<compile_context>
chip_gen: v5e
topology: v5e:2x2
jax: 0.10.0
libtpu: 0.0.40
codegen_flags: <defaults>
</compile_context>

<pallas_src>
import functools

import jax
import jax.numpy as jnp
from jax.experimental import pallas as pl
from jax.experimental.pallas import tpu as pltpu


# TODO(synk): pretrained torchvision VGG19 weights are not reproducible here;
# a small deterministic VGG-style backbone with the same structural pattern
# (conv3x3+ReLU blocks, 2x2 maxpool, classifier with last Linear removed) is used.
CNN_CFG = [(3, 8), (8, 8), "M", (8, 16), (16, 16), "M"]
CLS_HIDDEN = 32
EMBED_SIZE = 32
IMG_HW = 16


# ---------------------------------------------------------------------------
# The fused kernel
# ---------------------------------------------------------------------------
def _encoder_kernel(x_ref,
                    w1_ref, b1_ref, w2_ref, b2_ref,
                    w3_ref, b3_ref, w4_ref, b4_ref,
                    cw1_ref, cb1_ref, cw2_ref, cb2_ref,
                    fcw_ref, fcb_ref,
                    o_ref,
                    pad1, pad2, pcol, pool_buf, flat,
                    *, use_abs, no_imgnorm):
    n = x_ref.shape[0]

    # Zero the padded scratch buffers once: only the 1-pixel halo must stay zero,
    # the interiors are fully overwritten below.
    pad1[...] = jnp.zeros(pad1.shape, pad1.dtype)
    pad2[...] = jnp.zeros(pad2.shape, pad2.dtype)

    def set_interior(pad_ref, act):
        _, h, w, c = act.shape
        pad_ref[:, 1:h + 1, 1:w + 1, :c] = act

    def conv3x3_relu(pad_ref, h, w, w_ref, b_ref):
        """3x3 'same' conv + bias + ReLU as ONE im2col matmul (K = 9*Cin)."""
        cin = w_ref.shape[0] // 9
        cout = w_ref.shape[1]
        rows = n * h * w
        k = 9 * cin
        # Build the im2col buffer once in VMEM scratch (single MXU contraction).
        for kh in range(3):
            for kw in range(3):
                t = kh * 3 + kw
                tap = pad_ref[:, kh:kh + h, kw:kw + w, :cin]          # (n,h,w,cin)
                pcol[0:rows, t * cin:(t + 1) * cin] = tap.reshape(rows, cin)
        y = jnp.dot(pcol[0:rows, 0:k], w_ref[...],
                    preferred_element_type=jnp.float32)
        y = jnp.maximum(y + b_ref[...], 0.0)
        return y.reshape(n, h, w, cout)

    def pool_rows(act):
        """Max over adjacent row pairs: (n,h,w,c) -> (n,h//2,w,c)."""
        _, h, w, c = act.shape
        a = act.reshape(n, h // 2, 2, w, c)      # leading-dims-only regroup
        return jnp.maximum(a[:, :, 0], a[:, :, 1])

    # ---- conv block 1 @ 16x16 ---------------------------------------------
    set_interior(pad1, x_ref[...])                                    # Cin = 3
    y = conv3x3_relu(pad1, IMG_HW, IMG_HW, w1_ref, b1_ref)            # (n,16,16,8)
    set_interior(pad1, y)
    y = conv3x3_relu(pad1, IMG_HW, IMG_HW, w2_ref, b2_ref)            # (n,16,16,8)

    # ---- 2x2 max pool, written directly into the next conv's padded scratch
    y = pool_rows(y)                                                  # (n,8,16,8)
    h2 = IMG_HW // 2
    c2 = y.shape[-1]
    for wj in range(h2):
        col = jnp.maximum(y[:, :, 2 * wj:2 * wj + 1, :],
                          y[:, :, 2 * wj + 1:2 * wj + 2, :])          # (n,8,1,8)
        pad2[:, 1:h2 + 1, 1 + wj:2 + wj, :c2] = col

    # ---- conv block 2 @ 8x8 -------------------------------------------------
    y = conv3x3_relu(pad2, h2, h2, w3_ref, b3_ref)                    # (n,8,8,16)
    set_interior(pad2, y)
    y = conv3x3_relu(pad2, h2, h2, w4_ref, b4_ref)                    # (n,8,8,16)

    # ---- 2x2 max pool + flatten (NHWC order; NCHW permutation folded into cw1)
    y = pool_rows(y)                                                  # (n,4,8,16)
    h4 = h2 // 2
    c4 = y.shape[-1]
    for wj in range(h4):
        col = jnp.maximum(y[:, :, 2 * wj:2 * wj + 1, :],
                          y[:, :, 2 * wj + 1:2 * wj + 2, :])          # (n,4,1,16)
        pool_buf[:, 0:h4, wj:wj + 1, :] = col
    for hi in range(h4):
        for wi in range(h4):
            s = hi * h4 + wi
            flat[:, s * c4:(s + 1) * c4] = pool_buf[:, hi, wi, :]
    feats = flat[...]                                                 # (n,256)

    # ---- classifier (last VGG Linear stripped; dropout = identity) ----------
    # TODO(synk): Dropout layers are treated as identity (inference semantics).
    feats = jnp.maximum(
        jnp.dot(feats, cw1_ref[...], preferred_element_type=jnp.float32)
        + cb1_ref[...], 0.0)
    feats = jnp.maximum(
        jnp.dot(feats, cw2_ref[...], preferred_element_type=jnp.float32)
        + cb2_ref[...], 0.0)

    # ---- l2norm -> fc -> l2norm (-> abs) ------------------------------------
    # pl.reciprocal keeps the division off the VALU; approx=False to stay
    # bit-close to the f32 reference (approx=True is cheaper if tolerance allows).
    inv = pl.reciprocal(
        jnp.sqrt(jnp.sum(feats * feats, axis=1, keepdims=True)) + 1e-12,
        approx=False)
    feats = feats * inv
    out = jnp.dot(feats, fcw_ref[...],
                  preferred_element_type=jnp.float32) + fcb_ref[...]
    if not no_imgnorm:
        inv2 = pl.reciprocal(
            jnp.sqrt(jnp.sum(out * out, axis=1, keepdims=True)) + 1e-12,
            approx=False)
        out = out * inv2
    if use_abs:
        out = jnp.abs(out)
    o_ref[...] = out


# ---------------------------------------------------------------------------
# Parameters
# ---------------------------------------------------------------------------
def init_params(key):
    params = {"convs": [], "cls": [], "fc": None}
    for layer in CNN_CFG:
        if layer == "M":
            continue
        cin, cout = layer
        key, kw, kb = jax.random.split(key, 3)
        w = jax.random.normal(kw, (3, 3, cin, cout), jnp.float32) * 0.1
        b = jax.random.normal(kb, (1, cout), jnp.float32) * 0.01
        params["convs"].append((w, b))
    flat_dim = (IMG_HW // 4) * (IMG_HW // 4) * CNN_CFG[-2][1]  # 4*4*16
    for din, dout in [(flat_dim, CLS_HIDDEN), (CLS_HIDDEN, CLS_HIDDEN)]:
        key, kw = jax.random.split(key)
        w = jax.random.normal(kw, (din, dout), jnp.float32) * 0.05
        b = jnp.zeros((1, dout), jnp.float32)
        params["cls"].append((w, b))
    # self.fc: Xavier-uniform exactly as in EncoderImageFull.init_weights
    r = (6.0 ** 0.5) / ((CLS_HIDDEN + EMBED_SIZE) ** 0.5)
    key, kw = jax.random.split(key)
    fcw = jax.random.uniform(kw, (CLS_HIDDEN, EMBED_SIZE), jnp.float32, -r, r)
    fcb = jnp.zeros((1, EMBED_SIZE), jnp.float32)
    params["fc"] = (fcw, fcb)
    return params


def prepare_params(params):
    """One-time repack into the layout the fused kernel expects."""
    prepped = []
    for w, b in params["convs"]:
        kh, kw, cin, cout = w.shape
        prepped += [w.reshape(kh * kw * cin, cout), b]   # im2col weight (9*Cin, Cout)
    (w1, b1), (w2, b2) = params["cls"]
    # Fold torch's NCHW x.view(N, -1) ordering into the first classifier weight
    # so the kernel flattens in its native NHWC order with no runtime transpose.
    c_out = CNN_CFG[-2][1]
    hw = IMG_HW // 4
    w1p = (w1.reshape(c_out, hw, hw, -1)
             .transpose(1, 2, 0, 3)
             .reshape(hw * hw * c_out, -1))
    prepped += [w1p, b1, w2, b2]
    fcw, fcb = params["fc"]
    prepped += [fcw, fcb]
    return prepped


# ---------------------------------------------------------------------------
# Forward: one pallas_call, everything VMEM-resident
# ---------------------------------------------------------------------------
@functools.partial(jax.jit, static_argnames=("use_abs", "no_imgnorm"))
def encoder_image_full_forward(images_nchw, prepped_params,
                               use_abs=False, no_imgnorm=False):
    x = jnp.transpose(images_nchw, (0, 2, 3, 1)).astype(jnp.float32)  # NCHW -> NHWC
    n = x.shape[0]
    args = [x] + list(prepped_params)

    def full_spec(a):
        nd = a.ndim
        return pl.BlockSpec(a.shape, lambda i, _nd=nd: (0,) * _nd)

    hp = IMG_HW + 2
    h2p = IMG_HW // 2 + 2
    scratch_shapes = [
        pltpu.VMEM((n, hp, hp, 8), jnp.float32),                  # padded acts, 16x16
        pltpu.VMEM((n, h2p, h2p, 16), jnp.float32),               # padded acts, 8x8
        pltpu.VMEM((n * IMG_HW * IMG_HW, 9 * 16), jnp.float32),   # im2col buffer
        pltpu.VMEM((n, 4, 4, 16), jnp.float32),                   # pooled 4x4 map
        pltpu.VMEM((n, 4 * 4 * 16), jnp.float32),                 # flattened features
    ]

    return pl.pallas_call(
        functools.partial(_encoder_kernel, use_abs=use_abs, no_imgnorm=no_imgnorm),
        out_shape=jax.ShapeDtypeStruct((n, EMBED_SIZE), jnp.float32),
        grid=(1,),
        in_specs=[full_spec(a) for a in args],
        out_specs=pl.BlockSpec((n, EMBED_SIZE), lambda i: (0, 0)),
        scratch_shapes=scratch_shapes,
        compiler_params=pltpu.CompilerParams(
            dimension_semantics=("arbitrary",)),
    )(*args)


# ---------------------------------------------------------------------------
# Pure-JAX reference (correctness check only)
# ---------------------------------------------------------------------------
def _reference_forward(images_nchw, params, use_abs=False, no_imgnorm=False):
    x = jnp.transpose(images_nchw, (0, 2, 3, 1)).astype(jnp.float32)
    ci = 0
    for layer in CNN_CFG:
        if layer == "M":
            n, h, w, c = x.shape
            x = jnp.max(x.reshape(n, h // 2, 2, w // 2, 2, c), axis=(2, 4))
        else:
            wgt, b = params["convs"][ci]
            x = jax.lax.conv_general_dilated(
                x, wgt, (1, 1), "SAME",
                dimension_numbers=("NHWC", "HWIO", "NHWC"),
                precision=jax.lax.Precision.HIGHEST) + b.reshape(1, 1, 1, -1)
            x = jnp.maximum(x, 0.0)
            ci += 1
    n = x.shape[0]
    feats = jnp.transpose(x, (0, 3, 1, 2)).reshape(n, -1)   # torch NCHW flatten
    for wgt, b in params["cls"]:
        feats = jnp.maximum(feats @ wgt + b, 0.0)
    norm = jnp.sqrt(jnp.sum(feats ** 2, axis=1, keepdims=True)) + 1e-12
    feats = feats / norm
    fcw, fcb = params["fc"]
    feats = feats @ fcw + fcb
    if not no_imgnorm:
        norm = jnp.sqrt(jnp.sum(feats ** 2, axis=1, keepdims=True)) + 1e-12
        feats = feats / norm
    if use_abs:
        feats = jnp.abs(feats)
    return feats


if __name__ == "__main__":
    key = jax.random.PRNGKey(0)
    key, kimg = jax.random.split(key)
    images = jax.random.normal(kimg, (2, 3, IMG_HW, IMG_HW), jnp.float32)  # NCHW
    params = init_params(key)
    prepped = prepare_params(params)

    out = encoder_image_full_forward(images, prepped)
    out = jax.block_until_ready(out)

    ref = _reference_forward(images, params)
    assert out.shape == (2, EMBED_SIZE), out.shape
    assert bool(jnp.allclose(out, ref, atol=2e-3, rtol=2e-3)), "mismatch vs reference"
    print("KERNEL_OK")
</pallas_src>

<mosaic_0001>
module attributes {stable_mosaic.version = 11 : i64} {
  func.func @_encoder_kernel(%arg0: i32, %arg1: memref<2x16x16x3xf32, #tpu.memory_space<vmem>>, %arg2: memref<27x8xf32, #tpu.memory_space<vmem>>, %arg3: memref<1x8xf32, #tpu.memory_space<vmem>>, %arg4: memref<72x8xf32, #tpu.memory_space<vmem>>, %arg5: memref<1x8xf32, #tpu.memory_space<vmem>>, %arg6: memref<72x16xf32, #tpu.memory_space<vmem>>, %arg7: memref<1x16xf32, #tpu.memory_space<vmem>>, %arg8: memref<144x16xf32, #tpu.memory_space<vmem>>, %arg9: memref<1x16xf32, #tpu.memory_space<vmem>>, %arg10: memref<256x32xf32, #tpu.memory_space<vmem>>, %arg11: memref<1x32xf32, #tpu.memory_space<vmem>>, %arg12: memref<32x32xf32, #tpu.memory_space<vmem>>, %arg13: memref<1x32xf32, #tpu.memory_space<vmem>>, %arg14: memref<32x32xf32, #tpu.memory_space<vmem>>, %arg15: memref<1x32xf32, #tpu.memory_space<vmem>>, %arg16: memref<2x32xf32, #tpu.memory_space<vmem>>, %arg17: memref<2x18x18x8xf32, #tpu.memory_space<vmem>>, %arg18: memref<2x10x10x16xf32, #tpu.memory_space<vmem>>, %arg19: memref<512x144xf32, #tpu.memory_space<vmem>>, %arg20: memref<2x4x4x16xf32, #tpu.memory_space<vmem>>, %arg21: memref<2x256xf32, #tpu.memory_space<vmem>>) attributes {dimension_semantics = [#tpu.dimension_semantics<arbitrary>], iteration_bounds = array<i64: 1>, scalar_prefetch = 0 : i64, scratch_operands = 5 : i64, tpu.core_type = #tpu.core_type<tc>, window_params = [{pipeline_mode = #tpu.pipeline_mode<synchronous>, transform_indices = @transform_0, window_bounds = array<i64: 2, 16, 16, 3>}, {pipeline_mode = #tpu.pipeline_mode<synchronous>, transform_indices = @transform_1, window_bounds = array<i64: 27, 8>}, {pipeline_mode = #tpu.pipeline_mode<synchronous>, transform_indices = @transform_2, window_bounds = array<i64: 1, 8>}, {pipeline_mode = #tpu.pipeline_mode<synchronous>, transform_indices = @transform_3, window_bounds = array<i64: 72, 8>}, {pipeline_mode = #tpu.pipeline_mode<synchronous>, transform_indices = @transform_4, window_bounds = array<i64: 1, 8>}, {pipeline_mode = #tpu.pipeline_mode<synchronous>, transform_indices = @transform_5, window_bounds = array<i64: 72, 16>}, {pipeline_mode = #tpu.pipeline_mode<synchronous>, transform_indices = @transform_6, window_bounds = array<i64: 1, 16>}, {pipeline_mode = #tpu.pipeline_mode<synchronous>, transform_indices = @transform_7, window_bounds = array<i64: 144, 16>}, {pipeline_mode = #tpu.pipeline_mode<synchronous>, transform_indices = @transform_8, window_bounds = array<i64: 1, 16>}, {pipeline_mode = #tpu.pipeline_mode<synchronous>, transform_indices = @transform_9, window_bounds = array<i64: 256, 32>}, {pipeline_mode = #tpu.pipeline_mode<synchronous>, transform_indices = @transform_10, window_bounds = array<i64: 1, 32>}, {pipeline_mode = #tpu.pipeline_mode<synchronous>, transform_indices = @transform_11, window_bounds = array<i64: 32, 32>}, {pipeline_mode = #tpu.pipeline_mode<synchronous>, transform_indices = @transform_12, window_bounds = array<i64: 1, 32>}, {pipeline_mode = #tpu.pipeline_mode<synchronous>, transform_indices = @transform_13, window_bounds = array<i64: 32, 32>}, {pipeline_mode = #tpu.pipeline_mode<synchronous>, transform_indices = @transform_14, window_bounds = array<i64: 1, 32>}, {pipeline_mode = #tpu.pipeline_mode<synchronous>, transform_indices = @transform_15, window_bounds = array<i64: 2, 32>}]} {
    %cst = arith.constant 0.000000e+00 : f32
    %0 = vector.broadcast %cst : f32 to vector<2x18x18x8xf32>
    %c0 = arith.constant 0 : index
    %c0_0 = arith.constant 0 : index
    %c0_1 = arith.constant 0 : index
    %c0_2 = arith.constant 0 : index
    %1 = vector.load %arg17[%c0, %c0_0, %c0_1, %c0_2] : memref<2x18x18x8xf32, #tpu.memory_space<vmem>>, vector<2x18x18x8xf32>
    tpu.vector_store %arg17[%c0, %c0_0, %c0_1, %c0_2], %0 {strides = array<i32>} : memref<2x18x18x8xf32, #tpu.memory_space<vmem>>, vector<2x18x18x8xf32>,
    %cst_3 = arith.constant 0.000000e+00 : f32
    %2 = vector.broadcast %cst_3 : f32 to vector<2x10x10x16xf32>
    %c0_4 = arith.constant 0 : index
    %c0_5 = arith.constant 0 : index
    %c0_6 = arith.constant 0 : index
    %c0_7 = arith.constant 0 : index
    %3 = vector.load %arg18[%c0_4, %c0_5, %c0_6, %c0_7] : memref<2x10x10x16xf32, #tpu.memory_space<vmem>>, vector<2x10x10x16xf32>
    tpu.vector_store %arg18[%c0_4, %c0_5, %c0_6, %c0_7], %2 {strides = array<i32>} : memref<2x10x10x16xf32, #tpu.memory_space<vmem>>, vector<2x10x10x16xf32>,
    %c0_8 = arith.constant 0 : index
    %c0_9 = arith.constant 0 : index
    %c0_10 = arith.constant 0 : index
    %c0_11 = arith.constant 0 : index
    %4 = vector.load %arg1[%c0_8, %c0_9, %c0_10, %c0_11] : memref<2x16x16x3xf32, #tpu.memory_space<vmem>>, vector<2x16x16x3xf32>
    %c0_12 = arith.constant 0 : index
    %c1 = arith.constant 1 : index
    %c1_13 = arith.constant 1 : index
    %c0_14 = arith.constant 0 : index
    %5 = vector.load %arg17[%c0_12, %c1, %c1_13, %c0_14] : memref<2x18x18x8xf32, #tpu.memory_space<vmem>>, vector<2x16x16x3xf32>
    tpu.vector_store %arg17[%c0_12, %c1, %c1_13, %c0_14], %4 {strides = array<i32>} : memref<2x18x18x8xf32, #tpu.memory_space<vmem>>, vector<2x16x16x3xf32>,
    %c0_15 = arith.constant 0 : index
    %c0_16 = arith.constant 0 : index
    %c0_17 = arith.constant 0 : index
    %c0_18 = arith.constant 0 : index
    %6 = vector.load %arg17[%c0_15, %c0_16, %c0_17, %c0_18] : memref<2x18x18x8xf32, #tpu.memory_space<vmem>>, vector<2x16x16x3xf32>
    %7 = vector.shape_cast %6 : vector<2x16x16x3xf32> to vector<512x3xf32>
    %c0_19 = arith.constant 0 : index
    %c0_20 = arith.constant 0 : index
    %8 = vector.load %arg19[%c0_19, %c0_20] : memref<512x144xf32, #tpu.memory_space<vmem>>, vector<512x3xf32>
    tpu.vector_store %arg19[%c0_19, %c0_20], %7 {strides = array<i32>} : memref<512x144xf32, #tpu.memory_space<vmem>>, vector<512x3xf32>,
    %c0_21 = arith.constant 0 : index
    %c0_22 = arith.constant 0 : index
    %c1_23 = arith.constant 1 : index
    %c0_24 = arith.constant 0 : index
    %9 = vector.load %arg17[%c0_21, %c0_22, %c1_23, %c0_24] : memref<2x18x18x8xf32, #tpu.memory_space<vmem>>, vector<2x16x16x3xf32>
    %10 = vector.shape_cast %9 : vector<2x16x16x3xf32> to vector<512x3xf32>
    %c0_25 = arith.constant 0 : index
    %c3 = arith.constant 3 : index
    %11 = vector.load %arg19[%c0_25, %c3] : memref<512x144xf32, #tpu.memory_space<vmem>>, vector<512x3xf32>
    tpu.vector_store %arg19[%c0_25, %c3], %10 {strides = array<i32>} : memref<512x144xf32, #tpu.memory_space<vmem>>, vector<512x3xf32>,
    %c0_26 = arith.constant 0 : index
    %c0_27 = arith.constant 0 : index
    %c2 = arith.constant 2 : index
    %c0_28 = arith.constant 0 : index
    %12 = vector.load %arg17[%c0_26, %c0_27, %c2, %c0_28] : memref<2x18x18x8xf32, #tpu.memory_space<vmem>>, vector<2x16x16x3xf32>
    %13 = vector.shape_cast %12 : vector<2x16x16x3xf32> to vector<512x3xf32>
    %c0_29 = arith.constant 0 : index
    %c6 = arith.constant 6 : index
    %14 = vector.load %arg19[%c0_29, %c6] : memref<512x144xf32, #tpu.memory_space<vmem>>, vector<512x3xf32>
    tpu.vector_store %arg19[%c0_29, %c6], %13 {strides = array<i32>} : memref<512x144xf32, #tpu.memory_space<vmem>>, vector<512x3xf32>,
    %c0_30 = arith.constant 0 : index
    %c1_31 = arith.constant 1 : index
    %c0_32 = arith.constant 0 : index
    %c0_33 = arith.constant 0 : index
    %15 = vector.load %arg17[%c0_30, %c1_31, %c0_32, %c0_33] : memref<2x18x18x8xf32, #tpu.memory_space<vmem>>, vector<2x16x16x3xf32>
    %16 = vector.shape_cast %15 : vector<2x16x16x3xf32> to vector<512x3xf32>
    %c0_34 = arith.constant 0 : index
    %c9 = arith.constant 9 : index
    %17 = vector.load %arg19[%c0_34, %c9] : memref<512x144xf32, #tpu.memory_space<vmem>>, vector<512x3xf32>
    tpu.vector_store %arg19[%c0_34, %c9], %16 {strides = array<i32>} : memref<512x144xf32, #tpu.memory_space<vmem>>, vector<512x3xf32>,
    %c0_35 = arith.constant 0 : index
    %c1_36 = arith.constant 1 : index
    %c1_37 = arith.constant 1 : index
    %c0_38 = arith.constant 0 : index
    %18 = vector.load %arg17[%c0_35, %c1_36, %c1_37, %c0_38] : memref<2x18x18x8xf32, #tpu.memory_space<vmem>>, vector<2x16x16x3xf32>
    %19 = vector.shape_cast %18 : vector<2x16x16x3xf32> to vector<512x3xf32>
    %c0_39 = arith.constant 0 : index
    %c12 = arith.constant 12 : index
    %20 = vector.load %arg19[%c0_39, %c12] : memref<512x144xf32, #tpu.memory_space<vmem>>, vector<512x3xf32>
    tpu.vector_store %arg19[%c0_39, %c12], %19 {strides = array<i32>} : memref<512x144xf32, #tpu.memory_space<vmem>>, vector<512x3xf32>,
    %c0_40 = arith.constant 0 : index
    %c1_41 = arith.constant 1 : index
    %c2_42 = arith.constant 2 : index
    %c0_43 = arith.constant 0 : index
    %21 = vector.load %arg17[%c0_40, %c1_41, %c2_42, %c0_43] : memref<2x18x18x8xf32, #tpu.memory_space<vmem>>, vector<2x16x16x3xf32>
    %22 = vector.shape_cast %21 : vector<2x16x16x3xf32> to vector<512x3xf32>
    %c0_44 = arith.constant 0 : index
    %c15 = arith.constant 15 : index
    %23 = vector.load %arg19[%c0_44, %c15] : memref<512x144xf32, #tpu.memory_space<vmem>>, vector<512x3xf32>
    tpu.vector_store %arg19[%c0_44, %c15], %22 {strides = array<i32>} : memref<512x144xf32, #tpu.memory_space<vmem>>, vector<512x3xf32>,
    %c0_45 = arith.constant 0 : index
    %c2_46 = arith.constant 2 : index
    %c0_47 = arith.constant 0 : index
    %c0_48 = arith.constant 0 : index
    %24 = vector.load %arg17[%c0_45, %c2_46, %c0_47, %c0_48] : memref<2x18x18x8xf32, #tpu.memory_space<vmem>>, vector<2x16x16x3xf32>
    %25 = vector.shape_cast %24 : vector<2x16x16x3xf32> to vector<512x3xf32>
    %c0_49 = arith.constant 0 : index
    %c18 = arith.constant 18 : index
    %26 = vector.load %arg19[%c0_49, %c18] : memref<512x144xf32, #tpu.memory_space<vmem>>, vector<512x3xf32>
    tpu.vector_store %arg19[%c0_49, %c18], %25 {strides = array<i32>} : memref<512x144xf32, #tpu.memory_space<vmem>>, vector<512x3xf32>,
    %c0_50 = arith.constant 0 : index
    %c2_51 = arith.constant 2 : index
    %c1_52 = arith.constant 1 : index
    %c0_53 = arith.constant 0 : index
    %27 = vector.load %arg17[%c0_50, %c2_51, %c1_52, %c0_53] : memref<2x18x18x8xf32, #tpu.memory_space<vmem>>, vector<2x16x16x3xf32>
    %28 = vector.shape_cast %27 : vector<2x16x16x3xf32> to vector<512x3xf32>
    %c0_54 = arith.constant 0 : index
    %c21 = arith.constant 21 : index
    %29 = vector.load %arg19[%c0_54, %c21] : memref<512x144xf32, #tpu.memory_space<vmem>>, vector<512x3xf32>
    tpu.vector_store %arg19[%c0_54, %c21], %28 {strides = array<i32>} : memref<512x144xf32, #tpu.memory_space<vmem>>, vector<512x3xf32>,
    %c0_55 = arith.constant 0 : index
    %c2_56 = arith.constant 2 : index
    %c2_57 = arith.constant 2 : index
    %c0_58 = arith.constant 0 : index
    %30 = vector.load %arg17[%c0_55, %c2_56, %c2_57, %c0_58] : memref<2x18x18x8xf32, #tpu.memory_space<vmem>>, vector<2x16x16x3xf32>
    %31 = vector.shape_cast %30 : vector<2x16x16x3xf32> to vector<512x3xf32>
    %c0_59 = arith.constant 0 : index
    %c24 = arith.constant 24 : index
    %32 = vector.load %arg19[%c0_59, %c24] : memref<512x144xf32, #tpu.memory_space<vmem>>, vector<512x3xf32>
    tpu.vector_store %arg19[%c0_59, %c24], %31 {strides = array<i32>} : memref<512x144xf32, #tpu.memory_space<vmem>>, vector<512x3xf32>,
    %c0_60 = arith.constant 0 : index
    %c0_61 = arith.constant 0 : index
    %33 = vector.load %arg19[%c0_60, %c0_61] : memref<512x144xf32, #tpu.memory_space<vmem>>, vector<512x27xf32>
    %c0_62 = arith.constant 0 : index
    %c0_63 = arith.constant 0 : index
    %34 = vector.load %arg2[%c0_62, %c0_63] : memref<27x8xf32, #tpu.memory_space<vmem>>, vector<27x8xf32>
    %cst_64 = arith.constant dense<0.000000e+00> : vector<512x8xf32>
    %35 = tpu.matmul %33, %34, %cst_64 {dimension_numbers = #tpu.dot_dimension_numbers<[1], [0], [0], [1], [0, 0, 1, 1], [], []>} : vector<512x27xf32>, vector<27x8xf32>, vector<512x8xf32> -> vector<512x8xf32>
    %c0_65 = arith.constant 0 : index
    %c0_66 = arith.constant 0 : index
    %36 = vector.load %arg3[%c0_65, %c0_66] : memref<1x8xf32, #tpu.memory_space<vmem>>, vector<1x8xf32>
    %37 = vector.broadcast %36 : vector<1x8xf32> to vector<512x8xf32>
    %38 = arith.addf %35, %37 : vector<512x8xf32>
    %cst_67 = arith.constant 0.000000e+00 : f32
    %39 = vector.broadcast %cst_67 : f32 to vector<512x8xf32>
    %40 = arith.maximumf %38, %39 : vector<512x8xf32>
    %41 = vector.shape_cast %40 : vector<512x8xf32> to vector<2x16x16x8xf32>
    %c0_68 = arith.constant 0 : index
    %c1_69 = arith.constant 1 : index
    %c1_70 = arith.constant 1 : index
    %c0_71 = arith.constant 0 : index
    %42 = vector.load %arg17[%c0_68, %c1_69, %c1_70, %c0_71] : memref<2x18x18x8xf32, #tpu.memory_space<vmem>>, vector<2x16x16x8xf32>
    tpu.vector_store %arg17[%c0_68, %c1_69, %c1_70, %c0_71], %41 {strides = array<i32>} : memref<2x18x18x8xf32, #tpu.memory_space<vmem>>, vector<2x16x16x8xf32>,
    %c0_72 = arith.constant 0 : index
    %c0_73 = arith.constant 0 : index
    %c0_74 = arith.constant 0 : index
    %c0_75 = arith.constant 0 : index
    %43 = vector.load %arg17[%c0_72, %c0_73, %c0_74, %c0_75] : memref<2x18x18x8xf32, #tpu.memory_space<vmem>>, vector<2x16x16x8xf32>
    %44 = vector.shape_cast %43 : vector<2x16x16x8xf32> to vector<512x8xf32>
    %c0_76 = arith.constant 0 : index
    %c0_77 = arith.constant 0 : index
    %45 = vector.load %arg19[%c0_76, %c0_77] : memref<512x144xf32, #tpu.memory_space<vmem>>, vector<512x8xf32>
    tpu.vector_store %arg19[%c0_76, %c0_77], %44 {strides = array<i32>} : memref<512x144xf32, #tpu.memory_space<vmem>>, vector<512x8xf32>,
    %c0_78 = arith.constant 0 : index
    %c0_79 = arith.constant 0 : index
    %c1_80 = arith.constant 1 : index
    %c0_81 = arith.constant 0 : index
    %46 = vector.load %arg17[%c0_78, %c0_79, %c1_80, %c0_81] : memref<2x18x18x8xf32, #tpu.memory_space<vmem>>, vector<2x16x16x8xf32>
    %47 = vector.shape_cast %46 : vector<2x16x16x8xf32> to vector<512x8xf32>
    %c0_82 = arith.constant 0 : index
    %c8 = arith.constant 8 : index
    %48 = vector.load %arg19[%c0_82, %c8] : memref<512x144xf32, #tpu.memory_space<vmem>>, vector<512x8xf32>
    tpu.vector_store %arg19[%c0_82, %c8], %47 {strides = array<i32>} : memref<512x144xf32, #tpu.memory_space<vmem>>, vector<512x8xf32>,
    %c0_83 = arith.constant 0 : index
    %c0_84 = arith.constant 0 : index
    %c2_85 = arith.constant 2 : index
    %c0_86 = arith.constant 0 : index
    %49 = vector.load %arg17[%c0_83, %c0_84, %c2_85, %c0_86] : memref<2x18x18x8xf32, #tpu.memory_space<vmem>>, vector<2x16x16x8xf32>
    %50 = vector.shape_cast %49 : vector<2x16x16x8xf32> to vector<512x8xf32>
    %c0_87 = arith.constant 0 : index
    %c16 = arith.constant 16 : index
    %51 = vector.load %arg19[%c0_87, %c16] : memref<512x144xf32, #tpu.memory_space<vmem>>, vector<512x8xf32>
    tpu.vector_store %arg19[%c0_87, %c16], %50 {strides = array<i32>} : memref<512x144xf32, #tpu.memory_space<vmem>>, vector<512x8xf32>,
    %c0_88 = arith.constant 0 : index
    %c1_89 = arith.constant 1 : index
    %c0_90 = arith.constant 0 : index
    %c0_91 = arith.constant 0 : index
    %52 = vector.load %arg17[%c0_88, %c1_89, %c0_90, %c0_91] : memref<2x18x18x8xf32, #tpu.memory_space<vmem>>, vector<2x16x16x8xf32>
    %53 = vector.shape_cast %52 : vector<2x16x16x8xf32> to vector<512x8xf32>
    %c0_92 = arith.constant 0 : index
    %c24_93 = arith.constant 24 : index
    %54 = vector.load %arg19[%c0_92, %c24_93] : memref<512x144xf32, #tpu.memory_space<vmem>>, vector<512x8xf32>
    tpu.vector_store %arg19[%c0_92, %c24_93], %53 {strides = array<i32>} : memref<512x144xf32, #tpu.memory_space<vmem>>, vector<512x8xf32>,
    %c0_94 = arith.constant 0 : index
    %c1_95 = arith.constant 1 : index
    %c1_96 = arith.constant 1 : index
    %c0_97 = arith.constant 0 : index
    %55 = vector.load %arg17[%c0_94, %c1_95, %c1_96, %c0_97] : memref<2x18x18x8xf32, #tpu.memory_space<vmem>>, vector<2x16x16x8xf32>
    %56 = vector.shape_cast %55 : vector<2x16x16x8xf32> to vector<512x8xf32>
    %c0_98 = arith.constant 0 : index
    %c32 = arith.constant 32 : index
    %57 = vector.load %arg19[%c0_98, %c32] : memref<512x144xf32, #tpu.memory_space<vmem>>, vector<512x8xf32>
    tpu.vector_store %arg19[%c0_98, %c32], %56 {strides = array<i32>} : memref<512x144xf32, #tpu.memory_space<vmem>>, vector<512x8xf32>,
    %c0_99 = arith.constant 0 : index
    %c1_100 = arith.constant 1 : index
    %c2_101 = arith.constant 2 : index
    %c0_102 = arith.constant 0 : index
    %58 = vector.load %arg17[%c0_99, %c1_100, %c2_101, %c0_102] : memref<2x18x18x8xf32, #tpu.memory_space<vmem>>, vector<2x16x16x8xf32>
    %59 = vector.shape_cast %58 : vector<2x16x16x8xf32> to vector<512x8xf32>
    %c0_103 = arith.constant 0 : index
    %c40 = arith.constant 40 : index
    %60 = vector.load %arg19[%c0_103, %c40] : memref<512x144xf32, #tpu.memory_space<vmem>>, vector<512x8xf32>
    tpu.vector_store %arg19[%c0_103, %c40], %59 {strides = array<i32>} : memref<512x144xf32, #tpu.memory_space<vmem>>, vector<512x8xf32>,
    %c0_104 = arith.constant 0 : index
    %c2_105 = arith.constant 2 : index
    %c0_106 = arith.constant 0 : index
    %c0_107 = arith.constant 0 : index
    %61 = vector.load %arg17[%c0_104, %c2_105, %c0_106, %c0_107] : memref<2x18x18x8xf32, #tpu.memory_space<vmem>>, vector<2x16x16x8xf32>
    %62 = vector.shape_cast %61 : vector<2x16x16x8xf32> to vector<512x8xf32>
    %c0_108 = arith.constant 0 : index
    %c48 = arith.constant 48 : index
    %63 = vector.load %arg19[%c0_108, %c48] : memref<512x144xf32, #tpu.memory_space<vmem>>, vector<512x8xf32>
    tpu.vector_store %arg19[%c0_108, %c48], %62 {strides = array<i32>} : memref<512x144xf32, #tpu.memory_space<vmem>>, vector<512x8xf32>,
    %c0_109 = arith.constant 0 : index
    %c2_110 = arith.constant 2 : index
    %c1_111 = arith.constant 1 : index
    %c0_112 = arith.constant 0 : index
    %64 = vector.load %arg17[%c0_109, %c2_110, %c1_111, %c0_112] : memref<2x18x18x8xf32, #tpu.memory_space<vmem>>, vector<2x16x16x8xf32>
    %65 = vector.shape_cast %64 : vector<2x16x16x8xf32> to vector<512x8xf32>
    %c0_113 = arith.constant 0 : index
    %c56 = arith.constant 56 : index
    %66 = vector.load %arg19[%c0_113, %c56] : memref<512x144xf32, #tpu.memory_space<vmem>>, vector<512x8xf32>
    tpu.vector_store %arg19[%c0_113, %c56], %65 {strides = array<i32>} : memref<512x144xf32, #tpu.memory_space<vmem>>, vector<512x8xf32>,
    %c0_114 = arith.constant 0 : index
    %c2_115 = arith.constant 2 : index
    %c2_116 = arith.constant 2 : index
    %c0_117 = arith.constant 0 : index
    %67 = vector.load %arg17[%c0_114, %c2_115, %c2_116, %c0_117] : memref<2x18x18x8xf32, #tpu.memory_space<vmem>>, vector<2x16x16x8xf32>
    %68 = vector.shape_cast %67 : vector<2x16x16x8xf32> to vector<512x8xf32>
    %c0_118 = arith.constant 0 : index
    %c64 = arith.constant 64 : index
    %69 = vector.load %arg19[%c0_118, %c64] : memref<512x144xf32, #tpu.memory_space<vmem>>, vector<512x8xf32>
    tpu.vector_store %arg19[%c0_118, %c64], %68 {strides = array<i32>} : memref<512x144xf32, #tpu.memory_space<vmem>>, vector<512x8xf32>,
    %c0_119 = arith.constant 0 : index
    %c0_120 = arith.constant 0 : index
    %70 = vector.load %arg19[%c0_119, %c0_120] : memref<512x144xf32, #tpu.memory_space<vmem>>, vector<512x72xf32>
    %c0_121 = arith.constant 0 : index
    %c0_122 = arith.constant 0 : index
    %71 = vector.load %arg4[%c0_121, %c0_122] : memref<72x8xf32, #tpu.memory_space<vmem>>, vector<72x8xf32>
    %cst_123 = arith.constant dense<0.000000e+00> : vector<512x8xf32>
    %72 = tpu.matmul %70, %71, %cst_123 {dimension_numbers = #tpu.dot_dimension_numbers<[1], [0], [0], [1], [0, 0, 1, 1], [], []>} : vector<512x72xf32>, vector<72x8xf32>, vector<512x8xf32> -> vector<512x8xf32>
    %c0_124 = arith.constant 0 : index
    %c0_125 = arith.constant 0 : index
    %73 = vector.load %arg5[%c0_124, %c0_125] : memref<1x8xf32, #tpu.memory_space<vmem>>, vector<1x8xf32>
    %74 = vector.broadcast %73 : vector<1x8xf32> to vector<512x8xf32>
    %75 = arith.addf %72, %74 : vector<512x8xf32>
    %cst_126 = arith.constant 0.000000e+00 : f32
    %76 = vector.broadcast %cst_126 : f32 to vector<512x8xf32>
    %77 = arith.maximumf %75, %76 : vector<512x8xf32>
    %78 = vector.shape_cast %77 : vector<512x8xf32> to vector<2x16x16x8xf32>
    %79 = vector.shape_cast %78 : vector<2x16x16x8xf32> to vector<2x8x2x16x8xf32>
    %80 = vector.extract_strided_slice %79 {offsets = [0, 0, 0, 0, 0], sizes = [2, 8, 1, 16, 8], strides = [1, 1, 1, 1, 1]} : vector<2x8x2x16x8xf32> to vector<2x8x1x16x8xf32>
    %81 = vector.shape_cast %80 : vector<2x8x1x16x8xf32> to vector<2x8x16x8xf32>
    %82 = vector.extract_strided_slice %79 {offsets = [0, 0, 1, 0, 0], sizes = [2, 8, 1, 16, 8], strides = [1, 1, 1, 1, 1]} : vector<2x8x2x16x8xf32> to vector<2x8x1x16x8xf32>
    %83 = vector.shape_cast %82 : vector<2x8x1x16x8xf32> to vector<2x8x16x8xf32>
    %84 = arith.maximumf %81, %83 : vector<2x8x16x8xf32>
    %85 = vector.extract_strided_slice %84 {offsets = [0, 0, 0, 0], sizes = [2, 8, 1, 8], strides = [1, 1, 1, 1]} : vector<2x8x16x8xf32> to vector<2x8x1x8xf32>
    %86 = vector.extract_strided_slice %84 {offsets = [0, 0, 1, 0], sizes = [2, 8, 1, 8], strides = [1, 1, 1, 1]} : vector<2x8x16x8xf32> to vector<2x8x1x8xf32>
    %87 = arith.maximumf %85, %86 : vector<2x8x1x8xf32>
    %c0_127 = arith.constant 0 : index
    %c1_128 = arith.constant 1 : index
    %c1_129 = arith.constant 1 : index
    %c0_130 = arith.constant 0 : index
    %88 = vector.load %arg18[%c0_127, %c1_128, %c1_129, %c0_130] : memref<2x10x10x16xf32, #tpu.memory_space<vmem>>, vector<2x8x1x8xf32>
    tpu.vector_store %arg18[%c0_127, %c1_128, %c1_129, %c0_130], %87 {strides = array<i32>} : memref<2x10x10x16xf32, #tpu.memory_space<vmem>>, vector<2x8x1x8xf32>,
    %89 = vector.extract_strided_slice %84 {offsets = [0, 0, 2, 0], sizes = [2, 8, 1, 8], strides = [1, 1, 1, 1]} : vector<2x8x16x8xf32> to vector<2x8x1x8xf32>
    %90 = vector.extract_strided_slice %84 {offsets = [0, 0, 3, 0], sizes = [2, 8, 1, 8], strides = [1, 1, 1, 1]} : vector<2x8x16x8xf32> to vector<2x8x1x8xf32>
    %91 = arith.maximumf %89, %90 : vector<2x8x1x8xf32>
    %c0_131 = arith.constant 0 : index
    %c1_132 = arith.constant 1 : index
    %c2_133 = arith.constant 2 : index
    %c0_134 = arith.constant 0 : index
    %92 = vector.load %arg18[%c0_131, %c1_132, %c2_133, %c0_134] : memref<2x10x10x16xf32, #tpu.memory_space<vmem>>, vector<2x8x1x8xf32>
    tpu.vector_store %arg18[%c0_131, %c1_132, %c2_133, %c0_134], %91 {strides = array<i32>} : memref<2x10x10x16xf32, #tpu.memory_space<vmem>>, vector<2x8x1x8xf32>,
    %93 = vector.extract_strided_slice %84 {offsets = [0, 0, 4, 0], sizes = [2, 8, 1, 8], strides = [1, 1, 1, 1]} : vector<2x8x16x8xf32> to vector<2x8x1x8xf32>
    %94 = vector.extract_strided_slice %84 {offsets = [0, 0, 5, 0], sizes = [2, 8, 1, 8], strides = [1, 1, 1, 1]} : vector<2x8x16x8xf32> to vector<2x8x1x8xf32>
    %95 = arith.maximumf %93, %94 : vector<2x8x1x8xf32>
    %c0_135 = arith.constant 0 : index
    %c1_136 = arith.constant 1 : index
    %c3_137 = arith.constant 3 : index
    %c0_138 = arith.constant 0 : index
    %96 = vector.load %arg18[%c0_135, %c1_136, %c3_137, %c0_138] : memref<2x10x10x16xf32, #tpu.memory_space<vmem>>, vector<2x8x1x8xf32>
    tpu.vector_store %arg18[%c0_135, %c1_136, %c3_137, %c0_138], %95 {strides = array<i32>} : memref<2x10x10x16xf32, #tpu.memory_space<vmem>>, vector<2x8x1x8xf32>,
    %97 = vector.extract_strided_slice %84 {offsets = [0, 0, 6, 0], sizes = [2, 8, 1, 8], strides = [1, 1, 1, 1]} : vector<2x8x16x8xf32> to vector<2x8x1x8xf32>
    %98 = vector.extract_strided_slice %84 {offsets = [0, 0, 7, 0], sizes = [2, 8, 1, 8], strides = [1, 1, 1, 1]} : vector<2x8x16x8xf32> to vector<2x8x1x8xf32>
    %99 = arith.maximumf %97, %98 : vector<2x8x1x8xf32>
    %c0_139 = arith.constant 0 : index
    %c1_140 = arith.constant 1 : index
    %c4 = arith.constant 4 : index
    %c0_141 = arith.constant 0 : index
    %100 = vector.load %arg18[%c0_139, %c1_140, %c4, %c0_141] : memref<2x10x10x16xf32, #tpu.memory_space<vmem>>, vector<2x8x1x8xf32>
    tpu.vector_store %arg18[%c0_139, %c1_140, %c4, %c0_141], %99 {strides = array<i32>} : memref<2x10x10x16xf32, #tpu.memory_space<vmem>>, vector<2x8x1x8xf32>,
    %101 = vector.extract_strided_slice %84 {offsets = [0, 0, 8, 0], sizes = [2, 8, 1, 8], strides = [1, 1, 1, 1]} : vector<2x8x16x8xf32> to vector<2x8x1x8xf32>
    %102 = vector.extract_strided_slice %84 {offsets = [0, 0, 9, 0], sizes = [2, 8, 1, 8], strides = [1, 1, 1, 1]} : vector<2x8x16x8xf32> to vector<2x8x1x8xf32>
    %103 = arith.maximumf %101, %102 : vector<2x8x1x8xf32>
    %c0_142 = arith.constant 0 : index
    %c1_143 = arith.constant 1 : index
    %c5 = arith.constant 5 : index
    %c0_144 = arith.constant 0 : index
    %104 = vector.load %arg18[%c0_142, %c1_143, %c5, %c0_144] : memref<2x10x10x16xf32, #tpu.memory_space<vmem>>, vector<2x8x1x8xf32>
    tpu.vector_store %arg18[%c0_142, %c1_143, %c5, %c0_144], %103 {strides = array<i32>} : memref<2x10x10x16xf32, #tpu.memory_space<vmem>>, vector<2x8x1x8xf32>,
    %105 = vector.extract_strided_slice %84 {offsets = [0, 0, 10, 0], sizes = [2, 8, 1, 8], strides = [1, 1, 1, 1]} : vector<2x8x16x8xf32> to vector<2x8x1x8xf32>
    %106 = vector.extract_strided_slice %84 {offsets = [0, 0, 11, 0], sizes = [2, 8, 1, 8], strides = [1, 1, 1, 1]} : vector<2x8x16x8xf32> to vector<2x8x1x8xf32>
    %107 = arith.maximumf %105, %106 : vector<2x8x1x8xf32>
    %c0_145 = arith.constant 0 : index
    %c1_146 = arith.constant 1 : index
    %c6_147 = arith.constant 6 : index
    %c0_148 = arith.constant 0 : index
    %108 = vector.load %arg18[%c0_145, %c1_146, %c6_147, %c0_148] : memref<2x10x10x16xf32, #tpu.memory_space<vmem>>, vector<2x8x1x8xf32>
    tpu.vector_store %arg18[%c0_145, %c1_146, %c6_147, %c0_148], %107 {strides = array<i32>} : memref<2x10x10x16xf32, #tpu.memory_space<vmem>>, vector<2x8x1x8xf32>,
    %109 = vector.extract_strided_slice %84 {offsets = [0, 0, 12, 0], sizes = [2, 8, 1, 8], strides = [1, 1, 1, 1]} : vector<2x8x16x8xf32> to vector<2x8x1x8xf32>
    %110 = vector.extract_strided_slice %84 {offsets = [0, 0, 13, 0], sizes = [2, 8, 1, 8], strides = [1, 1, 1, 1]} : vector<2x8x16x8xf32> to vector<2x8x1x8xf32>
    %111 = arith.maximumf %109, %110 : vector<2x8x1x8xf32>
    %c0_149 = arith.constant 0 : index
    %c1_150 = arith.constant 1 : index
    %c7 = arith.constant 7 : index
    %c0_151 = arith.constant 0 : index
    %112 = vector.load %arg18[%c0_149, %c1_150, %c7, %c0_151] : memref<2x10x10x16xf32, #tpu.memory_space<vmem>>, vector<2x8x1x8xf32>
    tpu.vector_store %arg18[%c0_149, %c1_150, %c7, %c0_151], %111 {strides = array<i32>} : memref<2x10x10x16xf32, #tpu.memory_space<vmem>>, vector<2x8x1x8xf32>,
    %113 = vector.extract_strided_slice %84 {offsets = [0, 0, 14, 0], sizes = [2, 8, 1, 8], strides = [1, 1, 1, 1]} : vector<2x8x16x8xf32> to vector<2x8x1x8xf32>
    %114 = vector.extract_strided_slice %84 {offsets = [0, 0, 15, 0], sizes = [2, 8, 1, 8], strides = [1, 1, 1, 1]} : vector<2x8x16x8xf32> to vector<2x8x1x8xf32>
    %115 = arith.maximumf %113, %114 : vector<2x8x1x8xf32>
    %c0_152 = arith.constant 0 : index
    %c1_153 = arith.constant 1 : index
    %c8_154 = arith.constant 8 : index
    %c0_155 = arith.constant 0 : index
    %116 = vector.load %arg18[%c0_152, %c1_153, %c8_154, %c0_155] : memref<2x10x10x16xf32, #tpu.memory_space<vmem>>, vector<2x8x1x8xf32>
    tpu.vector_store %arg18[%c0_152, %c1_153, %c8_154, %c0_155], %115 {strides = array<i32>} : memref<2x10x10x16xf32, #tpu.memory_space<vmem>>, vector<2x8x1x8xf32>,
    %c0_156 = arith.constant 0 : index
    %c0_157 = arith.constant 0 : index
    %c0_158 = arith.constant 0 : index
    %c0_159 = arith.constant 0 : index
    %117 = vector.load %arg18[%c0_156, %c0_157, %c0_158, %c0_159] : memref<2x10x10x16xf32, #tpu.memory_space<vmem>>, vector<2x8x8x8xf32>
    %118 = vector.shape_cast %117 : vector<2x8x8x8xf32> to vector<128x8xf32>
    %c0_160 = arith.constant 0 : index
    %c0_161 = arith.constant 0 : index
    %119 = vector.load %arg19[%c0_160, %c0_161] : memref<512x144xf32, #tpu.memory_space<vmem>>, vector<128x8xf32>
    tpu.vector_store %arg19[%c0_160, %c0_161], %118 {strides = array<i32>} : memref<512x144xf32, #tpu.memory_space<vmem>>, vector<128x8xf32>,
    %c0_162 = arith.constant 0 : index
    %c0_163 = arith.constant 0 : index
    %c1_164 = arith.constant 1 : index
    %c0_165 = arith.constant 0 : index
    %120 = vector.load %arg18[%c0_162, %c0_163, %c1_164, %c0_165] : memref<2x10x10x16xf32, #tpu.memory_space<vmem>>, vector<2x8x8x8xf32>
    %121 = vector.shape_cast %120 : vector<2x8x8x8xf32> to vector<128x8xf32>
    %c0_166 = arith.constant 0 : index
    %c8_167 = arith.constant 8 : index
    %122 = vector.load %arg19[%c0_166, %c8_167] : memref<512x144xf32, #tpu.memory_space<vmem>>, vector<128x8xf32>
    tpu.vector_store %arg19[%c0_166, %c8_167], %121 {strides = array<i32>} : memref<512x144xf32, #tpu.memory_space<vmem>>, vector<128x8xf32>,
    %c0_168 = arith.constant 0 : index
    %c0_169 = arith.constant 0 : index
    %c2_170 = arith.constant 2 : index
    %c0_171 = arith.constant 0 : index
    %123 = vector.load %arg18[%c0_168, %c0_169, %c2_170, %c0_171] : memref<2x10x10x16xf32, #tpu.memory_space<vmem>>, vector<2x8x8x8xf32>
    %124 = vector.shape_cast %123 : vector<2x8x8x8xf32> to vector<128x8xf32>
    %c0_172 = arith.constant 0 : index
    %c16_173 = arith.constant 16 : index
    %125 = vector.load %arg19[%c0_172, %c16_173] : memref<512x144xf32, #tpu.memory_space<vmem>>, vector<128x8xf32>
    tpu.vector_store %arg19[%c0_172, %c16_173], %124 {strides = array<i32>} : memref<512x144xf32, #tpu.memory_space<vmem>>, vector<128x8xf32>,
    %c0_174 = arith.constant 0 : index
    %c1_175 = arith.constant 1 : index
    %c0_176 = arith.constant 0 : index
    %c0_177 = arith.constant 0 : index
    %126 = vector.load %arg18[%c0_174, %c1_175, %c0_176, %c0_177] : memref<2x10x10x16xf32, #tpu.memory_space<vmem>>, vector<2x8x8x8xf32>
    %127 = vector.shape_cast %126 : vector<2x8x8x8xf32> to vector<128x8xf32>
    %c0_178 = arith.constant 0 : index
    %c24_179 = arith.constant 24 : index
    %128 = vector.load %arg19[%c0_178, %c24_179] : memref<512x144xf32, #tpu.memory_space<vmem>>, vector<128x8xf32>
    tpu.vector_store %arg19[%c0_178, %c24_179], %127 {strides = array<i32>} : memref<512x144xf32, #tpu.memory_space<vmem>>, vector<128x8xf32>,
    %c0_180 = arith.constant 0 : index
    %c1_181 = arith.constant 1 : index
    %c1_182 = arith.constant 1 : index
    %c0_183 = arith.constant 0 : index
    %129 = vector.load %arg18[%c0_180, %c1_181, %c1_182, %c0_183] : memref<2x10x10x16xf32, #tpu.memory_space<vmem>>, vector<2x8x8x8xf32>
    %130 = vector.shape_cast %129 : vector<2x8x8x8xf32> to vector<128x8xf32>
    %c0_184 = arith.constant 0 : index
    %c32_185 = arith.constant 32 : index
    %131 = vector.load %arg19[%c0_184, %c32_185] : memref<512x144xf32, #tpu.memory_space<vmem>>, vector<128x8xf32>
    tpu.vector_store %arg19[%c0_184, %c32_185], %130 {strides = array<i32>} : memref<512x144xf32, #tpu.memory_space<vmem>>, vector<128x8xf32>,
    %c0_186 = arith.constant 0 : index
    %c1_187 = arith.constant 1 : index
    %c2_188 = arith.constant 2 : index
    %c0_189 = arith.constant 0 : index
    %132 = vector.load %arg18[%c0_186, %c1_187, %c2_188, %c0_189] : memref<2x10x10x16xf32, #tpu.memory_space<vmem>>, vector<2x8x8x8xf32>
    %133 = vector.shape_cast %132 : vector<2x8x8x8xf32> to vector<128x8xf32>
    %c0_190 = arith.constant 0 : index
    %c40_191 = arith.constant 40 : index
    %134 = vector.load %arg19[%c0_190, %c40_191] : memref<512x144xf32, #tpu.memory_space<vmem>>, vector<128x8xf32>
    tpu.vector_store %arg19[%c0_190, %c40_191], %133 {strides = array<i32>} : memref<512x144xf32, #tpu.memory_space<vmem>>, vector<128x8xf32>,
    %c0_192 = arith.constant 0 : index
    %c2_193 = arith.constant 2 : index
    %c0_194 = arith.constant 0 : index
    %c0_195 = arith.constant 0 : index
    %135 = vector.load %arg18[%c0_192, %c2_193, %c0_194, %c0_195] : memref<2x10x10x16xf32, #tpu.memory_space<vmem>>, vector<2x8x8x8xf32>
    %136 = vector.shape_cast %135 : vector<2x8x8x8xf32> to vector<128x8xf32>
    %c0_196 = arith.constant 0 : index
    %c48_197 = arith.constant 48 : index
    %137 = vector.load %arg19[%c0_196, %c48_197] : memref<512x144xf32, #tpu.memory_space<vmem>>, vector<128x8xf32>
    tpu.vector_store %arg19[%c0_196, %c48_197], %136 {strides = array<i32>} : memref<512x144xf32, #tpu.memory_space<vmem>>, vector<128x8xf32>,
    %c0_198 = arith.constant 0 : index
    %c2_199 = arith.constant 2 : index
    %c1_200 = arith.constant 1 : index
    %c0_201 = arith.constant 0 : index
    %138 = vector.load %arg18[%c0_198, %c2_199, %c1_200, %c0_201] : memref<2x10x10x16xf32, #tpu.memory_space<vmem>>, vector<2x8x8x8xf32>
    %139 = vector.shape_cast %138 : vector<2x8x8x8xf32> to vector<128x8xf32>
    %c0_202 = arith.constant 0 : index
    %c56_203 = arith.constant 56 : index
    %140 = vector.load %arg19[%c0_202, %c56_203] : memref<512x144xf32, #tpu.memory_space<vmem>>, vector<128x8xf32>
    tpu.vector_store %arg19[%c0_202, %c56_203], %139 {strides = array<i32>} : memref<512x144xf32, #tpu.memory_space<vmem>>, vector<128x8xf32>,
    %c0_204 = arith.constant 0 : index
    %c2_205 = arith.constant 2 : index
    %c2_206 = arith.constant 2 : index
    %c0_207 = arith.constant 0 : index
    %141 = vector.load %arg18[%c0_204, %c2_205, %c2_206, %c0_207] : memref<2x10x10x16xf32, #tpu.memory_space<vmem>>, vector<2x8x8x8xf32>
    %142 = vector.shape_cast %141 : vector<2x8x8x8xf32> to vector<128x8xf32>
    %c0_208 = arith.constant 0 : index
    %c64_209 = arith.constant 64 : index
    %143 = vector.load %arg19[%c0_208, %c64_209] : memref<512x144xf32, #tpu.memory_space<vmem>>, vector<128x8xf32>
    tpu.vector_store %arg19[%c0_208, %c64_209], %142 {strides = array<i32>} : memref<512x144xf32, #tpu.memory_space<vmem>>, vector<128x8xf32>,
    %c0_210 = arith.constant 0 : index
    %c0_211 = arith.constant 0 : index
    %144 = vector.load %arg19[%c0_210, %c0_211] : memref<512x144xf32, #tpu.memory_space<vmem>>, vector<128x72xf32>
    %c0_212 = arith.constant 0 : index
    %c0_213 = arith.constant 0 : index
    %145 = vector.load %arg6[%c0_212, %c0_213] : memref<72x16xf32, #tpu.memory_space<vmem>>, vector<72x16xf32>
    %cst_214 = arith.constant dense<0.000000e+00> : vector<128x16xf32>
    %146 = tpu.matmul %144, %145, %cst_214 {dimension_numbers = #tpu.dot_dimension_numbers<[1], [0], [0], [1], [0, 0, 1, 1], [], []>} : vector<128x72xf32>, vector<72x16xf32>, vector<128x16xf32> -> vector<128x16xf32>
    %c0_215 = arith.constant 0 : index
    %c0_216 = arith.constant 0 : index
    %147 = vector.load %arg7[%c0_215, %c0_216] : memref<1x16xf32, #tpu.memory_space<vmem>>, vector<1x16xf32>
    %148 = vector.broadcast %147 : vector<1x16xf32> to vector<128x16xf32>
    %149 = arith.addf %146, %148 : vector<128x16xf32>
    %cst_217 = arith.constant 0.000000e+00 : f32
    %150 = vector.broadcast %cst_217 : f32 to vector<128x16xf32>
    %151 = arith.maximumf %149, %150 : vector<128x16xf32>
    %152 = vector.shape_cast %151 : vector<128x16xf32> to vector<2x8x8x16xf32>
    %c0_218 = arith.constant 0 : index
    %c1_219 = arith.constant 1 : index
    %c1_220 = arith.constant 1 : index
    %c0_221 = arith.constant 0 : index
    %153 = vector.load %arg18[%c0_218, %c1_219, %c1_220, %c0_221] : memref<2x10x10x16xf32, #tpu.memory_space<vmem>>, vector<2x8x8x16xf32>
    tpu.vector_store %arg18[%c0_218, %c1_219, %c1_220, %c0_221], %152 {strides = array<i32>} : memref<2x10x10x16xf32, #tpu.memory_space<vmem>>, vector<2x8x8x16xf32>,
    %c0_222 = arith.constant 0 : index
    %c0_223 = arith.constant 0 : index
    %c0_224 = arith.constant 0 : index
    %c0_225 = arith.constant 0 : index
    %154 = vector.load %arg18[%c0_222, %c0_223, %c0_224, %c0_225] : memref<2x10x10x16xf32, #tpu.memory_space<vmem>>, vector<2x8x8x16xf32>
    %155 = vector.shape_cast %154 : vector<2x8x8x16xf32> to vector<128x16xf32>
    %c0_226 = arith.constant 0 : index
    %c0_227 = arith.constant 0 : index
    %156 = vector.load %arg19[%c0_226, %c0_227] : memref<512x144xf32, #tpu.memory_space<vmem>>, vector<128x16xf32>
    tpu.vector_store %arg19[%c0_226, %c0_227], %155 {strides = array<i32>} : memref<512x144xf32, #tpu.memory_space<vmem>>, vector<128x16xf32>,
    %c0_228 = arith.constant 0 : index
    %c0_229 = arith.constant 0 : index
    %c1_230 = arith.constant 1 : index
    %c0_231 = arith.constant 0 : index
    %157 = vector.load %arg18[%c0_228, %c0_229, %c1_230, %c0_231] : memref<2x10x10x16xf32, #tpu.memory_space<vmem>>, vector<2x8x8x16xf32>
    %158 = vector.shape_cast %157 : vector<2x8x8x16xf32> to vector<128x16xf32>
    %c0_232 = arith.constant 0 : index
    %c16_233 = arith.constant 16 : index
    %159 = vector.load %arg19[%c0_232, %c16_233] : memref<512x144xf32, #tpu.memory_space<vmem>>, vector<128x16xf32>
    tpu.vector_store %arg19[%c0_232, %c16_233], %158 {strides = array<i32>} : memref<512x144xf32, #tpu.memory_space<vmem>>, vector<128x16xf32>,
    %c0_234 = arith.constant 0 : index
    %c0_235 = arith.constant 0 : index
    %c2_236 = arith.constant 2 : index
    %c0_237 = arith.constant 0 : index
    %160 = vector.load %arg18[%c0_234, %c0_235, %c2_236, %c0_237] : memref<2x10x10x16xf32, #tpu.memory_space<vmem>>, vector<2x8x8x16xf32>
    %161 = vector.shape_cast %160 : vector<2x8x8x16xf32> to vector<128x16xf32>
    %c0_238 = arith.constant 0 : index
    %c32_239 = arith.constant 32 : index
    %162 = vector.load %arg19[%c0_238, %c32_239] : memref<512x144xf32, #tpu.memory_space<vmem>>, vector<128x16xf32>
    tpu.vector_store %arg19[%c0_238, %c32_239], %161 {strides = array<i32>} : memref<512x144xf32, #tpu.memory_space<vmem>>, vector<128x16xf32>,
    %c0_240 = arith.constant 0 : index
    %c1_241 = arith.constant 1 : index
    %c0_242 = arith.constant 0 : index
    %c0_243 = arith.constant 0 : index
    %163 = vector.load %arg18[%c0_240, %c1_241, %c0_242, %c0_243] : memref<2x10x10x16xf32, #tpu.memory_space<vmem>>, vector<2x8x8x16xf32>
    %164 = vector.shape_cast %163 : vector<2x8x8x16xf32> to vector<128x16xf32>
    %c0_244 = arith.constant 0 : index
    %c48_245 = arith.constant 48 : index
    %165 = vector.load %arg19[%c0_244, %c48_245] : memref<512x144xf32, #tpu.memory_space<vmem>>, vector<128x16xf32>
    tpu.vector_store %arg19[%c0_244, %c48_245], %164 {strides = array<i32>} : memref<512x144xf32, #tpu.memory_space<vmem>>, vector<128x16xf32>,
    %c0_246 = arith.constant 0 : index
    %c1_247 = arith.constant 1 : index
    %c1_248 = arith.constant 1 : index
    %c0_249 = arith.constant 0 : index
    %166 = vector.load %arg18[%c0_246, %c1_247, %c1_248, %c0_249] : memref<2x10x10x16xf32, #tpu.memory_space<vmem>>, vector<2x8x8x16xf32>
    %167 = vector.shape_cast %166 : vector<2x8x8x16xf32> to vector<128x16xf32>
    %c0_250 = arith.constant 0 : index
    %c64_251 = arith.constant 64 : index
    %168 = vector.load %arg19[%c0_250, %c64_251] : memref<512x144xf32, #tpu.memory_space<vmem>>, vector<128x16xf32>
    tpu.vector_store %arg19[%c0_250, %c64_251], %167 {strides = array<i32>} : memref<512x144xf32, #tpu.memory_space<vmem>>, vector<128x16xf32>,
    %c0_252 = arith.constant 0 : index
    %c1_253 = arith.constant 1 : index
    %c2_254 = arith.constant 2 : index
    %c0_255 = arith.constant 0 : index
    %169 = vector.load %arg18[%c0_252, %c1_253, %c2_254, %c0_255] : memref<2x10x10x16xf32, #tpu.memory_space<vmem>>, vector<2x8x8x16xf32>
    %170 = vector.shape_cast %169 : vector<2x8x8x16xf32> to vector<128x16xf32>
    %c0_256 = arith.constant 0 : index
    %c80 = arith.constant 80 : index
    %171 = vector.load %arg19[%c0_256, %c80] : memref<512x144xf32, #tpu.memory_space<vmem>>, vector<128x16xf32>
    tpu.vector_store %arg19[%c0_256, %c80], %170 {strides = array<i32>} : memref<512x144xf32, #tpu.memory_space<vmem>>, vector<128x16xf32>,
    %c0_257 = arith.constant 0 : index
    %c2_258 = arith.constant 2 : index
    %c0_259 = arith.constant 0 : index
    %c0_260 = arith.constant 0 : index
    %172 = vector.load %arg18[%c0_257, %c2_258, %c0_259, %c0_260] : memref<2x10x10x16xf32, #tpu.memory_space<vmem>>, vector<2x8x8x16xf32>
    %173 = vector.shape_cast %172 : vector<2x8x8x16xf32> to vector<128x16xf32>
    %c0_261 = arith.constant 0 : index
    %c96 = arith.constant 96 : index
    %174 = vector.load %arg19[%c0_261, %c96] : memref<512x144xf32, #tpu.memory_space<vmem>>, vector<128x16xf32>
    tpu.vector_store %arg19[%c0_261, %c96], %173 {strides = array<i32>} : memref<512x144xf32, #tpu.memory_space<vmem>>, vector<128x16xf32>,
    %c0_262 = arith.constant 0 : index
    %c2_263 = arith.constant 2 : index
    %c1_264 = arith.constant 1 : index
    %c0_265 = arith.constant 0 : index
    %175 = vector.load %arg18[%c0_262, %c2_263, %c1_264, %c0_265] : memref<2x10x10x16xf32, #tpu.memory_space<vmem>>, vector<2x8x8x16xf32>
    %176 = vector.shape_cast %175 : vector<2x8x8x16xf32> to vector<128x16xf32>
    %c0_266 = arith.constant 0 : index
    %c112 = arith.constant 112 : index
    %177 = vector.load %arg19[%c0_266, %c112] : memref<512x144xf32, #tpu.memory_space<vmem>>, vector<128x16xf32>
    tpu.vector_store %arg19[%c0_266, %c112], %176 {strides = array<i32>} : memref<512x144xf32, #tpu.memory_space<vmem>>, vector<128x16xf32>,
    %c0_267 = arith.constant 0 : index
    %c2_268 = arith.constant 2 : index
    %c2_269 = arith.constant 2 : index
    %c0_270 = arith.constant 0 : index
    %178 = vector.load %arg18[%c0_267, %c2_268, %c2_269, %c0_270] : memref<2x10x10x16xf32, #tpu.memory_space<vmem>>, vector<2x8x8x16xf32>
    %179 = vector.shape_cast %178 : vector<2x8x8x16xf32> to vector<128x16xf32>
    %c0_271 = arith.constant 0 : index
    %c128 = arith.constant 128 : index
    %180 = vector.load %arg19[%c0_271, %c128] : memref<512x144xf32, #tpu.memory_space<vmem>>, vector<128x16xf32>
    tpu.vector_store %arg19[%c0_271, %c128], %179 {strides = array<i32>} : memref<512x144xf32, #tpu.memory_space<vmem>>, vector<128x16xf32>,
    %c0_272 = arith.constant 0 : index
    %c0_273 = arith.constant 0 : index
    %181 = vector.load %arg19[%c0_272, %c0_273] : memref<512x144xf32, #tpu.memory_space<vmem>>, vector<128x144xf32>
    %c0_274 = arith.constant 0 : index
    %c0_275 = arith.constant 0 : index
    %182 = vector.load %arg8[%c0_274, %c0_275] : memref<144x16xf32, #tpu.memory_space<vmem>>, vector<144x16xf32>
    %cst_276 = arith.constant dense<0.000000e+00> : vector<128x16xf32>
    %183 = tpu.matmul %181, %182, %cst_276 {dimension_numbers = #tpu.dot_dimension_numbers<[1], [0], [0], [1], [0, 0, 1, 1], [], []>} : vector<128x144xf32>, vector<144x16xf32>, vector<128x16xf32> -> vector<128x16xf32>
    %c0_277 = arith.constant 0 : index
    %c0_278 = arith.constant 0 : index
    %184 = vector.load %arg9[%c0_277, %c0_278] : memref<1x16xf32, #tpu.memory_space<vmem>>, vector<1x16xf32>
    %185 = vector.broadcast %184 : vector<1x16xf32> to vector<128x16xf32>
    %186 = arith.addf %183, %185 : vector<128x16xf32>
    %cst_279 = arith.constant 0.000000e+00 : f32
    %187 = vector.broadcast %cst_279 : f32 to vector<128x16xf32>
    %188 = arith.maximumf %186, %187 : vector<128x16xf32>
    %189 = vector.shape_cast %188 : vector<128x16xf32> to vector<2x8x8x16xf32>
    %190 = vector.shape_cast %189 : vector<2x8x8x16xf32> to vector<2x4x2x8x16xf32>
    %191 = vector.extract_strided_slice %190 {offsets = [0, 0, 0, 0, 0], sizes = [2, 4, 1, 8, 16], strides = [1, 1, 1, 1, 1]} : vector<2x4x2x8x16xf32> to vector<2x4x1x8x16xf32>
    %192 = vector.shape_cast %191 : vector<2x4x1x8x16xf32> to vector<2x4x8x16xf32>
    %193 = vector.extract_strided_slice %190 {offsets = [0, 0, 1, 0, 0], sizes = [2, 4, 1, 8, 16], strides = [1, 1, 1, 1, 1]} : vector<2x4x2x8x16xf32> to vector<2x4x1x8x16xf32>
    %194 = vector.shape_cast %193 : vector<2x4x1x8x16xf32> to vector<2x4x8x16xf32>
    %195 = arith.maximumf %192, %194 : vector<2x4x8x16xf32>
    %196 = vector.extract_strided_slice %195 {offsets = [0, 0, 0, 0], sizes = [2, 4, 1, 16], strides = [1, 1, 1, 1]} : vector<2x4x8x16xf32> to vector<2x4x1x16xf32>
    %197 = vector.extract_strided_slice %195 {offsets = [0, 0, 1, 0], sizes = [2, 4, 1, 16], strides = [1, 1, 1, 1]} : vector<2x4x8x16xf32> to vector<2x4x1x16xf32>
    %198 = arith.maximumf %196, %197 : vector<2x4x1x16xf32>
    %c0_280 = arith.constant 0 : index
    %c0_281 = arith.constant 0 : index
    %c0_282 = arith.constant 0 : index
    %c0_283 = arith.constant 0 : index
    %199 = vector.load %arg20[%c0_280, %c0_281, %c0_282, %c0_283] : memref<2x4x4x16xf32, #tpu.memory_space<vmem>>, vector<2x4x1x16xf32>
    tpu.vector_store %arg20[%c0_280, %c0_281, %c0_282, %c0_283], %198 {strides = array<i32>} : memref<2x4x4x16xf32, #tpu.memory_space<vmem>>, vector<2x4x1x16xf32>,
    %200 = vector.extract_strided_slice %195 {offsets = [0, 0, 2, 0], sizes = [2, 4, 1, 16], strides = [1, 1, 1, 1]} : vector<2x4x8x16xf32> to vector<2x4x1x16xf32>
    %201 = vector.extract_strided_slice %195 {offsets = [0, 0, 3, 0], sizes = [2, 4, 1, 16], strides = [1, 1, 1, 1]} : vector<2x4x8x16xf32> to vector<2x4x1x16xf32>
    %202 = arith.maximumf %200, %201 : vector<2x4x1x16xf32>
    %c0_284 = arith.constant 0 : index
    %c0_285 = arith.constant 0 : index
    %c1_286 = arith.constant 1 : index
    %c0_287 = arith.constant 0 : index
    %203 = vector.load %arg20[%c0_284, %c0_285, %c1_286, %c0_287] : memref<2x4x4x16xf32, #tpu.memory_space<vmem>>, vector<2x4x1x16xf32>
    tpu.vector_store %arg20[%c0_284, %c0_285, %c1_286, %c0_287], %202 {strides = array<i32>} : memref<2x4x4x16xf32, #tpu.memory_space<vmem>>, vector<2x4x1x16xf32>,
    %204 = vector.extract_strided_slice %195 {offsets = [0, 0, 4, 0], sizes = [2, 4, 1, 16], strides = [1, 1, 1, 1]} : vector<2x4x8x16xf32> to vector<2x4x1x16xf32>
    %205 = vector.extract_strided_slice %195 {offsets = [0, 0, 5, 0], sizes = [2, 4, 1, 16], strides = [1, 1, 1, 1]} : vector<2x4x8x16xf32> to vector<2x4x1x16xf32>
    %206 = arith.maximumf %204, %205 : vector<2x4x1x16xf32>
    %c0_288 = arith.constant 0 : index
    %c0_289 = arith.constant 0 : index
    %c2_290 = arith.constant 2 : index
    %c0_291 = arith.constant 0 : index
    %207 = vector.load %arg20[%c0_288, %c0_289, %c2_290, %c0_291] : memref<2x4x4x16xf32, #tpu.memory_space<vmem>>, vector<2x4x1x16xf32>
    tpu.vector_store %arg20[%c0_288, %c0_289, %c2_290, %c0_291], %206 {strides = array<i32>} : memref<2x4x4x16xf32, #tpu.memory_space<vmem>>, vector<2x4x1x16xf32>,
    %208 = vector.extract_strided_slice %195 {offsets = [0, 0, 6, 0], sizes = [2, 4, 1, 16], strides = [1, 1, 1, 1]} : vector<2x4x8x16xf32> to vector<2x4x1x16xf32>
    %209 = vector.extract_strided_slice %195 {offsets = [0, 0, 7, 0], sizes = [2, 4, 1, 16], strides = [1, 1, 1, 1]} : vector<2x4x8x16xf32> to vector<2x4x1x16xf32>
    %210 = arith.maximumf %208, %209 : vector<2x4x1x16xf32>
    %c0_292 = arith.constant 0 : index
    %c0_293 = arith.constant 0 : index
    %c3_294 = arith.constant 3 : index
    %c0_295 = arith.constant 0 : index
    %211 = vector.load %arg20[%c0_292, %c0_293, %c3_294, %c0_295] : memref<2x4x4x16xf32, #tpu.memory_space<vmem>>, vector<2x4x1x16xf32>
    tpu.vector_store %arg20[%c0_292, %c0_293, %c3_294, %c0_295], %210 {strides = array<i32>} : memref<2x4x4x16xf32, #tpu.memory_space<vmem>>, vector<2x4x1x16xf32>,
    %c0_296 = arith.constant 0 : index
    %c0_297 = arith.constant 0 : index
    %c0_298 = arith.constant 0 : index
    %c0_299 = arith.constant 0 : index
    %212 = vector.load %arg20[%c0_296, %c0_297, %c0_298, %c0_299] : memref<2x4x4x16xf32, #tpu.memory_space<vmem>>, vector<2x1x1x16xf32>
    %213 = vector.shape_cast %212 : vector<2x1x1x16xf32> to vector<2x16xf32>
    %c0_300 = arith.constant 0 : index
    %c0_301 = arith.constant 0 : index
    %214 = vector.load %arg21[%c0_300, %c0_301] : memref<2x256xf32, #tpu.memory_space<vmem>>, vector<2x16xf32>
    tpu.vector_store %arg21[%c0_300, %c0_301], %213 {strides = array<i32>} : memref<2x256xf32, #tpu.memory_space<vmem>>, vector<2x16xf32>,
    %c0_302 = arith.constant 0 : index
    %c0_303 = arith.constant 0 : index
    %c1_304 = arith.constant 1 : index
    %c0_305 = arith.constant 0 : index
    %215 = vector.load %arg20[%c0_302, %c0_303, %c1_304, %c0_305] : memref<2x4x4x16xf32, #tpu.memory_space<vmem>>, vector<2x1x1x16xf32>
    %216 = vector.shape_cast %215 : vector<2x1x1x16xf32> to vector<2x16xf32>
    %c0_306 = arith.constant 0 : index
    %c16_307 = arith.constant 16 : index
    %217 = vector.load %arg21[%c0_306, %c16_307] : memref<2x256xf32, #tpu.memory_space<vmem>>, vector<2x16xf32>
    tpu.vector_store %arg21[%c0_306, %c16_307], %216 {strides = array<i32>} : memref<2x256xf32, #tpu.memory_space<vmem>>, vector<2x16xf32>,
    %c0_308 = arith.constant 0 : index
    %c0_309 = arith.constant 0 : index
    %c2_310 = arith.constant 2 : index
    %c0_311 = arith.constant 0 : index
    %218 = vector.load %arg20[%c0_308, %c0_309, %c2_310, %c0_311] : memref<2x4x4x16xf32, #tpu.memory_space<vmem>>, vector<2x1x1x16xf32>
    %219 = vector.shape_cast %218 : vector<2x1x1x16xf32> to vector<2x16xf32>
    %c0_312 = arith.constant 0 : index
    %c32_313 = arith.constant 32 : index
    %220 = vector.load %arg21[%c0_312, %c32_313] : memref<2x256xf32, #tpu.memory_space<vmem>>, vector<2x16xf32>
    tpu.vector_store %arg21[%c0_312, %c32_313], %219 {strides = array<i32>} : memref<2x256xf32, #tpu.memory_space<vmem>>, vector<2x16xf32>,
    %c0_314 = arith.constant 0 : index
    %c0_315 = arith.constant 0 : index
    %c3_316 = arith.constant 3 : index
    %c0_317 = arith.constant 0 : index
    %221 = vector.load %arg20[%c0_314, %c0_315, %c3_316, %c0_317] : memref<2x4x4x16xf32, #tpu.memory_space<vmem>>, vector<2x1x1x16xf32>
    %222 = vector.shape_cast %221 : vector<2x1x1x16xf32> to vector<2x16xf32>
    %c0_318 = arith.constant 0 : index
    %c48_319 = arith.constant 48 : index
    %223 = vector.load %arg21[%c0_318, %c48_319] : memref<2x256xf32, #tpu.memory_space<vmem>>, vector<2x16xf32>
    tpu.vector_store %arg21[%c0_318, %c48_319], %222 {strides = array<i32>} : memref<2x256xf32, #tpu.memory_space<vmem>>, vector<2x16xf32>,
    %c0_320 = arith.constant 0 : index
    %c1_321 = arith.constant 1 : index
    %c0_322 = arith.constant 0 : index
    %c0_323 = arith.constant 0 : index
    %224 = vector.load %arg20[%c0_320, %c1_321, %c0_322, %c0_323] : memref<2x4x4x16xf32, #tpu.memory_space<vmem>>, vector<2x1x1x16xf32>
    %225 = vector.shape_cast %224 : vector<2x1x1x16xf32> to vector<2x16xf32>
    %c0_324 = arith.constant 0 : index
    %c64_325 = arith.constant 64 : index
    %226 = vector.load %arg21[%c0_324, %c64_325] : memref<2x256xf32, #tpu.memory_space<vmem>>, vector<2x16xf32>
    tpu.vector_store %arg21[%c0_324, %c64_325], %225 {strides = array<i32>} : memref<2x256xf32, #tpu.memory_space<vmem>>, vector<2x16xf32>,
    %c0_326 = arith.constant 0 : index
    %c1_327 = arith.constant 1 : index
    %c1_328 = arith.constant 1 : index
    %c0_329 = arith.constant 0 : index
    %227 = vector.load %arg20[%c0_326, %c1_327, %c1_328, %c0_329] : memref<2x4x4x16xf32, #tpu.memory_space<vmem>>, vector<2x1x1x16xf32>
    %228 = vector.shape_cast %227 : vector<2x1x1x16xf32> to vector<2x16xf32>
    %c0_330 = arith.constant 0 : index
    %c80_331 = arith.constant 80 : index
    %229 = vector.load %arg21[%c0_330, %c80_331] : memref<2x256xf32, #tpu.memory_space<vmem>>, vector<2x16xf32>
    tpu.vector_store %arg21[%c0_330, %c80_331], %228 {strides = array<i32>} : memref<2x256xf32, #tpu.memory_space<vmem>>, vector<2x16xf32>,
    %c0_332 = arith.constant 0 : index
    %c1_333 = arith.constant 1 : index
    %c2_334 = arith.constant 2 : index
    %c0_335 = arith.constant 0 : index
    %230 = vector.load %arg20[%c0_332, %c1_333, %c2_334, %c0_335] : memref<2x4x4x16xf32, #tpu.memory_space<vmem>>, vector<2x1x1x16xf32>
    %231 = vector.shape_cast %230 : vector<2x1x1x16xf32> to vector<2x16xf32>
    %c0_336 = arith.constant 0 : index
    %c96_337 = arith.constant 96 : index
    %232 = vector.load %arg21[%c0_336, %c96_337] : memref<2x256xf32, #tpu.memory_space<vmem>>, vector<2x16xf32>
    tpu.vector_store %arg21[%c0_336, %c96_337], %231 {strides = array<i32>} : memref<2x256xf32, #tpu.memory_space<vmem>>, vector<2x16xf32>,
    %c0_338 = arith.constant 0 : index
    %c1_339 = arith.constant 1 : index
    %c3_340 = arith.constant 3 : index
    %c0_341 = arith.constant 0 : index
    %233 = vector.load %arg20[%c0_338, %c1_339, %c3_340, %c0_341] : memref<2x4x4x16xf32, #tpu.memory_space<vmem>>, vector<2x1x1x16xf32>
    %234 = vector.shape_cast %233 : vector<2x1x1x16xf32> to vector<2x16xf32>
    %c0_342 = arith.constant 0 : index
    %c112_343 = arith.constant 112 : index
    %235 = vector.load %arg21[%c0_342, %c112_343] : memref<2x256xf32, #tpu.memory_space<vmem>>, vector<2x16xf32>
    tpu.vector_store %arg21[%c0_342, %c112_343], %234 {strides = array<i32>} : memref<2x256xf32, #tpu.memory_space<vmem>>, vector<2x16xf32>,
    %c0_344 = arith.constant 0 : index
    %c2_345 = arith.constant 2 : index
    %c0_346 = arith.constant 0 : index
    %c0_347 = arith.constant 0 : index
    %236 = vector.load %arg20[%c0_344, %c2_345, %c0_346, %c0_347] : memref<2x4x4x16xf32, #tpu.memory_space<vmem>>, vector<2x1x1x16xf32>
    %237 = vector.shape_cast %236 : vector<2x1x1x16xf32> to vector<2x16xf32>
    %c0_348 = arith.constant 0 : index
    %c128_349 = arith.constant 128 : index
    %238 = vector.load %arg21[%c0_348, %c128_349] : memref<2x256xf32, #tpu.memory_space<vmem>>, vector<2x16xf32>
    tpu.vector_store %arg21[%c0_348, %c128_349], %237 {strides = array<i32>} : memref<2x256xf32, #tpu.memory_space<vmem>>, vector<2x16xf32>,
    %c0_350 = arith.constant 0 : index
    %c2_351 = arith.constant 2 : index
    %c1_352 = arith.constant 1 : index
    %c0_353 = arith.constant 0 : index
    %239 = vector.load %arg20[%c0_350, %c2_351, %c1_352, %c0_353] : memref<2x4x4x16xf32, #tpu.memory_space<vmem>>, vector<2x1x1x16xf32>
    %240 = vector.shape_cast %239 : vector<2x1x1x16xf32> to vector<2x16xf32>
    %c0_354 = arith.constant 0 : index
    %c144 = arith.constant 144 : index
    %241 = vector.load %arg21[%c0_354, %c144] : memref<2x256xf32, #tpu.memory_space<vmem>>, vector<2x16xf32>
    tpu.vector_store %arg21[%c0_354, %c144], %240 {strides = array<i32>} : memref<2x256xf32, #tpu.memory_space<vmem>>, vector<2x16xf32>,
    %c0_355 = arith.constant 0 : index
    %c2_356 = arith.constant 2 : index
    %c2_357 = arith.constant 2 : index
    %c0_358 = arith.constant 0 : index
    %242 = vector.load %arg20[%c0_355, %c2_356, %c2_357, %c0_358] : memref<2x4x4x16xf32, #tpu.memory_space<vmem>>, vector<2x1x1x16xf32>
    %243 = vector.shape_cast %242 : vector<2x1x1x16xf32> to vector<2x16xf32>
    %c0_359 = arith.constant 0 : index
    %c160 = arith.constant 160 : index
    %244 = vector.load %arg21[%c0_359, %c160] : memref<2x256xf32, #tpu.memory_space<vmem>>, vector<2x16xf32>
    tpu.vector_store %arg21[%c0_359, %c160], %243 {strides = array<i32>} : memref<2x256xf32, #tpu.memory_space<vmem>>, vector<2x16xf32>,
    %c0_360 = arith.constant 0 : index
    %c2_361 = arith.constant 2 : index
    %c3_362 = arith.constant 3 : index
    %c0_363 = arith.constant 0 : index
    %245 = vector.load %arg20[%c0_360, %c2_361, %c3_362, %c0_363] : memref<2x4x4x16xf32, #tpu.memory_space<vmem>>, vector<2x1x1x16xf32>
    %246 = vector.shape_cast %245 : vector<2x1x1x16xf32> to vector<2x16xf32>
    %c0_364 = arith.constant 0 : index
    %c176 = arith.constant 176 : index
    %247 = vector.load %arg21[%c0_364, %c176] : memref<2x256xf32, #tpu.memory_space<vmem>>, vector<2x16xf32>
    tpu.vector_store %arg21[%c0_364, %c176], %246 {strides = array<i32>} : memref<2x256xf32, #tpu.memory_space<vmem>>, vector<2x16xf32>,
    %c0_365 = arith.constant 0 : index
    %c3_366 = arith.constant 3 : index
    %c0_367 = arith.constant 0 : index
    %c0_368 = arith.constant 0 : index
    %248 = vector.load %arg20[%c0_365, %c3_366, %c0_367, %c0_368] : memref<2x4x4x16xf32, #tpu.memory_space<vmem>>, vector<2x1x1x16xf32>
    %249 = vector.shape_cast %248 : vector<2x1x1x16xf32> to vector<2x16xf32>
    %c0_369 = arith.constant 0 : index
    %c192 = arith.constant 192 : index
    %250 = vector.load %arg21[%c0_369, %c192] : memref<2x256xf32, #tpu.memory_space<vmem>>, vector<2x16xf32>
    tpu.vector_store %arg21[%c0_369, %c192], %249 {strides = array<i32>} : memref<2x256xf32, #tpu.memory_space<vmem>>, vector<2x16xf32>,
    %c0_370 = arith.constant 0 : index
    %c3_371 = arith.constant 3 : index
    %c1_372 = arith.constant 1 : index
    %c0_373 = arith.constant 0 : index
    %251 = vector.load %arg20[%c0_370, %c3_371, %c1_372, %c0_373] : memref<2x4x4x16xf32, #tpu.memory_space<vmem>>, vector<2x1x1x16xf32>
    %252 = vector.shape_cast %251 : vector<2x1x1x16xf32> to vector<2x16xf32>
    %c0_374 = arith.constant 0 : index
    %c208 = arith.constant 208 : index
    %253 = vector.load %arg21[%c0_374, %c208] : memref<2x256xf32, #tpu.memory_space<vmem>>, vector<2x16xf32>
    tpu.vector_store %arg21[%c0_374, %c208], %252 {strides = array<i32>} : memref<2x256xf32, #tpu.memory_space<vmem>>, vector<2x16xf32>,
    %c0_375 = arith.constant 0 : index
    %c3_376 = arith.constant 3 : index
    %c2_377 = arith.constant 2 : index
    %c0_378 = arith.constant 0 : index
    %254 = vector.load %arg20[%c0_375, %c3_376, %c2_377, %c0_378] : memref<2x4x4x16xf32, #tpu.memory_space<vmem>>, vector<2x1x1x16xf32>
    %255 = vector.shape_cast %254 : vector<2x1x1x16xf32> to vector<2x16xf32>
    %c0_379 = arith.constant 0 : index
    %c224 = arith.constant 224 : index
    %256 = vector.load %arg21[%c0_379, %c224] : memref<2x256xf32, #tpu.memory_space<vmem>>, vector<2x16xf32>
    tpu.vector_store %arg21[%c0_379, %c224], %255 {strides = array<i32>} : memref<2x256xf32, #tpu.memory_space<vmem>>, vector<2x16xf32>,
    %c0_380 = arith.constant 0 : index
    %c3_381 = arith.constant 3 : index
    %c3_382 = arith.constant 3 : index
    %c0_383 = arith.constant 0 : index
    %257 = vector.load %arg20[%c0_380, %c3_381, %c3_382, %c0_383] : memref<2x4x4x16xf32, #tpu.memory_space<vmem>>, vector<2x1x1x16xf32>
    %258 = vector.shape_cast %257 : vector<2x1x1x16xf32> to vector<2x16xf32>
    %c0_384 = arith.constant 0 : index
    %c240 = arith.constant 240 : index
    %259 = vector.load %arg21[%c0_384, %c240] : memref<2x256xf32, #tpu.memory_space<vmem>>, vector<2x16xf32>
    tpu.vector_store %arg21[%c0_384, %c240], %258 {strides = array<i32>} : memref<2x256xf32, #tpu.memory_space<vmem>>, vector<2x16xf32>,
    %c0_385 = arith.constant 0 : index
    %c0_386 = arith.constant 0 : index
    %260 = vector.load %arg21[%c0_385, %c0_386] : memref<2x256xf32, #tpu.memory_space<vmem>>, vector<2x256xf32>
    %c0_387 = arith.constant 0 : index
    %c0_388 = arith.constant 0 : index
    %261 = vector.load %arg10[%c0_387, %c0_388] : memref<256x32xf32, #tpu.memory_space<vmem>>, vector<256x32xf32>
    %cst_389 = arith.constant dense<0.000000e+00> : vector<2x32xf32>
    %262 = tpu.matmul %260, %261, %cst_389 {dimension_numbers = #tpu.dot_dimension_numbers<[1], [0], [0], [1], [0, 0, 1, 1], [], []>} : vector<2x256xf32>, vector<256x32xf32>, vector<2x32xf32> -> vector<2x32xf32>
    %c0_390 = arith.constant 0 : index
    %c0_391 = arith.constant 0 : index
    %263 = vector.load %arg11[%c0_390, %c0_391] : memref<1x32xf32, #tpu.memory_space<vmem>>, vector<1x32xf32>
    %264 = vector.broadcast %263 : vector<1x32xf32> to vector<2x32xf32>
    %265 = arith.addf %262, %264 : vector<2x32xf32>
    %cst_392 = arith.constant 0.000000e+00 : f32
    %266 = vector.broadcast %cst_392 : f32 to vector<2x32xf32>
    %267 = arith.maximumf %265, %266 : vector<2x32xf32>
    %c0_393 = arith.constant 0 : index
    %c0_394 = arith.constant 0 : index
    %268 = vector.load %arg12[%c0_393, %c0_394] : memref<32x32xf32, #tpu.memory_space<vmem>>, vector<32x32xf32>
    %cst_395 = arith.constant dense<0.000000e+00> : vector<2x32xf32>
    %269 = tpu.matmul %267, %268, %cst_395 {dimension_numbers = #tpu.dot_dimension_numbers<[1], [0], [0], [1], [0, 0, 1, 1], [], []>} : vector<2x32xf32>, vector<32x32xf32>, vector<2x32xf32> -> vector<2x32xf32>
    %c0_396 = arith.constant 0 : index
    %c0_397 = arith.constant 0 : index
    %270 = vector.load %arg13[%c0_396, %c0_397] : memref<1x32xf32, #tpu.memory_space<vmem>>, vector<1x32xf32>
    %271 = vector.broadcast %270 : vector<1x32xf32> to vector<2x32xf32>
    %272 = arith.addf %269, %271 : vector<2x32xf32>
    %cst_398 = arith.constant 0.000000e+00 : f32
    %273 = vector.broadcast %cst_398 : f32 to vector<2x32xf32>
    %274 = arith.maximumf %272, %273 : vector<2x32xf32>
    %275 = arith.mulf %274, %274 : vector<2x32xf32>
    %cst_399 = arith.constant dense<0.000000e+00> : vector<2xf32>
    %276 = vector.multi_reduction <add>, %275, %cst_399 [1] : vector<2x32xf32> to vector<2xf32>
    %277 = vector.shape_cast %276 : vector<2xf32> to vector<2x1xf32>
    %278 = math.sqrt %277 : vector<2x1xf32>
    %cst_400 = arith.constant 9.99999996E-13 : f32
    %279 = vector.broadcast %cst_400 : f32 to vector<2x1xf32>
    %280 = arith.addf %278, %279 : vector<2x1xf32>
    %281 = tpu.reciprocal %280 : vector<2x1xf32> -> vector<2x1xf32>
    %282 = vector.broadcast %281 : vector<2x1xf32> to vector<2x32xf32>
    %283 = arith.mulf %274, %282 : vector<2x32xf32>
    %c0_401 = arith.constant 0 : index
    %c0_402 = arith.constant 0 : index
    %284 = vector.load %arg14[%c0_401, %c0_402] : memref<32x32xf32, #tpu.memory_space<vmem>>, vector<32x32xf32>
    %cst_403 = arith.constant dense<0.000000e+00> : vector<2x32xf32>
    %285 = tpu.matmul %283, %284, %cst_403 {dimension_numbers = #tpu.dot_dimension_numbers<[1], [0], [0], [1], [0, 0, 1, 1], [], []>} : vector<2x32xf32>, vector<32x32xf32>, vector<2x32xf32> -> vector<2x32xf32>
    %c0_404 = arith.constant 0 : index
    %c0_405 = arith.constant 0 : index
    %286 = vector.load %arg15[%c0_404, %c0_405] : memref<1x32xf32, #tpu.memory_space<vmem>>, vector<1x32xf32>
    %287 = vector.broadcast %286 : vector<1x32xf32> to vector<2x32xf32>
    %288 = arith.addf %285, %287 : vector<2x32xf32>
    %289 = arith.mulf %288, %288 : vector<2x32xf32>
    %cst_406 = arith.constant dense<0.000000e+00> : vector<2xf32>
    %290 = vector.multi_reduction <add>, %289, %cst_406 [1] : vector<2x32xf32> to vector<2xf32>
    %291 = vector.shape_cast %290 : vector<2xf32> to vector<2x1xf32>
    %292 = math.sqrt %291 : vector<2x1xf32>
    %cst_407 = arith.constant 9.99999996E-13 : f32
    %293 = vector.broadcast %cst_407 : f32 to vector<2x1xf32>
    %294 = arith.addf %292, %293 : vector<2x1xf32>
    %295 = tpu.reciprocal %294 : vector<2x1xf32> -> vector<2x1xf32>
    %296 = vector.broadcast %295 : vector<2x1xf32> to vector<2x32xf32>
    %297 = arith.mulf %288, %296 : vector<2x32xf32>
    %c0_408 = arith.constant 0 : index
    %c0_409 = arith.constant 0 : index
    %298 = vector.load %arg16[%c0_408, %c0_409] : memref<2x32xf32, #tpu.memory_space<vmem>>, vector<2x32xf32>
    tpu.vector_store %arg16[%c0_408, %c0_409], %297 {strides = array<i32>} : memref<2x32xf32, #tpu.memory_space<vmem>>, vector<2x32xf32>,
    return
  }
  func.func @transform_0(%arg0: i32) -> (i32, i32, i32, i32) {
    %c0_i32 = arith.constant 0 : i32
    %c0_i32_0 = arith.constant 0 : i32
    %c0_i32_1 = arith.constant 0 : i32
    %c0_i32_2 = arith.constant 0 : i32
    %c0_i32_3 = arith.constant 0 : i32
    return %c0_i32, %c0_i32_0, %c0_i32_1, %c0_i32_2 : i32, i32, i32, i32
  }
  func.func @transform_1(%arg0: i32) -> (i32, i32) {
    %c0_i32 = arith.constant 0 : i32
    %c0_i32_0 = arith.constant 0 : i32
    %c0_i32_1 = arith.constant 0 : i32
    return %c0_i32, %c0_i32_0 : i32, i32
  }
  func.func @transform_2(%arg0: i32) -> (i32, i32) {
    %c0_i32 = arith.constant 0 : i32
    %c0_i32_0 = arith.constant 0 : i32
    %c0_i32_1 = arith.constant 0 : i32
    return %c0_i32, %c0_i32_0 : i32, i32
  }
  func.func @transform_3(%arg0: i32) -> (i32, i32) {
    %c0_i32 = arith.constant 0 : i32
    %c0_i32_0 = arith.constant 0 : i32
    %c0_i32_1 = arith.constant 0 : i32
    return %c0_i32, %c0_i32_0 : i32, i32
  }
  func.func @transform_4(%arg0: i32) -> (i32, i32) {
    %c0_i32 = arith.constant 0 : i32
    %c0_i32_0 = arith.constant 0 : i32
    %c0_i32_1 = arith.constant 0 : i32
    return %c0_i32, %c0_i32_0 : i32, i32
  }
  func.func @transform_5(%arg0: i32) -> (i32, i32) {
    %c0_i32 = arith.constant 0 : i32
    %c0_i32_0 = arith.constant 0 : i32
    %c0_i32_1 = arith.constant 0 : i32
    return %c0_i32, %c0_i32_0 : i32, i32
  }
  func.func @transform_6(%arg0: i32) -> (i32, i32) {
    %c0_i32 = arith.constant 0 : i32
    %c0_i32_0 = arith.constant 0 : i32
    %c0_i32_1 = arith.constant 0 : i32
    return %c0_i32, %c0_i32_0 : i32, i32
  }
  func.func @transform_7(%arg0: i32) -> (i32, i32) {
    %c0_i32 = arith.constant 0 : i32
    %c0_i32_0 = arith.constant 0 : i32
    %c0_i32_1 = arith.constant 0 : i32
    return %c0_i32, %c0_i32_0 : i32, i32
  }
  func.func @transform_8(%arg0: i32) -> (i32, i32) {
    %c0_i32 = arith.constant 0 : i32
    %c0_i32_0 = arith.constant 0 : i32
    %c0_i32_1 = arith.constant 0 : i32
    return %c0_i32, %c0_i32_0 : i32, i32
  }
  func.func @transform_9(%arg0: i32) -> (i32, i32) {
    %c0_i32 = arith.constant 0 : i32
    %c0_i32_0 = arith.constant 0 : i32
    %c0_i32_1 = arith.constant 0 : i32
    return %c0_i32, %c0_i32_0 : i32, i32
  }
  func.func @transform_10(%arg0: i32) -> (i32, i32) {
    %c0_i32 = arith.constant 0 : i32
    %c0_i32_0 = arith.constant 0 : i32
    %c0_i32_1 = arith.constant 0 : i32
    return %c0_i32, %c0_i32_0 : i32, i32
  }
  func.func @transform_11(%arg0: i32) -> (i32, i32) {
    %c0_i32 = arith.constant 0 : i32
    %c0_i32_0 = arith.constant 0 : i32
    %c0_i32_1 = arith.constant 0 : i32
    return %c0_i32, %c0_i32_0 : i32, i32
  }
  func.func @transform_12(%arg0: i32) -> (i32, i32) {
    %c0_i32 = arith.constant 0 : i32
    %c0_i32_0 = arith.constant 0 : i32
    %c0_i32_1 = arith.constant 0 : i32
    return %c0_i32, %c0_i32_0 : i32, i32
  }
  func.func @transform_13(%arg0: i32) -> (i32, i32) {
    %c0_i32 = arith.constant 0 : i32
    %c0_i32_0 = arith.constant 0 : i32
    %c0_i32_1 = arith.constant 0 : i32
    return %c0_i32, %c0_i32_0 : i32, i32
  }
  func.func @transform_14(%arg0: i32) -> (i32, i32) {
    %c0_i32 = arith.constant 0 : i32
    %c0_i32_0 = arith.constant 0 : i32
    %c0_i32_1 = arith.constant 0 : i32
    return %c0_i32, %c0_i32_0 : i32, i32
  }
  func.func @transform_15(%arg0: i32) -> (i32, i32) {
    %c0_i32 = arith.constant 0 : i32
    %c0_i32_0 = arith.constant 0 : i32
    %c0_i32_1 = arith.constant 0 : i32
    return %c0_i32, %c0_i32_0 : i32, i32
  }
}

</mosaic_0001>

<llo_original>
// kernel: encoder_image_full_forward.1
$region0: #{encoder_image_full_forward.1}
  #allocation0 [shape = 'u32[]', space=smem, size = 0x4, offset = 0x4, fixed_abs, tag = 'smem constant byte address 0x4 - core index']
  #allocation1 [shape = 'u32[72,128]{1,0:T(1,128)}', space=vmem, size = 0x9000, scoped, tag = 'internal scratch']
  #allocation2 [shape = 'f32[2,18,18,8]{3,2,1,0:T(8,128)}', space=vmem, size = 0x6c000, scoped, tag = 'scratch operand']
  #allocation3 [shape = 'f32[2,10,10,16]{3,2,1,0:T(8,128)}', space=vmem, size = 0x28000, scoped, tag = 'scratch operand']
  #allocation4 [shape = 'f32[512,144]{1,0:T(8,128)}', space=vmem, size = 0x80000, scoped, tag = 'scratch operand']
  #allocation5 [shape = 'f32[2,4,4,16]{3,2,1,0:T(4,128)}', space=vmem, size = 0x4000, scoped, tag = 'scratch operand']
  #allocation6 [shape = 'f32[2,256]{1,0:T(2,128)}', space=vmem, size = 0x800, scoped, tag = 'scratch operand']
  %s0 = inlined_call_operand.vmem [shape: f32[2,16,16,3], index: 0, kind: input, shape index: {}]
  %s1 = inlined_call_operand.vmem [shape: f32[27,8], index: 1, kind: input, shape index: {}]
  %s2 = inlined_call_operand.vmem [shape: f32[1,8], index: 2, kind: input, shape index: {}]
  %s3 = inlined_call_operand.vmem [shape: f32[72,8], index: 3, kind: input, shape index: {}]
  %s4 = inlined_call_operand.vmem [shape: f32[1,8], index: 4, kind: input, shape index: {}]
  %s5 = inlined_call_operand.vmem [shape: f32[72,16], index: 5, kind: input, shape index: {}]
  %s6 = inlined_call_operand.vmem [shape: f32[1,16], index: 6, kind: input, shape index: {}]
  %s7 = inlined_call_operand.vmem [shape: f32[144,16], index: 7, kind: input, shape index: {}]
  %s8 = inlined_call_operand.vmem [shape: f32[1,16], index: 8, kind: input, shape index: {}]
  %s9 = inlined_call_operand.vmem [shape: f32[256,32], index: 9, kind: input, shape index: {}]
  %s10 = inlined_call_operand.vmem [shape: f32[1,32], index: 10, kind: input, shape index: {}]
  %s11 = inlined_call_operand.vmem [shape: f32[32,32], index: 11, kind: input, shape index: {}]
  %s12 = inlined_call_operand.vmem [shape: f32[1,32], index: 12, kind: input, shape index: {}]
  %s13 = inlined_call_operand.vmem [shape: f32[32,32], index: 13, kind: input, shape index: {}]
  %s14 = inlined_call_operand.vmem [shape: f32[1,32], index: 14, kind: input, shape index: {}]
  %s15 = inlined_call_operand.hbm [shape: f32[2,32], index: 15, kind: output, shape index: {}]
  %s16 = sld [smem:[#allocation0]]
  $region70: #{encoder_image_full_forward.1} parent=0
    _
  %s18 = ssub.s32 1, %s16
  %s19 = scalar_select 0, %s18, %s16
  $region1: #{encoder_image_full_forward.1} parent=0
    #allocation7 [shape = 'u8[1024]{0}', space=vmem, size = 0x400, scoped, tag = 'output window, operand 0, single buffered']
    #allocation8 [shape = 's32[1]{0}', space=sflag, size = 0x4, scoped, tag = 'scoped memory for encoder_image_full_forward.1']
    %20 = vsyncpa [#allocation8], 0
    // Predicated region
    $region2: #{encoder_image_full_forward.1} parent=1 // pred_check
      _
    $region3: #{encoder_image_full_forward.1} parent=1 // pred_check_branch
      %22 = sbr.rel (0) target = $region5
    $region4: #{encoder_image_full_forward.1} parent=1 // pred_region
      _
    $region5: #{encoder_image_full_forward.1} parent=1 // pred_fallthru
      _
    // Predicated region
    $region6: #{encoder_image_full_forward.1} parent=1 // pred_check
      _
    $region7: #{encoder_image_full_forward.1} parent=1 // pred_check_branch
      %24 = sbr.rel (0) target = $region9
    $region8: #{encoder_image_full_forward.1} parent=1 // pred_region
      _
    $region9: #{encoder_image_full_forward.1} parent=1 // pred_fallthru
      _
    // Predicated region
    $region10: #{encoder_image_full_forward.1} parent=1 // pred_check
      _
    $region11: #{encoder_image_full_forward.1} parent=1 // pred_check_branch
      %26 = sbr.rel (0) target = $region13
    $region12: #{encoder_image_full_forward.1} parent=1 // pred_region
      _
    $region13: #{encoder_image_full_forward.1} parent=1 // pred_fallthru
      _
    // Predicated region
    $region14: #{encoder_image_full_forward.1} parent=1 // pred_check
      _
    $region15: #{encoder_image_full_forward.1} parent=1 // pred_check_branch
      %28 = sbr.rel (0) target = $region17
    $region16: #{encoder_image_full_forward.1} parent=1 // pred_region
      _
    $region17: #{encoder_image_full_forward.1} parent=1 // pred_fallthru
      _
    // Predicated region
    $region18: #{encoder_image_full_forward.1} parent=1 // pred_check
      _
    $region19: #{encoder_image_full_forward.1} parent=1 // pred_check_branch
      %30 = sbr.rel (0) target = $region21
    $region20: #{encoder_image_full_forward.1} parent=1 // pred_region
      _
    $region21: #{encoder_image_full_forward.1} parent=1 // pred_fallthru
      _
    // Predicated region
    $region22: #{encoder_image_full_forward.1} parent=1 // pred_check
      _
    $region23: #{encoder_image_full_forward.1} parent=1 // pred_check_branch
      %32 = sbr.rel (0) target = $region25
    $region24: #{encoder_image_full_forward.1} parent=1 // pred_region
      _
    $region25: #{encoder_image_full_forward.1} parent=1 // pred_fallthru
      _
    // Predicated region
    $region26: #{encoder_image_full_forward.1} parent=1 // pred_check
      _
    $region27: #{encoder_image_full_forward.1} parent=1 // pred_check_branch
      %34 = sbr.rel (0) target = $region29
    $region28: #{encoder_image_full_forward.1} parent=1 // pred_region
      _
    $region29: #{encoder_image_full_forward.1} parent=1 // pred_fallthru
      _
    // Predicated region
    $region30: #{encoder_image_full_forward.1} parent=1 // pred_check
      _
    $region31: #{encoder_image_full_forward.1} parent=1 // pred_check_branch
      %36 = sbr.rel (0) target = $region33
    $region32: #{encoder_image_full_forward.1} parent=1 // pred_region
      _
    $region33: #{encoder_image_full_forward.1} parent=1 // pred_fallthru
      _
    // Predicated region
    $region34: #{encoder_image_full_forward.1} parent=1 // pred_check
      _
    $region35: #{encoder_image_full_forward.1} parent=1 // pred_check_branch
      %38 = sbr.rel (0) target = $region37
    $region36: #{encoder_image_full_forward.1} parent=1 // pred_region
      _
    $region37: #{encoder_image_full_forward.1} parent=1 // pred_fallthru
      _
    // Predicated region
    $region38: #{encoder_image_full_forward.1} parent=1 // pred_check
      _
    $region39: #{encoder_image_full_forward.1} parent=1 // pred_check_branch
      %40 = sbr.rel (0) target = $region41
    $region40: #{encoder_image_full_forward.1} parent=1 // pred_region
      _
    $region41: #{encoder_image_full_forward.1} parent=1 // pred_fallthru
      _
    // Predicated region
    $region42: #{encoder_image_full_forward.1} parent=1 // pred_check
      _
    $region43: #{encoder_image_full_forward.1} parent=1 // pred_check_branch
      %42 = sbr.rel (0) target = $region45
    $region44: #{encoder_image_full_forward.1} parent=1 // pred_region
      _
    $region45: #{encoder_image_full_forward.1} parent=1 // pred_fallthru
      _
    // Predicated region
    $region46: #{encoder_image_full_forward.1} parent=1 // pred_check
      _
    $region47: #{encoder_image_full_forward.1} parent=1 // pred_check_branch
      %44 = sbr.rel (0) target = $region49
    $region48: #{encoder_image_full_forward.1} parent=1 // pred_region
      _
    $region49: #{encoder_image_full_forward.1} parent=1 // pred_fallthru
      _
    // Predicated region
    $region50: #{encoder_image_full_forward.1} parent=1 // pred_check
      _
    $region51: #{encoder_image_full_forward.1} parent=1 // pred_check_branch
      %46 = sbr.rel (0) target = $region53
    $region52: #{encoder_image_full_forward.1} parent=1 // pred_region
      _
    $region53: #{encoder_image_full_forward.1} parent=1 // pred_fallthru
      _
    // Predicated region
    $region54: #{encoder_image_full_forward.1} parent=1 // pred_check
      _
    $region55: #{encoder_image_full_forward.1} parent=1 // pred_check_branch
      %48 = sbr.rel (0) target = $region57
    $region56: #{encoder_image_full_forward.1} parent=1 // pred_region
      _
    $region57: #{encoder_image_full_forward.1} parent=1 // pred_fallthru
      _
    // Predicated region
    $region58: #{encoder_image_full_forward.1} parent=1 // pred_check
      _
    $region59: #{encoder_image_full_forward.1} parent=1 // pred_check_branch
      %50 = sbr.rel (0) target = $region61
    $region60: #{encoder_image_full_forward.1} parent=1 // pred_region
      _
    $region61: #{encoder_image_full_forward.1} parent=1 // pred_fallthru
      _
    %vm51 = vcmask 64512
    %52 = vst.msk [vmem:[#allocation2] sm:$0xff] %vm51, 0.0
    %53 = vst.msk [vmem:[#allocation2 + $0x8] sm:$0xff] %vm51, 0.0
    %vm54 = vcmask 58368
    %55 = vst.msk [vmem:[#allocation2 + $0x10] sm:$0x3] %vm54, 0.0
    %56 = vst.msk [vmem:[#allocation2 + $0x18] sm:$0xff] %vm51, 0.0
    %57 = vst.msk [vmem:[#allocation2 + $0x20] sm:$0xff] %vm51, 0.0
    %58 = vst.msk [vmem:[#allocation2 + $0x28] sm:$0x3] %vm54, 0.0
    %59 = vst.msk [vmem:[#allocation2 + $0x30] sm:$0xff] %vm51, 0.0
    %60 = vst.msk [vmem:[#allocation2 + $0x38] sm:$0xff] %vm51, 0.0
    %61 = vst.msk [vmem:[#allocation2 + $0x40] sm:$0x3] %vm54, 0.0
    %62 = vst.msk [vmem:[#allocation2 + $0x48] sm:$0xff] %vm51, 0.0
    %63 = vst.msk [vmem:[#allocation2 + $0x50] sm:$0xff] %vm51, 0.0
    %64 = vst.msk [vmem:[#allocation2 + $0x58] sm:$0x3] %vm54, 0.0
    %65 = vst.msk [vmem:[#allocation2 + $0x60] sm:$0xff] %vm51, 0.0
    %66 = vst.msk [vmem:[#allocation2 + $0x68] sm:$0xff] %vm51, 0.0
    %67 = vst.msk [vmem:[#allocation2 + $0x70] sm:$0x3] %vm54, 0.0
    %68 = vst.msk [vmem:[#allocation2 + $0x78] sm:$0xff] %vm51, 0.0
    %69 = vst.msk [vmem:[#allocation2 + $0x80] sm:$0xff] %vm51, 0.0
    %70 = vst.msk [vmem:[#allocation2 + $0x88] sm:$0x3] %vm54, 0.0
    %71 = vst.msk [vmem:[#allocation2 + $0x90] sm:$0xff] %vm51, 0.0
    %72 = vst.msk [vmem:[#allocation2 + $0x98] sm:$0xff] %vm51, 0.0
    %73 = vst.msk [vmem:[#allocation2 + $0xa0] sm:$0x3] %vm54, 0.0
    %74 = vst.msk [vmem:[#allocation2 + $0xa8] sm:$0xff] %vm51, 0.0
    %75 = vst.msk [vmem:[#allocation2 + $0xb0] sm:$0xff] %vm51, 0.0
    %76 = vst.msk [vmem:[#allocation2 + $0xb8] sm:$0x3] %vm54, 0.0
    %77 = vst.msk [vmem:[#allocation2 + $0xc0] sm:$0xff] %vm51, 0.0
    %78 = vst.msk [vmem:[#allocation2 + $0xc8] sm:$0xff] %vm51, 0.0
    %79 = vst.msk [vmem:[#allocation2 + $0xd0] sm:$0x3] %vm54, 0.0
    %80 = vst.msk [vmem:[#allocation2 + $0xd8] sm:$0xff] %vm51, 0.0
    %81 = vst.msk [vmem:[#allocation2 + $0xe0] sm:$0xff] %vm51, 0.0
    %82 = vst.msk [vmem:[#allocation2 + $0xe8] sm:$0x3] %vm54, 0.0
    %83 = vst.msk [vmem:[#allocation2 + $0xf0] sm:$0xff] %vm51, 0.0
    %84 = vst.msk [vmem:[#allocation2 + $0xf8] sm:$0xff] %vm51, 0.0
    %85 = vst.msk [vmem:[#allocation2 + $0x100] sm:$0x3] %vm54, 0.0
    %86 = vst.msk [vmem:[#allocation2 + $0x108] sm:$0xff] %vm51, 0.0
    %87 = vst.msk [vmem:[#allocation2 + $0x110] sm:$0xff] %vm51, 0.0
    %88 = vst.msk [vmem:[#allocation2 + $0x118] sm:$0x3] %vm54, 0.0
    %89 = vst.msk [vmem:[#allocation2 + $0x120] sm:$0xff] %vm51, 0.0
    %90 = vst.msk [vmem:[#allocation2 + $0x128] sm:$0xff] %vm51, 0.0
    %91 = vst.msk [vmem:[#allocation2 + $0x130] sm:$0x3] %vm54, 0.0
    %92 = vst.msk [vmem:[#allocation2 + $0x138] sm:$0xff] %vm51, 0.0
    %93 = vst.msk [vmem:[#allocation2 + $0x140] sm:$0xff] %vm51, 0.0
    %94 = vst.msk [vmem:[#allocation2 + $0x148] sm:$0x3] %vm54, 0.0
    %95 = vst.msk [vmem:[#allocation2 + $0x150] sm:$0xff] %vm51, 0.0
    %96 = vst.msk [vmem:[#allocation2 + $0x158] sm:$0xff] %vm51, 0.0
    %97 = vst.msk [vmem:[#allocation2 + $0x160] sm:$0x3] %vm54, 0.0
    %98 = vst.msk [vmem:[#allocation2 + $0x168] sm:$0xff] %vm51, 0.0
    %99 = vst.msk [vmem:[#allocation2 + $0x170] sm:$0xff] %vm51, 0.0
    %100 = vst.msk [vmem:[#allocation2 + $0x178] sm:$0x3] %vm54, 0.0
    %101 = vst.msk [vmem:[#allocation2 + $0x180] sm:$0xff] %vm51, 0.0
    %102 = vst.msk [vmem:[#allocation2 + $0x188] sm:$0xff] %vm51, 0.0
    %103 = vst.msk [vmem:[#allocation2 + $0x190] sm:$0x3] %vm54, 0.0
    %104 = vst.msk [vmem:[#allocation2 + $0x198] sm:$0xff] %vm51, 0.0
    %105 = vst.msk [vmem:[#allocation2 + $0x1a0] sm:$0xff] %vm51, 0.0
    %106 = vst.msk [vmem:[#allocation2 + $0x1a8] sm:$0x3] %vm54, 0.0
    %107 = vst.msk [vmem:[#allocation2 + $0x1b0] sm:$0xff] %vm51, 0.0
    %108 = vst.msk [vmem:[#allocation2 + $0x1b8] sm:$0xff] %vm51, 0.0
    %109 = vst.msk [vmem:[#allocation2 + $0x1c0] sm:$0x3] %vm54, 0.0
    %110 = vst.msk [vmem:[#allocation2 + $0x1c8] sm:$0xff] %vm51, 0.0
    %111 = vst.msk [vmem:[#allocation2 + $0x1d0] sm:$0xff] %vm51, 0.0
    %112 = vst.msk [vmem:[#allocation2 + $0x1d8] sm:$0x3] %vm54, 0.0
    %113 = vst.msk [vmem:[#allocation2 + $0x1e0] sm:$0xff] %vm51, 0.0
    %114 = vst.msk [vmem:[#allocation2 + $0x1e8] sm:$0xff] %vm51, 0.0
    %115 = vst.msk [vmem:[#allocation2 + $0x1f0] sm:$0x3] %vm54, 0.0
    %116 = vst.msk [vmem:[#allocation2 + $0x1f8] sm:$0xff] %vm51, 0.0
    %117 = vst.msk [vmem:[#allocation2 + $0x200] sm:$0xff] %vm51, 0.0
    %118 = vst.msk [vmem:[#allocation2 + $0x208] sm:$0x3] %vm54, 0.0
    %119 = vst.msk [vmem:[#allocation2 + $0x210] sm:$0xff] %vm51, 0.0
    %120 = vst.msk [vmem:[#allocation2 + $0x218] sm:$0xff] %vm51, 0.0
    %121 = vst.msk [vmem:[#allocation2 + $0x220] sm:$0x3] %vm54, 0.0
    %122 = vst.msk [vmem:[#allocation2 + $0x228] sm:$0xff] %vm51, 0.0
    %123 = vst.msk [vmem:[#allocation2 + $0x230] sm:$0xff] %vm51, 0.0
    %124 = vst.msk [vmem:[#allocation2 + $0x238] sm:$0x3] %vm54, 0.0
    %125 = vst.msk [vmem:[#allocation2 + $0x240] sm:$0xff] %vm51, 0.0
    %126 = vst.msk [vmem:[#allocation2 + $0x248] sm:$0xff] %vm51, 0.0
    %127 = vst.msk [vmem:[#allocation2 + $0x250] sm:$0x3] %vm54, 0.0
    %128 = vst.msk [vmem:[#allocation2 + $0x258] sm:$0xff] %vm51, 0.0
    %129 = vst.msk [vmem:[#allocation2 + $0x260] sm:$0xff] %vm51, 0.0
    %130 = vst.msk [vmem:[#allocation2 + $0x268] sm:$0x3] %vm54, 0.0
    %131 = vst.msk [vmem:[#allocation2 + $0x270] sm:$0xff] %vm51, 0.0
    %132 = vst.msk [vmem:[#allocation2 + $0x278] sm:$0xff] %vm51, 0.0
    %133 = vst.msk [vmem:[#allocation2 + $0x280] sm:$0x3] %vm54, 0.0
    %134 = vst.msk [vmem:[#allocation2 + $0x288] sm:$0xff] %vm51, 0.0
    %135 = vst.msk [vmem:[#allocation2 + $0x290] sm:$0xff] %vm51, 0.0
    %136 = vst.msk [vmem:[#allocation2 + $0x298] sm:$0x3] %vm54, 0.0
    %137 = vst.msk [vmem:[#allocation2 + $0x2a0] sm:$0xff] %vm51, 0.0
    %138 = vst.msk [vmem:[#allocation2 + $0x2a8] sm:$0xff] %vm51, 0.0
    %139 = vst.msk [vmem:[#allocation2 + $0x2b0] sm:$0x3] %vm54, 0.0
    %140 = vst.msk [vmem:[#allocation2 + $0x2b8] sm:$0xff] %vm51, 0.0
    %141 = vst.msk [vmem:[#allocation2 + $0x2c0] sm:$0xff] %vm51, 0.0
    %142 = vst.msk [vmem:[#allocation2 + $0x2c8] sm:$0x3] %vm54, 0.0
    %143 = vst.msk [vmem:[#allocation2 + $0x2d0] sm:$0xff] %vm51, 0.0
    %144 = vst.msk [vmem:[#allocation2 + $0x2d8] sm:$0xff] %vm51, 0.0
    %145 = vst.msk [vmem:[#allocation2 + $0x2e0] sm:$0x3] %vm54, 0.0
    %146 = vst.msk [vmem:[#allocation2 + $0x2e8] sm:$0xff] %vm51, 0.0
    %147 = vst.msk [vmem:[#allocation2 + $0x2f0] sm:$0xff] %vm51, 0.0
    %148 = vst.msk [vmem:[#allocation2 + $0x2f8] sm:$0x3] %vm54, 0.0
    %149 = vst.msk [vmem:[#allocation2 + $0x300] sm:$0xff] %vm51, 0.0
    %150 = vst.msk [vmem:[#allocation2 + $0x308] sm:$0xff] %vm51, 0.0
    %151 = vst.msk [vmem:[#allocation2 + $0x310] sm:$0x3] %vm54, 0.0
    %152 = vst.msk [vmem:[#allocation2 + $0x318] sm:$0xff] %vm51, 0.0
    %153 = vst.msk [vmem:[#allocation2 + $0x320] sm:$0xff] %vm51, 0.0
    %154 = vst.msk [vmem:[#allocation2 + $0x328] sm:$0x3] %vm54, 0.0
    %155 = vst.msk [vmem:[#allocation2 + $0x330] sm:$0xff] %vm51, 0.0
    %156 = vst.msk [vmem:[#allocation2 + $0x338] sm:$0xff] %vm51, 0.0
    %157 = vst.msk [vmem:[#allocation2 + $0x340] sm:$0x3] %vm54, 0.0
    %158 = vst.msk [vmem:[#allocation2 + $0x348] sm:$0xff] %vm51, 0.0
    %159 = vst.msk [vmem:[#allocation2 + $0x350] sm:$0xff] %vm51, 0.0
    %160 = vst.msk [vmem:[#allocation2 + $0x358] sm:$0x3] %vm54, 0.0
    %vm161 = vcmask 130048
    %162 = vst.msk [vmem:[#allocation3] sm:$0xff] %vm161, 0.0
    %vm163 = vcmask 123904
    %164 = vst.msk [vmem:[#allocation3 + $0x8] sm:$0x3] %vm163, 0.0
    %165 = vst.msk [vmem:[#allocation3 + $0x10] sm:$0xff] %vm161, 0.0
    %166 = vst.msk [vmem:[#allocation3 + $0x18] sm:$0x3] %vm163, 0.0
    %167 = vst.msk [vmem:[#allocation3 + $0x20] sm:$0xff] %vm161, 0.0
    %168 = vst.msk [vmem:[#allocation3 + $0x28] sm:$0x3] %vm163, 0.0
    %169 = vst.msk [vmem:[#allocation3 + $0x30] sm:$0xff] %vm161, 0.0
    %170 = vst.msk [vmem:[#allocation3 + $0x38] sm:$0x3] %vm163, 0.0
    %171 = vst.msk [vmem:[#allocation3 + $0x40] sm:$0xff] %vm161, 0.0
    %172 = vst.msk [vmem:[#allocation3 + $0x48] sm:$0x3] %vm163, 0.0
    %173 = vst.msk [vmem:[#allocation3 + $0x50] sm:$0xff] %vm161, 0.0
    %174 = vst.msk [vmem:[#allocation3 + $0x58] sm:$0x3] %vm163, 0.0
    %175 = vst.msk [vmem:[#allocation3 + $0x60] sm:$0xff] %vm161, 0.0
    %176 = vst.msk [vmem:[#allocation3 + $0x68] sm:$0x3] %vm163, 0.0
    %177 = vst.msk [vmem:[#allocation3 + $0x70] sm:$0xff] %vm161, 0.0
    %178 = vst.msk [vmem:[#allocation3 + $0x78] sm:$0x3] %vm163, 0.0
    %179 = vst.msk [vmem:[#allocation3 + $0x80] sm:$0xff] %vm161, 0.0
    %180 = vst.msk [vmem:[#allocation3 + $0x88] sm:$0x3] %vm163, 0.0
    %181 = vst.msk [vmem:[#allocation3 + $0x90] sm:$0xff] %vm161, 0.0
    %182 = vst.msk [vmem:[#allocation3 + $0x98] sm:$0x3] %vm163, 0.0
    %183 = vst.msk [vmem:[#allocation3 + $0xa0] sm:$0xff] %vm161, 0.0
    %184 = vst.msk [vmem:[#allocation3 + $0xa8] sm:$0x3] %vm163, 0.0
    %185 = vst.msk [vmem:[#allocation3 + $0xb0] sm:$0xff] %vm161, 0.0
    %186 = vst.msk [vmem:[#allocation3 + $0xb8] sm:$0x3] %vm163, 0.0
    %187 = vst.msk [vmem:[#allocation3 + $0xc0] sm:$0xff] %vm161, 0.0
    %188 = vst.msk [vmem:[#allocation3 + $0xc8] sm:$0x3] %vm163, 0.0
    %189 = vst.msk [vmem:[#allocation3 + $0xd0] sm:$0xff] %vm161, 0.0
    %190 = vst.msk [vmem:[#allocation3 + $0xd8] sm:$0x3] %vm163, 0.0
    %191 = vst.msk [vmem:[#allocation3 + $0xe0] sm:$0xff] %vm161, 0.0
    %192 = vst.msk [vmem:[#allocation3 + $0xe8] sm:$0x3] %vm163, 0.0
    %193 = vst.msk [vmem:[#allocation3 + $0xf0] sm:$0xff] %vm161, 0.0
    %194 = vst.msk [vmem:[#allocation3 + $0xf8] sm:$0x3] %vm163, 0.0
    %195 = vst.msk [vmem:[#allocation3 + $0x100] sm:$0xff] %vm161, 0.0
    %196 = vst.msk [vmem:[#allocation3 + $0x108] sm:$0x3] %vm163, 0.0
    %197 = vst.msk [vmem:[#allocation3 + $0x110] sm:$0xff] %vm161, 0.0
    %198 = vst.msk [vmem:[#allocation3 + $0x118] sm:$0x3] %vm163, 0.0
    %199 = vst.msk [vmem:[#allocation3 + $0x120] sm:$0xff] %vm161, 0.0
    %200 = vst.msk [vmem:[#allocation3 + $0x128] sm:$0x3] %vm163, 0.0
    %201 = vst.msk [vmem:[#allocation3 + $0x130] sm:$0xff] %vm161, 0.0
    %202 = vst.msk [vmem:[#allocation3 + $0x138] sm:$0x3] %vm163, 0.0
    %v203 = vld [vmem:[%s0] sm:$0xff]
    %v204 = vld [vmem:[%s0 + $0x8] sm:$0xff]
    %v205 = vld [vmem:[%s0 + $0x10] sm:$0xff]
    %v206 = vld [vmem:[%s0 + $0x18] sm:$0xff]
    %v207 = vld [vmem:[%s0 + $0x20] sm:$0xff]
    %v208 = vld [vmem:[%s0 + $0x28] sm:$0xff]
    %v209 = vld [vmem:[%s0 + $0x30] sm:$0xff]
    %v210 = vld [vmem:[%s0 + $0x38] sm:$0xff]
    %v211 = vld [vmem:[%s0 + $0x40] sm:$0xff]
    %v212 = vld [vmem:[%s0 + $0x48] sm:$0xff]
    %v213 = vld [vmem:[%s0 + $0x50] sm:$0xff]
    %v214 = vld [vmem:[%s0 + $0x58] sm:$0xff]
    %v215 = vld [vmem:[%s0 + $0x60] sm:$0xff]
    %v216 = vld [vmem:[%s0 + $0x68] sm:$0xff]
    %v217 = vld [vmem:[%s0 + $0x70] sm:$0xff]
    %v218 = vld [vmem:[%s0 + $0x78] sm:$0xff]
    %v219 = vld [vmem:[%s0 + $0x80] sm:$0xff]
    %v220 = vld [vmem:[%s0 + $0x88] sm:$0xff]
    %v221 = vld [vmem:[%s0 + $0x90] sm:$0xff]
    %v222 = vld [vmem:[%s0 + $0x98] sm:$0xff]
    %v223 = vld [vmem:[%s0 + $0xa0] sm:$0xff]
    %v224 = vld [vmem:[%s0 + $0xa8] sm:$0xff]
    %v225 = vld [vmem:[%s0 + $0xb0] sm:$0xff]
    %v226 = vld [vmem:[%s0 + $0xb8] sm:$0xff]
    %v227 = vld [vmem:[%s0 + $0xc0] sm:$0xff]
    %v228 = vld [vmem:[%s0 + $0xc8] sm:$0xff]
    %v229 = vld [vmem:[%s0 + $0xd0] sm:$0xff]
    %v230 = vld [vmem:[%s0 + $0xd8] sm:$0xff]
    %v231 = vld [vmem:[%s0 + $0xe0] sm:$0xff]
    %v232 = vld [vmem:[%s0 + $0xe8] sm:$0xff]
    %v233 = vld [vmem:[%s0 + $0xf0] sm:$0xff]
    %v234 = vld [vmem:[%s0 + $0xf8] sm:$0xff]
    %v235 = vld [vmem:[%s0 + $0x100] sm:$0xff]
    %v236 = vld [vmem:[%s0 + $0x108] sm:$0xff]
    %v237 = vld [vmem:[%s0 + $0x110] sm:$0xff]
    %v238 = vld [vmem:[%s0 + $0x118] sm:$0xff]
    %v239 = vld [vmem:[%s0 + $0x120] sm:$0xff]
    %v240 = vld [vmem:[%s0 + $0x128] sm:$0xff]
    %v241 = vld [vmem:[%s0 + $0x130] sm:$0xff]
    %v242 = vld [vmem:[%s0 + $0x138] sm:$0xff]
    %v243 = vld [vmem:[%s0 + $0x140] sm:$0xff]
    %v244 = vld [vmem:[%s0 + $0x148] sm:$0xff]
    %v245 = vld [vmem:[%s0 + $0x150] sm:$0xff]
    %v246 = vld [vmem:[%s0 + $0x158] sm:$0xff]
    %v247 = vld [vmem:[%s0 + $0x160] sm:$0xff]
    %v248 = vld [vmem:[%s0 + $0x168] sm:$0xff]
    %v249 = vld [vmem:[%s0 + $0x170] sm:$0xff]
    %v250 = vld [vmem:[%s0 + $0x178] sm:$0xff]
    %v251 = vld [vmem:[%s0 + $0x180] sm:$0xff]
    %v252 = vld [vmem:[%s0 + $0x188] sm:$0xff]
    %v253 = vld [vmem:[%s0 + $0x190] sm:$0xff]
    %v254 = vld [vmem:[%s0 + $0x198] sm:$0xff]
    %v255 = vld [vmem:[%s0 + $0x1a0] sm:$0xff]
    %v256 = vld [vmem:[%s0 + $0x1a8] sm:$0xff]
    %v257 = vld [vmem:[%s0 + $0x1b0] sm:$0xff]
    %v258 = vld [vmem:[%s0 + $0x1b8] sm:$0xff]
    %v259 = vld [vmem:[%s0 + $0x1c0] sm:$0xff]
    %v260 = vld [vmem:[%s0 + $0x1c8] sm:$0xff]
    %v261 = vld [vmem:[%s0 + $0x1d0] sm:$0xff]
    %v262 = vld [vmem:[%s0 + $0x1d8] sm:$0xff]
    %v263 = vld [vmem:[%s0 + $0x1e0] sm:$0xff]
    %v264 = vld [vmem:[%s0 + $0x1e8] sm:$0xff]
    %v265 = vld [vmem:[%s0 + $0x1f0] sm:$0xff]
    %v266 = vld [vmem:[%s0 + $0x1f8] sm:$0xff]
    %s267 = scalar_lea.vmem [#allocation2], 24
    %vm268 = vcmask 23552
    %269 = vst.msk [vmem:[%s267 + $0x1] sm:$0xff] %vm268, %v203
    %270 = vst.msk [vmem:[%s267 + $0x9] sm:$0xff] %vm268, %v204
    %271 = vst.msk [vmem:[%s267 + $0x19] sm:$0xff] %vm268, %v205
    %272 = vst.msk [vmem:[%s267 + $0x21] sm:$0xff] %vm268, %v206
    %273 = vst.msk [vmem:[%s267 + $0x31] sm:$0xff] %vm268, %v207
    %274 = vst.msk [vmem:[%s267 + $0x39] sm:$0xff] %vm268, %v208
    %275 = vst.msk [vmem:[%s267 + $0x49] sm:$0xff] %vm268, %v209
    %276 = vst.msk [vmem:[%s267 + $0x51] sm:$0xff] %vm268, %v210
    %277 = vst.msk [vmem:[%s267 + $0x61] sm:$0xff] %vm268, %v211
    %278 = vst.msk [vmem:[%s267 + $0x69] sm:$0xff] %vm268, %v212
    %279 = vst.msk [vmem:[%s267 + $0x79] sm:$0xff] %vm268, %v213
    %280 = vst.msk [vmem:[%s267 + $0x81] sm:$0xff] %vm268, %v214
    %281 = vst.msk [vmem:[%s267 + $0x91] sm:$0xff] %vm268, %v215
    %282 = vst.msk [vmem:[%s267 + $0x99] sm:$0xff] %vm268, %v216
    %283 = vst.msk [vmem:[%s267 + $0xa9] sm:$0xff] %vm268, %v217
    %284 = vst.msk [vmem:[%s267 + $0xb1] sm:$0xff] %vm268, %v218
    %285 = vst.msk [vmem:[%s267 + $0xc1] sm:$0xff] %vm268, %v219
    %286 = vst.msk [vmem:[%s267 + $0xc9] sm:$0xff] %vm268, %v220
    %287 = vst.msk [vmem:[%s267 + $0xd9] sm:$0xff] %vm268, %v221
    %288 = vst.msk [vmem:[%s267 + $0xe1] sm:$0xff] %vm268, %v222
    %289 = vst.msk [vmem:[%s267 + $0xf1] sm:$0xff] %vm268, %v223
    %290 = vst.msk [vmem:[%s267 + $0xf9] sm:$0xff] %vm268, %v224
    %291 = vst.msk [vmem:[%s267 + $0x109] sm:$0xff] %vm268, %v225
    %292 = vst.msk [vmem:[%s267 + $0x111] sm:$0xff] %vm268, %v226
    %293 = vst.msk [vmem:[%s267 + $0x121] sm:$0xff] %vm268, %v227
    %294 = vst.msk [vmem:[%s267 + $0x129] sm:$0xff] %vm268, %v228
    %295 = vst.msk [vmem:[%s267 + $0x139] sm:$0xff] %vm268, %v229
    %296 = vst.msk [vmem:[%s267 + $0x141] sm:$0xff] %vm268, %v230
    %297 = vst.msk [vmem:[%s267 + $0x151] sm:$0xff] %vm268, %v231
    %298 = vst.msk [vmem:[%s267 + $0x159] sm:$0xff] %vm268, %v232
    %299 = vst.msk [vmem:[%s267 + $0x169] sm:$0xff] %vm268, %v233
    %300 = vst.msk [vmem:[%s267 + $0x171] sm:$0xff] %vm268, %v234
    %301 = vst.msk [vmem:[%s267 + $0x1b1] sm:$0xff] %vm268, %v235
    %302 = vst.msk [vmem:[%s267 + $0x1b9] sm:$0xff] %vm268, %v236
    %303 = vst.msk [vmem:[%s267 + $0x1c9] sm:$0xff] %vm268, %v237
    %304 = vst.msk [vmem:[%s267 + $0x1d1] sm:$0xff] %vm268, %v238
    %305 = vst.msk [vmem:[%s267 + $0x1e1] sm:$0xff] %vm268, %v239
    %306 = vst.msk [vmem:[%s267 + $0x1e9] sm:$0xff] %vm268, %v240
    %307 = vst.msk [vmem:[%s267 + $0x1f9] sm:$0xff] %vm268, %v241
    %308 = vst.msk [vmem:[%s267 + $0x201] sm:$0xff] %vm268, %v242
    %309 = vst.msk [vmem:[%s267 + $0x211] sm:$0xff] %vm268, %v243
    %310 = vst.msk [vmem:[%s267 + $0x219] sm:$0xff] %vm268, %v244
    %311 = vst.msk [vmem:[%s267 + $0x229] sm:$0xff] %vm268, %v245
    %312 = vst.msk [vmem:[%s267 + $0x231] sm:$0xff] %vm268, %v246
    %313 = vst.msk [vmem:[%s267 + $0x241] sm:$0xff] %vm268, %v247
    %314 = vst.msk [vmem:[%s267 + $0x249] sm:$0xff] %vm268, %v248
    %315 = vst.msk [vmem:[%s267 + $0x259] sm:$0xff] %vm268, %v249
    %316 = vst.msk [vmem:[%s267 + $0x261] sm:$0xff] %vm268, %v250
    %317 = vst.msk [vmem:[%s267 + $0x271] sm:$0xff] %vm268, %v251
    %318 = vst.msk [vmem:[%s267 + $0x279] sm:$0xff] %vm268, %v252
    %319 = vst.msk [vmem:[%s267 + $0x289] sm:$0xff] %vm268, %v253
    %320 = vst.msk [vmem:[%s267 + $0x291] sm:$0xff] %vm268, %v254
    %321 = vst.msk [vmem:[%s267 + $0x2a1] sm:$0xff] %vm268, %v255
    %322 = vst.msk [vmem:[%s267 + $0x2a9] sm:$0xff] %vm268, %v256
    %323 = vst.msk [vmem:[%s267 + $0x2b9] sm:$0xff] %vm268, %v257
    %324 = vst.msk [vmem:[%s267 + $0x2c1] sm:$0xff] %vm268, %v258
    %325 = vst.msk [vmem:[%s267 + $0x2d1] sm:$0xff] %vm268, %v259
    %326 = vst.msk [vmem:[%s267 + $0x2d9] sm:$0xff] %vm268, %v260
    %327 = vst.msk [vmem:[%s267 + $0x2e9] sm:$0xff] %vm268, %v261
    %328 = vst.msk [vmem:[%s267 + $0x2f1] sm:$0xff] %vm268, %v262
    %329 = vst.msk [vmem:[%s267 + $0x301] sm:$0xff] %vm268, %v263
    %330 = vst.msk [vmem:[%s267 + $0x309] sm:$0xff] %vm268, %v264
    %331 = vst.msk [vmem:[%s267 + $0x319] sm:$0xff] %vm268, %v265
    %332 = vst.msk [vmem:[%s267 + $0x321] sm:$0xff] %vm268, %v266
    %v333 = vld [vmem:[#allocation2] sm:$0xff]
    %v334 = vld [vmem:[#allocation2 + $0x8] sm:$0xff]
    %v335 = vld [vmem:[#allocation2 + $0x18] sm:$0xff]
    %v336 = vld [vmem:[#allocation2 + $0x20] sm:$0xff]
    %v337 = vld [vmem:[#allocation2 + $0x30] sm:$0xff]
    %v338 = vld [vmem:[#allocation2 + $0x38] sm:$0xff]
    %v339 = vld [vmem:[#allocation2 + $0x48] sm:$0xff]
    %v340 = vld [vmem:[#allocation2 + $0x50] sm:$0xff]
    %v341 = vld [vmem:[#allocation2 + $0x60] sm:$0xff]
    %v342 = vld [vmem:[#allocation2 + $0x68] sm:$0xff]
    %v343 = vld [vmem:[#allocation2 + $0x78] sm:$0xff]
    %v344 = vld [vmem:[#allocation2 + $0x80] sm:$0xff]
    %v345 = vld [vmem:[#allocation2 + $0x90] sm:$0xff]
    %v346 = vld [vmem:[#allocation2 + $0x98] sm:$0xff]
    %v347 = vld [vmem:[#allocation2 + $0xa8] sm:$0xff]
    %v348 = vld [vmem:[#allocation2 + $0xb0] sm:$0xff]
    %v349 = vld [vmem:[#allocation2 + $0xc0] sm:$0xff]
    %v350 = vld [vmem:[#allocation2 + $0xc8] sm:$0xff]
    %v351 = vld [vmem:[#allocation2 + $0xd8] sm:$0xff]
    %v352 = vld [vmem:[#allocation2 + $0xe0] sm:$0xff]
    %v353 = vld [vmem:[#allocation2 + $0xf0] sm:$0xff]
    %v354 = vld [vmem:[#allocation2 + $0xf8] sm:$0xff]
    %v355 = vld [vmem:[#allocation2 + $0x108] sm:$0xff]
    %v356 = vld [vmem:[#allocation2 + $0x110] sm:$0xff]
    %v357 = vld [vmem:[#allocation2 + $0x120] sm:$0xff]
    %v358 = vld [vmem:[#allocation2 + $0x128] sm:$0xff]
    %v359 = vld [vmem:[#allocation2 + $0x138] sm:$0xff]
    %v360 = vld [vmem:[#allocation2 + $0x140] sm:$0xff]
    %v361 = vld [vmem:[#allocation2 + $0x150] sm:$0xff]
    %v362 = vld [vmem:[#allocation2 + $0x158] sm:$0xff]
    %v363 = vld [vmem:[#allocation2 + $0x168] sm:$0xff]
    %v364 = vld [vmem:[#allocation2 + $0x170] sm:$0xff]
    %v365 = vld [vmem:[#allocation2 + $0x1b0] sm:$0xff]
    %v366 = vld [vmem:[#allocation2 + $0x1b8] sm:$0xff]
    %v367 = vld [vmem:[#allocation2 + $0x1c8] sm:$0xff]
    %v368 = vld [vmem:[#allocation2 + $0x1d0] sm:$0xff]
    %v369 = vld [vmem:[#allocation2 + $0x1e0] sm:$0xff]
    %v370 = vld [vmem:[#allocation2 + $0x1e8] sm:$0xff]
    %v371 = vld [vmem:[#allocation2 + $0x1f8] sm:$0xff]
    %v372 = vld [vmem:[#allocation2 + $0x200] sm:$0xff]
    %v373 = vld [vmem:[#allocation2 + $0x210] sm:$0xff]
    %v374 = vld [vmem:[#allocation2 + $0x218] sm:$0xff]
    %v375 = vld [vmem:[#allocation2 + $0x228] sm:$0xff]
    %v376 = vld [vmem:[#allocation2 + $0x230] sm:$0xff]
    %v377 = vld [vmem:[#allocation2 + $0x240] sm:$0xff]
    %v378 = vld [vmem:[#allocation2 + $0x248] sm:$0xff]
    %v379 = vld [vmem:[#allocation2 + $0x258] sm:$0xff]
    %v380 = vld [vmem:[#allocation2 + $0x260] sm:$0xff]
    %v381 = vld [vmem:[#allocation2 + $0x270] sm:$0xff]
    %v382 = vld [vmem:[#allocation2 + $0x278] sm:$0xff]
    %v383 = vld [vmem:[#allocation2 + $0x288] sm:$0xff]
    %v384 = vld [vmem:[#allocation2 + $0x290] sm:$0xff]
    %v385 = vld [vmem:[#allocation2 + $0x2a0] sm:$0xff]
    %v386 = vld [vmem:[#allocation2 + $0x2a8] sm:$0xff]
    %v387 = vld [vmem:[#allocation2 + $0x2b8] sm:$0xff]
    %v388 = vld [vmem:[#allocation2 + $0x2c0] sm:$0xff]
    %v389 = vld [vmem:[#allocation2 + $0x2d0] sm:$0xff]
    %v390 = vld [vmem:[#allocation2 + $0x2d8] sm:$0xff]
    %v391 = vld [vmem:[#allocation2 + $0x2e8] sm:$0xff]
    %v392 = vld [vmem:[#allocation2 + $0x2f0] sm:$0xff]
    %v393 = vld [vmem:[#allocation2 + $0x300] sm:$0xff]
    %v394 = vld [vmem:[#allocation2 + $0x308] sm:$0xff]
    %v395 = vld [vmem:[#allocation2 + $0x318] sm:$0xff]
    %v396 = vld [vmem:[#allocation2 + $0x320] sm:$0xff]
    %397 = vst.msk [vmem:[#allocation4] sm:$0xff] %vm268, %v333
    %398 = vst.msk [vmem:[#allocation4 + $0x10] sm:$0xff] %vm268, %v334
    %399 = vst.msk [vmem:[#allocation4 + $0x20] sm:$0xff] %vm268, %v335
    %400 = vst.msk [vmem:[#allocation4 + $0x30] sm:$0xff] %vm268, %v336
    %401 = vst.msk [vmem:[#allocation4 + $0x40] sm:$0xff] %vm268, %v337
    %402 = vst.msk [vmem:[#allocation4 + $0x50] sm:$0xff] %vm268, %v338
    %403 = vst.msk [vmem:[#allocation4 + $0x60] sm:$0xff] %vm268, %v339
    %404 = vst.msk [vmem:[#allocation4 + $0x70] sm:$0xff] %vm268, %v340
    %405 = vst.msk [vmem:[#allocation4 + $0x80] sm:$0xff] %vm268, %v341
    %406 = vst.msk [vmem:[#allocation4 + $0x90] sm:$0xff] %vm268, %v342
    %407 = vst.msk [vmem:[#allocation4 + $0xa0] sm:$0xff] %vm268, %v343
    %408 = vst.msk [vmem:[#allocation4 + $0xb0] sm:$0xff] %vm268, %v344
    %409 = vst.msk [vmem:[#allocation4 + $0xc0] sm:$0xff] %vm268, %v345
    %410 = vst.msk [vmem:[#allocation4 + $0xd0] sm:$0xff] %vm268, %v346
    %411 = vst.msk [vmem:[#allocation4 + $0xe0] sm:$0xff] %vm268, %v347
    %412 = vst.msk [vmem:[#allocation4 + $0xf0] sm:$0xff] %vm268, %v348
    %413 = vst.msk [vmem:[#allocation4 + $0x100] sm:$0xff] %vm268, %v349
    %414 = vst.msk [vmem:[#allocation4 + $0x110] sm:$0xff] %vm268, %v350
    %415 = vst.msk [vmem:[#allocation4 + $0x120] sm:$0xff] %vm268, %v351
    %416 = vst.msk [vmem:[#allocation4 + $0x130] sm:$0xff] %vm268, %v352
    %417 = vst.msk [vmem:[#allocation4 + $0x140] sm:$0xff] %vm268, %v353
    %418 = vst.msk [vmem:[#allocation4 + $0x150] sm:$0xff] %vm268, %v354
    %419 = vst.msk [vmem:[#allocation4 + $0x160] sm:$0xff] %vm268, %v355
    %420 = vst.msk [vmem:[#allocation4 + $0x170] sm:$0xff] %vm268, %v356
    %421 = vst.msk [vmem:[#allocation4 + $0x180] sm:$0xff] %vm268, %v357
    %422 = vst.msk [vmem:[#allocation4 + $0x190] sm:$0xff] %vm268, %v358
    %423 = vst.msk [vmem:[#allocation4 + $0x1a0] sm:$0xff] %vm268, %v359
    %424 = vst.msk [vmem:[#allocation4 + $0x1b0] sm:$0xff] %vm268, %v360
    %425 = vst.msk [vmem:[#allocation4 + $0x1c0] sm:$0xff] %vm268, %v361
    %426 = vst.msk [vmem:[#allocation4 + $0x1d0] sm:$0xff] %vm268, %v362
    %427 = vst.msk [vmem:[#allocation4 + $0x1e0] sm:$0xff] %vm268, %v363
    %428 = vst.msk [vmem:[#allocation4 + $0x1f0] sm:$0xff] %vm268, %v364
    %429 = vst.msk [vmem:[#allocation4 + $0x200] sm:$0xff] %vm268, %v365
    %430 = vst.msk [vmem:[#allocation4 + $0x210] sm:$0xff] %vm268, %v366
    %431 = vst.msk [vmem:[#allocation4 + $0x220] sm:$0xff] %vm268, %v367
    %432 = vst.msk [vmem:[#allocation4 + $0x230] sm:$0xff] %vm268, %v368
    %433 = vst.msk [vmem:[#allocation4 + $0x240] sm:$0xff] %vm268, %v369
    %434 = vst.msk [vmem:[#allocation4 + $0x250] sm:$0xff] %vm268, %v370
    %435 = vst.msk [vmem:[#allocation4 + $0x260] sm:$0xff] %vm268, %v371
    %436 = vst.msk [vmem:[#allocation4 + $0x270] sm:$0xff] %vm268, %v372
    %437 = vst.msk [vmem:[#allocation4 + $0x280] sm:$0xff] %vm268, %v373
    %438 = vst.msk [vmem:[#allocation4 + $0x290] sm:$0xff] %vm268, %v374
    %439 = vst.msk [vmem:[#allocation4 + $0x2a0] sm:$0xff] %vm268, %v375
    %440 = vst.msk [vmem:[#allocation4 + $0x2b0] sm:$0xff] %vm268, %v376
    %441 = vst.msk [vmem:[#allocation4 + $0x2c0] sm:$0xff] %vm268, %v377
    %442 = vst.msk [vmem:[#allocation4 + $0x2d0] sm:$0xff] %vm268, %v378
    %443 = vst.msk [vmem:[#allocation4 + $0x2e0] sm:$0xff] %vm268, %v379
    %444 = vst.msk [vmem:[#allocation4 + $0x2f0] sm:$0xff] %vm268, %v380
    %445 = vst.msk [vmem:[#allocation4 + $0x300] sm:$0xff] %vm268, %v381
    %446 = vst.msk [vmem:[#allocation4 + $0x310] sm:$0xff] %vm268, %v382
    %447 = vst.msk [vmem:[#allocation4 + $0x320] sm:$0xff] %vm268, %v383
    %448 = vst.msk [vmem:[#allocation4 + $0x330] sm:$0xff] %vm268, %v384
    %449 = vst.msk [vmem:[#allocation4 + $0x340] sm:$0xff] %vm268, %v385
    %450 = vst.msk [vmem:[#allocation4 + $0x350] sm:$0xff] %vm268, %v386
    %451 = vst.msk [vmem:[#allocation4 + $0x360] sm:$0xff] %vm268, %v387
    %452 = vst.msk [vmem:[#allocation4 + $0x370] sm:$0xff] %vm268, %v388
    %453 = vst.msk [vmem:[#allocation4 + $0x380] sm:$0xff] %vm268, %v389
    %454 = vst.msk [vmem:[#allocation4 + $0x390] sm:$0xff] %vm268, %v390
    %455 = vst.msk [vmem:[#allocation4 + $0x3a0] sm:$0xff] %vm268, %v391
    %456 = vst.msk [vmem:[#allocation4 + $0x3b0] sm:$0xff] %vm268, %v392
    %457 = vst.msk [vmem:[#allocation4 + $0x3c0] sm:$0xff] %vm268, %v393
    %458 = vst.msk [vmem:[#allocation4 + $0x3d0] sm:$0xff] %vm268, %v394
    %459 = vst.msk [vmem:[#allocation4 + $0x3e0] sm:$0xff] %vm268, %v395
    %460 = vst.msk [vmem:[#allocation4 + $0x3f0] sm:$0xff] %vm268, %v396
    %v461 = vld [vmem:[#allocation2 + $0x1] sm:$0xff]
    %v462 = vld [vmem:[#allocation2 + $0x9] sm:$0xff]
    %v463 = vld [vmem:[#allocation2 + $0x19] sm:$0xff]
    %v464 = vld [vmem:[#allocation2 + $0x21] sm:$0xff]
    %v465 = vld [vmem:[#allocation2 + $0x31] sm:$0xff]
    %v466 = vld [vmem:[#allocation2 + $0x39] sm:$0xff]
    %v467 = vld [vmem:[#allocation2 + $0x49] sm:$0xff]
    %v468 = vld [vmem:[#allocation2 + $0x51] sm:$0xff]
    %v469 = vld [vmem:[#allocation2 + $0x61] sm:$0xff]
    %v470 = vld [vmem:[#allocation2 + $0x69] sm:$0xff]
    %v471 = vld [vmem:[#allocation2 + $0x79] sm:$0xff]
    %v472 = vld [vmem:[#allocation2 + $0x81] sm:$0xff]
    %v473 = vld [vmem:[#allocation2 + $0x91] sm:$0xff]
    %v474 = vld [vmem:[#allocation2 + $0x99] sm:$0xff]
    %v475 = vld [vmem:[#allocation2 + $0xa9] sm:$0xff]
    %v476 = vld [vmem:[#allocation2 + $0xb1] sm:$0xff]
    %v477 = vld [vmem:[#allocation2 + $0xc1] sm:$0xff]
    %v478 = vld [vmem:[#allocation2 + $0xc9] sm:$0xff]
    %v479 = vld [vmem:[#allocation2 + $0xd9] sm:$0xff]
    %v480 = vld [vmem:[#allocation2 + $0xe1] sm:$0xff]
    %v481 = vld [vmem:[#allocation2 + $0xf1] sm:$0xff]
    %v482 = vld [vmem:[#allocation2 + $0xf9] sm:$0xff]
    %v483 = vld [vmem:[#allocation2 + $0x109] sm:$0xff]
    %v484 = vld [vmem:[#allocation2 + $0x111] sm:$0xff]
    %v485 = vld [vmem:[#allocation2 + $0x121] sm:$0xff]
    %v486 = vld [vmem:[#allocation2 + $0x129] sm:$0xff]
    %v487 = vld [vmem:[#allocation2 + $0x139] sm:$0xff]
    %v488 = vld [vmem:[#allocation2 + $0x141] sm:$0xff]
    %v489 = vld [vmem:[#allocation2 + $0x151] sm:$0xff]
    %v490 = vld [vmem:[#allocation2 + $0x159] sm:$0xff]
    %v491 = vld [vmem:[#allocation2 + $0x169] sm:$0xff]
    %v492 = vld [vmem:[#allocation2 + $0x171] sm:$0xff]
    %v493 = vld [vmem:[#allocation2 + $0x1b1] sm:$0xff]
    %v494 = vld [vmem:[#allocation2 + $0x1b9] sm:$0xff]
    %v495 = vld [vmem:[#allocation2 + $0x1c9] sm:$0xff]
    %v496 = vld [vmem:[#allocation2 + $0x1d1] sm:$0xff]
    %v497 = vld [vmem:[#allocation2 + $0x1e1] sm:$0xff]
    %v498 = vld [vmem:[#allocation2 + $0x1e9] sm:$0xff]
    %v499 = vld [vmem:[#allocation2 + $0x1f9] sm:$0xff]
    %v500 = vld [vmem:[#allocation2 + $0x201] sm:$0xff]
    %v501 = vld [vmem:[#allocation2 + $0x211] sm:$0xff]
    %v502 = vld [vmem:[#allocation2 + $0x219] sm:$0xff]
    %v503 = vld [vmem:[#allocation2 + $0x229] sm:$0xff]
    %v504 = vld [vmem:[#allocation2 + $0x231] sm:$0xff]
    %v505 = vld [vmem:[#allocation2 + $0x241] sm:$0xff]
    %v506 = vld [vmem:[#allocation2 + $0x249] sm:$0xff]
    %v507 = vld [vmem:[#allocation2 + $0x259] sm:$0xff]
    %v508 = vld [vmem:[#allocation2 + $0x261] sm:$0xff]
    %v509 = vld [vmem:[#allocation2 + $0x271] sm:$0xff]
    %v510 = vld [vmem:[#allocation2 + $0x279] sm:$0xff]
    %v511 = vld [vmem:[#allocation2 + $0x289] sm:$0xff]
    %v512 = vld [vmem:[#allocation2 + $0x291] sm:$0xff]
    %v513 = vld [vmem:[#allocation2 + $0x2a1] sm:$0xff]
    %v514 = vld [vmem:[#allocation2 + $0x2a9] sm:$0xff]
    %v515 = vld [vmem:[#allocation2 + $0x2b9] sm:$0xff]
    %v516 = vld [vmem:[#allocation2 + $0x2c1] sm:$0xff]
    %v517 = vld [vmem:[#allocation2 + $0x2d1] sm:$0xff]
    %v518 = vld [vmem:[#allocation2 + $0x2d9] sm:$0xff]
    %v519 = vld [vmem:[#allocation2 + $0x2e9] sm:$0xff]
    %v520 = vld [vmem:[#allocation2 + $0x2f1] sm:$0xff]
    %v521 = vld [vmem:[#allocation2 + $0x301] sm:$0xff]
    %v522 = vld [vmem:[#allocation2 + $0x309] sm:$0xff]
    %v523 = vld [vmem:[#allocation2 + $0x319] sm:$0xff]
    %v524 = vld [vmem:[#allocation2 + $0x321] sm:$0xff]
    %589 = vrot.lane.b32.xlu0 %v461, 3
    %v590 = vpop.permute.xlu0 %589
    %591 = vrot.lane.b32.xlu0 %v462, 3
    %v592 = vpop.permute.xlu0 %591
    %593 = vrot.lane.b32.xlu0 %v463, 3
    %v594 = vpop.permute.xlu0 %593
    %595 = vrot.lane.b32.xlu0 %v464, 3
    %v596 = vpop.permute.xlu0 %595
    %597 = vrot.lane.b32.xlu0 %v465, 3
    %v598 = vpop.permute.xlu0 %597
    %599 = vrot.lane.b32.xlu0 %v466, 3
    %v600 = vpop.permute.xlu0 %599
    %601 = vrot.lane.b32.xlu0 %v467, 3
    %v602 = vpop.permute.xlu0 %601
    %603 = vrot.lane.b32.xlu0 %v468, 3
    %v604 = vpop.permute.xlu0 %603
    %605 = vrot.lane.b32.xlu0 %v469, 3
    %v606 = vpop.permute.xlu0 %605
    %607 = vrot.lane.b32.xlu0 %v470, 3
    %v608 = vpop.permute.xlu0 %607
    %609 = vrot.lane.b32.xlu0 %v471, 3
    %v610 = vpop.permute.xlu0 %609
    %611 = vrot.lane.b32.xlu0 %v472, 3
    %v612 = vpop.permute.xlu0 %611
    %613 = vrot.lane.b32.xlu0 %v473, 3
    %v614 = vpop.permute.xlu0 %613
    %615 = vrot.lane.b32.xlu0 %v474, 3
    %v616 = vpop.permute.xlu0 %615
    %617 = vrot.lane.b32.xlu0 %v475, 3
    %v618 = vpop.permute.xlu0 %617
    %619 = vrot.lane.b32.xlu0 %v476, 3
    %v620 = vpop.permute.xlu0 %619
    %621 = vrot.lane.b32.xlu0 %v477, 3
    %v622 = vpop.permute.xlu0 %621
    %623 = vrot.lane.b32.xlu0 %v478, 3
    %v624 = vpop.permute.xlu0 %623
    %625 = vrot.lane.b32.xlu0 %v479, 3
    %v626 = vpop.permute.xlu0 %625
    %627 = vrot.lane.b32.xlu0 %v480, 3
    %v628 = vpop.permute.xlu0 %627
    %629 = vrot.lane.b32.xlu0 %v481, 3
    %v630 = vpop.permute.xlu0 %629
    %631 = vrot.lane.b32.xlu0 %v482, 3
    %v632 = vpop.permute.xlu0 %631
    %633 = vrot.lane.b32.xlu0 %v483, 3
    %v634 = vpop.permute.xlu0 %633
    %635 = vrot.lane.b32.xlu0 %v484, 3
    %v636 = vpop.permute.xlu0 %635
    %637 = vrot.lane.b32.xlu0 %v485, 3
    %v638 = vpop.permute.xlu0 %637
    %639 = vrot.lane.b32.xlu0 %v486, 3
    %v640 = vpop.permute.xlu0 %639
    %641 = vrot.lane.b32.xlu0 %v487, 3
    %v642 = vpop.permute.xlu0 %641
    %643 = vrot.lane.b32.xlu0 %v488, 3
    %v644 = vpop.permute.xlu0 %643
    %645 = vrot.lane.b32.xlu0 %v489, 3
    %v646 = vpop.permute.xlu0 %645
    %647 = vrot.lane.b32.xlu0 %v490, 3
    %v648 = vpop.permute.xlu0 %647
    %649 = vrot.lane.b32.xlu0 %v491, 3
    %v650 = vpop.permute.xlu0 %649
    %651 = vrot.lane.b32.xlu0 %v492, 3
    %v652 = vpop.permute.xlu0 %651
    %653 = vrot.lane.b32.xlu0 %v493, 3
    %v654 = vpop.permute.xlu0 %653
    %655 = vrot.lane.b32.xlu0 %v494, 3
    %v656 = vpop.permute.xlu0 %655
    %657 = vrot.lane.b32.xlu0 %v495, 3
    %v658 = vpop.permute.xlu0 %657
    %659 = vrot.lane.b32.xlu0 %v496, 3
    %v660 = vpop.permute.xlu0 %659
    %661 = vrot.lane.b32.xlu0 %v497, 3
    %v662 = vpop.permute.xlu0 %661
    %663 = vrot.lane.b32.xlu0 %v498, 3
    %v664 = vpop.permute.xlu0 %663
    %665 = vrot.lane.b32.xlu0 %v499, 3
    %v666 = vpop.permute.xlu0 %665
    %667 = vrot.lane.b32.xlu0 %v500, 3
    %v668 = vpop.permute.xlu0 %667
    %669 = vrot.lane.b32.xlu0 %v501, 3
    %v670 = vpop.permute.xlu0 %669
    %671 = vrot.lane.b32.xlu0 %v502, 3
    %v672 = vpop.permute.xlu0 %671
    %673 = vrot.lane.b32.xlu0 %v503, 3
    %v674 = vpop.permute.xlu0 %673
    %675 = vrot.lane.b32.xlu0 %v504, 3
    %v676 = vpop.permute.xlu0 %675
    %677 = vrot.lane.b32.xlu0 %v505, 3
    %v678 = vpop.permute.xlu0 %677
    %679 = vrot.lane.b32.xlu0 %v506, 3
    %v680 = vpop.permute.xlu0 %679
    %681 = vrot.lane.b32.xlu0 %v507, 3
    %v682 = vpop.permute.xlu0 %681
    %683 = vrot.lane.b32.xlu0 %v508, 3
    %v684 = vpop.permute.xlu0 %683
    %685 = vrot.lane.b32.xlu0 %v509, 3
    %v686 = vpop.permute.xlu0 %685
    %687 = vrot.lane.b32.xlu0 %v510, 3
    %v688 = vpop.permute.xlu0 %687
    %689 = vrot.lane.b32.xlu0 %v511, 3
    %v690 = vpop.permute.xlu0 %689
    %691 = vrot.lane.b32.xlu0 %v512, 3
    %v692 = vpop.permute.xlu0 %691
    %693 = vrot.lane.b32.xlu0 %v513, 3
    %v694 = vpop.permute.xlu0 %693
    %695 = vrot.lane.b32.xlu0 %v514, 3
    %v696 = vpop.permute.xlu0 %695
    %697 = vrot.lane.b32.xlu0 %v515, 3
    %v698 = vpop.permute.xlu0 %697
    %699 = vrot.lane.b32.xlu0 %v516, 3
    %v700 = vpop.permute.xlu0 %699
    %701 = vrot.lane.b32.xlu0 %v517, 3
    %v702 = vpop.permute.xlu0 %701
    %703 = vrot.lane.b32.xlu0 %v518, 3
    %v704 = vpop.permute.xlu0 %703
    %705 = vrot.lane.b32.xlu0 %v519, 3
    %v706 = vpop.permute.xlu0 %705
    %707 = vrot.lane.b32.xlu0 %v520, 3
    %v708 = vpop.permute.xlu0 %707
    %709 = vrot.lane.b32.xlu0 %v521, 3
    %v710 = vpop.permute.xlu0 %709
    %711 = vrot.lane.b32.xlu0 %v522, 3
    %v712 = vpop.permute.xlu0 %711
    %713 = vrot.lane.b32.xlu0 %v523, 3
    %v714 = vpop.permute.xlu0 %713
    %715 = vrot.lane.b32.xlu0 %v524, 3
    %v716 = vpop.permute.xlu0 %715
    %vm781 = vcmask 48152
    %782 = vst.msk [vmem:[#allocation4] sm:$0xff] %vm781, %v590
    %783 = vst.msk [vmem:[#allocation4 + $0x10] sm:$0xff] %vm781, %v592
    %784 = vst.msk [vmem:[#allocation4 + $0x20] sm:$0xff] %vm781, %v594
    %785 = vst.msk [vmem:[#allocation4 + $0x30] sm:$0xff] %vm781, %v596
    %786 = vst.msk [vmem:[#allocation4 + $0x40] sm:$0xff] %vm781, %v598
    %787 = vst.msk [vmem:[#allocation4 + $0x50] sm:$0xff] %vm781, %v600
    %788 = vst.msk [vmem:[#allocation4 + $0x60] sm:$0xff] %vm781, %v602
    %789 = vst.msk [vmem:[#allocation4 + $0x70] sm:$0xff] %vm781, %v604
    %790 = vst.msk [vmem:[#allocation4 + $0x80] sm:$0xff] %vm781, %v606
    %791 = vst.msk [vmem:[#allocation4 + $0x90] sm:$0xff] %vm781, %v608
    %792 = vst.msk [vmem:[#allocation4 + $0xa0] sm:$0xff] %vm781, %v610
    %793 = vst.msk [vmem:[#allocation4 + $0xb0] sm:$0xff] %vm781, %v612
    %794 = vst.msk [vmem:[#allocation4 + $0xc0] sm:$0xff] %vm781, %v614
    %795 = vst.msk [vmem:[#allocation4 + $0xd0] sm:$0xff] %vm781, %v616
    %796 = vst.msk [vmem:[#allocation4 + $0xe0] sm:$0xff] %vm781, %v618
    %797 = vst.msk [vmem:[#allocation4 + $0xf0] sm:$0xff] %vm781, %v620
    %798 = vst.msk [vmem:[#allocation4 + $0x100] sm:$0xff] %vm781, %v622
    %799 = vst.msk [vmem:[#allocation4 + $0x110] sm:$0xff] %vm781, %v624
    %800 = vst.msk [vmem:[#allocation4 + $0x120] sm:$0xff] %vm781, %v626
    %801 = vst.msk [vmem:[#allocation4 + $0x130] sm:$0xff] %vm781, %v628
    %802 = vst.msk [vmem:[#allocation4 + $0x140] sm:$0xff] %vm781, %v630
    %803 = vst.msk [vmem:[#allocation4 + $0x150] sm:$0xff] %vm781, %v632
    %804 = vst.msk [vmem:[#allocation4 + $0x160] sm:$0xff] %vm781, %v634
    %805 = vst.msk [vmem:[#allocation4 + $0x170] sm:$0xff] %vm781, %v636
    %806 = vst.msk [vmem:[#allocation4 + $0x180] sm:$0xff] %vm781, %v638
    %807 = vst.msk [vmem:[#allocation4 + $0x190] sm:$0xff] %vm781, %v640
    %808 = vst.msk [vmem:[#allocation4 + $0x1a0] sm:$0xff] %vm781, %v642
    %809 = vst.msk [vmem:[#allocation4 + $0x1b0] sm:$0xff] %vm781, %v644
    %810 = vst.msk [vmem:[#allocation4 + $0x1c0] sm:$0xff] %vm781, %v646
    %811 = vst.msk [vmem:[#allocation4 + $0x1d0] sm:$0xff] %vm781, %v648
    %812 = vst.msk [vmem:[#allocation4 + $0x1e0] sm:$0xff] %vm781, %v650
    %813 = vst.msk [vmem:[#allocation4 + $0x1f0] sm:$0xff] %vm781, %v652
    %814 = vst.msk [vmem:[#allocation4 + $0x200] sm:$0xff] %vm781, %v654
    %815 = vst.msk [vmem:[#allocation4 + $0x210] sm:$0xff] %vm781, %v656
    %816 = vst.msk [vmem:[#allocation4 + $0x220] sm:$0xff] %vm781, %v658
    %817 = vst.msk [vmem:[#allocation4 + $0x230] sm:$0xff] %vm781, %v660
    %818 = vst.msk [vmem:[#allocation4 + $0x240] sm:$0xff] %vm781, %v662
    %819 = vst.msk [vmem:[#allocation4 + $0x250] sm:$0xff] %vm781, %v664
    %820 = vst.msk [vmem:[#allocation4 + $0x260] sm:$0xff] %vm781, %v666
    %821 = vst.msk [vmem:[#allocation4 + $0x270] sm:$0xff] %vm781, %v668
    %822 = vst.msk [vmem:[#allocation4 + $0x280] sm:$0xff] %vm781, %v670
    %823 = vst.msk [vmem:[#allocation4 + $0x290] sm:$0xff] %vm781, %v672
    %824 = vst.msk [vmem:[#allocation4 + $0x2a0] sm:$0xff] %vm781, %v674
    %825 = vst.msk [vmem:[#allocation4 + $0x2b0] sm:$0xff] %vm781, %v676
    %826 = vst.msk [vmem:[#allocation4 + $0x2c0] sm:$0xff] %vm781, %v678
    %827 = vst.msk [vmem:[#allocation4 + $0x2d0] sm:$0xff] %vm781, %v680
    %828 = vst.msk [vmem:[#allocation4 + $0x2e0] sm:$0xff] %vm781, %v682
    %829 = vst.msk [vmem:[#allocation4 + $0x2f0] sm:$0xff] %vm781, %v684
    %830 = vst.msk [vmem:[#allocation4 + $0x300] sm:$0xff] %vm781, %v686
    %831 = vst.msk [vmem:[#allocation4 + $0x310] sm:$0xff] %vm781, %v688
    %832 = vst.msk [vmem:[#allocation4 + $0x320] sm:$0xff] %vm781, %v690
    %833 = vst.msk [vmem:[#allocation4 + $0x330] sm:$0xff] %vm781, %v692
    %834 = vst.msk [vmem:[#allocation4 + $0x340] sm:$0xff] %vm781, %v694
    %835 = vst.msk [vmem:[#allocation4 + $0x350] sm:$0xff] %vm781, %v696
    %836 = vst.msk [vmem:[#allocation4 + $0x360] sm:$0xff] %vm781, %v698
    %837 = vst.msk [vmem:[#allocation4 + $0x370] sm:$0xff] %vm781, %v700
    %838 = vst.msk [vmem:[#allocation4 + $0x380] sm:$0xff] %vm781, %v702
    %839 = vst.msk [vmem:[#allocation4 + $0x390] sm:$0xff] %vm781, %v704
    %840 = vst.msk [vmem:[#allocation4 + $0x3a0] sm:$0xff] %vm781, %v706
    %841 = vst.msk [vmem:[#allocation4 + $0x3b0] sm:$0xff] %vm781, %v708
    %842 = vst.msk [vmem:[#allocation4 + $0x3c0] sm:$0xff] %vm781, %v710
    %843 = vst.msk [vmem:[#allocation4 + $0x3d0] sm:$0xff] %vm781, %v712
    %844 = vst.msk [vmem:[#allocation4 + $0x3e0] sm:$0xff] %vm781, %v714
    %845 = vst.msk [vmem:[#allocation4 + $0x3f0] sm:$0xff] %vm781, %v716
    %v846 = vld [vmem:[#allocation2 + $0x2] sm:$0xff]
    %v847 = vld [vmem:[#allocation2 + $0xa] sm:$0xff]
    %v848 = vld [vmem:[#allocation2 + $0x1a] sm:$0xff]
    %v849 = vld [vmem:[#allocation2 + $0x22] sm:$0xff]
    %v850 = vld [vmem:[#allocation2 + $0x32] sm:$0xff]
    %v851 = vld [vmem:[#allocation2 + $0x3a] sm:$0xff]
    %v852 = vld [vmem:[#allocation2 + $0x4a] sm:$0xff]
    %v853 = vld [vmem:[#allocation2 + $0x52] sm:$0xff]
    %v854 = vld [vmem:[#allocation2 + $0x62] sm:$0xff]
    %v855 = vld [vmem:[#allocation2 + $0x6a] sm:$0xff]
    %v856 = vld [vmem:[#allocation2 + $0x7a] sm:$0xff]
    %v857 = vld [vmem:[#allocation2 + $0x82] sm:$0xff]
    %v858 = vld [vmem:[#allocation2 + $0x92] sm:$0xff]
    %v859 = vld [vmem:[#allocation2 + $0x9a] sm:$0xff]
    %v860 = vld [vmem:[#allocation2 + $0xaa] sm:$0xff]
    %v861 = vld [vmem:[#allocation2 + $0xb2] sm:$0xff]
    %v862 = vld [vmem:[#allocation2 + $0xc2] sm:$0xff]
    %v863 = vld [vmem:[#allocation2 + $0xca] sm:$0xff]
    %v864 = vld [vmem:[#allocation2 + $0xda] sm:$0xff]
    %v865 = vld [vmem:[#allocation2 + $0xe2] sm:$0xff]
    %v866 = vld [vmem:[#allocation2 + $0xf2] sm:$0xff]
    %v867 = vld [vmem:[#allocation2 + $0xfa] sm:$0xff]
    %v868 = vld [vmem:[#allocation2 + $0x10a] sm:$0xff]
    %v869 = vld [vmem:[#allocation2 + $0x112] sm:$0xff]
    %v870 = vld [vmem:[#allocation2 + $0x122] sm:$0xff]
    %v871 = vld [vmem:[#allocation2 + $0x12a] sm:$0xff]
    %v872 = vld [vmem:[#allocation2 + $0x13a] sm:$0xff]
    %v873 = vld [vmem:[#allocation2 + $0x142] sm:$0xff]
    %v874 = vld [vmem:[#allocation2 + $0x152] sm:$0xff]
    %v875 = vld [vmem:[#allocation2 + $0x15a] sm:$0xff]
    %v876 = vld [vmem:[#allocation2 + $0x16a] sm:$0xff]
    %v877 = vld [vmem:[#allocation2 + $0x172] sm:$0xff]
    %v878 = vld [vmem:[#allocation2 + $0x1b2] sm:$0xff]
    %v879 = vld [vmem:[#allocation2 + $0x1ba] sm:$0xff]
    %v880 = vld [vmem:[#allocation2 + $0x1ca] sm:$0xff]
    %v881 = vld [vmem:[#allocation2 + $0x1d2] sm:$0xff]
    %v882 = vld [vmem:[#allocation2 + $0x1e2] sm:$0xff]
    %v883 = vld [vmem:[#allocation2 + $0x1ea] sm:$0xff]
    %v884 = vld [vmem:[#allocation2 + $0x1fa] sm:$0xff]
    %v885 = vld [vmem:[#allocation2 + $0x202] sm:$0xff]
    %v886 = vld [vmem:[#allocation2 + $0x212] sm:$0xff]
    %v887 = vld [vmem:[#allocation2 + $0x21a] sm:$0xff]
    %v888 = vld [vmem:[#allocation2 + $0x22a] sm:$0xff]
    %v889 = vld [vmem:[#allocation2 + $0x232] sm:$0xff]
    %v890 = vld [vmem:[#allocation2 + $0x242] sm:$0xff]
    %v891 = vld [vmem:[#allocation2 + $0x24a] sm:$0xff]
    %v892 = vld [vmem:[#allocation2 + $0x25a] sm:$0xff]
    %v893 = vld [vmem:[#allocation2 + $0x262] sm:$0xff]
    %v894 = vld [vmem:[#allocation2 + $0x272] sm:$0xff]
    %v895 = vld [vmem:[#allocation2 + $0x27a] sm:$0xff]
    %v896 = vld [vmem:[#allocation2 + $0x28a] sm:$0xff]
    %v897 = vld [vmem:[#allocation2 + $0x292] sm:$0xff]
    %v898 = vld [vmem:[#allocation2 + $0x2a2] sm:$0xff]
    %v899 = vld [vmem:[#allocation2 + $0x2aa] sm:$0xff]
    %v900 = vld [vmem:[#allocation2 + $0x2ba] sm:$0xff]
    %v901 = vld [vmem:[#allocation2 + $0x2c2] sm:$0xff]
    %v902 = vld [vmem:[#allocation2 + $0x2d2] sm:$0xff]
    %v903 = vld [vmem:[#allocation2 + $0x2da] sm:$0xff]
    %v904 = vld [vmem:[#allocation2 + $0x2ea] sm:$0xff]
    %v905 = vld [vmem:[#allocation2 + $0x2f2] sm:$0xff]
    %v906 = vld [vmem:[#allocation2 + $0x302] sm:$0xff]
    %v907 = vld [vmem:[#allocation2 + $0x30a] sm:$0xff]
    %v908 = vld [vmem:[#allocation2 + $0x31a] sm:$0xff]
    %v909 = vld [vmem:[#allocation2 + $0x322] sm:$0xff]
    %974 = vrot.lane.b32.xlu0 %v846, 6
    %v975 = vpop.permute.xlu0 %974
    %976 = vrot.lane.b32.xlu0 %v847, 6
    %v977 = vpop.permute.xlu0 %976
    %978 = vrot.lane.b32.xlu0 %v848, 6
    %v979 = vpop.permute.xlu0 %978
    %980 = vrot.lane.b32.xlu0 %v849, 6
    %v981 = vpop.permute.xlu0 %980
    %982 = vrot.lane.b32.xlu0 %v850, 6
    %v983 = vpop.permute.xlu0 %982
    %984 = vrot.lane.b32.xlu0 %v851, 6
    %v985 = vpop.permute.xlu0 %984
    %986 = vrot.lane.b32.xlu0 %v852, 6
    %v987 = vpop.permute.xlu0 %986
    %988 = vrot.lane.b32.xlu0 %v853, 6
    %v989 = vpop.permute.xlu0 %988
    %990 = vrot.lane.b32.xlu0 %v854, 6
    %v991 = vpop.permute.xlu0 %990
    %992 = vrot.lane.b32.xlu0 %v855, 6
    %v993 = vpop.permute.xlu0 %992
    %994 = vrot.lane.b32.xlu0 %v856, 6
    %v995 = vpop.permute.xlu0 %994
    %996 = vrot.lane.b32.xlu0 %v857, 6
    %v997 = vpop.permute.xlu0 %996
    %998 = vrot.lane.b32.xlu0 %v858, 6
    %v999 = vpop.permute.xlu0 %998
    %1000 = vrot.lane.b32.xlu0 %v859, 6
    %v1001 = vpop.permute.xlu0 %1000
    %1002 = vrot.lane.b32.xlu0 %v860, 6
    %v1003 = vpop.permute.xlu0 %1002
    %1004 = vrot.lane.b32.xlu0 %v861, 6
    %v1005 = vpop.permute.xlu0 %1004
    %1006 = vrot.lane.b32.xlu0 %v862, 6
    %v1007 = vpop.permute.xlu0 %1006
    %1008 = vrot.lane.b32.xlu0 %v863, 6
    %v1009 = vpop.permute.xlu0 %1008
    %1010 = vrot.lane.b32.xlu0 %v864, 6
    %v1011 = vpop.permute.xlu0 %1010
    %1012 = vrot.lane.b32.xlu0 %v865, 6
    %v1013 = vpop.permute.xlu0 %1012
    %1014 = vrot.lane.b32.xlu0 %v866, 6
    %v1015 = vpop.permute.xlu0 %1014
    %1016 = vrot.lane.b32.xlu0 %v867, 6
    %v1017 = vpop.permute.xlu0 %1016
    %1018 = vrot.lane.b32.xlu0 %v868, 6
    %v1019 = vpop.permute.xlu0 %1018
    %1020 = vrot.lane.b32.xlu0 %v869, 6
    %v1021 = vpop.permute.xlu0 %1020
    %1022 = vrot.lane.b32.xlu0 %v870, 6
    %v1023 = vpop.permute.xlu0 %1022
    %1024 = vrot.lane.b32.xlu0 %v871, 6
    %v1025 = vpop.permute.xlu0 %1024
    %1026 = vrot.lane.b32.xlu0 %v872, 6
    %v1027 = vpop.permute.xlu0 %1026
    %1028 = vrot.lane.b32.xlu0 %v873, 6
    %v1029 = vpop.permute.xlu0 %1028
    %1030 = vrot.lane.b32.xlu0 %v874, 6
    %v1031 = vpop.permute.xlu0 %1030
    %1032 = vrot.lane.b32.xlu0 %v875, 6
    %v1033 = vpop.permute.xlu0 %1032
    %1034 = vrot.lane.b32.xlu0 %v876, 6
    %v1035 = vpop.permute.xlu0 %1034
    %1036 = vrot.lane.b32.xlu0 %v877, 6
    %v1037 = vpop.permute.xlu0 %1036
    %1038 = vrot.lane.b32.xlu0 %v878, 6
    %v1039 = vpop.permute.xlu0 %1038
    %1040 = vrot.lane.b32.xlu0 %v879, 6
    %v1041 = vpop.permute.xlu0 %1040
    %1042 = vrot.lane.b32.xlu0 %v880, 6
    %v1043 = vpop.permute.xlu0 %1042
    %1044 = vrot.lane.b32.xlu0 %v881, 6
    %v1045 = vpop.permute.xlu0 %1044
    %1046 = vrot.lane.b32.xlu0 %v882, 6
    %v1047 = vpop.permute.xlu0 %1046
    %1048 = vrot.lane.b32.xlu0 %v883, 6
    %v1049 = vpop.permute.xlu0 %1048
    %1050 = vrot.lane.b32.xlu0 %v884, 6
    %v1051 = vpop.permute.xlu0 %1050
    %1052 = vrot.lane.b32.xlu0 %v885, 6
    %v1053 = vpop.permute.xlu0 %1052
    %1054 = vrot.lane.b32.xlu0 %v886, 6
    %v1055 = vpop.permute.xlu0 %1054
    %1056 = vrot.lane.b32.xlu0 %v887, 6
    %v1057 = vpop.permute.xlu0 %1056
    %1058 = vrot.lane.b32.xlu0 %v888, 6
    %v1059 = vpop.permute.xlu0 %1058
    %1060 = vrot.lane.b32.xlu0 %v889, 6
    %v1061 = vpop.permute.xlu0 %1060
    %1062 = vrot.lane.b32.xlu0 %v890, 6
    %v1063 = vpop.permute.xlu0 %1062
    %1064 = vrot.lane.b32.xlu0 %v891, 6
    %v1065 = vpop.permute.xlu0 %1064
    %1066 = vrot.lane.b32.xlu0 %v892, 6
    %v1067 = vpop.permute.xlu0 %1066
    %1068 = vrot.lane.b32.xlu0 %v893, 6
    %v1069 = vpop.permute.xlu0 %1068
    %1070 = vrot.lane.b32.xlu0 %v894, 6
    %v1071 = vpop.permute.xlu0 %1070
    %1072 = vrot.lane.b32.xlu0 %v895, 6
    %v1073 = vpop.permute.xlu0 %1072
    %1074 = vrot.lane.b32.xlu0 %v896, 6
    %v1075 = vpop.permute.xlu0 %1074
    %1076 = vrot.lane.b32.xlu0 %v897, 6
    %v1077 = vpop.permute.xlu0 %1076
    %1078 = vrot.lane.b32.xlu0 %v898, 6
    %v1079 = vpop.permute.xlu0 %1078
    %1080 = vrot.lane.b32.xlu0 %v899, 6
    %v1081 = vpop.permute.xlu0 %1080
    %1082 = vrot.lane.b32.xlu0 %v900, 6
    %v1083 = vpop.permute.xlu0 %1082
    %1084 = vrot.lane.b32.xlu0 %v901, 6
    %v1085 = vpop.permute.xlu0 %1084
    %1086 = vrot.lane.b32.xlu0 %v902, 6
    %v1087 = vpop.permute.xlu0 %1086
    %1088 = vrot.lane.b32.xlu0 %v903, 6
    %v1089 = vpop.permute.xlu0 %1088
    %1090 = vrot.lane.b32.xlu0 %v904, 6
    %v1091 = vpop.permute.xlu0 %1090
    %1092 = vrot.lane.b32.xlu0 %v905, 6
    %v1093 = vpop.permute.xlu0 %1092
    %1094 = vrot.lane.b32.xlu0 %v906, 6
    %v1095 = vpop.permute.xlu0 %1094
    %1096 = vrot.lane.b32.xlu0 %v907, 6
    %v1097 = vpop.permute.xlu0 %1096
    %1098 = vrot.lane.b32.xlu0 %v908, 6
    %v1099 = vpop.permute.xlu0 %1098
    %1100 = vrot.lane.b32.xlu0 %v909, 6
    %v1101 = vpop.permute.xlu0 %1100
    %vm1166 = vcmask 72752
    %1167 = vst.msk [vmem:[#allocation4] sm:$0xff] %vm1166, %v975
    %1168 = vst.msk [vmem:[#allocation4 + $0x10] sm:$0xff] %vm1166, %v977
    %1169 = vst.msk [vmem:[#allocation4 + $0x20] sm:$0xff] %vm1166, %v979
    %1170 = vst.msk [vmem:[#allocation4 + $0x30] sm:$0xff] %vm1166, %v981
    %1171 = vst.msk [vmem:[#allocation4 + $0x40] sm:$0xff] %vm1166, %v983
    %1172 = vst.msk [vmem:[#allocation4 + $0x50] sm:$0xff] %vm1166, %v985
    %1173 = vst.msk [vmem:[#allocation4 + $0x60] sm:$0xff] %vm1166, %v987
    %1174 = vst.msk [vmem:[#allocation4 + $0x70] sm:$0xff] %vm1166, %v989
    %1175 = vst.msk [vmem:[#allocation4 + $0x80] sm:$0xff] %vm1166, %v991
    %1176 = vst.msk [vmem:[#allocation4 + $0x90] sm:$0xff] %vm1166, %v993
    %1177 = vst.msk [vmem:[#allocation4 + $0xa0] sm:$0xff] %vm1166, %v995
    %1178 = vst.msk [vmem:[#allocation4 + $0xb0] sm:$0xff] %vm1166, %v997
    %1179 = vst.msk [vmem:[#allocation4 + $0xc0] sm:$0xff] %vm1166, %v999
    %1180 = vst.msk [vmem:[#allocation4 + $0xd0] sm:$0xff] %vm1166, %v1001
    %1181 = vst.msk [vmem:[#allocation4 + $0xe0] sm:$0xff] %vm1166, %v1003
    %1182 = vst.msk [vmem:[#allocation4 + $0xf0] sm:$0xff] %vm1166, %v1005
    %1183 = vst.msk [vmem:[#allocation4 + $0x100] sm:$0xff] %vm1166, %v1007
    %1184 = vst.msk [vmem:[#allocation4 + $0x110] sm:$0xff] %vm1166, %v1009
    %1185 = vst.msk [vmem:[#allocation4 + $0x120] sm:$0xff] %vm1166, %v1011
    %1186 = vst.msk [vmem:[#allocation4 + $0x130] sm:$0xff] %vm1166, %v1013
    %1187 = vst.msk [vmem:[#allocation4 + $0x140] sm:$0xff] %vm1166, %v1015
    %1188 = vst.msk [vmem:[#allocation4 + $0x150] sm:$0xff] %vm1166, %v1017
    %1189 = vst.msk [vmem:[#allocation4 + $0x160] sm:$0xff] %vm1166, %v1019
    %1190 = vst.msk [vmem:[#allocation4 + $0x170] sm:$0xff] %vm1166, %v1021
    %1191 = vst.msk [vmem:[#allocation4 + $0x180] sm:$0xff] %vm1166, %v1023
    %1192 = vst.msk [vmem:[#allocation4 + $0x190] sm:$0xff] %vm1166, %v1025
    %1193 = vst.msk [vmem:[#allocation4 + $0x1a0] sm:$0xff] %vm1166, %v1027
    %1194 = vst.msk [vmem:[#allocation4 + $0x1b0] sm:$0xff] %vm1166, %v1029
    %1195 = vst.msk [vmem:[#allocation4 + $0x1c0] sm:$0xff] %vm1166, %v1031
    %1196 = vst.msk [vmem:[#allocation4 + $0x1d0] sm:$0xff] %vm1166, %v1033
    %1197 = vst.msk [vmem:[#allocation4 + $0x1e0] sm:$0xff] %vm1166, %v1035
    %1198 = vst.msk [vmem:[#allocation4 + $0x1f0] sm:$0xff] %vm1166, %v1037
    %1199 = vst.msk [vmem:[#allocation4 + $0x200] sm:$0xff] %vm1166, %v1039
    %1200 = vst.msk [vmem:[#allocation4 + $0x210] sm:$0xff] %vm1166, %v1041
    %1201 = vst.msk [vmem:[#allocation4 + $0x220] sm:$0xff] %vm1166, %v1043
    %1202 = vst.msk [vmem:[#allocation4 + $0x230] sm:$0xff] %vm1166, %v1045
    %1203 = vst.msk [vmem:[#allocation4 + $0x240] sm:$0xff] %vm1166, %v1047
    %1204 = vst.msk [vmem:[#allocation4 + $0x250] sm:$0xff] %vm1166, %v1049
    %1205 = vst.msk [vmem:[#allocation4 + $0x260] sm:$0xff] %vm1166, %v1051
    %1206 = vst.msk [vmem:[#allocation4 + $0x270] sm:$0xff] %vm1166, %v1053
    %1207 = vst.msk [vmem:[#allocation4 + $0x280] sm:$0xff] %vm1166, %v1055
    %1208 = vst.msk [vmem:[#allocation4 + $0x290] sm:$0xff] %vm1166, %v1057
    %1209 = vst.msk [vmem:[#allocation4 + $0x2a0] sm:$0xff] %vm1166, %v1059
    %1210 = vst.msk [vmem:[#allocation4 + $0x2b0] sm:$0xff] %vm1166, %v1061
    %1211 = vst.msk [vmem:[#allocation4 + $0x2c0] sm:$0xff] %vm1166, %v1063
    %1212 = vst.msk [vmem:[#allocation4 + $0x2d0] sm:$0xff] %vm1166, %v1065
    %1213 = vst.msk [vmem:[#allocation4 + $0x2e0] sm:$0xff] %vm1166, %v1067
    %1214 = vst.msk [vmem:[#allocation4 + $0x2f0] sm:$0xff] %vm1166, %v1069
    %1215 = vst.msk [vmem:[#allocation4 + $0x300] sm:$0xff] %vm1166, %v1071
    %1216 = vst.msk [vmem:[#allocation4 + $0x310] sm:$0xff] %vm1166, %v1073
    %1217 = vst.msk [vmem:[#allocation4 + $0x320] sm:$0xff] %vm1166, %v1075
    %1218 = vst.msk [vmem:[#allocation4 + $0x330] sm:$0xff] %vm1166, %v1077
    %1219 = vst.msk [vmem:[#allocation4 + $0x340] sm:$0xff] %vm1166, %v1079
    %1220 = vst.msk [vmem:[#allocation4 + $0x350] sm:$0xff] %vm1166, %v1081
    %1221 = vst.msk [vmem:[#allocation4 + $0x360] sm:$0xff] %vm1166, %v1083
    %1222 = vst.msk [vmem:[#allocation4 + $0x370] sm:$0xff] %vm1166, %v1085
    %1223 = vst.msk [vmem:[#allocation4 + $0x380] sm:$0xff] %vm1166, %v1087
    %1224 = vst.msk [vmem:[#allocation4 + $0x390] sm:$0xff] %vm1166, %v1089
    %1225 = vst.msk [vmem:[#allocation4 + $0x3a0] sm:$0xff] %vm1166, %v1091
    %1226 = vst.msk [vmem:[#allocation4 + $0x3b0] sm:$0xff] %vm1166, %v1093
    %1227 = vst.msk [vmem:[#allocation4 + $0x3c0] sm:$0xff] %vm1166, %v1095
    %1228 = vst.msk [vmem:[#allocation4 + $0x3d0] sm:$0xff] %vm1166, %v1097
    %1229 = vst.msk [vmem:[#allocation4 + $0x3e0] sm:$0xff] %vm1166, %v1099
    %1230 = vst.msk [vmem:[#allocation4 + $0x3f0] sm:$0xff] %vm1166, %v1101
    %v1231 = vld [vmem:[%s267] sm:$0xff]
    %v1232 = vld [vmem:[%s267 + $0x8] sm:$0xff]
    %v1233 = vld [vmem:[%s267 + $0x18] sm:$0xff]
    %v1234 = vld [vmem:[%s267 + $0x20] sm:$0xff]
    %v1235 = vld [vmem:[%s267 + $0x30] sm:$0xff]
    %v1236 = vld [vmem:[%s267 + $0x38] sm:$0xff]
    %v1237 = vld [vmem:[%s267 + $0x48] sm:$0xff]
    %v1238 = vld [vmem:[%s267 + $0x50] sm:$0xff]
    %v1239 = vld [vmem:[%s267 + $0x60] sm:$0xff]
    %v1240 = vld [vmem:[%s267 + $0x68] sm:$0xff]
    %v1241 = vld [vmem:[%s267 + $0x78] sm:$0xff]
    %v1242 = vld [vmem:[%s267 + $0x80] sm:$0xff]
    %v1243 = vld [vmem:[%s267 + $0x90] sm:$0xff]
    %v1244 = vld [vmem:[%s267 + $0x98] sm:$0xff]
    %v1245 = vld [vmem:[%s267 + $0xa8] sm:$0xff]
    %v1246 = vld [vmem:[%s267 + $0xb0] sm:$0xff]
    %v1247 = vld [vmem:[%s267 + $0xc0] sm:$0xff]
    %v1248 = vld [vmem:[%s267 + $0xc8] sm:$0xff]
    %v1249 = vld [vmem:[%s267 + $0xd8] sm:$0xff]
    %v1250 = vld [vmem:[%s267 + $0xe0] sm:$0xff]
    %v1251 = vld [vmem:[%s267 + $0xf0] sm:$0xff]
    %v1252 = vld [vmem:[%s267 + $0xf8] sm:$0xff]
    %v1253 = vld [vmem:[%s267 + $0x108] sm:$0xff]
    %v1254 = vld [vmem:[%s267 + $0x110] sm:$0xff]
    %v1255 = vld [vmem:[%s267 + $0x120] sm:$0xff]
    %v1256 = vld [vmem:[%s267 + $0x128] sm:$0xff]
    %v1257 = vld [vmem:[%s267 + $0x138] sm:$0xff]
    %v1258 = vld [vmem:[%s267 + $0x140] sm:$0xff]
    %v1259 = vld [vmem:[%s267 + $0x150] sm:$0xff]
    %v1260 = vld [vmem:[%s267 + $0x158] sm:$0xff]
    %v1261 = vld [vmem:[%s267 + $0x168] sm:$0xff]
    %v1262 = vld [vmem:[%s267 + $0x170] sm:$0xff]
    %v1263 = vld [vmem:[%s267 + $0x1b0] sm:$0xff]
    %v1264 = vld [vmem:[%s267 + $0x1b8] sm:$0xff]
    %v1265 = vld [vmem:[%s267 + $0x1c8] sm:$0xff]
    %v1266 = vld [vmem:[%s267 + $0x1d0] sm:$0xff]
    %v1267 = vld [vmem:[%s267 + $0x1e0] sm:$0xff]
    %v1268 = vld [vmem:[%s267 + $0x1e8] sm:$0xff]
    %v1269 = vld [vmem:[%s267 + $0x1f8] sm:$0xff]
    %v1270 = vld [vmem:[%s267 + $0x200] sm:$0xff]
    %v1271 = vld [vmem:[%s267 + $0x210] sm:$0xff]
    %v1272 = vld [vmem:[%s267 + $0x218] sm:$0xff]
    %v1273 = vld [vmem:[%s267 + $0x228] sm:$0xff]
    %v1274 = vld [vmem:[%s267 + $0x230] sm:$0xff]
    %v1275 = vld [vmem:[%s267 + $0x240] sm:$0xff]
    %v1276 = vld [vmem:[%s267 + $0x248] sm:$0xff]
    %v1277 = vld [vmem:[%s267 + $0x258] sm:$0xff]
    %v1278 = vld [vmem:[%s267 + $0x260] sm:$0xff]
    %v1279 = vld [vmem:[%s267 + $0x270] sm:$0xff]
    %v1280 = vld [vmem:[%s267 + $0x278] sm:$0xff]
    %v1281 = vld [vmem:[%s267 + $0x288] sm:$0xff]
    %v1282 = vld [vmem:[%s267 + $0x290] sm:$0xff]
    %v1283 = vld [vmem:[%s267 + $0x2a0] sm:$0xff]
    %v1284 = vld [vmem:[%s267 + $0x2a8] sm:$0xff]
    %v1285 = vld [vmem:[%s267 + $0x2b8] sm:$0xff]
    %v1286 = vld [vmem:[%s267 + $0x2c0] sm:$0xff]
    %v1287 = vld [vmem:[%s267 + $0x2d0] sm:$0xff]
    %v1288 = vld [vmem:[%s267 + $0x2d8] sm:$0xff]
    %v1289 = vld [vmem:[%s267 + $0x2e8] sm:$0xff]
    %v1290 = vld [vmem:[%s267 + $0x2f0] sm:$0xff]
    %v1291 = vld [vmem:[%s267 + $0x300] sm:$0xff]
    %v1292 = vld [vmem:[%s267 + $0x308] sm:$0xff]
    %v1293 = vld [vmem:[%s267 + $0x318] sm:$0xff]
    %v1294 = vld [vmem:[%s267 + $0x320] sm:$0xff]
    %1359 = vrot.lane.b32.xlu0 %v1231, 9
    %v1360 = vpop.permute.xlu0 %1359
    %1361 = vrot.lane.b32.xlu0 %v1232, 9
    %v1362 = vpop.permute.xlu0 %1361
    %1363 = vrot.lane.b32.xlu0 %v1233, 9
    %v1364 = vpop.permute.xlu0 %1363
    %1365 = vrot.lane.b32.xlu0 %v1234, 9
    %v1366 = vpop.permute.xlu0 %1365
    %1367 = vrot.lane.b32.xlu0 %v1235, 9
    %v1368 = vpop.permute.xlu0 %1367
    %1369 = vrot.lane.b32.xlu0 %v1236, 9
    %v1370 = vpop.permute.xlu0 %1369
    %1371 = vrot.lane.b32.xlu0 %v1237, 9
    %v1372 = vpop.permute.xlu0 %1371
    %1373 = vrot.lane.b32.xlu0 %v1238, 9
    %v1374 = vpop.permute.xlu0 %1373
    %1375 = vrot.lane.b32.xlu0 %v1239, 9
    %v1376 = vpop.permute.xlu0 %1375
    %1377 = vrot.lane.b32.xlu0 %v1240, 9
    %v1378 = vpop.permute.xlu0 %1377
    %1379 = vrot.lane.b32.xlu0 %v1241, 9
    %v1380 = vpop.permute.xlu0 %1379
    %1381 = vrot.lane.b32.xlu0 %v1242, 9
    %v1382 = vpop.permute.xlu0 %1381
    %1383 = vrot.lane.b32.xlu0 %v1243, 9
    %v1384 = vpop.permute.xlu0 %1383
    %1385 = vrot.lane.b32.xlu0 %v1244, 9
    %v1386 = vpop.permute.xlu0 %1385
    %1387 = vrot.lane.b32.xlu0 %v1245, 9
    %v1388 = vpop.permute.xlu0 %1387
    %1389 = vrot.lane.b32.xlu0 %v1246, 9
    %v1390 = vpop.permute.xlu0 %1389
    %1391 = vrot.lane.b32.xlu0 %v1247, 9
    %v1392 = vpop.permute.xlu0 %1391
    %1393 = vrot.lane.b32.xlu0 %v1248, 9
    %v1394 = vpop.permute.xlu0 %1393
    %1395 = vrot.lane.b32.xlu0 %v1249, 9
    %v1396 = vpop.permute.xlu0 %1395
    %1397 = vrot.lane.b32.xlu0 %v1250, 9
    %v1398 = vpop.permute.xlu0 %1397
    %1399 = vrot.lane.b32.xlu0 %v1251, 9
    %v1400 = vpop.permute.xlu0 %1399
    %1401 = vrot.lane.b32.xlu0 %v1252, 9
    %v1402 = vpop.permute.xlu0 %1401
    %1403 = vrot.lane.b32.xlu0 %v1253, 9
    %v1404 = vpop.permute.xlu0 %1403
    %1405 = vrot.lane.b32.xlu0 %v1254, 9
    %v1406 = vpop.permute.xlu0 %1405
    %1407 = vrot.lane.b32.xlu0 %v1255, 9
    %v1408 = vpop.permute.xlu0 %1407
    %1409 = vrot.lane.b32.xlu0 %v1256, 9
    %v1410 = vpop.permute.xlu0 %1409
    %1411 = vrot.lane.b32.xlu0 %v1257, 9
    %v1412 = vpop.permute.xlu0 %1411
    %1413 = vrot.lane.b32.xlu0 %v1258, 9
    %v1414 = vpop.permute.xlu0 %1413
    %1415 = vrot.lane.b32.xlu0 %v1259, 9
    %v1416 = vpop.permute.xlu0 %1415
    %1417 = vrot.lane.b32.xlu0 %v1260, 9
    %v1418 = vpop.permute.xlu0 %1417
    %1419 = vrot.lane.b32.xlu0 %v1261, 9
    %v1420 = vpop.permute.xlu0 %1419
    %1421 = vrot.lane.b32.xlu0 %v1262, 9
    %v1422 = vpop.permute.xlu0 %1421
    %1423 = vrot.lane.b32.xlu0 %v1263, 9
    %v1424 = vpop.permute.xlu0 %1423
    %1425 = vrot.lane.b32.xlu0 %v1264, 9
    %v1426 = vpop.permute.xlu0 %1425
    %1427 = vrot.lane.b32.xlu0 %v1265, 9
    %v1428 = vpop.permute.xlu0 %1427
    %1429 = vrot.lane.b32.xlu0 %v1266, 9
    %v1430 = vpop.permute.xlu0 %1429
    %1431 = vrot.lane.b32.xlu0 %v1267, 9
    %v1432 = vpop.permute.xlu0 %1431
    %1433 = vrot.lane.b32.xlu0 %v1268, 9
    %v1434 = vpop.permute.xlu0 %1433
    %1435 = vrot.lane.b32.xlu0 %v1269, 9
    %v1436 = vpop.permute.xlu0 %1435
    %1437 = vrot.lane.b32.xlu0 %v1270, 9
    %v1438 = vpop.permute.xlu0 %1437
    %1439 = vrot.lane.b32.xlu0 %v1271, 9
    %v1440 = vpop.permute.xlu0 %1439
    %1441 = vrot.lane.b32.xlu0 %v1272, 9
    %v1442 = vpop.permute.xlu0 %1441
    %1443 = vrot.lane.b32.xlu0 %v1273, 9
    %v1444 = vpop.permute.xlu0 %1443
    %1445 = vrot.lane.b32.xlu0 %v1274, 9
    %v1446 = vpop.permute.xlu0 %1445
    %1447 = vrot.lane.b32.xlu0 %v1275, 9
    %v1448 = vpop.permute.xlu0 %1447
    %1449 = vrot.lane.b32.xlu0 %v1276, 9
    %v1450 = vpop.permute.xlu0 %1449
    %1451 = vrot.lane.b32.xlu0 %v1277, 9
    %v1452 = vpop.permute.xlu0 %1451
    %1453 = vrot.lane.b32.xlu0 %v1278, 9
    %v1454 = vpop.permute.xlu0 %1453
    %1455 = vrot.lane.b32.xlu0 %v1279, 9
    %v1456 = vpop.permute.xlu0 %1455
    %1457 = vrot.lane.b32.xlu0 %v1280, 9
    %v1458 = vpop.permute.xlu0 %1457
    %1459 = vrot.lane.b32.xlu0 %v1281, 9
    %v1460 = vpop.permute.xlu0 %1459
    %1461 = vrot.lane.b32.xlu0 %v1282, 9
    %v1462 = vpop.permute.xlu0 %1461
    %1463 = vrot.lane.b32.xlu0 %v1283, 9
    %v1464 = vpop.permute.xlu0 %1463
    %1465 = vrot.lane.b32.xlu0 %v1284, 9
    %v1466 = vpop.permute.xlu0 %1465
    %1467 = vrot.lane.b32.xlu0 %v1285, 9
    %v1468 = vpop.permute.xlu0 %1467
    %1469 = vrot.lane.b32.xlu0 %v1286, 9
    %v1470 = vpop.permute.xlu0 %1469
    %1471 = vrot.lane.b32.xlu0 %v1287, 9
    %v1472 = vpop.permute.xlu0 %1471
    %1473 = vrot.lane.b32.xlu0 %v1288, 9
    %v1474 = vpop.permute.xlu0 %1473
    %1475 = vrot.lane.b32.xlu0 %v1289, 9
    %v1476 = vpop.permute.xlu0 %1475
    %1477 = vrot.lane.b32.xlu0 %v1290, 9
    %v1478 = vpop.permute.xlu0 %1477
    %1479 = vrot.lane.b32.xlu0 %v1291, 9
    %v1480 = vpop.permute.xlu0 %1479
    %1481 = vrot.lane.b32.xlu0 %v1292, 9
    %v1482 = vpop.permute.xlu0 %1481
    %1483 = vrot.lane.b32.xlu0 %v1293, 9
    %v1484 = vpop.permute.xlu0 %1483
    %1485 = vrot.lane.b32.xlu0 %v1294, 9
    %v1486 = vpop.permute.xlu0 %1485
    %vm1551 = vcmask 97352
    %1552 = vst.msk [vmem:[#allocation4] sm:$0xff] %vm1551, %v1360
    %1553 = vst.msk [vmem:[#allocation4 + $0x10] sm:$0xff] %vm1551, %v1362
    %1554 = vst.msk [vmem:[#allocation4 + $0x20] sm:$0xff] %vm1551, %v1364
    %1555 = vst.msk [vmem:[#allocation4 + $0x30] sm:$0xff] %vm1551, %v1366
    %1556 = vst.msk [vmem:[#allocation4 + $0x40] sm:$0xff] %vm1551, %v1368
    %1557 = vst.msk [vmem:[#allocation4 + $0x50] sm:$0xff] %vm1551, %v1370
    %1558 = vst.msk [vmem:[#allocation4 + $0x60] sm:$0xff] %vm1551, %v1372
    %1559 = vst.msk [vmem:[#allocation4 + $0x70] sm:$0xff] %vm1551, %v1374
    %1560 = vst.msk [vmem:[#allocation4 + $0x80] sm:$0xff] %vm1551, %v1376
    %1561 = vst.msk [vmem:[#allocation4 + $0x90] sm:$0xff] %vm1551, %v1378
    %1562 = vst.msk [vmem:[#allocation4 + $0xa0] sm:$0xff] %vm1551, %v1380
    %1563 = vst.msk [vmem:[#allocation4 + $0xb0] sm:$0xff] %vm1551, %v1382
    %1564 = vst.msk [vmem:[#allocation4 + $0xc0] sm:$0xff] %vm1551, %v1384
    %1565 = vst.msk [vmem:[#allocation4 + $0xd0] sm:$0xff] %vm1551, %v1386
    %1566 = vst.msk [vmem:[#allocation4 + $0xe0] sm:$0xff] %vm1551, %v1388
    %1567 = vst.msk [vmem:[#allocation4 + $0xf0] sm:$0xff] %vm1551, %v1390
    %1568 = vst.msk [vmem:[#allocation4 + $0x100] sm:$0xff] %vm1551, %v1392
    %1569 = vst.msk [vmem:[#allocation4 + $0x110] sm:$0xff] %vm1551, %v1394
    %1570 = vst.msk [vmem:[#allocation4 + $0x120] sm:$0xff] %vm1551, %v1396
    %1571 = vst.msk [vmem:[#allocation4 + $0x130] sm:$0xff] %vm1551, %v1398
    %1572 = vst.msk [vmem:[#allocation4 + $0x140] sm:$0xff] %vm1551, %v1400
    %1573 = vst.msk [vmem:[#allocation4 + $0x150] sm:$0xff] %vm1551, %v1402
    %1574 = vst.msk [vmem:[#allocation4 + $0x160] sm:$0xff] %vm1551, %v1404
    %1575 = vst.msk [vmem:[#allocation4 + $0x170] sm:$0xff] %vm1551, %v1406
    %1576 = vst.msk [vmem:[#allocation4 + $0x180] sm:$0xff] %vm1551, %v1408
    %1577 = vst.msk [vmem:[#allocation4 + $0x190] sm:$0xff] %vm1551, %v1410
    %1578 = vst.msk [vmem:[#allocation4 + $0x1a0] sm:$0xff] %vm1551, %v1412
    %1579 = vst.msk [vmem:[#allocation4 + $0x1b0] sm:$0xff] %vm1551, %v1414
    %1580 = vst.msk [vmem:[#allocation4 + $0x1c0] sm:$0xff] %vm1551, %v1416
    %1581 = vst.msk [vmem:[#allocation4 + $0x1d0] sm:$0xff] %vm1551, %v1418
    %1582 = vst.msk [vmem:[#allocation4 + $0x1e0] sm:$0xff] %vm1551, %v1420
    %1583 = vst.msk [vmem:[#allocation4 + $0x1f0] sm:$0xff] %vm1551, %v1422
    %1584 = vst.msk [vmem:[#allocation4 + $0x200] sm:$0xff] %vm1551, %v1424
    %1585 = vst.msk [vmem:[#allocation4 + $0x210] sm:$0xff] %vm1551, %v1426
    %1586 = vst.msk [vmem:[#allocation4 + $0x220] sm:$0xff] %vm1551, %v1428
    %1587 = vst.msk [vmem:[#allocation4 + $0x230] sm:$0xff] %vm1551, %v1430
    %1588 = vst.msk [vmem:[#allocation4 + $0x240] sm:$0xff] %vm1551, %v1432
    %1589 = vst.msk [vmem:[#allocation4 + $0x250] sm:$0xff] %vm1551, %v1434
    %1590 = vst.msk [vmem:[#allocation4 + $0x260] sm:$0xff] %vm1551, %v1436
    %1591 = vst.msk [vmem:[#allocation4 + $0x270] sm:$0xff] %vm1551, %v1438
    %1592 = vst.msk [vmem:[#allocation4 + $0x280] sm:$0xff] %vm1551, %v1440
    %1593 = vst.msk [vmem:[#allocation4 + $0x290] sm:$0xff] %vm1551, %v1442
    %1594 = vst.msk [vmem:[#allocation4 + $0x2a0] sm:$0xff] %vm1551, %v1444
    %1595 = vst.msk [vmem:[#allocation4 + $0x2b0] sm:$0xff] %vm1551, %v1446
    %1596 = vst.msk [vmem:[#allocation4 + $0x2c0] sm:$0xff] %vm1551, %v1448
    %1597 = vst.msk [vmem:[#allocation4 + $0x2d0] sm:$0xff] %vm1551, %v1450
    %1598 = vst.msk [vmem:[#allocation4 + $0x2e0] sm:$0xff] %vm1551, %v1452
    %1599 = vst.msk [vmem:[#allocation4 + $0x2f0] sm:$0xff] %vm1551, %v1454
    %1600 = vst.msk [vmem:[#allocation4 + $0x300] sm:$0xff] %vm1551, %v1456
    %1601 = vst.msk [vmem:[#allocation4 + $0x310] sm:$0xff] %vm1551, %v1458
    %1602 = vst.msk [vmem:[#allocation4 + $0x320] sm:$0xff] %vm1551, %v1460
    %1603 = vst.msk [vmem:[#allocation4 + $0x330] sm:$0xff] %vm1551, %v1462
    %1604 = vst.msk [vmem:[#allocation4 + $0x340] sm:$0xff] %vm1551, %v1464
    %1605 = vst.msk [vmem:[#allocation4 + $0x350] sm:$0xff] %vm1551, %v1466
    %1606 = vst.msk [vmem:[#allocation4 + $0x360] sm:$0xff] %vm1551, %v1468
    %1607 = vst.msk [vmem:[#allocation4 + $0x370] sm:$0xff] %vm1551, %v1470
    %1608 = vst.msk [vmem:[#allocation4 + $0x380] sm:$0xff] %vm1551, %v1472
    %1609 = vst.msk [vmem:[#allocation4 + $0x390] sm:$0xff] %vm1551, %v1474
    %1610 = vst.msk [vmem:[#allocation4 + $0x3a0] sm:$0xff] %vm1551, %v1476
    %1611 = vst.msk [vmem:[#allocation4 + $0x3b0] sm:$0xff] %vm1551, %v1478
    %1612 = vst.msk [vmem:[#allocation4 + $0x3c0] sm:$0xff] %vm1551, %v1480
    %1613 = vst.msk [vmem:[#allocation4 + $0x3d0] sm:$0xff] %vm1551, %v1482
    %1614 = vst.msk [vmem:[#allocation4 + $0x3e0] sm:$0xff] %vm1551, %v1484
    %1615 = vst.msk [vmem:[#allocation4 + $0x3f0] sm:$0xff] %vm1551, %v1486
    %v1616 = vld [vmem:[%s267 + $0x1] sm:$0xff]
    %v1617 = vld [vmem:[%s267 + $0x9] sm:$0xff]
    %v1618 = vld [vmem:[%s267 + $0x19] sm:$0xff]
    %v1619 = vld [vmem:[%s267 + $0x21] sm:$0xff]
    %v1620 = vld [vmem:[%s267 + $0x31] sm:$0xff]
    %v1621 = vld [vmem:[%s267 + $0x39] sm:$0xff]
    %v1622 = vld [vmem:[%s267 + $0x49] sm:$0xff]
    %v1623 = vld [vmem:[%s267 + $0x51] sm:$0xff]
    %v1624 = vld [vmem:[%s267 + $0x61] sm:$0xff]
    %v1625 = vld [vmem:[%s267 + $0x69] sm:$0xff]
    %v1626 = vld [vmem:[%s267 + $0x79] sm:$0xff]
    %v1627 = vld [vmem:[%s267 + $0x81] sm:$0xff]
    %v1628 = vld [vmem:[%s267 + $0x91] sm:$0xff]
    %v1629 = vld [vmem:[%s267 + $0x99] sm:$0xff]
    %v1630 = vld [vmem:[%s267 + $0xa9] sm:$0xff]
    %v1631 = vld [vmem:[%s267 + $0xb1] sm:$0xff]
    %v1632 = vld [vmem:[%s267 + $0xc1] sm:$0xff]
    %v1633 = vld [vmem:[%s267 + $0xc9] sm:$0xff]
    %v1634 = vld [vmem:[%s267 + $0xd9] sm:$0xff]
    %v1635 = vld [vmem:[%s267 + $0xe1] sm:$0xff]
    %v1636 = vld [vmem:[%s267 + $0xf1] sm:$0xff]
    %v1637 = vld [vmem:[%s267 + $0xf9] sm:$0xff]
    %v1638 = vld [vmem:[%s267 + $0x109] sm:$0xff]
    %v1639 = vld [vmem:[%s267 + $0x111] sm:$0xff]
    %v1640 = vld [vmem:[%s267 + $0x121] sm:$0xff]
    %v1641 = vld [vmem:[%s267 + $0x129] sm:$0xff]
    %v1642 = vld [vmem:[%s267 + $0x139] sm:$0xff]
    %v1643 = vld [vmem:[%s267 + $0x141] sm:$0xff]
    %v1644 = vld [vmem:[%s267 + $0x151] sm:$0xff]
    %v1645 = vld [vmem:[%s267 + $0x159] sm:$0xff]
    %v1646 = vld [vmem:[%s267 + $0x169] sm:$0xff]
    %v1647 = vld [vmem:[%s267 + $0x171] sm:$0xff]
    %v1648 = vld [vmem:[%s267 + $0x1b1] sm:$0xff]
    %v1649 = vld [vmem:[%s267 + $0x1b9] sm:$0xff]
    %v1650 = vld [vmem:[%s267 + $0x1c9] sm:$0xff]
    %v1651 = vld [vmem:[%s267 + $0x1d1] sm:$0xff]
    %v1652 = vld [vmem:[%s267 + $0x1e1] sm:$0xff]
    %v1653 = vld [vmem:[%s267 + $0x1e9] sm:$0xff]
    %v1654 = vld [vmem:[%s267 + $0x1f9] sm:$0xff]
    %v1655 = vld [vmem:[%s267 + $0x201] sm:$0xff]
    %v1656 = vld [vmem:[%s267 + $0x211] sm:$0xff]
    %v1657 = vld [vmem:[%s267 + $0x219] sm:$0xff]
    %v1658 = vld [vmem:[%s267 + $0x229] sm:$0xff]
    %v1659 = vld [vmem:[%s267 + $0x231] sm:$0xff]
    %v1660 = vld [vmem:[%s267 + $0x241] sm:$0xff]
    %v1661 = vld [vmem:[%s267 + $0x249] sm:$0xff]
    %v1662 = vld [vmem:[%s267 + $0x259] sm:$0xff]
    %v1663 = vld [vmem:[%s267 + $0x261] sm:$0xff]
    %v1664 = vld [vmem:[%s267 + $0x271] sm:$0xff]
    %v1665 = vld [vmem:[%s267 + $0x279] sm:$0xff]
    %v1666 = vld [vmem:[%s267 + $0x289] sm:$0xff]
    %v1667 = vld [vmem:[%s267 + $0x291] sm:$0xff]
    %v1668 = vld [vmem:[%s267 + $0x2a1] sm:$0xff]
    %v1669 = vld [vmem:[%s267 + $0x2a9] sm:$0xff]
    %v1670 = vld [vmem:[%s267 + $0x2b9] sm:$0xff]
    %v1671 = vld [vmem:[%s267 + $0x2c1] sm:$0xff]
    %v1672 = vld [vmem:[%s267 + $0x2d1] sm:$0xff]
    %v1673 = vld [vmem:[%s267 + $0x2d9] sm:$0xff]
    %v1674 = vld [vmem:[%s267 + $0x2e9] sm:$0xff]
    %v1675 = vld [vmem:[%s267 + $0x2f1] sm:$0xff]
    %v1676 = vld [vmem:[%s267 + $0x301] sm:$0xff]
    %v1677 = vld [vmem:[%s267 + $0x309] sm:$0xff]
    %v1678 = vld [vmem:[%s267 + $0x319] sm:$0xff]
    %v1679 = vld [vmem:[%s267 + $0x321] sm:$0xff]
    %1744 = vrot.lane.b32.xlu0 %v1616, 12
    %v1745 = vpop.permute.xlu0 %1744
    %1746 = vrot.lane.b32.xlu0 %v1617, 12
    %v1747 = vpop.permute.xlu0 %1746
    %1748 = vrot.lane.b32.xlu0 %v1618, 12
    %v1749 = vpop.permute.xlu0 %1748
    %1750 = vrot.lane.b32.xlu0 %v1619, 12
    %v1751 = vpop.permute.xlu0 %1750
    %1752 = vrot.lane.b32.xlu0 %v1620, 12
    %v1753 = vpop.permute.xlu0 %1752
    %1754 = vrot.lane.b32.xlu0 %v1621, 12
    %v1755 = vpop.permute.xlu0 %1754
    %1756 = vrot.lane.b32.xlu0 %v1622, 12
    %v1757 = vpop.permute.xlu0 %1756
    %1758 = vrot.lane.b32.xlu0 %v1623, 12
    %v1759 = vpop.permute.xlu0 %1758
    %1760 = vrot.lane.b32.xlu0 %v1624, 12
    %v1761 = vpop.permute.xlu0 %1760
    %1762 = vrot.lane.b32.xlu0 %v1625, 12
    %v1763 = vpop.permute.xlu0 %1762
    %1764 = vrot.lane.b32.xlu0 %v1626, 12
    %v1765 = vpop.permute.xlu0 %1764
    %1766 = vrot.lane.b32.xlu0 %v1627, 12
    %v1767 = vpop.permute.xlu0 %1766
    %1768 = vrot.lane.b32.xlu0 %v1628, 12
    %v1769 = vpop.permute.xlu0 %1768
    %1770 = vrot.lane.b32.xlu0 %v1629, 12
    %v1771 = vpop.permute.xlu0 %1770
    %1772 = vrot.lane.b32.xlu0 %v1630, 12
    %v1773 = vpop.permute.xlu0 %1772
    %1774 = vrot.lane.b32.xlu0 %v1631, 12
    %v1775 = vpop.permute.xlu0 %1774
    %1776 = vrot.lane.b32.xlu0 %v1632, 12
    %v1777 = vpop.permute.xlu0 %1776
    %1778 = vrot.lane.b32.xlu0 %v1633, 12
    %v1779 = vpop.permute.xlu0 %1778
    %1780 = vrot.lane.b32.xlu0 %v1634, 12
    %v1781 = vpop.permute.xlu0 %1780
    %1782 = vrot.lane.b32.xlu0 %v1635, 12
    %v1783 = vpop.permute.xlu0 %1782
    %1784 = vrot.lane.b32.xlu0 %v1636, 12
    %v1785 = vpop.permute.xlu0 %1784
    %1786 = vrot.lane.b32.xlu0 %v1637, 12
    %v1787 = vpop.permute.xlu0 %1786
    %1788 = vrot.lane.b32.xlu0 %v1638, 12
    %v1789 = vpop.permute.xlu0 %1788
    %1790 = vrot.lane.b32.xlu0 %v1639, 12
    %v1791 = vpop.permute.xlu0 %1790
    %1792 = vrot.lane.b32.xlu0 %v1640, 12
    %v1793 = vpop.permute.xlu0 %1792
    %1794 = vrot.lane.b32.xlu0 %v1641, 12
    %v1795 = vpop.permute.xlu0 %1794
    %1796 = vrot.lane.b32.xlu0 %v1642, 12
    %v1797 = vpop.permute.xlu0 %1796
    %1798 = vrot.lane.b32.xlu0 %v1643, 12
    %v1799 = vpop.permute.xlu0 %1798
    %1800 = vrot.lane.b32.xlu0 %v1644, 12
    %v1801 = vpop.permute.xlu0 %1800
    %1802 = vrot.lane.b32.xlu0 %v1645, 12
    %v1803 = vpop.permute.xlu0 %1802
    %1804 = vrot.lane.b32.xlu0 %v1646, 12
    %v1805 = vpop.permute.xlu0 %1804
    %1806 = vrot.lane.b32.xlu0 %v1647, 12
    %v1807 = vpop.permute.xlu0 %1806
    %1808 = vrot.lane.b32.xlu0 %v1648, 12
    %v1809 = vpop.permute.xlu0 %1808
    %1810 = vrot.lane.b32.xlu0 %v1649, 12
    %v1811 = vpop.permute.xlu0 %1810
    %1812 = vrot.lane.b32.xlu0 %v1650, 12
    %v1813 = vpop.permute.xlu0 %1812
    %1814 = vrot.lane.b32.xlu0 %v1651, 12
    %v1815 = vpop.permute.xlu0 %1814
    %1816 = vrot.lane.b32.xlu0 %v1652, 12
    %v1817 = vpop.permute.xlu0 %1816
    %1818 = vrot.lane.b32.xlu0 %v1653, 12
    %v1819 = vpop.permute.xlu0 %1818
    %1820 = vrot.lane.b32.xlu0 %v1654, 12
    %v1821 = vpop.permute.xlu0 %1820
    %1822 = vrot.lane.b32.xlu0 %v1655, 12
    %v1823 = vpop.permute.xlu0 %1822
    %1824 = vrot.lane.b32.xlu0 %v1656, 12
    %v1825 = vpop.permute.xlu0 %1824
    %1826 = vrot.lane.b32.xlu0 %v1657, 12
    %v1827 = vpop.permute.xlu0 %1826
    %1828 = vrot.lane.b32.xlu0 %v1658, 12
    %v1829 = vpop.permute.xlu0 %1828
    %1830 = vrot.lane.b32.xlu0 %v1659, 12
    %v1831 = vpop.permute.xlu0 %1830
    %1832 = vrot.lane.b32.xlu0 %v1660, 12
    %v1833 = vpop.permute.xlu0 %1832
    %1834 = vrot.lane.b32.xlu0 %v1661, 12
    %v1835 = vpop.permute.xlu0 %1834
    %1836 = vrot.lane.b32.xlu0 %v1662, 12
    %v1837 = vpop.permute.xlu0 %1836
    %1838 = vrot.lane.b32.xlu0 %v1663, 12
    %v1839 = vpop.permute.xlu0 %1838
    %1840 = vrot.lane.b32.xlu0 %v1664, 12
    %v1841 = vpop.permute.xlu0 %1840
    %1842 = vrot.lane.b32.xlu0 %v1665, 12
    %v1843 = vpop.permute.xlu0 %1842
    %1844 = vrot.lane.b32.xlu0 %v1666, 12
    %v1845 = vpop.permute.xlu0 %1844
    %1846 = vrot.lane.b32.xlu0 %v1667, 12
    %v1847 = vpop.permute.xlu0 %1846
    %1848 = vrot.lane.b32.xlu0 %v1668, 12
    %v1849 = vpop.permute.xlu0 %1848
    %1850 = vrot.lane.b32.xlu0 %v1669, 12
    %v1851 = vpop.permute.xlu0 %1850
    %1852 = vrot.lane.b32.xlu0 %v1670, 12
    %v1853 = vpop.permute.xlu0 %1852
    %1854 = vrot.lane.b32.xlu0 %v1671, 12
    %v1855 = vpop.permute.xlu0 %1854
    %1856 = vrot.lane.b32.xlu0 %v1672, 12
    %v1857 = vpop.permute.xlu0 %1856
    %1858 = vrot.lane.b32.xlu0 %v1673, 12
    %v1859 = vpop.permute.xlu0 %1858
    %1860 = vrot.lane.b32.xlu0 %v1674, 12
    %v1861 = vpop.permute.xlu0 %1860
    %1862 = vrot.lane.b32.xlu0 %v1675, 12
    %v1863 = vpop.permute.xlu0 %1862
    %1864 = vrot.lane.b32.xlu0 %v1676, 12
    %v1865 = vpop.permute.xlu0 %1864
    %1866 = vrot.lane.b32.xlu0 %v1677, 12
    %v1867 = vpop.permute.xlu0 %1866
    %1868 = vrot.lane.b32.xlu0 %v1678, 12
    %v1869 = vpop.permute.xlu0 %1868
    %1870 = vrot.lane.b32.xlu0 %v1679, 12
    %v1871 = vpop.permute.xlu0 %1870
    %vm1936 = vcmask 121952
    %1937 = vst.msk [vmem:[#allocation4] sm:$0xff] %vm1936, %v1745
    %1938 = vst.msk [vmem:[#allocation4 + $0x10] sm:$0xff] %vm1936, %v1747
    %1939 = vst.msk [vmem:[#allocation4 + $0x20] sm:$0xff] %vm1936, %v1749
    %1940 = vst.msk [vmem:[#allocation4 + $0x30] sm:$0xff] %vm1936, %v1751
    %1941 = vst.msk [vmem:[#allocation4 + $0x40] sm:$0xff] %vm1936, %v1753
    %1942 = vst.msk [vmem:[#allocation4 + $0x50] sm:$0xff] %vm1936, %v1755
    %1943 = vst.msk [vmem:[#allocation4 + $0x60] sm:$0xff] %vm1936, %v1757
    %1944 = vst.msk [vmem:[#allocation4 + $0x70] sm:$0xff] %vm1936, %v1759
    %1945 = vst.msk [vmem:[#allocation4 + $0x80] sm:$0xff] %vm1936, %v1761
    %1946 = vst.msk [vmem:[#allocation4 + $0x90] sm:$0xff] %vm1936, %v1763
    %1947 = vst.msk [vmem:[#allocation4 + $0xa0] sm:$0xff] %vm1936, %v1765
    %1948 = vst.msk [vmem:[#allocation4 + $0xb0] sm:$0xff] %vm1936, %v1767
    %1949 = vst.msk [vmem:[#allocation4 + $0xc0] sm:$0xff] %vm1936, %v1769
    %1950 = vst.msk [vmem:[#allocation4 + $0xd0] sm:$0xff] %vm1936, %v1771
    %1951 = vst.msk [vmem:[#allocation4 + $0xe0] sm:$0xff] %vm1936, %v1773
    %1952 = vst.msk [vmem:[#allocation4 + $0xf0] sm:$0xff] %vm1936, %v1775
    %1953 = vst.msk [vmem:[#allocation4 + $0x100] sm:$0xff] %vm1936, %v1777
    %1954 = vst.msk [vmem:[#allocation4 + $0x110] sm:$0xff] %vm1936, %v1779
    %1955 = vst.msk [vmem:[#allocation4 + $0x120] sm:$0xff] %vm1936, %v1781
    %1956 = vst.msk [vmem:[#allocation4 + $0x130] sm:$0xff] %vm1936, %v1783
    %1957 = vst.msk [vmem:[#allocation4 + $0x140] sm:$0xff] %vm1936, %v1785
    %1958 = vst.msk [vmem:[#allocation4 + $0x150] sm:$0xff] %vm1936, %v1787
    %1959 = vst.msk [vmem:[#allocation4 + $0x160] sm:$0xff] %vm1936, %v1789
    %1960 = vst.msk [vmem:[#allocation4 + $0x170] sm:$0xff] %vm1936, %v1791
    %1961 = vst.msk [vmem:[#allocation4 + $0x180] sm:$0xff] %vm1936, %v1793
    %1962 = vst.msk [vmem:[#allocation4 + $0x190] sm:$0xff] %vm1936, %v1795
    %1963 = vst.msk [vmem:[#allocation4 + $0x1a0] sm:$0xff] %vm1936, %v1797
    %1964 = vst.msk [vmem:[#allocation4 + $0x1b0] sm:$0xff] %vm1936, %v1799
    %1965 = vst.msk [vmem:[#allocation4 + $0x1c0] sm:$0xff] %vm1936, %v1801
    %1966 = vst.msk [vmem:[#allocation4 + $0x1d0] sm:$0xff] %vm1936, %v1803
    %1967 = vst.msk [vmem:[#allocation4 + $0x1e0] sm:$0xff] %vm1936, %v1805
    %1968 = vst.msk [vmem:[#allocation4 + $0x1f0] sm:$0xff] %vm1936, %v1807
    %1969 = vst.msk [vmem:[#allocation4 + $0x200] sm:$0xff] %vm1936, %v1809
    %1970 = vst.msk [vmem:[#allocation4 + $0x210] sm:$0xff] %vm1936, %v1811
    %1971 = vst.msk [vmem:[#allocation4 + $0x220] sm:$0xff] %vm1936, %v1813
    %1972 = vst.msk [vmem:[#allocation4 + $0x230] sm:$0xff] %vm1936, %v1815
    %1973 = vst.msk [vmem:[#allocation4 + $0x240] sm:$0xff] %vm1936, %v1817
    %1974 = vst.msk [vmem:[#allocation4 + $0x250] sm:$0xff] %vm1936, %v1819
    %1975 = vst.msk [vmem:[#allocation4 + $0x260] sm:$0xff] %vm1936, %v1821
    %1976 = vst.msk [vmem:[#allocation4 + $0x270] sm:$0xff] %vm1936, %v1823
    %1977 = vst.msk [vmem:[#allocation4 + $0x280] sm:$0xff] %vm1936, %v1825
    %1978 = vst.msk [vmem:[#allocation4 + $0x290] sm:$0xff] %vm1936, %v1827
    %1979 = vst.msk [vmem:[#allocation4 + $0x2a0] sm:$0xff] %vm1936, %v1829
    %1980 = vst.msk [vmem:[#allocation4 + $0x2b0] sm:$0xff] %vm1936, %v1831
    %1981 = vst.msk [vmem:[#allocation4 + $0x2c0] sm:$0xff] %vm1936, %v1833
    %1982 = vst.msk [vmem:[#allocation4 + $0x2d0] sm:$0xff] %vm1936, %v1835
    %1983 = vst.msk [vmem:[#allocation4 + $0x2e0] sm:$0xff] %vm1936, %v1837
    %1984 = vst.msk [vmem:[#allocation4 + $0x2f0] sm:$0xff] %vm1936, %v1839
    %1985 = vst.msk [vmem:[#allocation4 + $0x300] sm:$0xff] %vm1936, %v1841
    %1986 = vst.msk [vmem:[#allocation4 + $0x310] sm:$0xff] %vm1936, %v1843
    %1987 = vst.msk [vmem:[#allocation4 + $0x320] sm:$0xff] %vm1936, %v1845
    %1988 = vst.msk [vmem:[#allocation4 + $0x330] sm:$0xff] %vm1936, %v1847
    %1989 = vst.msk [vmem:[#allocation4 + $0x340] sm:$0xff] %vm1936, %v1849
    %1990 = vst.msk [vmem:[#allocation4 + $0x350] sm:$0xff] %vm1936, %v1851
    %1991 = vst.msk [vmem:[#allocation4 + $0x360] sm:$0xff] %vm1936, %v1853
    %1992 = vst.msk [vmem:[#allocation4 + $0x370] sm:$0xff] %vm1936, %v1855
    %1993 = vst.msk [vmem:[#allocation4 + $0x380] sm:$0xff] %vm1936, %v1857
    %1994 = vst.msk [vmem:[#allocation4 + $0x390] sm:$0xff] %vm1936, %v1859
    %1995 = vst.msk [vmem:[#allocation4 + $0x3a0] sm:$0xff] %vm1936, %v1861
    %1996 = vst.msk [vmem:[#allocation4 + $0x3b0] sm:$0xff] %vm1936, %v1863
    %1997 = vst.msk [vmem:[#allocation4 + $0x3c0] sm:$0xff] %vm1936, %v1865
    %1998 = vst.msk [vmem:[#allocation4 + $0x3d0] sm:$0xff] %vm1936, %v1867
    %1999 = vst.msk [vmem:[#allocation4 + $0x3e0] sm:$0xff] %vm1936, %v1869
    %2000 = vst.msk [vmem:[#allocation4 + $0x3f0] sm:$0xff] %vm1936, %v1871
    %v2001 = vld [vmem:[%s267 + $0x2] sm:$0xff]
    %v2002 = vld [vmem:[%s267 + $0xa] sm:$0xff]
    %v2003 = vld [vmem:[%s267 + $0x1a] sm:$0xff]
    %v2004 = vld [vmem:[%s267 + $0x22] sm:$0xff]
    %v2005 = vld [vmem:[%s267 + $0x32] sm:$0xff]
    %v2006 = vld [vmem:[%s267 + $0x3a] sm:$0xff]
    %v2007 = vld [vmem:[%s267 + $0x4a] sm:$0xff]
    %v2008 = vld [vmem:[%s267 + $0x52] sm:$0xff]
    %v2009 = vld [vmem:[%s267 + $0x62] sm:$0xff]
    %v2010 = vld [vmem:[%s267 + $0x6a] sm:$0xff]
    %v2011 = vld [vmem:[%s267 + $0x7a] sm:$0xff]
    %v2012 = vld [vmem:[%s267 + $0x82] sm:$0xff]
    %v2013 = vld [vmem:[%s267 + $0x92] sm:$0xff]
    %v2014 = vld [vmem:[%s267 + $0x9a] sm:$0xff]
    %v2015 = vld [vmem:[%s267 + $0xaa] sm:$0xff]
    %v2016 = vld [vmem:[%s267 + $0xb2] sm:$0xff]
    %v2017 = vld [vmem:[%s267 + $0xc2] sm:$0xff]
    %v2018 = vld [vmem:[%s267 + $0xca] sm:$0xff]
    %v2019 = vld [vmem:[%s267 + $0xda] sm:$0xff]
    %v2020 = vld [vmem:[%s267 + $0xe2] sm:$0xff]
    %v2021 = vld [vmem:[%s267 + $0xf2] sm:$0xff]
    %v2022 = vld [vmem:[%s267 + $0xfa] sm:$0xff]
    %v2023 = vld [vmem:[%s267 + $0x10a] sm:$0xff]
    %v2024 = vld [vmem:[%s267 + $0x112] sm:$0xff]
    %v2025 = vld [vmem:[%s267 + $0x122] sm:$0xff]
    %v2026 = vld [vmem:[%s267 + $0x12a] sm:$0xff]
    %v2027 = vld [vmem:[%s267 + $0x13a] sm:$0xff]
    %v2028 = vld [vmem:[%s267 + $0x142] sm:$0xff]
    %v2029 = vld [vmem:[%s267 + $0x152] sm:$0xff]
    %v2030 = vld [vmem:[%s267 + $0x15a] sm:$0xff]
    %v2031 = vld [vmem:[%s267 + $0x16a] sm:$0xff]
    %v2032 = vld [vmem:[%s267 + $0x172] sm:$0xff]
    %v2033 = vld [vmem:[%s267 + $0x1b2] sm:$0xff]
    %v2034 = vld [vmem:[%s267 + $0x1ba] sm:$0xff]
    %v2035 = vld [vmem:[%s267 + $0x1ca] sm:$0xff]
    %v2036 = vld [vmem:[%s267 + $0x1d2] sm:$0xff]
    %v2037 = vld [vmem:[%s267 + $0x1e2] sm:$0xff]
    %v2038 = vld [vmem:[%s267 + $0x1ea] sm:$0xff]
    %v2039 = vld [vmem:[%s267 + $0x1fa] sm:$0xff]
    %v2040 = vld [vmem:[%s267 + $0x202] sm:$0xff]
    %v2041 = vld [vmem:[%s267 + $0x212] sm:$0xff]
    %v2042 = vld [vmem:[%s267 + $0x21a] sm:$0xff]
    %v2043 = vld [vmem:[%s267 + $0x22a] sm:$0xff]
    %v2044 = vld [vmem:[%s267 + $0x232] sm:$0xff]
    %v2045 = vld [vmem:[%s267 + $0x242] sm:$0xff]
    %v2046 = vld [vmem:[%s267 + $0x24a] sm:$0xff]
    %v2047 = vld [vmem:[%s267 + $0x25a] sm:$0xff]
    %v2048 = vld [vmem:[%s267 + $0x262] sm:$0xff]
    %v2049 = vld [vmem:[%s267 + $0x272] sm:$0xff]
    %v2050 = vld [vmem:[%s267 + $0x27a] sm:$0xff]
    %v2051 = vld [vmem:[%s267 + $0x28a] sm:$0xff]
    %v2052 = vld [vmem:[%s267 + $0x292] sm:$0xff]
    %v2053 = vld [vmem:[%s267 + $0x2a2] sm:$0xff]
    %v2054 = vld [vmem:[%s267 + $0x2aa] sm:$0xff]
    %v2055 = vld [vmem:[%s267 + $0x2ba] sm:$0xff]
    %v2056 = vld [vmem:[%s267 + $0x2c2] sm:$0xff]
    %v2057 = vld [vmem:[%s267 + $0x2d2] sm:$0xff]
    %v2058 = vld [vmem:[%s267 + $0x2da] sm:$0xff]
    %v2059 = vld [vmem:[%s267 + $0x2ea] sm:$0xff]
    %v2060 = vld [vmem:[%s267 + $0x2f2] sm:$0xff]
    %v2061 = vld [vmem:[%s267 + $0x302] sm:$0xff]
    %v2062 = vld [vmem:[%s267 + $0x30a] sm:$0xff]
    %v2063 = vld [vmem:[%s267 + $0x31a] sm:$0xff]
    %v2064 = vld [vmem:[%s267 + $0x322] sm:$0xff]
    %2129 = vrot.lane.b32.xlu0 %v2001, 15
    %v2130 = vpop.permute.xlu0 %2129
    %2131 = vrot.lane.b32.xlu0 %v2002, 15
    %v2132 = vpop.permute.xlu0 %2131
    %2133 = vrot.lane.b32.xlu0 %v2003, 15
    %v2134 = vpop.permute.xlu0 %2133
    %2135 = vrot.lane.b32.xlu0 %v2004, 15
    %v2136 = vpop.permute.xlu0 %2135
    %2137 = vrot.lane.b32.xlu0 %v2005, 15
    %v2138 = vpop.permute.xlu0 %2137
    %2139 = vrot.lane.b32.xlu0 %v2006, 15
    %v2140 = vpop.permute.xlu0 %2139
    %2141 = vrot.lane.b32.xlu0 %v2007, 15
    %v2142 = vpop.permute.xlu0 %2141
    %2143 = vrot.lane.b32.xlu0 %v2008, 15
    %v2144 = vpop.permute.xlu0 %2143
    %2145 = vrot.lane.b32.xlu0 %v2009, 15
    %v2146 = vpop.permute.xlu0 %2145
    %2147 = vrot.lane.b32.xlu0 %v2010, 15
    %v2148 = vpop.permute.xlu0 %2147
    %2149 = vrot.lane.b32.xlu0 %v2011, 15
    %v2150 = vpop.permute.xlu0 %2149
    %2151 = vrot.lane.b32.xlu0 %v2012, 15
    %v2152 = vpop.permute.xlu0 %2151
    %2153 = vrot.lane.b32.xlu0 %v2013, 15
    %v2154 = vpop.permute.xlu0 %2153
    %2155 = vrot.lane.b32.xlu0 %v2014, 15
    %v2156 = vpop.permute.xlu0 %2155
    %2157 = vrot.lane.b32.xlu0 %v2015, 15
    %v2158 = vpop.permute.xlu0 %2157
    %2159 = vrot.lane.b32.xlu0 %v2016, 15
    %v2160 = vpop.permute.xlu0 %2159
    %2161 = vrot.lane.b32.xlu0 %v2017, 15
    %v2162 = vpop.permute.xlu0 %2161
    %2163 = vrot.lane.b32.xlu0 %v2018, 15
    %v2164 = vpop.permute.xlu0 %2163
    %2165 = vrot.lane.b32.xlu0 %v2019, 15
    %v2166 = vpop.permute.xlu0 %2165
    %2167 = vrot.lane.b32.xlu0 %v2020, 15
    %v2168 = vpop.permute.xlu0 %2167
    %2169 = vrot.lane.b32.xlu0 %v2021, 15
    %v2170 = vpop.permute.xlu0 %2169
    %2171 = vrot.lane.b32.xlu0 %v2022, 15
    %v2172 = vpop.permute.xlu0 %2171
    %2173 = vrot.lane.b32.xlu0 %v2023, 15
    %v2174 = vpop.permute.xlu0 %2173
    %2175 = vrot.lane.b32.xlu0 %v2024, 15
    %v2176 = vpop.permute.xlu0 %2175
    %2177 = vrot.lane.b32.xlu0 %v2025, 15
    %v2178 = vpop.permute.xlu0 %2177
    %2179 = vrot.lane.b32.xlu0 %v2026, 15
    %v2180 = vpop.permute.xlu0 %2179
    %2181 = vrot.lane.b32.xlu0 %v2027, 15
    %v2182 = vpop.permute.xlu0 %2181
    %2183 = vrot.lane.b32.xlu0 %v2028, 15
    %v2184 = vpop.permute.xlu0 %2183
    %2185 = vrot.lane.b32.xlu0 %v2029, 15
    %v2186 = vpop.permute.xlu0 %2185
    %2187 = vrot.lane.b32.xlu0 %v2030, 15
    %v2188 = vpop.permute.xlu0 %2187
    %2189 = vrot.lane.b32.xlu0 %v2031, 15
    %v2190 = vpop.permute.xlu0 %2189
    %2191 = vrot.lane.b32.xlu0 %v2032, 15
    %v2192 = vpop.permute.xlu0 %2191
    %2193 = vrot.lane.b32.xlu0 %v2033, 15
    %v2194 = vpop.permute.xlu0 %2193
    %2195 = vrot.lane.b32.xlu0 %v2034, 15
    %v2196 = vpop.permute.xlu0 %2195
    %2197 = vrot.lane.b32.xlu0 %v2035, 15
    %v2198 = vpop.permute.xlu0 %2197
    %2199 = vrot.lane.b32.xlu0 %v2036, 15
    %v2200 = vpop.permute.xlu0 %2199
    %2201 = vrot.lane.b32.xlu0 %v2037, 15
    %v2202 = vpop.permute.xlu0 %2201
    %2203 = vrot.lane.b32.xlu0 %v2038, 15
    %v2204 = vpop.permute.xlu0 %2203
    %2205 = vrot.lane.b32.xlu0 %v2039, 15
    %v2206 = vpop.permute.xlu0 %2205
    %2207 = vrot.lane.b32.xlu0 %v2040, 15
    %v2208 = vpop.permute.xlu0 %2207
    %2209 = vrot.lane.b32.xlu0 %v2041, 15
    %v2210 = vpop.permute.xlu0 %2209
    %2211 = vrot.lane.b32.xlu0 %v2042, 15
    %v2212 = vpop.permute.xlu0 %2211
    %2213 = vrot.lane.b32.xlu0 %v2043, 15
    %v2214 = vpop.permute.xlu0 %2213
    %2215 = vrot.lane.b32.xlu0 %v2044, 15
    %v2216 = vpop.permute.xlu0 %2215
    %2217 = vrot.lane.b32.xlu0 %v2045, 15
    %v2218 = vpop.permute.xlu0 %2217
    %2219 = vrot.lane.b32.xlu0 %v2046, 15
    %v2220 = vpop.permute.xlu0 %2219
    %2221 = vrot.lane.b32.xlu0 %v2047, 15
    %v2222 = vpop.permute.xlu0 %2221
    %2223 = vrot.lane.b32.xlu0 %v2048, 15
    %v2224 = vpop.permute.xlu0 %2223
    %2225 = vrot.lane.b32.xlu0 %v2049, 15
    %v2226 = vpop.permute.xlu0 %2225
    %2227 = vrot.lane.b32.xlu0 %v2050, 15
    %v2228 = vpop.permute.xlu0 %2227
    %2229 = vrot.lane.b32.xlu0 %v2051, 15
    %v2230 = vpop.permute.xlu0 %2229
    %2231 = vrot.lane.b32.xlu0 %v2052, 15
    %v2232 = vpop.permute.xlu0 %2231
    %2233 = vrot.lane.b32.xlu0 %v2053, 15
    %v2234 = vpop.permute.xlu0 %2233
    %2235 = vrot.lane.b32.xlu0 %v2054, 15
    %v2236 = vpop.permute.xlu0 %2235
    %2237 = vrot.lane.b32.xlu0 %v2055, 15
    %v2238 = vpop.permute.xlu0 %2237
    %2239 = vrot.lane.b32.xlu0 %v2056, 15
    %v2240 = vpop.permute.xlu0 %2239
    %2241 = vrot.lane.b32.xlu0 %v2057, 15
    %v2242 = vpop.permute.xlu0 %2241
    %2243 = vrot.lane.b32.xlu0 %v2058, 15
    %v2244 = vpop.permute.xlu0 %2243
    %2245 = vrot.lane.b32.xlu0 %v2059, 15
    %v2246 = vpop.permute.xlu0 %2245
    %2247 = vrot.lane.b32.xlu0 %v2060, 15
    %v2248 = vpop.permute.xlu0 %2247
    %2249 = vrot.lane.b32.xlu0 %v2061, 15
    %v2250 = vpop.permute.xlu0 %2249
    %2251 = vrot.lane.b32.xlu0 %v2062, 15
    %v2252 = vpop.permute.xlu0 %2251
    %2253 = vrot.lane.b32.xlu0 %v2063, 15
    %v2254 = vpop.permute.xlu0 %2253
    %2255 = vrot.lane.b32.xlu0 %v2064, 15
    %v2256 = vpop.permute.xlu0 %2255
    %vm2321 = vcmask 146552
    %2322 = vst.msk [vmem:[#allocation4] sm:$0xff] %vm2321, %v2130
    %2323 = vst.msk [vmem:[#allocation4 + $0x10] sm:$0xff] %vm2321, %v2132
    %2324 = vst.msk [vmem:[#allocation4 + $0x20] sm:$0xff] %vm2321, %v2134
    %2325 = vst.msk [vmem:[#allocation4 + $0x30] sm:$0xff] %vm2321, %v2136
    %2326 = vst.msk [vmem:[#allocation4 + $0x40] sm:$0xff] %vm2321, %v2138
    %2327 = vst.msk [vmem:[#allocation4 + $0x50] sm:$0xff] %vm2321, %v2140
    %2328 = vst.msk [vmem:[#allocation4 + $0x60] sm:$0xff] %vm2321, %v2142
    %2329 = vst.msk [vmem:[#allocation4 + $0x70] sm:$0xff] %vm2321, %v2144
    %2330 = vst.msk [vmem:[#allocation4 + $0x80] sm:$0xff] %vm2321, %v2146
    %2331 = vst.msk [vmem:[#allocation4 + $0x90] sm:$0xff] %vm2321, %v2148
    %2332 = vst.msk [vmem:[#allocation4 + $0xa0] sm:$0xff] %vm2321, %v2150
    %2333 = vst.msk [vmem:[#allocation4 + $0xb0] sm:$0xff] %vm2321, %v2152
    %2334 = vst.msk [vmem:[#allocation4 + $0xc0] sm:$0xff] %vm2321, %v2154
    %2335 = vst.msk [vmem:[#allocation4 + $0xd0] sm:$0xff] %vm2321, %v2156
    %2336 = vst.msk [vmem:[#allocation4 + $0xe0] sm:$0xff] %vm2321, %v2158
    %2337 = vst.msk [vmem:[#allocation4 + $0xf0] sm:$0xff] %vm2321, %v2160
    %2338 = vst.msk [vmem:[#allocation4 + $0x100] sm:$0xff] %vm2321, %v2162
    %2339 = vst.msk [vmem:[#allocation4 + $0x110] sm:$0xff] %vm2321, %v2164
    %2340 = vst.msk [vmem:[#allocation4 + $0x120] sm:$0xff] %vm2321, %v2166
    %2341 = vst.msk [vmem:[#allocation4 + $0x130] sm:$0xff] %vm2321, %v2168
    %2342 = vst.msk [vmem:[#allocation4 + $0x140] sm:$0xff] %vm2321, %v2170
    %2343 = vst.msk [vmem:[#allocation4 + $0x150] sm:$0xff] %vm2321, %v2172
    %2344 = vst.msk [vmem:[#allocation4 + $0x160] sm:$0xff] %vm2321, %v2174
    %2345 = vst.msk [vmem:[#allocation4 + $0x170] sm:$0xff] %vm2321, %v2176
    %2346 = vst.msk [vmem:[#allocation4 + $0x180] sm:$0xff] %vm2321, %v2178
    %2347 = vst.msk [vmem:[#allocation4 + $0x190] sm:$0xff] %vm2321, %v2180
    %2348 = vst.msk [vmem:[#allocation4 + $0x1a0] sm:$0xff] %vm2321, %v2182
    %2349 = vst.msk [vmem:[#allocation4 + $0x1b0] sm:$0xff] %vm2321, %v2184
    %2350 = vst.msk [vmem:[#allocation4 + $0x1c0] sm:$0xff] %vm2321, %v2186
    %2351 = vst.msk [vmem:[#allocation4 + $0x1d0] sm:$0xff] %vm2321, %v2188
    %2352 = vst.msk [vmem:[#allocation4 + $0x1e0] sm:$0xff] %vm2321, %v2190
    %2353 = vst.msk [vmem:[#allocation4 + $0x1f0] sm:$0xff] %vm2321, %v2192
    %2354 = vst.msk [vmem:[#allocation4 + $0x200] sm:$0xff] %vm2321, %v2194
    %2355 = vst.msk [vmem:[#allocation4 + $0x210] sm:$0xff] %vm2321, %v2196
    %2356 = vst.msk [vmem:[#allocation4 + $0x220] sm:$0xff] %vm2321, %v2198
    %2357 = vst.msk [vmem:[#allocation4 + $0x230] sm:$0xff] %vm2321, %v2200
    %2358 = vst.msk [vmem:[#allocation4 + $0x240] sm:$0xff] %vm2321, %v2202
    %2359 = vst.msk [vmem:[#allocation4 + $0x250] sm:$0xff] %vm2321, %v2204
    %2360 = vst.msk [vmem:[#allocation4 + $0x260] sm:$0xff] %vm2321, %v2206
    %2361 = vst.msk [vmem:[#allocation4 + $0x270] sm:$0xff] %vm2321, %v2208
    %2362 = vst.msk [vmem:[#allocation4 + $0x280] sm:$0xff] %vm2321, %v2210
    %2363 = vst.msk [vmem:[#allocation4 + $0x290] sm:$0xff] %vm2321, %v2212
    %2364 = vst.msk [vmem:[#allocation4 + $0x2a0] sm:$0xff] %vm2321, %v2214
    %2365 = vst.msk [vmem:[#allocation4 + $0x2b0] sm:$0xff] %vm2321, %v2216
    %2366 = vst.msk [vmem:[#allocation4 + $0x2c0] sm:$0xff] %vm2321, %v2218
    %2367 = vst.msk [vmem:[#allocation4 + $0x2d0] sm:$0xff] %vm2321, %v2220
    %2368 = vst.msk [vmem:[#allocation4 + $0x2e0] sm:$0xff] %vm2321, %v2222
    %2369 = vst.msk [vmem:[#allocation4 + $0x2f0] sm:$0xff] %vm2321, %v2224
    %2370 = vst.msk [vmem:[#allocation4 + $0x300] sm:$0xff] %vm2321, %v2226
    %2371 = vst.msk [vmem:[#allocation4 + $0x310] sm:$0xff] %vm2321, %v2228
    %2372 = vst.msk [vmem:[#allocation4 + $0x320] sm:$0xff] %vm2321, %v2230
    %2373 = vst.msk [vmem:[#allocation4 + $0x330] sm:$0xff] %vm2321, %v2232
    %2374 = vst.msk [vmem:[#allocation4 + $0x340] sm:$0xff] %vm2321, %v2234
    %2375 = vst.msk [vmem:[#allocation4 + $0x350] sm:$0xff] %vm2321, %v2236
    %2376 = vst.msk [vmem:[#allocation4 + $0x360] sm:$0xff] %vm2321, %v2238
    %2377 = vst.msk [vmem:[#allocation4 + $0x370] sm:$0xff] %vm2321, %v2240
    %2378 = vst.msk [vmem:[#allocation4 + $0x380] sm:$0xff] %vm2321, %v2242
    %2379 = vst.msk [vmem:[#allocation4 + $0x390] sm:$0xff] %vm2321, %v2244
    %2380 = vst.msk [vmem:[#allocation4 + $0x3a0] sm:$0xff] %vm2321, %v2246
    %2381 = vst.msk [vmem:[#allocation4 + $0x3b0] sm:$0xff] %vm2321, %v2248
    %2382 = vst.msk [vmem:[#allocation4 + $0x3c0] sm:$0xff] %vm2321, %v2250
    %2383 = vst.msk [vmem:[#allocation4 + $0x3d0] sm:$0xff] %vm2321, %v2252
    %2384 = vst.msk [vmem:[#allocation4 + $0x3e0] sm:$0xff] %vm2321, %v2254
    %2385 = vst.msk [vmem:[#allocation4 + $0x3f0] sm:$0xff] %vm2321, %v2256
    %s2386 = scalar_lea.vmem [#allocation2], 48
    %v2387 = vld [vmem:[%s2386] sm:$0xff]
    %v2388 = vld [vmem:[%s2386 + $0x8] sm:$0xff]
    %v2389 = vld [vmem:[%s2386 + $0x18] sm:$0xff]
    %v2390 = vld [vmem:[%s2386 + $0x20] sm:$0xff]
    %v2391 = vld [vmem:[%s2386 + $0x30] sm:$0xff]
    %v2392 = vld [vmem:[%s2386 + $0x38] sm:$0xff]
    %v2393 = vld [vmem:[%s2386 + $0x48] sm:$0xff]
    %v2394 = vld [vmem:[%s2386 + $0x50] sm:$0xff]
    %v2395 = vld [vmem:[%s2386 + $0x60] sm:$0xff]
    %v2396 = vld [vmem:[%s2386 + $0x68] sm:$0xff]
    %v2397 = vld [vmem:[%s2386 + $0x78] sm:$0xff]
    %v2398 = vld [vmem:[%s2386 + $0x80] sm:$0xff]
    %v2399 = vld [vmem:[%s2386 + $0x90] sm:$0xff]
    %v2400 = vld [vmem:[%s2386 + $0x98] sm:$0xff]
    %v2401 = vld [vmem:[%s2386 + $0xa8] sm:$0xff]
    %v2402 = vld [vmem:[%s2386 + $0xb0] sm:$0xff]
    %v2403 = vld [vmem:[%s2386 + $0xc0] sm:$0xff]
    %v2404 = vld [vmem:[%s2386 + $0xc8] sm:$0xff]
    %v2405 = vld [vmem:[%s2386 + $0xd8] sm:$0xff]
    %v2406 = vld [vmem:[%s2386 + $0xe0] sm:$0xff]
    %v2407 = vld [vmem:[%s2386 + $0xf0] sm:$0xff]
    %v2408 = vld [vmem:[%s2386 + $0xf8] sm:$0xff]
    %v2409 = vld [vmem:[%s2386 + $0x108] sm:$0xff]
    %v2410 = vld [vmem:[%s2386 + $0x110] sm:$0xff]
    %v2411 = vld [vmem:[%s2386 + $0x120] sm:$0xff]
    %v2412 = vld [vmem:[%s2386 + $0x128] sm:$0xff]
    %v2413 = vld [vmem:[%s2386 + $0x138] sm:$0xff]
    %v2414 = vld [vmem:[%s2386 + $0x140] sm:$0xff]
    %v2415 = vld [vmem:[%s2386 + $0x150] sm:$0xff]
    %v2416 = vld [vmem:[%s2386 + $0x158] sm:$0xff]
    %v2417 = vld [vmem:[%s2386 + $0x168] sm:$0xff]
    %v2418 = vld [vmem:[%s2386 + $0x170] sm:$0xff]
    %v2419 = vld [vmem:[%s2386 + $0x1b0] sm:$0xff]
    %v2420 = vld [vmem:[%s2386 + $0x1b8] sm:$0xff]
    %v2421 = vld [vmem:[%s2386 + $0x1c8] sm:$0xff]
    %v2422 = vld [vmem:[%s2386 + $0x1d0] sm:$0xff]
    %v2423 = vld [vmem:[%s2386 + $0x1e0] sm:$0xff]
    %v2424 = vld [vmem:[%s2386 + $0x1e8] sm:$0xff]
    %v2425 = vld [vmem:[%s2386 + $0x1f8] sm:$0xff]
    %v2426 = vld [vmem:[%s2386 + $0x200] sm:$0xff]
    %v2427 = vld [vmem:[%s2386 + $0x210] sm:$0xff]
    %v2428 = vld [vmem:[%s2386 + $0x218] sm:$0xff]
    %v2429 = vld [vmem:[%s2386 + $0x228] sm:$0xff]
    %v2430 = vld [vmem:[%s2386 + $0x230] sm:$0xff]
    %v2431 = vld [vmem:[%s2386 + $0x240] sm:$0xff]
    %v2432 = vld [vmem:[%s2386 + $0x248] sm:$0xff]
    %v2433 = vld [vmem:[%s2386 + $0x258] sm:$0xff]
    %v2434 = vld [vmem:[%s2386 + $0x260] sm:$0xff]
    %v2435 = vld [vmem:[%s2386 + $0x270] sm:$0xff]
    %v2436 = vld [vmem:[%s2386 + $0x278] sm:$0xff]
    %v2437 = vld [vmem:[%s2386 + $0x288] sm:$0xff]
    %v2438 = vld [vmem:[%s2386 + $0x290] sm:$0xff]
    %v2439 = vld [vmem:[%s2386 + $0x2a0] sm:$0xff]
    %v2440 = vld [vmem:[%s2386 + $0x2a8] sm:$0xff]
    %v2441 = vld [vmem:[%s2386 + $0x2b8] sm:$0xff]
    %v2442 = vld [vmem:[%s2386 + $0x2c0] sm:$0xff]
    %v2443 = vld [vmem:[%s2386 + $0x2d0] sm:$0xff]
    %v2444 = vld [vmem:[%s2386 + $0x2d8] sm:$0xff]
    %v2445 = vld [vmem:[%s2386 + $0x2e8] sm:$0xff]
    %v2446 = vld [vmem:[%s2386 + $0x2f0] sm:$0xff]
    %v2447 = vld [vmem:[%s2386 + $0x300] sm:$0xff]
    %v2448 = vld [vmem:[%s2386 + $0x308] sm:$0xff]
    %v2449 = vld [vmem:[%s2386 + $0x318] sm:$0xff]
    %v2450 = vld [vmem:[%s2386 + $0x320] sm:$0xff]
    %2515 = vrot.lane.b32.xlu0 %v2387, 18
    %v2516 = vpop.permute.xlu0 %2515
    %2517 = vrot.lane.b32.xlu0 %v2388, 18
    %v2518 = vpop.permute.xlu0 %2517
    %2519 = vrot.lane.b32.xlu0 %v2389, 18
    %v2520 = vpop.permute.xlu0 %2519
    %2521 = vrot.lane.b32.xlu0 %v2390, 18
    %v2522 = vpop.permute.xlu0 %2521
    %2523 = vrot.lane.b32.xlu0 %v2391, 18
    %v2524 = vpop.permute.xlu0 %2523
    %2525 = vrot.lane.b32.xlu0 %v2392, 18
    %v2526 = vpop.permute.xlu0 %2525
    %2527 = vrot.lane.b32.xlu0 %v2393, 18
    %v2528 = vpop.permute.xlu0 %2527
    %2529 = vrot.lane.b32.xlu0 %v2394, 18
    %v2530 = vpop.permute.xlu0 %2529
    %2531 = vrot.lane.b32.xlu0 %v2395, 18
    %v2532 = vpop.permute.xlu0 %2531
    %2533 = vrot.lane.b32.xlu0 %v2396, 18
    %v2534 = vpop.permute.xlu0 %2533
    %2535 = vrot.lane.b32.xlu0 %v2397, 18
    %v2536 = vpop.permute.xlu0 %2535
    %2537 = vrot.lane.b32.xlu0 %v2398, 18
    %v2538 = vpop.permute.xlu0 %2537
    %2539 = vrot.lane.b32.xlu0 %v2399, 18
    %v2540 = vpop.permute.xlu0 %2539
    %2541 = vrot.lane.b32.xlu0 %v2400, 18
    %v2542 = vpop.permute.xlu0 %2541
    %2543 = vrot.lane.b32.xlu0 %v2401, 18
    %v2544 = vpop.permute.xlu0 %2543
    %2545 = vrot.lane.b32.xlu0 %v2402, 18
    %v2546 = vpop.permute.xlu0 %2545
    %2547 = vrot.lane.b32.xlu0 %v2403, 18
    %v2548 = vpop.permute.xlu0 %2547
    %2549 = vrot.lane.b32.xlu0 %v2404, 18
    %v2550 = vpop.permute.xlu0 %2549
    %2551 = vrot.lane.b32.xlu0 %v2405, 18
    %v2552 = vpop.permute.xlu0 %2551
    %2553 = vrot.lane.b32.xlu0 %v2406, 18
    %v2554 = vpop.permute.xlu0 %2553
    %2555 = vrot.lane.b32.xlu0 %v2407, 18
    %v2556 = vpop.permute.xlu0 %2555
    %2557 = vrot.lane.b32.xlu0 %v2408, 18
    %v2558 = vpop.permute.xlu0 %2557
    %2559 = vrot.lane.b32.xlu0 %v2409, 18
    %v2560 = vpop.permute.xlu0 %2559
    %2561 = vrot.lane.b32.xlu0 %v2410, 18
    %v2562 = vpop.permute.xlu0 %2561
    %2563 = vrot.lane.b32.xlu0 %v2411, 18
    %v2564 = vpop.permute.xlu0 %2563
    %2565 = vrot.lane.b32.xlu0 %v2412, 18
    %v2566 = vpop.permute.xlu0 %2565
    %2567 = vrot.lane.b32.xlu0 %v2413, 18
    %v2568 = vpop.permute.xlu0 %2567
    %2569 = vrot.lane.b32.xlu0 %v2414, 18
    %v2570 = vpop.permute.xlu0 %2569
    %2571 = vrot.lane.b32.xlu0 %v2415, 18
    %v2572 = vpop.permute.xlu0 %2571
    %2573 = vrot.lane.b32.xlu0 %v2416, 18
    %v2574 = vpop.permute.xlu0 %2573
    %2575 = vrot.lane.b32.xlu0 %v2417, 18
    %v2576 = vpop.permute.xlu0 %2575
    %2577 = vrot.lane.b32.xlu0 %v2418, 18
    %v2578 = vpop.permute.xlu0 %2577
    %2579 = vrot.lane.b32.xlu0 %v2419, 18
    %v2580 = vpop.permute.xlu0 %2579
    %2581 = vrot.lane.b32.xlu0 %v2420, 18
    %v2582 = vpop.permute.xlu0 %2581
    %2583 = vrot.lane.b32.xlu0 %v2421, 18
    %v2584 = vpop.permute.xlu0 %2583
    %2585 = vrot.lane.b32.xlu0 %v2422, 18
    %v2586 = vpop.permute.xlu0 %2585
    %2587 = vrot.lane.b32.xlu0 %v2423, 18
    %v2588 = vpop.permute.xlu0 %2587
    %2589 = vrot.lane.b32.xlu0 %v2424, 18
    %v2590 = vpop.permute.xlu0 %2589
    %2591 = vrot.lane.b32.xlu0 %v2425, 18
    %v2592 = vpop.permute.xlu0 %2591
    %2593 = vrot.lane.b32.xlu0 %v2426, 18
    %v2594 = vpop.permute.xlu0 %2593
    %2595 = vrot.lane.b32.xlu0 %v2427, 18
    %v2596 = vpop.permute.xlu0 %2595
    %2597 = vrot.lane.b32.xlu0 %v2428, 18
    %v2598 = vpop.permute.xlu0 %2597
    %2599 = vrot.lane.b32.xlu0 %v2429, 18
    %v2600 = vpop.permute.xlu0 %2599
    %2601 = vrot.lane.b32.xlu0 %v2430, 18
    %v2602 = vpop.permute.xlu0 %2601
    %2603 = vrot.lane.b32.xlu0 %v2431, 18
    %v2604 = vpop.permute.xlu0 %2603
    %2605 = vrot.lane.b32.xlu0 %v2432, 18
    %v2606 = vpop.permute.xlu0 %2605
    %2607 = vrot.lane.b32.xlu0 %v2433, 18
    %v2608 = vpop.permute.xlu0 %2607
    %2609 = vrot.lane.b32.xlu0 %v2434, 18
    %v2610 = vpop.permute.xlu0 %2609
    %2611 = vrot.lane.b32.xlu0 %v2435, 18
    %v2612 = vpop.permute.xlu0 %2611
    %2613 = vrot.lane.b32.xlu0 %v2436, 18
    %v2614 = vpop.permute.xlu0 %2613
    %2615 = vrot.lane.b32.xlu0 %v2437, 18
    %v2616 = vpop.permute.xlu0 %2615
    %2617 = vrot.lane.b32.xlu0 %v2438, 18
    %v2618 = vpop.permute.xlu0 %2617
    %2619 = vrot.lane.b32.xlu0 %v2439, 18
    %v2620 = vpop.permute.xlu0 %2619
    %2621 = vrot.lane.b32.xlu0 %v2440, 18
    %v2622 = vpop.permute.xlu0 %2621
    %2623 = vrot.lane.b32.xlu0 %v2441, 18
    %v2624 = vpop.permute.xlu0 %2623
    %2625 = vrot.lane.b32.xlu0 %v2442, 18
    %v2626 = vpop.permute.xlu0 %2625
    %2627 = vrot.lane.b32.xlu0 %v2443, 18
    %v2628 = vpop.permute.xlu0 %2627
    %2629 = vrot.lane.b32.xlu0 %v2444, 18
    %v2630 = vpop.permute.xlu0 %2629
    %2631 = vrot.lane.b32.xlu0 %v2445, 18
    %v2632 = vpop.permute.xlu0 %2631
    %2633 = vrot.lane.b32.xlu0 %v2446, 18
    %v2634 = vpop.permute.xlu0 %2633
    %2635 = vrot.lane.b32.xlu0 %v2447, 18
    %v2636 = vpop.permute.xlu0 %2635
    %2637 = vrot.lane.b32.xlu0 %v2448, 18
    %v2638 = vpop.permute.xlu0 %2637
    %2639 = vrot.lane.b32.xlu0 %v2449, 18
    %v2640 = vpop.permute.xlu0 %2639
    %2641 = vrot.lane.b32.xlu0 %v2450, 18
    %v2642 = vpop.permute.xlu0 %2641
    %vm2707 = vcmask 171152
    %2708 = vst.msk [vmem:[#allocation4] sm:$0xff] %vm2707, %v2516
    %2709 = vst.msk [vmem:[#allocation4 + $0x10] sm:$0xff] %vm2707, %v2518
    %2710 = vst.msk [vmem:[#allocation4 + $0x20] sm:$0xff] %vm2707, %v2520
    %2711 = vst.msk [vmem:[#allocation4 + $0x30] sm:$0xff] %vm2707, %v2522
    %2712 = vst.msk [vmem:[#allocation4 + $0x40] sm:$0xff] %vm2707, %v2524
    %2713 = vst.msk [vmem:[#allocation4 + $0x50] sm:$0xff] %vm2707, %v2526
    %2714 = vst.msk [vmem:[#allocation4 + $0x60] sm:$0xff] %vm2707, %v2528
    %2715 = vst.msk [vmem:[#allocation4 + $0x70] sm:$0xff] %vm2707, %v2530
    %2716 = vst.msk [vmem:[#allocation4 + $0x80] sm:$0xff] %vm2707, %v2532
    %2717 = vst.msk [vmem:[#allocation4 + $0x90] sm:$0xff] %vm2707, %v2534
    %2718 = vst.msk [vmem:[#allocation4 + $0xa0] sm:$0xff] %vm2707, %v2536
    %2719 = vst.msk [vmem:[#allocation4 + $0xb0] sm:$0xff] %vm2707, %v2538
    %2720 = vst.msk [vmem:[#allocation4 + $0xc0] sm:$0xff] %vm2707, %v2540
    %2721 = vst.msk [vmem:[#allocation4 + $0xd0] sm:$0xff] %vm2707, %v2542
    %2722 = vst.msk [vmem:[#allocation4 + $0xe0] sm:$0xff] %vm2707, %v2544
    %2723 = vst.msk [vmem:[#allocation4 + $0xf0] sm:$0xff] %vm2707, %v2546
    %2724 = vst.msk [vmem:[#allocation4 + $0x100] sm:$0xff] %vm2707, %v2548
    %2725 = vst.msk [vmem:[#allocation4 + $0x110] sm:$0xff] %vm2707, %v2550
    %2726 = vst.msk [vmem:[#allocation4 + $0x120] sm:$0xff] %vm2707, %v2552
    %2727 = vst.msk [vmem:[#allocation4 + $0x130] sm:$0xff] %vm2707, %v2554
    %2728 = vst.msk [vmem:[#allocation4 + $0x140] sm:$0xff] %vm2707, %v2556
    %2729 = vst.msk [vmem:[#allocation4 + $0x150] sm:$0xff] %vm2707, %v2558
    %2730 = vst.msk [vmem:[#allocation4 + $0x160] sm:$0xff] %vm2707, %v2560
    %2731 = vst.msk [vmem:[#allocation4 + $0x170] sm:$0xff] %vm2707, %v2562
    %2732 = vst.msk [vmem:[#allocation4 + $0x180] sm:$0xff] %vm2707, %v2564
    %2733 = vst.msk [vmem:[#allocation4 + $0x190] sm:$0xff] %vm2707, %v2566
    %2734 = vst.msk [vmem:[#allocation4 + $0x1a0] sm:$0xff] %vm2707, %v2568
    %2735 = vst.msk [vmem:[#allocation4 + $0x1b0] sm:$0xff] %vm2707, %v2570
    %2736 = vst.msk [vmem:[#allocation4 + $0x1c0] sm:$0xff] %vm2707, %v2572
    %2737 = vst.msk [vmem:[#allocation4 + $0x1d0] sm:$0xff] %vm2707, %v2574
    %2738 = vst.msk [vmem:[#allocation4 + $0x1e0] sm:$0xff] %vm2707, %v2576
    %2739 = vst.msk [vmem:[#allocation4 + $0x1f0] sm:$0xff] %vm2707, %v2578
    %2740 = vst.msk [vmem:[#allocation4 + $0x200] sm:$0xff] %vm2707, %v2580
    %2741 = vst.msk [vmem:[#allocation4 + $0x210] sm:$0xff] %vm2707, %v2582
    %2742 = vst.msk [vmem:[#allocation4 + $0x220] sm:$0xff] %vm2707, %v2584
    %2743 = vst.msk [vmem:[#allocation4 + $0x230] sm:$0xff] %vm2707, %v2586
    %2744 = vst.msk [vmem:[#allocation4 + $0x240] sm:$0xff] %vm2707, %v2588
    %2745 = vst.msk [vmem:[#allocation4 + $0x250] sm:$0xff] %vm2707, %v2590
    %2746 = vst.msk [vmem:[#allocation4 + $0x260] sm:$0xff] %vm2707, %v2592
    %2747 = vst.msk [vmem:[#allocation4 + $0x270] sm:$0xff] %vm2707, %v2594
    %2748 = vst.msk [vmem:[#allocation4 + $0x280] sm:$0xff] %vm2707, %v2596
    %2749 = vst.msk [vmem:[#allocation4 + $0x290] sm:$0xff] %vm2707, %v2598
    %2750 = vst.msk [vmem:[#allocation4 + $0x2a0] sm:$0xff] %vm2707, %v2600
    %2751 = vst.msk [vmem:[#allocation4 + $0x2b0] sm:$0xff] %vm2707, %v2602
    %2752 = vst.msk [vmem:[#allocation4 + $0x2c0] sm:$0xff] %vm2707, %v2604
    %2753 = vst.msk [vmem:[#allocation4 + $0x2d0] sm:$0xff] %vm2707, %v2606
    %2754 = vst.msk [vmem:[#allocation4 + $0x2e0] sm:$0xff] %vm2707, %v2608
    %2755 = vst.msk [vmem:[#allocation4 + $0x2f0] sm:$0xff] %vm2707, %v2610
    %2756 = vst.msk [vmem:[#allocation4 + $0x300] sm:$0xff] %vm2707, %v2612
    %2757 = vst.msk [vmem:[#allocation4 + $0x310] sm:$0xff] %vm2707, %v2614
    %2758 = vst.msk [vmem:[#allocation4 + $0x320] sm:$0xff] %vm2707, %v2616
    %2759 = vst.msk [vmem:[#allocation4 + $0x330] sm:$0xff] %vm2707, %v2618
    %2760 = vst.msk [vmem:[#allocation4 + $0x340] sm:$0xff] %vm2707, %v2620
    %2761 = vst.msk [vmem:[#allocation4 + $0x350] sm:$0xff] %vm2707, %v2622
    %2762 = vst.msk [vmem:[#allocation4 + $0x360] sm:$0xff] %vm2707, %v2624
    %2763 = vst.msk [vmem:[#allocation4 + $0x370] sm:$0xff] %vm2707, %v2626
    %2764 = vst.msk [vmem:[#allocation4 + $0x380] sm:$0xff] %vm2707, %v2628
    %2765 = vst.msk [vmem:[#allocation4 + $0x390] sm:$0xff] %vm2707, %v2630
    %2766 = vst.msk [vmem:[#allocation4 + $0x3a0] sm:$0xff] %vm2707, %v2632
    %2767 = vst.msk [vmem:[#allocation4 + $0x3b0] sm:$0xff] %vm2707, %v2634
    %2768 = vst.msk [vmem:[#allocation4 + $0x3c0] sm:$0xff] %vm2707, %v2636
    %2769 = vst.msk [vmem:[#allocation4 + $0x3d0] sm:$0xff] %vm2707, %v2638
    %2770 = vst.msk [vmem:[#allocation4 + $0x3e0] sm:$0xff] %vm2707, %v2640
    %2771 = vst.msk [vmem:[#allocation4 + $0x3f0] sm:$0xff] %vm2707, %v2642
    %v2772 = vld [vmem:[%s2386 + $0x1] sm:$0xff]
    %v2773 = vld [vmem:[%s2386 + $0x9] sm:$0xff]
    %v2774 = vld [vmem:[%s2386 + $0x19] sm:$0xff]
    %v2775 = vld [vmem:[%s2386 + $0x21] sm:$0xff]
    %v2776 = vld [vmem:[%s2386 + $0x31] sm:$0xff]
    %v2777 = vld [vmem:[%s2386 + $0x39] sm:$0xff]
    %v2778 = vld [vmem:[%s2386 + $0x49] sm:$0xff]
    %v2779 = vld [vmem:[%s2386 + $0x51] sm:$0xff]
    %v2780 = vld [vmem:[%s2386 + $0x61] sm:$0xff]
    %v2781 = vld [vmem:[%s2386 + $0x69] sm:$0xff]
    %v2782 = vld [vmem:[%s2386 + $0x79] sm:$0xff]
    %v2783 = vld [vmem:[%s2386 + $0x81] sm:$0xff]
    %v2784 = vld [vmem:[%s2386 + $0x91] sm:$0xff]
    %v2785 = vld [vmem:[%s2386 + $0x99] sm:$0xff]
    %v2786 = vld [vmem:[%s2386 + $0xa9] sm:$0xff]
    %v2787 = vld [vmem:[%s2386 + $0xb1] sm:$0xff]
    %v2788 = vld [vmem:[%s2386 + $0xc1] sm:$0xff]
    %v2789 = vld [vmem:[%s2386 + $0xc9] sm:$0xff]
    %v2790 = vld [vmem:[%s2386 + $0xd9] sm:$0xff]
    %v2791 = vld [vmem:[%s2386 + $0xe1] sm:$0xff]
    %v2792 = vld [vmem:[%s2386 + $0xf1] sm:$0xff]
    %v2793 = vld [vmem:[%s2386 + $0xf9] sm:$0xff]
    %v2794 = vld [vmem:[%s2386 + $0x109] sm:$0xff]
    %v2795 = vld [vmem:[%s2386 + $0x111] sm:$0xff]
    %v2796 = vld [vmem:[%s2386 + $0x121] sm:$0xff]
    %v2797 = vld [vmem:[%s2386 + $0x129] sm:$0xff]
    %v2798 = vld [vmem:[%s2386 + $0x139] sm:$0xff]
    %v2799 = vld [vmem:[%s2386 + $0x141] sm:$0xff]
    %v2800 = vld [vmem:[%s2386 + $0x151] sm:$0xff]
    %v2801 = vld [vmem:[%s2386 + $0x159] sm:$0xff]
    %v2802 = vld [vmem:[%s2386 + $0x169] sm:$0xff]
    %v2803 = vld [vmem:[%s2386 + $0x171] sm:$0xff]
    %v2804 = vld [vmem:[%s2386 + $0x1b1] sm:$0xff]
    %v2805 = vld [vmem:[%s2386 + $0x1b9] sm:$0xff]
    %v2806 = vld [vmem:[%s2386 + $0x1c9] sm:$0xff]
    %v2807 = vld [vmem:[%s2386 + $0x1d1] sm:$0xff]
    %v2808 = vld [vmem:[%s2386 + $0x1e1] sm:$0xff]
    %v2809 = vld [vmem:[%s2386 + $0x1e9] sm:$0xff]
    %v2810 = vld [vmem:[%s2386 + $0x1f9] sm:$0xff]
    %v2811 = vld [vmem:[%s2386 + $0x201] sm:$0xff]
    %v2812 = vld [vmem:[%s2386 + $0x211] sm:$0xff]
    %v2813 = vld [vmem:[%s2386 + $0x219] sm:$0xff]
    %v2814 = vld [vmem:[%s2386 + $0x229] sm:$0xff]
    %v2815 = vld [vmem:[%s2386 + $0x231] sm:$0xff]
    %v2816 = vld [vmem:[%s2386 + $0x241] sm:$0xff]
    %v2817 = vld [vmem:[%s2386 + $0x249] sm:$0xff]
    %v2818 = vld [vmem:[%s2386 + $0x259] sm:$0xff]
    %v2819 = vld [vmem:[%s2386 + $0x261] sm:$0xff]
    %v2820 = vld [vmem:[%s2386 + $0x271] sm:$0xff]
    %v2821 = vld [vmem:[%s2386 + $0x279] sm:$0xff]
    %v2822 = vld [vmem:[%s2386 + $0x289] sm:$0xff]
    %v2823 = vld [vmem:[%s2386 + $0x291] sm:$0xff]
    %v2824 = vld [vmem:[%s2386 + $0x2a1] sm:$0xff]
    %v2825 = vld [vmem:[%s2386 + $0x2a9] sm:$0xff]
    %v2826 = vld [vmem:[%s2386 + $0x2b9] sm:$0xff]
    %v2827 = vld [vmem:[%s2386 + $0x2c1] sm:$0xff]
    %v2828 = vld [vmem:[%s2386 + $0x2d1] sm:$0xff]
    %v2829 = vld [vmem:[%s2386 + $0x2d9] sm:$0xff]
    %v2830 = vld [vmem:[%s2386 + $0x2e9] sm:$0xff]
    %v2831 = vld [vmem:[%s2386 + $0x2f1] sm:$0xff]
    %v2832 = vld [vmem:[%s2386 + $0x301] sm:$0xff]
    %v2833 = vld [vmem:[%s2386 + $0x309] sm:$0xff]
    %v2834 = vld [vmem:[%s2386 + $0x319] sm:$0xff]
    %v2835 = vld [vmem:[%s2386 + $0x321] sm:$0xff]
    %2900 = vrot.lane.b32.xlu0 %v2772, 21
    %v2901 = vpop.permute.xlu0 %2900
    %2902 = vrot.lane.b32.xlu0 %v2773, 21
    %v2903 = vpop.permute.xlu0 %2902
    %2904 = vrot.lane.b32.xlu0 %v2774, 21
    %v2905 = vpop.permute.xlu0 %2904
    %2906 = vrot.lane.b32.xlu0 %v2775, 21
    %v2907 = vpop.permute.xlu0 %2906
    %2908 = vrot.lane.b32.xlu0 %v2776, 21
    %v2909 = vpop.permute.xlu0 %2908
    %2910 = vrot.lane.b32.xlu0 %v2777, 21
    %v2911 = vpop.permute.xlu0 %2910
    %2912 = vrot.lane.b32.xlu0 %v2778, 21
    %v2913 = vpop.permute.xlu0 %2912
    %2914 = vrot.lane.b32.xlu0 %v2779, 21
    %v2915 = vpop.permute.xlu0 %2914
    %2916 = vrot.lane.b32.xlu0 %v2780, 21
    %v2917 = vpop.permute.xlu0 %2916
    %2918 = vrot.lane.b32.xlu0 %v2781, 21
    %v2919 = vpop.permute.xlu0 %2918
    %2920 = vrot.lane.b32.xlu0 %v2782, 21
    %v2921 = vpop.permute.xlu0 %2920
    %2922 = vrot.lane.b32.xlu0 %v2783, 21
    %v2923 = vpop.permute.xlu0 %2922
    %2924 = vrot.lane.b32.xlu0 %v2784, 21
    %v2925 = vpop.permute.xlu0 %2924
    %2926 = vrot.lane.b32.xlu0 %v2785, 21
    %v2927 = vpop.permute.xlu0 %2926
    %2928 = vrot.lane.b32.xlu0 %v2786, 21
    %v2929 = vpop.permute.xlu0 %2928
    %2930 = vrot.lane.b32.xlu0 %v2787, 21
    %v2931 = vpop.permute.xlu0 %2930
    %2932 = vrot.lane.b32.xlu0 %v2788, 21
    %v2933 = vpop.permute.xlu0 %2932
    %2934 = vrot.lane.b32.xlu0 %v2789, 21
    %v2935 = vpop.permute.xlu0 %2934
    %2936 = vrot.lane.b32.xlu0 %v2790, 21
    %v2937 = vpop.permute.xlu0 %2936
    %2938 = vrot.lane.b32.xlu0 %v2791, 21
    %v2939 = vpop.permute.xlu0 %2938
    %2940 = vrot.lane.b32.xlu0 %v2792, 21
    %v2941 = vpop.permute.xlu0 %2940
    %2942 = vrot.lane.b32.xlu0 %v2793, 21
    %v2943 = vpop.permute.xlu0 %2942
    %2944 = vrot.lane.b32.xlu0 %v2794, 21
    %v2945 = vpop.permute.xlu0 %2944
    %2946 = vrot.lane.b32.xlu0 %v2795, 21
    %v2947 = vpop.permute.xlu0 %2946
    %2948 = vrot.lane.b32.xlu0 %v2796, 21
    %v2949 = vpop.permute.xlu0 %2948
    %2950 = vrot.lane.b32.xlu0 %v2797, 21
    %v2951 = vpop.permute.xlu0 %2950
    %2952 = vrot.lane.b32.xlu0 %v2798, 21
    %v2953 = vpop.permute.xlu0 %2952
    %2954 = vrot.lane.b32.xlu0 %v2799, 21
    %v2955 = vpop.permute.xlu0 %2954
    %2956 = vrot.lane.b32.xlu0 %v2800, 21
    %v2957 = vpop.permute.xlu0 %2956
    %2958 = vrot.lane.b32.xlu0 %v2801, 21
    %v2959 = vpop.permute.xlu0 %2958
    %2960 = vrot.lane.b32.xlu0 %v2802, 21
    %v2961 = vpop.permute.xlu0 %2960
    %2962 = vrot.lane.b32.xlu0 %v2803, 21
    %v2963 = vpop.permute.xlu0 %2962
    %2964 = vrot.lane.b32.xlu0 %v2804, 21
    %v2965 = vpop.permute.xlu0 %2964
    %2966 = vrot.lane.b32.xlu0 %v2805, 21
    %v2967 = vpop.permute.xlu0 %2966
    %2968 = vrot.lane.b32.xlu0 %v2806, 21
    %v2969 = vpop.permute.xlu0 %2968
    %2970 = vrot.lane.b32.xlu0 %v2807, 21
    %v2971 = vpop.permute.xlu0 %2970
    %2972 = vrot.lane.b32.xlu0 %v2808, 21
    %v2973 = vpop.permute.xlu0 %2972
    %2974 = vrot.lane.b32.xlu0 %v2809, 21
    %v2975 = vpop.permute.xlu0 %2974
    %2976 = vrot.lane.b32.xlu0 %v2810, 21
    %v2977 = vpop.permute.xlu0 %2976
    %2978 = vrot.lane.b32.xlu0 %v2811, 21
    %v2979 = vpop.permute.xlu0 %2978
    %2980 = vrot.lane.b32.xlu0 %v2812, 21
    %v2981 = vpop.permute.xlu0 %2980
    %2982 = vrot.lane.b32.xlu0 %v2813, 21
    %v2983 = vpop.permute.xlu0 %2982
    %2984 = vrot.lane.b32.xlu0 %v2814, 21
    %v2985 = vpop.permute.xlu0 %2984
    %2986 = vrot.lane.b32.xlu0 %v2815, 21
    %v2987 = vpop.permute.xlu0 %2986
    %2988 = vrot.lane.b32.xlu0 %v2816, 21
    %v2989 = vpop.permute.xlu0 %2988
    %2990 = vrot.lane.b32.xlu0 %v2817, 21
    %v2991 = vpop.permute.xlu0 %2990
    %2992 = vrot.lane.b32.xlu0 %v2818, 21
    %v2993 = vpop.permute.xlu0 %2992
    %2994 = vrot.lane.b32.xlu0 %v2819, 21
    %v2995 = vpop.permute.xlu0 %2994
    %2996 = vrot.lane.b32.xlu0 %v2820, 21
    %v2997 = vpop.permute.xlu0 %2996
    %2998 = vrot.lane.b32.xlu0 %v2821, 21
    %v2999 = vpop.permute.xlu0 %2998
    %3000 = vrot.lane.b32.xlu0 %v2822, 21
    %v3001 = vpop.permute.xlu0 %3000
    %3002 = vrot.lane.b32.xlu0 %v2823, 21
    %v3003 = vpop.permute.xlu0 %3002
    %3004 = vrot.lane.b32.xlu0 %v2824, 21
    %v3005 = vpop.permute.xlu0 %3004
    %3006 = vrot.lane.b32.xlu0 %v2825, 21
    %v3007 = vpop.permute.xlu0 %3006
    %3008 = vrot.lane.b32.xlu0 %v2826, 21
    %v3009 = vpop.permute.xlu0 %3008
    %3010 = vrot.lane.b32.xlu0 %v2827, 21
    %v3011 = vpop.permute.xlu0 %3010
    %3012 = vrot.lane.b32.xlu0 %v2828, 21
    %v3013 = vpop.permute.xlu0 %3012
    %3014 = vrot.lane.b32.xlu0 %v2829, 21
    %v3015 = vpop.permute.xlu0 %3014
    %3016 = vrot.lane.b32.xlu0 %v2830, 21
    %v3017 = vpop.permute.xlu0 %3016
    %3018 = vrot.lane.b32.xlu0 %v2831, 21
    %v3019 = vpop.permute.xlu0 %3018
    %3020 = vrot.lane.b32.xlu0 %v2832, 21
    %v3021 = vpop.permute.xlu0 %3020
    %3022 = vrot.lane.b32.xlu0 %v2833, 21
    %v3023 = vpop.permute.xlu0 %3022
    %3024 = vrot.lane.b32.xlu0 %v2834, 21
    %v3025 = vpop.permute.xlu0 %3024
    %3026 = vrot.lane.b32.xlu0 %v2835, 21
    %v3027 = vpop.permute.xlu0 %3026
    %vm3092 = vcmask 195752
    %3093 = vst.msk [vmem:[#allocation4] sm:$0xff] %vm3092, %v2901
    %3094 = vst.msk [vmem:[#allocation4 + $0x10] sm:$0xff] %vm3092, %v2903
    %3095 = vst.msk [vmem:[#allocation4 + $0x20] sm:$0xff] %vm3092, %v2905
    %3096 = vst.msk [vmem:[#allocation4 + $0x30] sm:$0xff] %vm3092, %v2907
    %3097 = vst.msk [vmem:[#allocation4 + $0x40] sm:$0xff] %vm3092, %v2909
    %3098 = vst.msk [vmem:[#allocation4 + $0x50] sm:$0xff] %vm3092, %v2911
    %3099 = vst.msk [vmem:[#allocation4 + $0x60] sm:$0xff] %vm3092, %v2913
    %3100 = vst.msk [vmem:[#allocation4 + $0x70] sm:$0xff] %vm3092, %v2915
    %3101 = vst.msk [vmem:[#allocation4 + $0x80] sm:$0xff] %vm3092, %v2917
    %3102 = vst.msk [vmem:[#allocation4 + $0x90] sm:$0xff] %vm3092, %v2919
    %3103 = vst.msk [vmem:[#allocation4 + $0xa0] sm:$0xff] %vm3092, %v2921
    %3104 = vst.msk [vmem:[#allocation4 + $0xb0] sm:$0xff] %vm3092, %v2923
    %3105 = vst.msk [vmem:[#allocation4 + $0xc0] sm:$0xff] %vm3092, %v2925
    %3106 = vst.msk [vmem:[#allocation4 + $0xd0] sm:$0xff] %vm3092, %v2927
    %3107 = vst.msk [vmem:[#allocation4 + $0xe0] sm:$0xff] %vm3092, %v2929
    %3108 = vst.msk [vmem:[#allocation4 + $0xf0] sm:$0xff] %vm3092, %v2931
    %3109 = vst.msk [vmem:[#allocation4 + $0x100] sm:$0xff] %vm3092, %v2933
    %3110 = vst.msk [vmem:[#allocation4 + $0x110] sm:$0xff] %vm3092, %v2935
    %3111 = vst.msk [vmem:[#allocation4 + $0x120] sm:$0xff] %vm3092, %v2937
    %3112 = vst.msk [vmem:[#allocation4 + $0x130] sm:$0xff] %vm3092, %v2939
    %3113 = vst.msk [vmem:[#allocation4 + $0x140] sm:$0xff] %vm3092, %v2941
    %3114 = vst.msk [vmem:[#allocation4 + $0x150] sm:$0xff] %vm3092, %v2943
    %3115 = vst.msk [vmem:[#allocation4 + $0x160] sm:$0xff] %vm3092, %v2945
    %3116 = vst.msk [vmem:[#allocation4 + $0x170] sm:$0xff] %vm3092, %v2947
    %3117 = vst.msk [vmem:[#allocation4 + $0x180] sm:$0xff] %vm3092, %v2949
    %3118 = vst.msk [vmem:[#allocation4 + $0x190] sm:$0xff] %vm3092, %v2951
    %3119 = vst.msk [vmem:[#allocation4 + $0x1a0] sm:$0xff] %vm3092, %v2953
    %3120 = vst.msk [vmem:[#allocation4 + $0x1b0] sm:$0xff] %vm3092, %v2955
    %3121 = vst.msk [vmem:[#allocation4 + $0x1c0] sm:$0xff] %vm3092, %v2957
    %3122 = vst.msk [vmem:[#allocation4 + $0x1d0] sm:$0xff] %vm3092, %v2959
    %3123 = vst.msk [vmem:[#allocation4 + $0x1e0] sm:$0xff] %vm3092, %v2961
    %3124 = vst.msk [vmem:[#allocation4 + $0x1f0] sm:$0xff] %vm3092, %v2963
    %3125 = vst.msk [vmem:[#allocation4 + $0x200] sm:$0xff] %vm3092, %v2965
    %3126 = vst.msk [vmem:[#allocation4 + $0x210] sm:$0xff] %vm3092, %v2967
    %3127 = vst.msk [vmem:[#allocation4 + $0x220] sm:$0xff] %vm3092, %v2969
    %3128 = vst.msk [vmem:[#allocation4 + $0x230] sm:$0xff] %vm3092, %v2971
    %3129 = vst.msk [vmem:[#allocation4 + $0x240] sm:$0xff] %vm3092, %v2973
    %3130 = vst.msk [vmem:[#allocation4 + $0x250] sm:$0xff] %vm3092, %v2975
    %3131 = vst.msk [vmem:[#allocation4 + $0x260] sm:$0xff] %vm3092, %v2977
    %3132 = vst.msk [vmem:[#allocation4 + $0x270] sm:$0xff] %vm3092, %v2979
    %3133 = vst.msk [vmem:[#allocation4 + $0x280] sm:$0xff] %vm3092, %v2981
    %3134 = vst.msk [vmem:[#allocation4 + $0x290] sm:$0xff] %vm3092, %v2983
    %3135 = vst.msk [vmem:[#allocation4 + $0x2a0] sm:$0xff] %vm3092, %v2985
    %3136 = vst.msk [vmem:[#allocation4 + $0x2b0] sm:$0xff] %vm3092, %v2987
    %3137 = vst.msk [vmem:[#allocation4 + $0x2c0] sm:$0xff] %vm3092, %v2989
    %3138 = vst.msk [vmem:[#allocation4 + $0x2d0] sm:$0xff] %vm3092, %v2991
    %3139 = vst.msk [vmem:[#allocation4 + $0x2e0] sm:$0xff] %vm3092, %v2993
    %3140 = vst.msk [vmem:[#allocation4 + $0x2f0] sm:$0xff] %vm3092, %v2995
    %3141 = vst.msk [vmem:[#allocation4 + $0x300] sm:$0xff] %vm3092, %v2997
    %3142 = vst.msk [vmem:[#allocation4 + $0x310] sm:$0xff] %vm3092, %v2999
    %3143 = vst.msk [vmem:[#allocation4 + $0x320] sm:$0xff] %vm3092, %v3001
    %3144 = vst.msk [vmem:[#allocation4 + $0x330] sm:$0xff] %vm3092, %v3003
    %3145 = vst.msk [vmem:[#allocation4 + $0x340] sm:$0xff] %vm3092, %v3005
    %3146 = vst.msk [vmem:[#allocation4 + $0x350] sm:$0xff] %vm3092, %v3007
    %3147 = vst.msk [vmem:[#allocation4 + $0x360] sm:$0xff] %vm3092, %v3009
    %3148 = vst.msk [vmem:[#allocation4 + $0x370] sm:$0xff] %vm3092, %v3011
    %3149 = vst.msk [vmem:[#allocation4 + $0x380] sm:$0xff] %vm3092, %v3013
    %3150 = vst.msk [vmem:[#allocation4 + $0x390] sm:$0xff] %vm3092, %v3015
    %3151 = vst.msk [vmem:[#allocation4 + $0x3a0] sm:$0xff] %vm3092, %v3017
    %3152 = vst.msk [vmem:[#allocation4 + $0x3b0] sm:$0xff] %vm3092, %v3019
    %3153 = vst.msk [vmem:[#allocation4 + $0x3c0] sm:$0xff] %vm3092, %v3021
    %3154 = vst.msk [vmem:[#allocation4 + $0x3d0] sm:$0xff] %vm3092, %v3023
    %3155 = vst.msk [vmem:[#allocation4 + $0x3e0] sm:$0xff] %vm3092, %v3025
    %3156 = vst.msk [vmem:[#allocation4 + $0x3f0] sm:$0xff] %vm3092, %v3027
    %v3157 = vld [vmem:[%s2386 + $0x2] sm:$0xff]
    %v3158 = vld [vmem:[%s2386 + $0xa] sm:$0xff]
    %v3159 = vld [vmem:[%s2386 + $0x1a] sm:$0xff]
    %v3160 = vld [vmem:[%s2386 + $0x22] sm:$0xff]
    %v3161 = vld [vmem:[%s2386 + $0x32] sm:$0xff]
    %v3162 = vld [vmem:[%s2386 + $0x3a] sm:$0xff]
    %v3163 = vld [vmem:[%s2386 + $0x4a] sm:$0xff]
    %v3164 = vld [vmem:[%s2386 + $0x52] sm:$0xff]
    %v3165 = vld [vmem:[%s2386 + $0x62] sm:$0xff]
    %v3166 = vld [vmem:[%s2386 + $0x6a] sm:$0xff]
    %v3167 = vld [vmem:[%s2386 + $0x7a] sm:$0xff]
    %v3168 = vld [vmem:[%s2386 + $0x82] sm:$0xff]
    %v3169 = vld [vmem:[%s2386 + $0x92] sm:$0xff]
    %v3170 = vld [vmem:[%s2386 + $0x9a] sm:$0xff]
    %v3171 = vld [vmem:[%s2386 + $0xaa] sm:$0xff]
    %v3172 = vld [vmem:[%s2386 + $0xb2] sm:$0xff]
    %v3173 = vld [vmem:[%s2386 + $0xc2] sm:$0xff]
    %v3174 = vld [vmem:[%s2386 + $0xca] sm:$0xff]
    %v3175 = vld [vmem:[%s2386 + $0xda] sm:$0xff]
    %v3176 = vld [vmem:[%s2386 + $0xe2] sm:$0xff]
    %v3177 = vld [vmem:[%s2386 + $0xf2] sm:$0xff]
    %v3178 = vld [vmem:[%s2386 + $0xfa] sm:$0xff]
    %v3179 = vld [vmem:[%s2386 + $0x10a] sm:$0xff]
    %v3180 = vld [vmem:[%s2386 + $0x112] sm:$0xff]
    %v3181 = vld [vmem:[%s2386 + $0x122] sm:$0xff]
    %v3182 = vld [vmem:[%s2386 + $0x12a] sm:$0xff]
    %v3183 = vld [vmem:[%s2386 + $0x13a] sm:$0xff]
    %v3184 = vld [vmem:[%s2386 + $0x142] sm:$0xff]
    %v3185 = vld [vmem:[%s2386 + $0x152] sm:$0xff]
    %v3186 = vld [vmem:[%s2386 + $0x15a] sm:$0xff]
    %v3187 = vld [vmem:[%s2386 + $0x16a] sm:$0xff]
    %v3188 = vld [vmem:[%s2386 + $0x172] sm:$0xff]
    %v3189 = vld [vmem:[%s2386 + $0x1b2] sm:$0xff]
    %v3190 = vld [vmem:[%s2386 + $0x1ba] sm:$0xff]
    %v3191 = vld [vmem:[%s2386 + $0x1ca] sm:$0xff]
    %v3192 = vld [vmem:[%s2386 + $0x1d2] sm:$0xff]
    %v3193 = vld [vmem:[%s2386 + $0x1e2] sm:$0xff]
    %v3194 = vld [vmem:[%s2386 + $0x1ea] sm:$0xff]
    %v3195 = vld [vmem:[%s2386 + $0x1fa] sm:$0xff]
    %v3196 = vld [vmem:[%s2386 + $0x202] sm:$0xff]
    %v3197 = vld [vmem:[%s2386 + $0x212] sm:$0xff]
    %v3198 = vld [vmem:[%s2386 + $0x21a] sm:$0xff]
    %v3199 = vld [vmem:[%s2386 + $0x22a] sm:$0xff]
    %v3200 = vld [vmem:[%s2386 + $0x232] sm:$0xff]
    %v3201 = vld [vmem:[%s2386 + $0x242] sm:$0xff]
    %v3202 = vld [vmem:[%s2386 + $0x24a] sm:$0xff]
    %v3203 = vld [vmem:[%s2386 + $0x25a] sm:$0xff]
    %v3204 = vld [vmem:[%s2386 + $0x262] sm:$0xff]
    %v3205 = vld [vmem:[%s2386 + $0x272] sm:$0xff]
    %v3206 = vld [vmem:[%s2386 + $0x27a] sm:$0xff]
    %v3207 = vld [vmem:[%s2386 + $0x28a] sm:$0xff]
    %v3208 = vld [vmem:[%s2386 + $0x292] sm:$0xff]
    %v3209 = vld [vmem:[%s2386 + $0x2a2] sm:$0xff]
    %v3210 = vld [vmem:[%s2386 + $0x2aa] sm:$0xff]
    %v3211 = vld [vmem:[%s2386 + $0x2ba] sm:$0xff]
    %v3212 = vld [vmem:[%s2386 + $0x2c2] sm:$0xff]
    %v3213 = vld [vmem:[%s2386 + $0x2d2] sm:$0xff]
    %v3214 = vld [vmem:[%s2386 + $0x2da] sm:$0xff]
    %v3215 = vld [vmem:[%s2386 + $0x2ea] sm:$0xff]
    %v3216 = vld [vmem:[%s2386 + $0x2f2] sm:$0xff]
    %v3217 = vld [vmem:[%s2386 + $0x302] sm:$0xff]
    %v3218 = vld [vmem:[%s2386 + $0x30a] sm:$0xff]
    %v3219 = vld [vmem:[%s2386 + $0x31a] sm:$0xff]
    %v3220 = vld [vmem:[%s2386 + $0x322] sm:$0xff]
    %3285 = vrot.lane.b32.xlu0 %v3157, 24
    %v3286 = vpop.permute.xlu0 %3285
    %3287 = vrot.lane.b32.xlu0 %v3158, 24
    %v3288 = vpop.permute.xlu0 %3287
    %3289 = vrot.lane.b32.xlu0 %v3159, 24
    %v3290 = vpop.permute.xlu0 %3289
    %3291 = vrot.lane.b32.xlu0 %v3160, 24
    %v3292 = vpop.permute.xlu0 %3291
    %3293 = vrot.lane.b32.xlu0 %v3161, 24
    %v3294 = vpop.permute.xlu0 %3293
    %3295 = vrot.lane.b32.xlu0 %v3162, 24
    %v3296 = vpop.permute.xlu0 %3295
    %3297 = vrot.lane.b32.xlu0 %v3163, 24
    %v3298 = vpop.permute.xlu0 %3297
    %3299 = vrot.lane.b32.xlu0 %v3164, 24
    %v3300 = vpop.permute.xlu0 %3299
    %3301 = vrot.lane.b32.xlu0 %v3165, 24
    %v3302 = vpop.permute.xlu0 %3301
    %3303 = vrot.lane.b32.xlu0 %v3166, 24
    %v3304 = vpop.permute.xlu0 %3303
    %3305 = vrot.lane.b32.xlu0 %v3167, 24
    %v3306 = vpop.permute.xlu0 %3305
    %3307 = vrot.lane.b32.xlu0 %v3168, 24
    %v3308 = vpop.permute.xlu0 %3307
    %3309 = vrot.lane.b32.xlu0 %v3169, 24
    %v3310 = vpop.permute.xlu0 %3309
    %3311 = vrot.lane.b32.xlu0 %v3170, 24
    %v3312 = vpop.permute.xlu0 %3311
    %3313 = vrot.lane.b32.xlu0 %v3171, 24
    %v3314 = vpop.permute.xlu0 %3313
    %3315 = vrot.lane.b32.xlu0 %v3172, 24
    %v3316 = vpop.permute.xlu0 %3315
    %3317 = vrot.lane.b32.xlu0 %v3173, 24
    %v3318 = vpop.permute.xlu0 %3317
    %3319 = vrot.lane.b32.xlu0 %v3174, 24
    %v3320 = vpop.permute.xlu0 %3319
    %3321 = vrot.lane.b32.xlu0 %v3175, 24
    %v3322 = vpop.permute.xlu0 %3321
    %3323 = vrot.lane.b32.xlu0 %v3176, 24
    %v3324 = vpop.permute.xlu0 %3323
    %3325 = vrot.lane.b32.xlu0 %v3177, 24
    %v3326 = vpop.permute.xlu0 %3325
    %3327 = vrot.lane.b32.xlu0 %v3178, 24
    %v3328 = vpop.permute.xlu0 %3327
    %3329 = vrot.lane.b32.xlu0 %v3179, 24
    %v3330 = vpop.permute.xlu0 %3329
    %3331 = vrot.lane.b32.xlu0 %v3180, 24
    %v3332 = vpop.permute.xlu0 %3331
    %3333 = vrot.lane.b32.xlu0 %v3181, 24
    %v3334 = vpop.permute.xlu0 %3333
    %3335 = vrot.lane.b32.xlu0 %v3182, 24
    %v3336 = vpop.permute.xlu0 %3335
    %3337 = vrot.lane.b32.xlu0 %v3183, 24
    %v3338 = vpop.permute.xlu0 %3337
    %3339 = vrot.lane.b32.xlu0 %v3184, 24
    %v3340 = vpop.permute.xlu0 %3339
    %3341 = vrot.lane.b32.xlu0 %v3185, 24
    %v3342 = vpop.permute.xlu0 %3341
    %3343 = vrot.lane.b32.xlu0 %v3186, 24
    %v3344 = vpop.permute.xlu0 %3343
    %3345 = vrot.lane.b32.xlu0 %v3187, 24
    %v3346 = vpop.permute.xlu0 %3345
    %3347 = vrot.lane.b32.xlu0 %v3188, 24
    %v3348 = vpop.permute.xlu0 %3347
    %3349 = vrot.lane.b32.xlu0 %v3189, 24
    %v3350 = vpop.permute.xlu0 %3349
    %3351 = vrot.lane.b32.xlu0 %v3190, 24
    %v3352 = vpop.permute.xlu0 %3351
    %3353 = vrot.lane.b32.xlu0 %v3191, 24
    %v3354 = vpop.permute.xlu0 %3353
    %3355 = vrot.lane.b32.xlu0 %v3192, 24
    %v3356 = vpop.permute.xlu0 %3355
    %3357 = vrot.lane.b32.xlu0 %v3193, 24
    %v3358 = vpop.permute.xlu0 %3357
    %3359 = vrot.lane.b32.xlu0 %v3194, 24
    %v3360 = vpop.permute.xlu0 %3359
    %3361 = vrot.lane.b32.xlu0 %v3195, 24
    %v3362 = vpop.permute.xlu0 %3361
    %3363 = vrot.lane.b32.xlu0 %v3196, 24
    %v3364 = vpop.permute.xlu0 %3363
    %3365 = vrot.lane.b32.xlu0 %v3197, 24
    %v3366 = vpop.permute.xlu0 %3365
    %3367 = vrot.lane.b32.xlu0 %v3198, 24
    %v3368 = vpop.permute.xlu0 %3367
    %3369 = vrot.lane.b32.xlu0 %v3199, 24
    %v3370 = vpop.permute.xlu0 %3369
    %3371 = vrot.lane.b32.xlu0 %v3200, 24
    %v3372 = vpop.permute.xlu0 %3371
    %3373 = vrot.lane.b32.xlu0 %v3201, 24
    %v3374 = vpop.permute.xlu0 %3373
    %3375 = vrot.lane.b32.xlu0 %v3202, 24
    %v3376 = vpop.permute.xlu0 %3375
    %3377 = vrot.lane.b32.xlu0 %v3203, 24
    %v3378 = vpop.permute.xlu0 %3377
    %3379 = vrot.lane.b32.xlu0 %v3204, 24
    %v3380 = vpop.permute.xlu0 %3379
    %3381 = vrot.lane.b32.xlu0 %v3205, 24
    %v3382 = vpop.permute.xlu0 %3381
    %3383 = vrot.lane.b32.xlu0 %v3206, 24
    %v3384 = vpop.permute.xlu0 %3383
    %3385 = vrot.lane.b32.xlu0 %v3207, 24
    %v3386 = vpop.permute.xlu0 %3385
    %3387 = vrot.lane.b32.xlu0 %v3208, 24
    %v3388 = vpop.permute.xlu0 %3387
    %3389 = vrot.lane.b32.xlu0 %v3209, 24
    %v3390 = vpop.permute.xlu0 %3389
    %3391 = vrot.lane.b32.xlu0 %v3210, 24
    %v3392 = vpop.permute.xlu0 %3391
    %3393 = vrot.lane.b32.xlu0 %v3211, 24
    %v3394 = vpop.permute.xlu0 %3393
    %3395 = vrot.lane.b32.xlu0 %v3212, 24
    %v3396 = vpop.permute.xlu0 %3395
    %3397 = vrot.lane.b32.xlu0 %v3213, 24
    %v3398 = vpop.permute.xlu0 %3397
    %3399 = vrot.lane.b32.xlu0 %v3214, 24
    %v3400 = vpop.permute.xlu0 %3399
    %3401 = vrot.lane.b32.xlu0 %v3215, 24
    %v3402 = vpop.permute.xlu0 %3401
    %3403 = vrot.lane.b32.xlu0 %v3216, 24
    %v3404 = vpop.permute.xlu0 %3403
    %3405 = vrot.lane.b32.xlu0 %v3217, 24
    %v3406 = vpop.permute.xlu0 %3405
    %3407 = vrot.lane.b32.xlu0 %v3218, 24
    %v3408 = vpop.permute.xlu0 %3407
    %3409 = vrot.lane.b32.xlu0 %v3219, 24
    %v3410 = vpop.permute.xlu0 %3409
    %3411 = vrot.lane.b32.xlu0 %v3220, 24
    %v3412 = vpop.permute.xlu0 %3411
    %vm3477 = vcmask 220352
    %3478 = vst.msk [vmem:[#allocation4] sm:$0xff] %vm3477, %v3286
    %3479 = vst.msk [vmem:[#allocation4 + $0x10] sm:$0xff] %vm3477, %v3288
    %3480 = vst.msk [vmem:[#allocation4 + $0x20] sm:$0xff] %vm3477, %v3290
    %3481 = vst.msk [vmem:[#allocation4 + $0x30] sm:$0xff] %vm3477, %v3292
    %3482 = vst.msk [vmem:[#allocation4 + $0x40] sm:$0xff] %vm3477, %v3294
    %3483 = vst.msk [vmem:[#allocation4 + $0x50] sm:$0xff] %vm3477, %v3296
    %3484 = vst.msk [vmem:[#allocation4 + $0x60] sm:$0xff] %vm3477, %v3298
    %3485 = vst.msk [vmem:[#allocation4 + $0x70] sm:$0xff] %vm3477, %v3300
    %3486 = vst.msk [vmem:[#allocation4 + $0x80] sm:$0xff] %vm3477, %v3302
    %3487 = vst.msk [vmem:[#allocation4 + $0x90] sm:$0xff] %vm3477, %v3304
    %3488 = vst.msk [vmem:[#allocation4 + $0xa0] sm:$0xff] %vm3477, %v3306
    %3489 = vst.msk [vmem:[#allocation4 + $0xb0] sm:$0xff] %vm3477, %v3308
    %3490 = vst.msk [vmem:[#allocation4 + $0xc0] sm:$0xff] %vm3477, %v3310
    %3491 = vst.msk [vmem:[#allocation4 + $0xd0] sm:$0xff] %vm3477, %v3312
    %3492 = vst.msk [vmem:[#allocation4 + $0xe0] sm:$0xff] %vm3477, %v3314
    %3493 = vst.msk [vmem:[#allocation4 + $0xf0] sm:$0xff] %vm3477, %v3316
    %3494 = vst.msk [vmem:[#allocation4 + $0x100] sm:$0xff] %vm3477, %v3318
    %3495 = vst.msk [vmem:[#allocation4 + $0x110] sm:$0xff] %vm3477, %v3320
    %3496 = vst.msk [vmem:[#allocation4 + $0x120] sm:$0xff] %vm3477, %v3322
    %3497 = vst.msk [vmem:[#allocation4 + $0x130] sm:$0xff] %vm3477, %v3324
    %3498 = vst.msk [vmem:[#allocation4 + $0x140] sm:$0xff] %vm3477, %v3326
    %3499 = vst.msk [vmem:[#allocation4 + $0x150] sm:$0xff] %vm3477, %v3328
    %3500 = vst.msk [vmem:[#allocation4 + $0x160] sm:$0xff] %vm3477, %v3330
    %3501 = vst.msk [vmem:[#allocation4 + $0x170] sm:$0xff] %vm3477, %v3332
    %3502 = vst.msk [vmem:[#allocation4 + $0x180] sm:$0xff] %vm3477, %v3334
    %3503 = vst.msk [vmem:[#allocation4 + $0x190] sm:$0xff] %vm3477, %v3336
    %3504 = vst.msk [vmem:[#allocation4 + $0x1a0] sm:$0xff] %vm3477, %v3338
    %3505 = vst.msk [vmem:[#allocation4 + $0x1b0] sm:$0xff] %vm3477, %v3340
    %3506 = vst.msk [vmem:[#allocation4 + $0x1c0] sm:$0xff] %vm3477, %v3342
    %3507 = vst.msk [vmem:[#allocation4 + $0x1d0] sm:$0xff] %vm3477, %v3344
    %3508 = vst.msk [vmem:[#allocation4 + $0x1e0] sm:$0xff] %vm3477, %v3346
    %3509 = vst.msk [vmem:[#allocation4 + $0x1f0] sm:$0xff] %vm3477, %v3348
    %3510 = vst.msk [vmem:[#allocation4 + $0x200] sm:$0xff] %vm3477, %v3350
    %3511 = vst.msk [vmem:[#allocation4 + $0x210] sm:$0xff] %vm3477, %v3352
    %3512 = vst.msk [vmem:[#allocation4 + $0x220] sm:$0xff] %vm3477, %v3354
    %3513 = vst.msk [vmem:[#allocation4 + $0x230] sm:$0xff] %vm3477, %v3356
    %3514 = vst.msk [vmem:[#allocation4 + $0x240] sm:$0xff] %vm3477, %v3358
    %3515 = vst.msk [vmem:[#allocation4 + $0x250] sm:$0xff] %vm3477, %v3360
    %3516 = vst.msk [vmem:[#allocation4 + $0x260] sm:$0xff] %vm3477, %v3362
    %3517 = vst.msk [vmem:[#allocation4 + $0x270] sm:$0xff] %vm3477, %v3364
    %3518 = vst.msk [vmem:[#allocation4 + $0x280] sm:$0xff] %vm3477, %v3366
    %3519 = vst.msk [vmem:[#allocation4 + $0x290] sm:$0xff] %vm3477, %v3368
    %3520 = vst.msk [vmem:[#allocation4 + $0x2a0] sm:$0xff] %vm3477, %v3370
    %3521 = vst.msk [vmem:[#allocation4 + $0x2b0] sm:$0xff] %vm3477, %v3372
    %3522 = vst.msk [vmem:[#allocation4 + $0x2c0] sm:$0xff] %vm3477, %v3374
    %3523 = vst.msk [vmem:[#allocation4 + $0x2d0] sm:$0xff] %vm3477, %v3376
    %3524 = vst.msk [vmem:[#allocation4 + $0x2e0] sm:$0xff] %vm3477, %v3378
    %3525 = vst.msk [vmem:[#allocation4 + $0x2f0] sm:$0xff] %vm3477, %v3380
    %3526 = vst.msk [vmem:[#allocation4 + $0x300] sm:$0xff] %vm3477, %v3382
    %3527 = vst.msk [vmem:[#allocation4 + $0x310] sm:$0xff] %vm3477, %v3384
    %3528 = vst.msk [vmem:[#allocation4 + $0x320] sm:$0xff] %vm3477, %v3386
    %3529 = vst.msk [vmem:[#allocation4 + $0x330] sm:$0xff] %vm3477, %v3388
    %3530 = vst.msk [vmem:[#allocation4 + $0x340] sm:$0xff] %vm3477, %v3390
    %3531 = vst.msk [vmem:[#allocation4 + $0x350] sm:$0xff] %vm3477, %v3392
    %3532 = vst.msk [vmem:[#allocation4 + $0x360] sm:$0xff] %vm3477, %v3394
    %3533 = vst.msk [vmem:[#allocation4 + $0x370] sm:$0xff] %vm3477, %v3396
    %3534 = vst.msk [vmem:[#allocation4 + $0x380] sm:$0xff] %vm3477, %v3398
    %3535 = vst.msk [vmem:[#allocation4 + $0x390] sm:$0xff] %vm3477, %v3400
    %3536 = vst.msk [vmem:[#allocation4 + $0x3a0] sm:$0xff] %vm3477, %v3402
    %3537 = vst.msk [vmem:[#allocation4 + $0x3b0] sm:$0xff] %vm3477, %v3404
    %3538 = vst.msk [vmem:[#allocation4 + $0x3c0] sm:$0xff] %vm3477, %v3406
    %3539 = vst.msk [vmem:[#allocation4 + $0x3d0] sm:$0xff] %vm3477, %v3408
    %3540 = vst.msk [vmem:[#allocation4 + $0x3e0] sm:$0xff] %vm3477, %v3410
    %3541 = vst.msk [vmem:[#allocation4 + $0x3f0] sm:$0xff] %vm3477, %v3412
    %v3542 = vld [vmem:[#allocation4] sm:$0xff]
    %v3543 = vld [vmem:[#allocation4 + $0x10] sm:$0xff]
    %v3544 = vld [vmem:[#allocation4 + $0x20] sm:$0xff]
    %v3545 = vld [vmem:[#allocation4 + $0x30] sm:$0xff]
    %v3546 = vld [vmem:[#allocation4 + $0x40] sm:$0xff]
    %v3547 = vld [vmem:[#allocation4 + $0x50] sm:$0xff]
    %v3548 = vld [vmem:[#allocation4 + $0x60] sm:$0xff]
    %v3549 = vld [vmem:[#allocation4 + $0x70] sm:$0xff]
    %v3550 = vld [vmem:[#allocation4 + $0x80] sm:$0xff]
    %v3551 = vld [vmem:[#allocation4 + $0x90] sm:$0xff]
    %v3552 = vld [vmem:[#allocation4 + $0xa0] sm:$0xff]
    %v3553 = vld [vmem:[#allocation4 + $0xb0] sm:$0xff]
    %v3554 = vld [vmem:[#allocation4 + $0xc0] sm:$0xff]
    %v3555 = vld [vmem:[#allocation4 + $0xd0] sm:$0xff]
    %v3556 = vld [vmem:[#allocation4 + $0xe0] sm:$0xff]
    %v3557 = vld [vmem:[#allocation4 + $0xf0] sm:$0xff]
    %v3558 = vld [vmem:[#allocation4 + $0x100] sm:$0xff]
    %v3559 = vld [vmem:[#allocation4 + $0x110] sm:$0xff]
    %v3560 = vld [vmem:[#allocation4 + $0x120] sm:$0xff]
    %v3561 = vld [vmem:[#allocation4 + $0x130] sm:$0xff]
    %v3562 = vld [vmem:[#allocation4 + $0x140] sm:$0xff]
    %v3563 = vld [vmem:[#allocation4 + $0x150] sm:$0xff]
    %v3564 = vld [vmem:[#allocation4 + $0x160] sm:$0xff]
    %v3565 = vld [vmem:[#allocation4 + $0x170] sm:$0xff]
    %v3566 = vld [vmem:[#allocation4 + $0x180] sm:$0xff]
    %v3567 = vld [vmem:[#allocation4 + $0x190] sm:$0xff]
    %v3568 = vld [vmem:[#allocation4 + $0x1a0] sm:$0xff]
    %v3569 = vld [vmem:[#allocation4 + $0x1b0] sm:$0xff]
    %v3570 = vld [vmem:[#allocation4 + $0x1c0] sm:$0xff]
    %v3571 = vld [vmem:[#allocation4 + $0x1d0] sm:$0xff]
    %v3572 = vld [vmem:[#allocation4 + $0x1e0] sm:$0xff]
    %v3573 = vld [vmem:[#allocation4 + $0x1f0] sm:$0xff]
    %v3574 = vld [vmem:[#allocation4 + $0x200] sm:$0xff]
    %v3575 = vld [vmem:[#allocation4 + $0x210] sm:$0xff]
    %v3576 = vld [vmem:[#allocation4 + $0x220] sm:$0xff]
    %v3577 = vld [vmem:[#allocation4 + $0x230] sm:$0xff]
    %v3578 = vld [vmem:[#allocation4 + $0x240] sm:$0xff]
    %v3579 = vld [vmem:[#allocation4 + $0x250] sm:$0xff]
    %v3580 = vld [vmem:[#allocation4 + $0x260] sm:$0xff]
    %v3581 = vld [vmem:[#allocation4 + $0x270] sm:$0xff]
    %v3582 = vld [vmem:[#allocation4 + $0x280] sm:$0xff]
    %v3583 = vld [vmem:[#allocation4 + $0x290] sm:$0xff]
    %v3584 = vld [vmem:[#allocation4 + $0x2a0] sm:$0xff]
    %v3585 = vld [vmem:[#allocation4 + $0x2b0] sm:$0xff]
    %v3586 = vld [vmem:[#allocation4 + $0x2c0] sm:$0xff]
    %v3587 = vld [vmem:[#allocation4 + $0x2d0] sm:$0xff]
    %v3588 = vld [vmem:[#allocation4 + $0x2e0] sm:$0xff]
    %v3589 = vld [vmem:[#allocation4 + $0x2f0] sm:$0xff]
    %v3590 = vld [vmem:[#allocation4 + $0x300] sm:$0xff]
    %v3591 = vld [vmem:[#allocation4 + $0x310] sm:$0xff]
    %v3592 = vld [vmem:[#allocation4 + $0x320] sm:$0xff]
    %v3593 = vld [vmem:[#allocation4 + $0x330] sm:$0xff]
    %v3594 = vld [vmem:[#allocation4 + $0x340] sm:$0xff]
    %v3595 = vld [vmem:[#allocation4 + $0x350] sm:$0xff]
    %v3596 = vld [vmem:[#allocation4 + $0x360] sm:$0xff]
    %v3597 = vld [vmem:[#allocation4 + $0x370] sm:$0xff]
    %v3598 = vld [vmem:[#allocation4 + $0x380] sm:$0xff]
    %v3599 = vld [vmem:[#allocation4 + $0x390] sm:$0xff]
    %v3600 = vld [vmem:[#allocation4 + $0x3a0] sm:$0xff]
    %v3601 = vld [vmem:[#allocation4 + $0x3b0] sm:$0xff]
    %v3602 = vld [vmem:[#allocation4 + $0x3c0] sm:$0xff]
    %v3603 = vld [vmem:[#allocation4 + $0x3d0] sm:$0xff]
    %v3604 = vld [vmem:[#allocation4 + $0x3e0] sm:$0xff]
    %v3605 = vld [vmem:[#allocation4 + $0x3f0] sm:$0xff]
    %v3606 = vld [vmem:[%s1] sm:$0xff]
    %v3607 = vld [vmem:[%s1 + $0x8] sm:$0xff]
    %v3608 = vld [vmem:[%s1 + $0x10] sm:$0xff]
    %v3609 = vld [vmem:[%s1 + $0x18] sm:$0x7]
    %v3610 = vld [vmem:[%s2] sm:$0x1]
    %v3612 = vperm.slane %v3610, 0
    %vm3614 = vcmask 220160
    %v3616 = vsel %vm3614, %v3542, 0
    %v3619 = vsel %vm3614, %v3543, 0
    %v3622 = vsel %vm3614, %v3544, 0
    %v3625 = vsel %vm3614, %v3545, 0
    %v3628 = vsel %vm3614, %v3546, 0
    %v3631 = vsel %vm3614, %v3547, 0
    %v3634 = vsel %vm3614, %v3548, 0
    %v3637 = vsel %vm3614, %v3549, 0
    %v3640 = vsel %vm3614, %v3550, 0
    %v3643 = vsel %vm3614, %v3551, 0
    %v3646 = vsel %vm3614, %v3552, 0
    %v3649 = vsel %vm3614, %v3553, 0
    %v3652 = vsel %vm3614, %v3554, 0
    %v3655 = vsel %vm3614, %v3555, 0
    %v3658 = vsel %vm3614, %v3556, 0
    %v3661 = vsel %vm3614, %v3557, 0
    %v3664 = vsel %vm3614, %v3558, 0
    %v3667 = vsel %vm3614, %v3559, 0
    %v3670 = vsel %vm3614, %v3560, 0
    %v3673 = vsel %vm3614, %v3561, 0
    %v3676 = vsel %vm3614, %v3562, 0
    %v3679 = vsel %vm3614, %v3563, 0
    %v3682 = vsel %vm3614, %v3564, 0
    %v3685 = vsel %vm3614, %v3565, 0
    %v3688 = vsel %vm3614, %v3566, 0
    %v3691 = vsel %vm3614, %v3567, 0
    %v3694 = vsel %vm3614, %v3568, 0
    %v3697 = vsel %vm3614, %v3569, 0
    %v3700 = vsel %vm3614, %v3570, 0
    %v3703 = vsel %vm3614, %v3571, 0
    %v3706 = vsel %vm3614, %v3572, 0
    %v3709 = vsel %vm3614, %v3573, 0
    %v3712 = vsel %vm3614, %v3574, 0
    %v3715 = vsel %vm3614, %v3575, 0
    %v3718 = vsel %vm3614, %v3576, 0
    %v3721 = vsel %vm3614, %v3577, 0
    %v3724 = vsel %vm3614, %v3578, 0
    %v3727 = vsel %vm3614, %v3579, 0
    %v3730 = vsel %vm3614, %v3580, 0
    %v3733 = vsel %vm3614, %v3581, 0
    %v3736 = vsel %vm3614, %v3582, 0
    %v3739 = vsel %vm3614, %v3583, 0
    %v3742 = vsel %vm3614, %v3584, 0
    %v3745 = vsel %vm3614, %v3585, 0
    %v3748 = vsel %vm3614, %v3586, 0
    %v3751 = vsel %vm3614, %v3587, 0
    %v3754 = vsel %vm3614, %v3588, 0
    %v3757 = vsel %vm3614, %v3589, 0
    %v3760 = vsel %vm3614, %v3590, 0
    %v3763 = vsel %vm3614, %v3591, 0
    %v3766 = vsel %vm3614, %v3592, 0
    %v3769 = vsel %vm3614, %v3593, 0
    %v3772 = vsel %vm3614, %v3594, 0
    %v3775 = vsel %vm3614, %v3595, 0
    %v3778 = vsel %vm3614, %v3596, 0
    %v3781 = vsel %vm3614, %v3597, 0
    %v3784 = vsel %vm3614, %v3598, 0
    %v3787 = vsel %vm3614, %v3599, 0
    %v3790 = vsel %vm3614, %v3600, 0
    %v3793 = vsel %vm3614, %v3601, 0
    %v3796 = vsel %vm3614, %v3602, 0
    %v3799 = vsel %vm3614, %v3603, 0
    %v3802 = vsel %vm3614, %v3604, 0
    %v3805 = vsel %vm3614, %v3605, 0
    %vm3807 = vcmask 1042432
    %v3809 = vsel %vm3807, %v3609, 0
    %3811 = vmatpush.msra.mxu0 0.0
    %3812 = vmatpush.msra.mxu0 0.0
    %3813 = vmatpush.msra.mxu0 0.0
    %3814 = vmatpush.msra.mxu0 0.0
    %3815 = vmatpush.msra.mxu0 0.0
    %3816 = vmatpush.msra.mxu0 0.0
    %3817 = vmatpush.msra.mxu0 0.0
    %3818 = vmatpush.msra.mxu0 0.0
    %3819 = vmatpush.msra.mxu0 0.0
    %3820 = vmatpush.msra.mxu0 0.0
    %3821 = vmatpush.msra.mxu0 0.0
    %3822 = vmatpush.msra.mxu0 0.0
    %3823 = vmatpush.msra.mxu0 %v3809
    %3824 = vmatpush.msra.mxu0 %v3608
    %3825 = vmatpush.msra.mxu0 %v3607
    %3826 = vmatpush.msra.mxu0 %v3606
    %3827 = vmatmul.f32.gmra.mxu0 %v3616
    %v3828 = vpop.f32.mrf.mxu0
    %v3829 = vadd.f32 %v3612, %v3828
    %3830 = vmatmul.f32.gmra.mxu0 %v3619
    %v3831 = vpop.f32.mrf.mxu0
    %v3832 = vadd.f32 %v3612, %v3831
    %3833 = vmatmul.f32.gmra.mxu0 %v3622
    %v3834 = vpop.f32.mrf.mxu0
    %v3835 = vadd.f32 %v3612, %v3834
    %3836 = vmatmul.f32.gmra.mxu0 %v3625
    %v3837 = vpop.f32.mrf.mxu0
    %v3838 = vadd.f32 %v3612, %v3837
    %3839 = vmatmul.f32.gmra.mxu0 %v3628
    %v3840 = vpop.f32.mrf.mxu0
    %v3841 = vadd.f32 %v3612, %v3840
    %3842 = vmatmul.f32.gmra.mxu0 %v3631
    %v3843 = vpop.f32.mrf.mxu0
    %v3844 = vadd.f32 %v3612, %v3843
    %3845 = vmatmul.f32.gmra.mxu0 %v3634
    %v3846 = vpop.f32.mrf.mxu0
    %v3847 = vadd.f32 %v3612, %v3846
    %3848 = vmatmul.f32.gmra.mxu0 %v3637
    %v3849 = vpop.f32.mrf.mxu0
    %v3850 = vadd.f32 %v3612, %v3849
    %3851 = vmatmul.f32.gmra.mxu0 %v3640
    %v3852 = vpop.f32.mrf.mxu0
    %v3853 = vadd.f32 %v3612, %v3852
    %3854 = vmatmul.f32.gmra.mxu0 %v3643
    %v3855 = vpop.f32.mrf.mxu0
    %v3856 = vadd.f32 %v3612, %v3855
    %3857 = vmatmul.f32.gmra.mxu0 %v3646
    %v3858 = vpop.f32.mrf.mxu0
    %v3859 = vadd.f32 %v3612, %v3858
    %3860 = vmatmul.f32.gmra.mxu0 %v3649
    %v3861 = vpop.f32.mrf.mxu0
    %v3862 = vadd.f32 %v3612, %v3861
    %3863 = vmatmul.f32.gmra.mxu0 %v3652
    %v3864 = vpop.f32.mrf.mxu0
    %v3865 = vadd.f32 %v3612, %v3864
    %3866 = vmatmul.f32.gmra.mxu0 %v3655
    %v3867 = vpop.f32.mrf.mxu0
    %v3868 = vadd.f32 %v3612, %v3867
    %3869 = vmatmul.f32.gmra.mxu0 %v3658
    %v3870 = vpop.f32.mrf.mxu0
    %v3871 = vadd.f32 %v3612, %v3870
    %3872 = vmatmul.f32.gmra.mxu0 %v3661
    %v3873 = vpop.f32.mrf.mxu0
    %v3874 = vadd.f32 %v3612, %v3873
    %3875 = vmatmul.f32.gmra.mxu0 %v3664
    %v3876 = vpop.f32.mrf.mxu0
    %v3877 = vadd.f32 %v3612, %v3876
    %3878 = vmatmul.f32.gmra.mxu0 %v3667
    %v3879 = vpop.f32.mrf.mxu0
    %v3880 = vadd.f32 %v3612, %v3879
    %3881 = vmatmul.f32.gmra.mxu0 %v3670
    %v3882 = vpop.f32.mrf.mxu0
    %v3883 = vadd.f32 %v3612, %v3882
    %3884 = vmatmul.f32.gmra.mxu0 %v3673
    %v3885 = vpop.f32.mrf.mxu0
    %v3886 = vadd.f32 %v3612, %v3885
    %3887 = vmatmul.f32.gmra.mxu0 %v3676
    %v3888 = vpop.f32.mrf.mxu0
    %v3889 = vadd.f32 %v3612, %v3888
    %3890 = vmatmul.f32.gmra.mxu0 %v3679
    %v3891 = vpop.f32.mrf.mxu0
    %v3892 = vadd.f32 %v3612, %v3891
    %3893 = vmatmul.f32.gmra.mxu0 %v3682
    %v3894 = vpop.f32.mrf.mxu0
    %v3895 = vadd.f32 %v3612, %v3894
    %3896 = vmatmul.f32.gmra.mxu0 %v3685
    %v3897 = vpop.f32.mrf.mxu0
    %v3898 = vadd.f32 %v3612, %v3897
    %3899 = vmatmul.f32.gmra.mxu0 %v3688
    %v3900 = vpop.f32.mrf.mxu0
    %v3901 = vadd.f32 %v3612, %v3900
    %3902 = vmatmul.f32.gmra.mxu0 %v3691
    %v3903 = vpop.f32.mrf.mxu0
    %v3904 = vadd.f32 %v3612, %v3903
    %3905 = vmatmul.f32.gmra.mxu0 %v3694
    %v3906 = vpop.f32.mrf.mxu0
    %v3907 = vadd.f32 %v3612, %v3906
    %3908 = vmatmul.f32.gmra.mxu0 %v3697
    %v3909 = vpop.f32.mrf.mxu0
    %v3910 = vadd.f32 %v3612, %v3909
    %3911 = vmatmul.f32.gmra.mxu0 %v3700
    %v3912 = vpop.f32.mrf.mxu0
    %v3913 = vadd.f32 %v3612, %v3912
    %3914 = vmatmul.f32.gmra.mxu0 %v3703
    %v3915 = vpop.f32.mrf.mxu0
    %v3916 = vadd.f32 %v3612, %v3915
    %3917 = vmatmul.f32.gmra.mxu0 %v3706
    %v3918 = vpop.f32.mrf.mxu0
    %v3919 = vadd.f32 %v3612, %v3918
    %3920 = vmatmul.f32.gmra.mxu0 %v3709
    %v3921 = vpop.f32.mrf.mxu0
    %v3922 = vadd.f32 %v3612, %v3921
    %3923 = vmatmul.f32.gmra.mxu0 %v3712
    %v3924 = vpop.f32.mrf.mxu0
    %v3925 = vadd.f32 %v3612, %v3924
    %3926 = vmatmul.f32.gmra.mxu0 %v3715
    %v3927 = vpop.f32.mrf.mxu0
    %v3928 = vadd.f32 %v3612, %v3927
    %3929 = vmatmul.f32.gmra.mxu0 %v3718
    %v3930 = vpop.f32.mrf.mxu0
    %v3931 = vadd.f32 %v3612, %v3930
    %3932 = vmatmul.f32.gmra.mxu0 %v3721
    %v3933 = vpop.f32.mrf.mxu0
    %v3934 = vadd.f32 %v3612, %v3933
    %3935 = vmatmul.f32.gmra.mxu0 %v3724
    %v3936 = vpop.f32.mrf.mxu0
    %v3937 = vadd.f32 %v3612, %v3936
    %3938 = vmatmul.f32.gmra.mxu0 %v3727
    %v3939 = vpop.f32.mrf.mxu0
    %v3940 = vadd.f32 %v3612, %v3939
    %3941 = vmatmul.f32.gmra.mxu0 %v3730
    %v3942 = vpop.f32.mrf.mxu0
    %v3943 = vadd.f32 %v3612, %v3942
    %3944 = vmatmul.f32.gmra.mxu0 %v3733
    %v3945 = vpop.f32.mrf.mxu0
    %v3946 = vadd.f32 %v3612, %v3945
    %3947 = vmatmul.f32.gmra.mxu0 %v3736
    %v3948 = vpop.f32.mrf.mxu0
    %v3949 = vadd.f32 %v3612, %v3948
    %3950 = vmatmul.f32.gmra.mxu0 %v3739
    %v3951 = vpop.f32.mrf.mxu0
    %v3952 = vadd.f32 %v3612, %v3951
    %3953 = vmatmul.f32.gmra.mxu0 %v3742
    %v3954 = vpop.f32.mrf.mxu0
    %v3955 = vadd.f32 %v3612, %v3954
    %3956 = vmatmul.f32.gmra.mxu0 %v3745
    %v3957 = vpop.f32.mrf.mxu0
    %v3958 = vadd.f32 %v3612, %v3957
    %3959 = vmatmul.f32.gmra.mxu0 %v3748
    %v3960 = vpop.f32.mrf.mxu0
    %v3961 = vadd.f32 %v3612, %v3960
    %3962 = vmatmul.f32.gmra.mxu0 %v3751
    %v3963 = vpop.f32.mrf.mxu0
    %v3964 = vadd.f32 %v3612, %v3963
    %3965 = vmatmul.f32.gmra.mxu0 %v3754
    %v3966 = vpop.f32.mrf.mxu0
    %v3967 = vadd.f32 %v3612, %v3966
    %3968 = vmatmul.f32.gmra.mxu0 %v3757
    %v3969 = vpop.f32.mrf.mxu0
    %v3970 = vadd.f32 %v3612, %v3969
    %3971 = vmatmul.f32.gmra.mxu0 %v3760
    %v3972 = vpop.f32.mrf.mxu0
    %v3973 = vadd.f32 %v3612, %v3972
    %3974 = vmatmul.f32.gmra.mxu0 %v3763
    %v3975 = vpop.f32.mrf.mxu0
    %v3976 = vadd.f32 %v3612, %v3975
    %3977 = vmatmul.f32.gmra.mxu0 %v3766
    %v3978 = vpop.f32.mrf.mxu0
    %v3979 = vadd.f32 %v3612, %v3978
    %3980 = vmatmul.f32.gmra.mxu0 %v3769
    %v3981 = vpop.f32.mrf.mxu0
    %v3982 = vadd.f32 %v3612, %v3981
    %3983 = vmatmul.f32.gmra.mxu0 %v3772
    %v3984 = vpop.f32.mrf.mxu0
    %v3985 = vadd.f32 %v3612, %v3984
    %3986 = vmatmul.f32.gmra.mxu0 %v3775
    %v3987 = vpop.f32.mrf.mxu0
    %v3988 = vadd.f32 %v3612, %v3987
    %3989 = vmatmul.f32.gmra.mxu0 %v3778
    %v3990 = vpop.f32.mrf.mxu0
    %v3991 = vadd.f32 %v3612, %v3990
    %3992 = vmatmul.f32.gmra.mxu0 %v3781
    %v3993 = vpop.f32.mrf.mxu0
    %v3994 = vadd.f32 %v3612, %v3993
    %3995 = vmatmul.f32.gmra.mxu0 %v3784
    %v3996 = vpop.f32.mrf.mxu0
    %v3997 = vadd.f32 %v3612, %v3996
    %3998 = vmatmul.f32.gmra.mxu0 %v3787
    %v3999 = vpop.f32.mrf.mxu0
    %v4000 = vadd.f32 %v3612, %v3999
    %4001 = vmatmul.f32.gmra.mxu0 %v3790
    %v4002 = vpop.f32.mrf.mxu0
    %v4003 = vadd.f32 %v3612, %v4002
    %4004 = vmatmul.f32.gmra.mxu0 %v3793
    %v4005 = vpop.f32.mrf.mxu0
    %v4006 = vadd.f32 %v3612, %v4005
    %4007 = vmatmul.f32.gmra.mxu0 %v3796
    %v4008 = vpop.f32.mrf.mxu0
    %v4009 = vadd.f32 %v3612, %v4008
    %4010 = vmatmul.f32.gmra.mxu0 %v3799
    %v4011 = vpop.f32.mrf.mxu0
    %v4012 = vadd.f32 %v3612, %v4011
    %4013 = vmatmul.f32.gmra.mxu0 %v3802
    %v4014 = vpop.f32.mrf.mxu0
    %v4015 = vadd.f32 %v3612, %v4014
    %4016 = vmatmul.f32.gmra.mxu0 %v3805
    %v4017 = vpop.f32.mrf.mxu0
    %v4018 = vadd.f32 %v3612, %v4017
    %4019 = vdwg.mxu0
    %v4020 = vmax.f32 %v3829, 0.0
    %v4021 = vmax.f32 %v3832, 0.0
    %v4022 = vmax.f32 %v3835, 0.0
    %v4023 = vmax.f32 %v3838, 0.0
    %v4024 = vmax.f32 %v3841, 0.0
    %v4025 = vmax.f32 %v3844, 0.0
    %v4026 = vmax.f32 %v3847, 0.0
    %v4027 = vmax.f32 %v3850, 0.0
    %v4028 = vmax.f32 %v3853, 0.0
    %v4029 = vmax.f32 %v3856, 0.0
    %v4030 = vmax.f32 %v3859, 0.0
    %v4031 = vmax.f32 %v3862, 0.0
    %v4032 = vmax.f32 %v3865, 0.0
    %v4033 = vmax.f32 %v3868, 0.0
    %v4034 = vmax.f32 %v3871, 0.0
    %v4035 = vmax.f32 %v3874, 0.0
    %v4036 = vmax.f32 %v3877, 0.0
    %v4037 = vmax.f32 %v3880, 0.0
    %v4038 = vmax.f32 %v3883, 0.0
    %v4039 = vmax.f32 %v3886, 0.0
    %v4040 = vmax.f32 %v3889, 0.0
    %v4041 = vmax.f32 %v3892, 0.0
    %v4042 = vmax.f32 %v3895, 0.0
    %v4043 = vmax.f32 %v3898, 0.0
    %v4044 = vmax.f32 %v3901, 0.0
    %v4045 = vmax.f32 %v3904, 0.0
    %v4046 = vmax.f32 %v3907, 0.0
    %v4047 = vmax.f32 %v3910, 0.0
    %v4048 = vmax.f32 %v3913, 0.0
    %v4049 = vmax.f32 %v3916, 0.0
    %v4050 = vmax.f32 %v3919, 0.0
    %v4051 = vmax.f32 %v3922, 0.0
    %v4052 = vmax.f32 %v3925, 0.0
    %v4053 = vmax.f32 %v3928, 0.0
    %v4054 = vmax.f32 %v3931, 0.0
    %v4055 = vmax.f32 %v3934, 0.0
    %v4056 = vmax.f32 %v3937, 0.0
    %v4057 = vmax.f32 %v3940, 0.0
    %v4058 = vmax.f32 %v3943, 0.0
    %v4059 = vmax.f32 %v3946, 0.0
    %v4060 = vmax.f32 %v3949, 0.0
    %v4061 = vmax.f32 %v3952, 0.0
    %v4062 = vmax.f32 %v3955, 0.0
    %v4063 = vmax.f32 %v3958, 0.0
    %v4064 = vmax.f32 %v3961, 0.0
    %v4065 = vmax.f32 %v3964, 0.0
    %v4066 = vmax.f32 %v3967, 0.0
    %v4067 = vmax.f32 %v3970, 0.0
    %v4068 = vmax.f32 %v3973, 0.0
    %v4069 = vmax.f32 %v3976, 0.0
    %v4070 = vmax.f32 %v3979, 0.0
    %v4071 = vmax.f32 %v3982, 0.0
    %v4072 = vmax.f32 %v3985, 0.0
    %v4073 = vmax.f32 %v3988, 0.0
    %v4074 = vmax.f32 %v3991, 0.0
    %v4075 = vmax.f32 %v3994, 0.0
    %v4076 = vmax.f32 %v3997, 0.0
    %v4077 = vmax.f32 %v4000, 0.0
    %v4078 = vmax.f32 %v4003, 0.0
    %v4079 = vmax.f32 %v4006, 0.0
    %v4080 = vmax.f32 %v4009, 0.0
    %v4081 = vmax.f32 %v4012, 0.0
    %v4082 = vmax.f32 %v4015, 0.0
    %v4083 = vmax.f32 %v4018, 0.0
    %4084 = vst.msk [vmem:[%s267 + $0x1] sm:$0xff] %vm51, %v4020
    %4085 = vst.msk [vmem:[%s267 + $0x9] sm:$0xff] %vm51, %v4021
    %4086 = vst.msk [vmem:[%s267 + $0x19] sm:$0xff] %vm51, %v4022
    %4087 = vst.msk [vmem:[%s267 + $0x21] sm:$0xff] %vm51, %v4023
    %4088 = vst.msk [vmem:[%s267 + $0x31] sm:$0xff] %vm51, %v4024
    %4089 = vst.msk [vmem:[%s267 + $0x39] sm:$0xff] %vm51, %v4025
    %4090 = vst.msk [vmem:[%s267 + $0x49] sm:$0xff] %vm51, %v4026
    %4091 = vst.msk [vmem:[%s267 + $0x51] sm:$0xff] %vm51, %v4027
    %4092 = vst.msk [vmem:[%s267 + $0x61] sm:$0xff] %vm51, %v4028
    %4093 = vst.msk [vmem:[%s267 + $0x69] sm:$0xff] %vm51, %v4029
    %4094 = vst.msk [vmem:[%s267 + $0x79] sm:$0xff] %vm51, %v4030
    %4095 = vst.msk [vmem:[%s267 + $0x81] sm:$0xff] %vm51, %v4031
    %4096 = vst.msk [vmem:[%s267 + $0x91] sm:$0xff] %vm51, %v4032
    %4097 = vst.msk [vmem:[%s267 + $0x99] sm:$0xff] %vm51, %v4033
    %4098 = vst.msk [vmem:[%s267 + $0xa9] sm:$0xff] %vm51, %v4034
    %4099 = vst.msk [vmem:[%s267 + $0xb1] sm:$0xff] %vm51, %v4035
    %4100 = vst.msk [vmem:[%s267 + $0xc1] sm:$0xff] %vm51, %v4036
    %4101 = vst.msk [vmem:[%s267 + $0xc9] sm:$0xff] %vm51, %v4037
    %4102 = vst.msk [vmem:[%s267 + $0xd9] sm:$0xff] %vm51, %v4038
    %4103 = vst.msk [vmem:[%s267 + $0xe1] sm:$0xff] %vm51, %v4039
    %4104 = vst.msk [vmem:[%s267 + $0xf1] sm:$0xff] %vm51, %v4040
    %4105 = vst.msk [vmem:[%s267 + $0xf9] sm:$0xff] %vm51, %v4041
    %4106 = vst.msk [vmem:[%s267 + $0x109] sm:$0xff] %vm51, %v4042
    %4107 = vst.msk [vmem:[%s267 + $0x111] sm:$0xff] %vm51, %v4043
    %4108 = vst.msk [vmem:[%s267 + $0x121] sm:$0xff] %vm51, %v4044
    %4109 = vst.msk [vmem:[%s267 + $0x129] sm:$0xff] %vm51, %v4045
    %4110 = vst.msk [vmem:[%s267 + $0x139] sm:$0xff] %vm51, %v4046
    %4111 = vst.msk [vmem:[%s267 + $0x141] sm:$0xff] %vm51, %v4047
    %4112 = vst.msk [vmem:[%s267 + $0x151] sm:$0xff] %vm51, %v4048
    %4113 = vst.msk [vmem:[%s267 + $0x159] sm:$0xff] %vm51, %v4049
    %4114 = vst.msk [vmem:[%s267 + $0x169] sm:$0xff] %vm51, %v4050
    %4115 = vst.msk [vmem:[%s267 + $0x171] sm:$0xff] %vm51, %v4051
    %4116 = vst.msk [vmem:[%s267 + $0x1b1] sm:$0xff] %vm51, %v4052
    %4117 = vst.msk [vmem:[%s267 + $0x1b9] sm:$0xff] %vm51, %v4053
    %4118 = vst.msk [vmem:[%s267 + $0x1c9] sm:$0xff] %vm51, %v4054
    %4119 = vst.msk [vmem:[%s267 + $0x1d1] sm:$0xff] %vm51, %v4055
    %4120 = vst.msk [vmem:[%s267 + $0x1e1] sm:$0xff] %vm51, %v4056
    %4121 = vst.msk [vmem:[%s267 + $0x1e9] sm:$0xff] %vm51, %v4057
    %4122 = vst.msk [vmem:[%s267 + $0x1f9] sm:$0xff] %vm51, %v4058
    %4123 = vst.msk [vmem:[%s267 + $0x201] sm:$0xff] %vm51, %v4059
    %4124 = vst.msk [vmem:[%s267 + $0x211] sm:$0xff] %vm51, %v4060
    %4125 = vst.msk [vmem:[%s267 + $0x219] sm:$0xff] %vm51, %v4061
    %4126 = vst.msk [vmem:[%s267 + $0x229] sm:$0xff] %vm51, %v4062
    %4127 = vst.msk [vmem:[%s267 + $0x231] sm:$0xff] %vm51, %v4063
    %4128 = vst.msk [vmem:[%s267 + $0x241] sm:$0xff] %vm51, %v4064
    %4129 = vst.msk [vmem:[%s267 + $0x249] sm:$0xff] %vm51, %v4065
    %4130 = vst.msk [vmem:[%s267 + $0x259] sm:$0xff] %vm51, %v4066
    %4131 = vst.msk [vmem:[%s267 + $0x261] sm:$0xff] %vm51, %v4067
    %4132 = vst.msk [vmem:[%s267 + $0x271] sm:$0xff] %vm51, %v4068
    %4133 = vst.msk [vmem:[%s267 + $0x279] sm:$0xff] %vm51, %v4069
    %4134 = vst.msk [vmem:[%s267 + $0x289] sm:$0xff] %vm51, %v4070
    %4135 = vst.msk [vmem:[%s267 + $0x291] sm:$0xff] %vm51, %v4071
    %4136 = vst.msk [vmem:[%s267 + $0x2a1] sm:$0xff] %vm51, %v4072
    %4137 = vst.msk [vmem:[%s267 + $0x2a9] sm:$0xff] %vm51, %v4073
    %4138 = vst.msk [vmem:[%s267 + $0x2b9] sm:$0xff] %vm51, %v4074
    %4139 = vst.msk [vmem:[%s267 + $0x2c1] sm:$0xff] %vm51, %v4075
    %4140 = vst.msk [vmem:[%s267 + $0x2d1] sm:$0xff] %vm51, %v4076
    %4141 = vst.msk [vmem:[%s267 + $0x2d9] sm:$0xff] %vm51, %v4077
    %4142 = vst.msk [vmem:[%s267 + $0x2e9] sm:$0xff] %vm51, %v4078
    %4143 = vst.msk [vmem:[%s267 + $0x2f1] sm:$0xff] %vm51, %v4079
    %4144 = vst.msk [vmem:[%s267 + $0x301] sm:$0xff] %vm51, %v4080
    %4145 = vst.msk [vmem:[%s267 + $0x309] sm:$0xff] %vm51, %v4081
    %4146 = vst.msk [vmem:[%s267 + $0x319] sm:$0xff] %vm51, %v4082
    %4147 = vst.msk [vmem:[%s267 + $0x321] sm:$0xff] %vm51, %v4083
    %v4148 = vld [vmem:[#allocation2] sm:$0xff]
    %v4149 = vld [vmem:[#allocation2 + $0x8] sm:$0xff]
    %v4150 = vld [vmem:[#allocation2 + $0x18] sm:$0xff]
    %v4151 = vld [vmem:[#allocation2 + $0x20] sm:$0xff]
    %v4152 = vld [vmem:[#allocation2 + $0x30] sm:$0xff]
    %v4153 = vld [vmem:[#allocation2 + $0x38] sm:$0xff]
    %v4154 = vld [vmem:[#allocation2 + $0x48] sm:$0xff]
    %v4155 = vld [vmem:[#allocation2 + $0x50] sm:$0xff]
    %v4156 = vld [vmem:[#allocation2 + $0x60] sm:$0xff]
    %v4157 = vld [vmem:[#allocation2 + $0x68] sm:$0xff]
    %v4158 = vld [vmem:[#allocation2 + $0x78] sm:$0xff]
    %v4159 = vld [vmem:[#allocation2 + $0x80] sm:$0xff]
    %v4160 = vld [vmem:[#allocation2 + $0x90] sm:$0xff]
    %v4161 = vld [vmem:[#allocation2 + $0x98] sm:$0xff]
    %v4162 = vld [vmem:[#allocation2 + $0xa8] sm:$0xff]
    %v4163 = vld [vmem:[#allocation2 + $0xb0] sm:$0xff]
    %v4164 = vld [vmem:[#allocation2 + $0xc0] sm:$0xff]
    %v4165 = vld [vmem:[#allocation2 + $0xc8] sm:$0xff]
    %v4166 = vld [vmem:[#allocation2 + $0xd8] sm:$0xff]
    %v4167 = vld [vmem:[#allocation2 + $0xe0] sm:$0xff]
    %v4168 = vld [vmem:[#allocation2 + $0xf0] sm:$0xff]
    %v4169 = vld [vmem:[#allocation2 + $0xf8] sm:$0xff]
    %v4170 = vld [vmem:[#allocation2 + $0x108] sm:$0xff]
    %v4171 = vld [vmem:[#allocation2 + $0x110] sm:$0xff]
    %v4172 = vld [vmem:[#allocation2 + $0x120] sm:$0xff]
    %v4173 = vld [vmem:[#allocation2 + $0x128] sm:$0xff]
    %v4174 = vld [vmem:[#allocation2 + $0x138] sm:$0xff]
    %v4175 = vld [vmem:[#allocation2 + $0x140] sm:$0xff]
    %v4176 = vld [vmem:[#allocation2 + $0x150] sm:$0xff]
    %v4177 = vld [vmem:[#allocation2 + $0x158] sm:$0xff]
    %v4178 = vld [vmem:[#allocation2 + $0x168] sm:$0xff]
    %v4179 = vld [vmem:[#allocation2 + $0x170] sm:$0xff]
    %v4180 = vld [vmem:[#allocation2 + $0x1b0] sm:$0xff]
    %v4181 = vld [vmem:[#allocation2 + $0x1b8] sm:$0xff]
    %v4182 = vld [vmem:[#allocation2 + $0x1c8] sm:$0xff]
    %v4183 = vld [vmem:[#allocation2 + $0x1d0] sm:$0xff]
    %v4184 = vld [vmem:[#allocation2 + $0x1e0] sm:$0xff]
    %v4185 = vld [vmem:[#allocation2 + $0x1e8] sm:$0xff]
    %v4186 = vld [vmem:[#allocation2 + $0x1f8] sm:$0xff]
    %v4187 = vld [vmem:[#allocation2 + $0x200] sm:$0xff]
    %v4188 = vld [vmem:[#allocation2 + $0x210] sm:$0xff]
    %v4189 = vld [vmem:[#allocation2 + $0x218] sm:$0xff]
    %v4190 = vld [vmem:[#allocation2 + $0x228] sm:$0xff]
    %v4191 = vld [vmem:[#allocation2 + $0x230] sm:$0xff]
    %v4192 = vld [vmem:[#allocation2 + $0x240] sm:$0xff]
    %v4193 = vld [vmem:[#allocation2 + $0x248] sm:$0xff]
    %v4194 = vld [vmem:[#allocation2 + $0x258] sm:$0xff]
    %v4195 = vld [vmem:[#allocation2 + $0x260] sm:$0xff]
    %v4196 = vld [vmem:[#allocation2 + $0x270] sm:$0xff]
    %v4197 = vld [vmem:[#allocation2 + $0x278] sm:$0xff]
    %v4198 = vld [vmem:[#allocation2 + $0x288] sm:$0xff]
    %v4199 = vld [vmem:[#allocation2 + $0x290] sm:$0xff]
    %v4200 = vld [vmem:[#allocation2 + $0x2a0] sm:$0xff]
    %v4201 = vld [vmem:[#allocation2 + $0x2a8] sm:$0xff]
    %v4202 = vld [vmem:[#allocation2 + $0x2b8] sm:$0xff]
    %v4203 = vld [vmem:[#allocation2 + $0x2c0] sm:$0xff]
    %v4204 = vld [vmem:[#allocation2 + $0x2d0] sm:$0xff]
    %v4205 = vld [vmem:[#allocation2 + $0x2d8] sm:$0xff]
    %v4206 = vld [vmem:[#allocation2 + $0x2e8] sm:$0xff]
    %v4207 = vld [vmem:[#allocation2 + $0x2f0] sm:$0xff]
    %v4208 = vld [vmem:[#allocation2 + $0x300] sm:$0xff]
    %v4209 = vld [vmem:[#allocation2 + $0x308] sm:$0xff]
    %v4210 = vld [vmem:[#allocation2 + $0x318] sm:$0xff]
    %v4211 = vld [vmem:[#allocation2 + $0x320] sm:$0xff]
    %4212 = vst.msk [vmem:[#allocation4] sm:$0xff] %vm51, %v4148
    %4213 = vst.msk [vmem:[#allocation4 + $0x10] sm:$0xff] %vm51, %v4149
    %4214 = vst.msk [vmem:[#allocation4 + $0x20] sm:$0xff] %vm51, %v4150
    %4215 = vst.msk [vmem:[#allocation4 + $0x30] sm:$0xff] %vm51, %v4151
    %4216 = vst.msk [vmem:[#allocation4 + $0x40] sm:$0xff] %vm51, %v4152
    %4217 = vst.msk [vmem:[#allocation4 + $0x50] sm:$0xff] %vm51, %v4153
    %4218 = vst.msk [vmem:[#allocation4 + $0x60] sm:$0xff] %vm51, %v4154
    %4219 = vst.msk [vmem:[#allocation4 + $0x70] sm:$0xff] %vm51, %v4155
    %4220 = vst.msk [vmem:[#allocation4 + $0x80] sm:$0xff] %vm51, %v4156
    %4221 = vst.msk [vmem:[#allocation4 + $0x90] sm:$0xff] %vm51, %v4157
    %4222 = vst.msk [vmem:[#allocation4 + $0xa0] sm:$0xff] %vm51, %v4158
    %4223 = vst.msk [vmem:[#allocation4 + $0xb0] sm:$0xff] %vm51, %v4159
    %4224 = vst.msk [vmem:[#allocation4 + $0xc0] sm:$0xff] %vm51, %v4160
    %4225 = vst.msk [vmem:[#allocation4 + $0xd0] sm:$0xff] %vm51, %v4161
    %4226 = vst.msk [vmem:[#allocation4 + $0xe0] sm:$0xff] %vm51, %v4162
    %4227 = vst.msk [vmem:[#allocation4 + $0xf0] sm:$0xff] %vm51, %v4163
    %4228 = vst.msk [vmem:[#allocation4 + $0x100] sm:$0xff] %vm51, %v4164
    %4229 = vst.msk [vmem:[#allocation4 + $0x110] sm:$0xff] %vm51, %v4165
    %4230 = vst.msk [vmem:[#allocation4 + $0x120] sm:$0xff] %vm51, %v4166
    %4231 = vst.msk [vmem:[#allocation4 + $0x130] sm:$0xff] %vm51, %v4167
    %4232 = vst.msk [vmem:[#allocation4 + $0x140] sm:$0xff] %vm51, %v4168
    %4233 = vst.msk [vmem:[#allocation4 + $0x150] sm:$0xff] %vm51, %v4169
    %4234 = vst.msk [vmem:[#allocation4 + $0x160] sm:$0xff] %vm51, %v4170
    %4235 = vst.msk [vmem:[#allocation4 + $0x170] sm:$0xff] %vm51, %v4171
    %4236 = vst.msk [vmem:[#allocation4 + $0x180] sm:$0xff] %vm51, %v4172
    %4237 = vst.msk [vmem:[#allocation4 + $0x190] sm:$0xff] %vm51, %v4173
    %4238 = vst.msk [vmem:[#allocation4 + $0x1a0] sm:$0xff] %vm51, %v4174
    %4239 = vst.msk [vmem:[#allocation4 + $0x1b0] sm:$0xff] %vm51, %v4175
    %4240 = vst.msk [vmem:[#allocation4 + $0x1c0] sm:$0xff] %vm51, %v4176
    %4241 = vst.msk [vmem:[#allocation4 + $0x1d0] sm:$0xff] %vm51, %v4177
    %4242 = vst.msk [vmem:[#allocation4 + $0x1e0] sm:$0xff] %vm51, %v4178
    %4243 = vst.msk [vmem:[#allocation4 + $0x1f0] sm:$0xff] %vm51, %v4179
    %4244 = vst.msk [vmem:[#allocation4 + $0x200] sm:$0xff] %vm51, %v4180
    %4245 = vst.msk [vmem:[#allocation4 + $0x210] sm:$0xff] %vm51, %v4181
    %4246 = vst.msk [vmem:[#allocation4 + $0x220] sm:$0xff] %vm51, %v4182
    %4247 = vst.msk [vmem:[#allocation4 + $0x230] sm:$0xff] %vm51, %v4183
    %4248 = vst.msk [vmem:[#allocation4 + $0x240] sm:$0xff] %vm51, %v4184
    %4249 = vst.msk [vmem:[#allocation4 + $0x250] sm:$0xff] %vm51, %v4185
    %4250 = vst.msk [vmem:[#allocation4 + $0x260] sm:$0xff] %vm51, %v4186
    %4251 = vst.msk [vmem:[#allocation4 + $0x270] sm:$0xff] %vm51, %v4187
    %4252 = vst.msk [vmem:[#allocation4 + $0x280] sm:$0xff] %vm51, %v4188
    %4253 = vst.msk [vmem:[#allocation4 + $0x290] sm:$0xff] %vm51, %v4189
    %4254 = vst.msk [vmem:[#allocation4 + $0x2a0] sm:$0xff] %vm51, %v4190
    %4255 = vst.msk [vmem:[#allocation4 + $0x2b0] sm:$0xff] %vm51, %v4191
    %4256 = vst.msk [vmem:[#allocation4 + $0x2c0] sm:$0xff] %vm51, %v4192
    %4257 = vst.msk [vmem:[#allocation4 + $0x2d0] sm:$0xff] %vm51, %v4193
    %4258 = vst.msk [vmem:[#allocation4 + $0x2e0] sm:$0xff] %vm51, %v4194
    %4259 = vst.msk [vmem:[#allocation4 + $0x2f0] sm:$0xff] %vm51, %v4195
    %4260 = vst.msk [vmem:[#allocation4 + $0x300] sm:$0xff] %vm51, %v4196
    %4261 = vst.msk [vmem:[#allocation4 + $0x310] sm:$0xff] %vm51, %v4197
    %4262 = vst.msk [vmem:[#allocation4 + $0x320] sm:$0xff] %vm51, %v4198
    %4263 = vst.msk [vmem:[#allocation4 + $0x330] sm:$0xff] %vm51, %v4199
    %4264 = vst.msk [vmem:[#allocation4 + $0x340] sm:$0xff] %vm51, %v4200
    %4265 = vst.msk [vmem:[#allocation4 + $0x350] sm:$0xff] %vm51, %v4201
    %4266 = vst.msk [vmem:[#allocation4 + $0x360] sm:$0xff] %vm51, %v4202
    %4267 = vst.msk [vmem:[#allocation4 + $0x370] sm:$0xff] %vm51, %v4203
    %4268 = vst.msk [vmem:[#allocation4 + $0x380] sm:$0xff] %vm51, %v4204
    %4269 = vst.msk [vmem:[#allocation4 + $0x390] sm:$0xff] %vm51, %v4205
    %4270 = vst.msk [vmem:[#allocation4 + $0x3a0] sm:$0xff] %vm51, %v4206
    %4271 = vst.msk [vmem:[#allocation4 + $0x3b0] sm:$0xff] %vm51, %v4207
    %4272 = vst.msk [vmem:[#allocation4 + $0x3c0] sm:$0xff] %vm51, %v4208
    %4273 = vst.msk [vmem:[#allocation4 + $0x3d0] sm:$0xff] %vm51, %v4209
    %4274 = vst.msk [vmem:[#allocation4 + $0x3e0] sm:$0xff] %vm51, %v4210
    %4275 = vst.msk [vmem:[#allocation4 + $0x3f0] sm:$0xff] %vm51, %v4211
    %v4276 = vld [vmem:[#allocation2 + $0x1] sm:$0xff]
    %v4277 = vld [vmem:[#allocation2 + $0x9] sm:$0xff]
    %v4278 = vld [vmem:[#allocation2 + $0x19] sm:$0xff]
    %v4279 = vld [vmem:[#allocation2 + $0x21] sm:$0xff]
    %v4280 = vld [vmem:[#allocation2 + $0x31] sm:$0xff]
    %v4281 = vld [vmem:[#allocation2 + $0x39] sm:$0xff]
    %v4282 = vld [vmem:[#allocation2 + $0x49] sm:$0xff]
    %v4283 = vld [vmem:[#allocation2 + $0x51] sm:$0xff]
    %v4284 = vld [vmem:[#allocation2 + $0x61] sm:$0xff]
    %v4285 = vld [vmem:[#allocation2 + $0x69] sm:$0xff]
    %v4286 = vld [vmem:[#allocation2 + $0x79] sm:$0xff]
    %v4287 = vld [vmem:[#allocation2 + $0x81] sm:$0xff]
    %v4288 = vld [vmem:[#allocation2 + $0x91] sm:$0xff]
    %v4289 = vld [vmem:[#allocation2 + $0x99] sm:$0xff]
    %v4290 = vld [vmem:[#allocation2 + $0xa9] sm:$0xff]
    %v4291 = vld [vmem:[#allocation2 + $0xb1] sm:$0xff]
    %v4292 = vld [vmem:[#allocation2 + $0xc1] sm:$0xff]
    %v4293 = vld [vmem:[#allocation2 + $0xc9] sm:$0xff]
    %v4294 = vld [vmem:[#allocation2 + $0xd9] sm:$0xff]
    %v4295 = vld [vmem:[#allocation2 + $0xe1] sm:$0xff]
    %v4296 = vld [vmem:[#allocation2 + $0xf1] sm:$0xff]
    %v4297 = vld [vmem:[#allocation2 + $0xf9] sm:$0xff]
    %v4298 = vld [vmem:[#allocation2 + $0x109] sm:$0xff]
    %v4299 = vld [vmem:[#allocation2 + $0x111] sm:$0xff]
    %v4300 = vld [vmem:[#allocation2 + $0x121] sm:$0xff]
    %v4301 = vld [vmem:[#allocation2 + $0x129] sm:$0xff]
    %v4302 = vld [vmem:[#allocation2 + $0x139] sm:$0xff]
    %v4303 = vld [vmem:[#allocation2 + $0x141] sm:$0xff]
    %v4304 = vld [vmem:[#allocation2 + $0x151] sm:$0xff]
    %v4305 = vld [vmem:[#allocation2 + $0x159] sm:$0xff]
    %v4306 = vld [vmem:[#allocation2 + $0x169] sm:$0xff]
    %v4307 = vld [vmem:[#allocation2 + $0x171] sm:$0xff]
    %v4308 = vld [vmem:[#allocation2 + $0x1b1] sm:$0xff]
    %v4309 = vld [vmem:[#allocation2 + $0x1b9] sm:$0xff]
    %v4310 = vld [vmem:[#allocation2 + $0x1c9] sm:$0xff]
    %v4311 = vld [vmem:[#allocation2 + $0x1d1] sm:$0xff]
    %v4312 = vld [vmem:[#allocation2 + $0x1e1] sm:$0xff]
    %v4313 = vld [vmem:[#allocation2 + $0x1e9] sm:$0xff]
    %v4314 = vld [vmem:[#allocation2 + $0x1f9] sm:$0xff]
    %v4315 = vld [vmem:[#allocation2 + $0x201] sm:$0xff]
    %v4316 = vld [vmem:[#allocation2 + $0x211] sm:$0xff]
    %v4317 = vld [vmem:[#allocation2 + $0x219] sm:$0xff]
    %v4318 = vld [vmem:[#allocation2 + $0x229] sm:$0xff]
    %v4319 = vld [vmem:[#allocation2 + $0x231] sm:$0xff]
    %v4320 = vld [vmem:[#allocation2 + $0x241] sm:$0xff]
    %v4321 = vld [vmem:[#allocation2 + $0x249] sm:$0xff]
    %v4322 = vld [vmem:[#allocation2 + $0x259] sm:$0xff]
    %v4323 = vld [vmem:[#allocation2 + $0x261] sm:$0xff]
    %v4324 = vld [vmem:[#allocation2 + $0x271] sm:$0xff]
    %v4325 = vld [vmem:[#allocation2 + $0x279] sm:$0xff]
    %v4326 = vld [vmem:[#allocation2 + $0x289] sm:$0xff]
    %v4327 = vld [vmem:[#allocation2 + $0x291] sm:$0xff]
    %v4328 = vld [vmem:[#allocation2 + $0x2a1] sm:$0xff]
    %v4329 = vld [vmem:[#allocation2 + $0x2a9] sm:$0xff]
    %v4330 = vld [vmem:[#allocation2 + $0x2b9] sm:$0xff]
    %v4331 = vld [vmem:[#allocation2 + $0x2c1] sm:$0xff]
    %v4332 = vld [vmem:[#allocation2 + $0x2d1] sm:$0xff]
    %v4333 = vld [vmem:[#allocation2 + $0x2d9] sm:$0xff]
    %v4334 = vld [vmem:[#allocation2 + $0x2e9] sm:$0xff]
    %v4335 = vld [vmem:[#allocation2 + $0x2f1] sm:$0xff]
    %v4336 = vld [vmem:[#allocation2 + $0x301] sm:$0xff]
    %v4337 = vld [vmem:[#allocation2 + $0x309] sm:$0xff]
    %v4338 = vld [vmem:[#allocation2 + $0x319] sm:$0xff]
    %v4339 = vld [vmem:[#allocation2 + $0x321] sm:$0xff]
    %4404 = vrot.lane.b32.xlu0 %v4276, 8
    %v4405 = vpop.permute.xlu0 %4404
    %4406 = vrot.lane.b32.xlu0 %v4277, 8
    %v4407 = vpop.permute.xlu0 %4406
    %4408 = vrot.lane.b32.xlu0 %v4278, 8
    %v4409 = vpop.permute.xlu0 %4408
    %4410 = vrot.lane.b32.xlu0 %v4279, 8
    %v4411 = vpop.permute.xlu0 %4410
    %4412 = vrot.lane.b32.xlu0 %v4280, 8
    %v4413 = vpop.permute.xlu0 %4412
    %4414 = vrot.lane.b32.xlu0 %v4281, 8
    %v4415 = vpop.permute.xlu0 %4414
    %4416 = vrot.lane.b32.xlu0 %v4282, 8
    %v4417 = vpop.permute.xlu0 %4416
    %4418 = vrot.lane.b32.xlu0 %v4283, 8
    %v4419 = vpop.permute.xlu0 %4418
    %4420 = vrot.lane.b32.xlu0 %v4284, 8
    %v4421 = vpop.permute.xlu0 %4420
    %4422 = vrot.lane.b32.xlu0 %v4285, 8
    %v4423 = vpop.permute.xlu0 %4422
    %4424 = vrot.lane.b32.xlu0 %v4286, 8
    %v4425 = vpop.permute.xlu0 %4424
    %4426 = vrot.lane.b32.xlu0 %v4287, 8
    %v4427 = vpop.permute.xlu0 %4426
    %4428 = vrot.lane.b32.xlu0 %v4288, 8
    %v4429 = vpop.permute.xlu0 %4428
    %4430 = vrot.lane.b32.xlu0 %v4289, 8
    %v4431 = vpop.permute.xlu0 %4430
    %4432 = vrot.lane.b32.xlu0 %v4290, 8
    %v4433 = vpop.permute.xlu0 %4432
    %4434 = vrot.lane.b32.xlu0 %v4291, 8
    %v4435 = vpop.permute.xlu0 %4434
    %4436 = vrot.lane.b32.xlu0 %v4292, 8
    %v4437 = vpop.permute.xlu0 %4436
    %4438 = vrot.lane.b32.xlu0 %v4293, 8
    %v4439 = vpop.permute.xlu0 %4438
    %4440 = vrot.lane.b32.xlu0 %v4294, 8
    %v4441 = vpop.permute.xlu0 %4440
    %4442 = vrot.lane.b32.xlu0 %v4295, 8
    %v4443 = vpop.permute.xlu0 %4442
    %4444 = vrot.lane.b32.xlu0 %v4296, 8
    %v4445 = vpop.permute.xlu0 %4444
    %4446 = vrot.lane.b32.xlu0 %v4297, 8
    %v4447 = vpop.permute.xlu0 %4446
    %4448 = vrot.lane.b32.xlu0 %v4298, 8
    %v4449 = vpop.permute.xlu0 %4448
    %4450 = vrot.lane.b32.xlu0 %v4299, 8
    %v4451 = vpop.permute.xlu0 %4450
    %4452 = vrot.lane.b32.xlu0 %v4300, 8
    %v4453 = vpop.permute.xlu0 %4452
    %4454 = vrot.lane.b32.xlu0 %v4301, 8
    %v4455 = vpop.permute.xlu0 %4454
    %4456 = vrot.lane.b32.xlu0 %v4302, 8
    %v4457 = vpop.permute.xlu0 %4456
    %4458 = vrot.lane.b32.xlu0 %v4303, 8
    %v4459 = vpop.permute.xlu0 %4458
    %4460 = vrot.lane.b32.xlu0 %v4304, 8
    %v4461 = vpop.permute.xlu0 %4460
    %4462 = vrot.lane.b32.xlu0 %v4305, 8
    %v4463 = vpop.permute.xlu0 %4462
    %4464 = vrot.lane.b32.xlu0 %v4306, 8
    %v4465 = vpop.permute.xlu0 %4464
    %4466 = vrot.lane.b32.xlu0 %v4307, 8
    %v4467 = vpop.permute.xlu0 %4466
    %4468 = vrot.lane.b32.xlu0 %v4308, 8
    %v4469 = vpop.permute.xlu0 %4468
    %4470 = vrot.lane.b32.xlu0 %v4309, 8
    %v4471 = vpop.permute.xlu0 %4470
    %4472 = vrot.lane.b32.xlu0 %v4310, 8
    %v4473 = vpop.permute.xlu0 %4472
    %4474 = vrot.lane.b32.xlu0 %v4311, 8
    %v4475 = vpop.permute.xlu0 %4474
    %4476 = vrot.lane.b32.xlu0 %v4312, 8
    %v4477 = vpop.permute.xlu0 %4476
    %4478 = vrot.lane.b32.xlu0 %v4313, 8
    %v4479 = vpop.permute.xlu0 %4478
    %4480 = vrot.lane.b32.xlu0 %v4314, 8
    %v4481 = vpop.permute.xlu0 %4480
    %4482 = vrot.lane.b32.xlu0 %v4315, 8
    %v4483 = vpop.permute.xlu0 %4482
    %4484 = vrot.lane.b32.xlu0 %v4316, 8
    %v4485 = vpop.permute.xlu0 %4484
    %4486 = vrot.lane.b32.xlu0 %v4317, 8
    %v4487 = vpop.permute.xlu0 %4486
    %4488 = vrot.lane.b32.xlu0 %v4318, 8
    %v4489 = vpop.permute.xlu0 %4488
    %4490 = vrot.lane.b32.xlu0 %v4319, 8
    %v4491 = vpop.permute.xlu0 %4490
    %4492 = vrot.lane.b32.xlu0 %v4320, 8
    %v4493 = vpop.permute.xlu0 %4492
    %4494 = vrot.lane.b32.xlu0 %v4321, 8
    %v4495 = vpop.permute.xlu0 %4494
    %4496 = vrot.lane.b32.xlu0 %v4322, 8
    %v4497 = vpop.permute.xlu0 %4496
    %4498 = vrot.lane.b32.xlu0 %v4323, 8
    %v4499 = vpop.permute.xlu0 %4498
    %4500 = vrot.lane.b32.xlu0 %v4324, 8
    %v4501 = vpop.permute.xlu0 %4500
    %4502 = vrot.lane.b32.xlu0 %v4325, 8
    %v4503 = vpop.permute.xlu0 %4502
    %4504 = vrot.lane.b32.xlu0 %v4326, 8
    %v4505 = vpop.permute.xlu0 %4504
    %4506 = vrot.lane.b32.xlu0 %v4327, 8
    %v4507 = vpop.permute.xlu0 %4506
    %4508 = vrot.lane.b32.xlu0 %v4328, 8
    %v4509 = vpop.permute.xlu0 %4508
    %4510 = vrot.lane.b32.xlu0 %v4329, 8
    %v4511 = vpop.permute.xlu0 %4510
    %4512 = vrot.lane.b32.xlu0 %v4330, 8
    %v4513 = vpop.permute.xlu0 %4512
    %4514 = vrot.lane.b32.xlu0 %v4331, 8
    %v4515 = vpop.permute.xlu0 %4514
    %4516 = vrot.lane.b32.xlu0 %v4332, 8
    %v4517 = vpop.permute.xlu0 %4516
    %4518 = vrot.lane.b32.xlu0 %v4333, 8
    %v4519 = vpop.permute.xlu0 %4518
    %4520 = vrot.lane.b32.xlu0 %v4334, 8
    %v4521 = vpop.permute.xlu0 %4520
    %4522 = vrot.lane.b32.xlu0 %v4335, 8
    %v4523 = vpop.permute.xlu0 %4522
    %4524 = vrot.lane.b32.xlu0 %v4336, 8
    %v4525 = vpop.permute.xlu0 %4524
    %4526 = vrot.lane.b32.xlu0 %v4337, 8
    %v4527 = vpop.permute.xlu0 %4526
    %4528 = vrot.lane.b32.xlu0 %v4338, 8
    %v4529 = vpop.permute.xlu0 %4528
    %4530 = vrot.lane.b32.xlu0 %v4339, 8
    %v4531 = vpop.permute.xlu0 %4530
    %vm4596 = vcmask 130112
    %4597 = vst.msk [vmem:[#allocation4] sm:$0xff] %vm4596, %v4405
    %4598 = vst.msk [vmem:[#allocation4 + $0x10] sm:$0xff] %vm4596, %v4407
    %4599 = vst.msk [vmem:[#allocation4 + $0x20] sm:$0xff] %vm4596, %v4409
    %4600 = vst.msk [vmem:[#allocation4 + $0x30] sm:$0xff] %vm4596, %v4411
    %4601 = vst.msk [vmem:[#allocation4 + $0x40] sm:$0xff] %vm4596, %v4413
    %4602 = vst.msk [vmem:[#allocation4 + $0x50] sm:$0xff] %vm4596, %v4415
    %4603 = vst.msk [vmem:[#allocation4 + $0x60] sm:$0xff] %vm4596, %v4417
    %4604 = vst.msk [vmem:[#allocation4 + $0x70] sm:$0xff] %vm4596, %v4419
    %4605 = vst.msk [vmem:[#allocation4 + $0x80] sm:$0xff] %vm4596, %v4421
    %4606 = vst.msk [vmem:[#allocation4 + $0x90] sm:$0xff] %vm4596, %v4423
    %4607 = vst.msk [vmem:[#allocation4 + $0xa0] sm:$0xff] %vm4596, %v4425
    %4608 = vst.msk [vmem:[#allocation4 + $0xb0] sm:$0xff] %vm4596, %v4427
    %4609 = vst.msk [vmem:[#allocation4 + $0xc0] sm:$0xff] %vm4596, %v4429
    %4610 = vst.msk [vmem:[#allocation4 + $0xd0] sm:$0xff] %vm4596, %v4431
    %4611 = vst.msk [vmem:[#allocation4 + $0xe0] sm:$0xff] %vm4596, %v4433
    %4612 = vst.msk [vmem:[#allocation4 + $0xf0] sm:$0xff] %vm4596, %v4435
    %4613 = vst.msk [vmem:[#allocation4 + $0x100] sm:$0xff] %vm4596, %v4437
    %4614 = vst.msk [vmem:[#allocation4 + $0x110] sm:$0xff] %vm4596, %v4439
    %4615 = vst.msk [vmem:[#allocation4 + $0x120] sm:$0xff] %vm4596, %v4441
    %4616 = vst.msk [vmem:[#allocation4 + $0x130] sm:$0xff] %vm4596, %v4443
    %4617 = vst.msk [vmem:[#allocation4 + $0x140] sm:$0xff] %vm4596, %v4445
    %4618 = vst.msk [vmem:[#allocation4 + $0x150] sm:$0xff] %vm4596, %v4447
    %4619 = vst.msk [vmem:[#allocation4 + $0x160] sm:$0xff] %vm4596, %v4449
    %4620 = vst.msk [vmem:[#allocation4 + $0x170] sm:$0xff] %vm4596, %v4451
    %4621 = vst.msk [vmem:[#allocation4 + $0x180] sm:$0xff] %vm4596, %v4453
    %4622 = vst.msk [vmem:[#allocation4 + $0x190] sm:$0xff] %vm4596, %v4455
    %4623 = vst.msk [vmem:[#allocation4 + $0x1a0] sm:$0xff] %vm4596, %v4457
    %4624 = vst.msk [vmem:[#allocation4 + $0x1b0] sm:$0xff] %vm4596, %v4459
    %4625 = vst.msk [vmem:[#allocation4 + $0x1c0] sm:$0xff] %vm4596, %v4461
    %4626 = vst.msk [vmem:[#allocation4 + $0x1d0] sm:$0xff] %vm4596, %v4463
    %4627 = vst.msk [vmem:[#allocation4 + $0x1e0] sm:$0xff] %vm4596, %v4465
    %4628 = vst.msk [vmem:[#allocation4 + $0x1f0] sm:$0xff] %vm4596, %v4467
    %4629 = vst.msk [vmem:[#allocation4 + $0x200] sm:$0xff] %vm4596, %v4469
    %4630 = vst.msk [vmem:[#allocation4 + $0x210] sm:$0xff] %vm4596, %v4471
    %4631 = vst.msk [vmem:[#allocation4 + $0x220] sm:$0xff] %vm4596, %v4473
    %4632 = vst.msk [vmem:[#allocation4 + $0x230] sm:$0xff] %vm4596, %v4475
    %4633 = vst.msk [vmem:[#allocation4 + $0x240] sm:$0xff] %vm4596, %v4477
    %4634 = vst.msk [vmem:[#allocation4 + $0x250] sm:$0xff] %vm4596, %v4479
    %4635 = vst.msk [vmem:[#allocation4 + $0x260] sm:$0xff] %vm4596, %v4481
    %4636 = vst.msk [vmem:[#allocation4 + $0x270] sm:$0xff] %vm4596, %v4483
    %4637 = vst.msk [vmem:[#allocation4 + $0x280] sm:$0xff] %vm4596, %v4485
    %4638 = vst.msk [vmem:[#allocation4 + $0x290] sm:$0xff] %vm4596, %v4487
    %4639 = vst.msk [vmem:[#allocation4 + $0x2a0] sm:$0xff] %vm4596, %v4489
    %4640 = vst.msk [vmem:[#allocation4 + $0x2b0] sm:$0xff] %vm4596, %v4491
    %4641 = vst.msk [vmem:[#allocation4 + $0x2c0] sm:$0xff] %vm4596, %v4493
    %4642 = vst.msk [vmem:[#allocation4 + $0x2d0] sm:$0xff] %vm4596, %v4495
    %4643 = vst.msk [vmem:[#allocation4 + $0x2e0] sm:$0xff] %vm4596, %v4497
    %4644 = vst.msk [vmem:[#allocation4 + $0x2f0] sm:$0xff] %vm4596, %v4499
    %4645 = vst.msk [vmem:[#allocation4 + $0x300] sm:$0xff] %vm4596, %v4501
    %4646 = vst.msk [vmem:[#allocation4 + $0x310] sm:$0xff] %vm4596, %v4503
    %4647 = vst.msk [vmem:[#allocation4 + $0x320] sm:$0xff] %vm4596, %v4505
    %4648 = vst.msk [vmem:[#allocation4 + $0x330] sm:$0xff] %vm4596, %v4507
    %4649 = vst.msk [vmem:[#allocation4 + $0x340] sm:$0xff] %vm4596, %v4509
    %4650 = vst.msk [vmem:[#allocation4 + $0x350] sm:$0xff] %vm4596, %v4511
    %4651 = vst.msk [vmem:[#allocation4 + $0x360] sm:$0xff] %vm4596, %v4513
    %4652 = vst.msk [vmem:[#allocation4 + $0x370] sm:$0xff] %vm4596, %v4515
    %4653 = vst.msk [vmem:[#allocation4 + $0x380] sm:$0xff] %vm4596, %v4517
    %4654 = vst.msk [vmem:[#allocation4 + $0x390] sm:$0xff] %vm4596, %v4519
    %4655 = vst.msk [vmem:[#allocation4 + $0x3a0] sm:$0xff] %vm4596, %v4521
    %4656 = vst.msk [vmem:[#allocation4 + $0x3b0] sm:$0xff] %vm4596, %v4523
    %4657 = vst.msk [vmem:[#allocation4 + $0x3c0] sm:$0xff] %vm4596, %v4525
    %4658 = vst.msk [vmem:[#allocation4 + $0x3d0] sm:$0xff] %vm4596, %v4527
    %4659 = vst.msk [vmem:[#allocation4 + $0x3e0] sm:$0xff] %vm4596, %v4529
    %4660 = vst.msk [vmem:[#allocation4 + $0x3f0] sm:$0xff] %vm4596, %v4531
    %v4661 = vld [vmem:[#allocation2 + $0x2] sm:$0xff]
    %v4662 = vld [vmem:[#allocation2 + $0xa] sm:$0xff]
    %v4663 = vld [vmem:[#allocation2 + $0x1a] sm:$0xff]
    %v4664 = vld [vmem:[#allocation2 + $0x22] sm:$0xff]
    %v4665 = vld [vmem:[#allocation2 + $0x32] sm:$0xff]
    %v4666 = vld [vmem:[#allocation2 + $0x3a] sm:$0xff]
    %v4667 = vld [vmem:[#allocation2 + $0x4a] sm:$0xff]
    %v4668 = vld [vmem:[#allocation2 + $0x52] sm:$0xff]
    %v4669 = vld [vmem:[#allocation2 + $0x62] sm:$0xff]
    %v4670 = vld [vmem:[#allocation2 + $0x6a] sm:$0xff]
    %v4671 = vld [vmem:[#allocation2 + $0x7a] sm:$0xff]
    %v4672 = vld [vmem:[#allocation2 + $0x82] sm:$0xff]
    %v4673 = vld [vmem:[#allocation2 + $0x92] sm:$0xff]
    %v4674 = vld [vmem:[#allocation2 + $0x9a] sm:$0xff]
    %v4675 = vld [vmem:[#allocation2 + $0xaa] sm:$0xff]
    %v4676 = vld [vmem:[#allocation2 + $0xb2] sm:$0xff]
    %v4677 = vld [vmem:[#allocation2 + $0xc2] sm:$0xff]
    %v4678 = vld [vmem:[#allocation2 + $0xca] sm:$0xff]
    %v4679 = vld [vmem:[#allocation2 + $0xda] sm:$0xff]
    %v4680 = vld [vmem:[#allocation2 + $0xe2] sm:$0xff]
    %v4681 = vld [vmem:[#allocation2 + $0xf2] sm:$0xff]
    %v4682 = vld [vmem:[#allocation2 + $0xfa] sm:$0xff]
    %v4683 = vld [vmem:[#allocation2 + $0x10a] sm:$0xff]
    %v4684 = vld [vmem:[#allocation2 + $0x112] sm:$0xff]
    %v4685 = vld [vmem:[#allocation2 + $0x122] sm:$0xff]
    %v4686 = vld [vmem:[#allocation2 + $0x12a] sm:$0xff]
    %v4687 = vld [vmem:[#allocation2 + $0x13a] sm:$0xff]
    %v4688 = vld [vmem:[#allocation2 + $0x142] sm:$0xff]
    %v4689 = vld [vmem:[#allocation2 + $0x152] sm:$0xff]
    %v4690 = vld [vmem:[#allocation2 + $0x15a] sm:$0xff]
    %v4691 = vld [vmem:[#allocation2 + $0x16a] sm:$0xff]
    %v4692 = vld [vmem:[#allocation2 + $0x172] sm:$0xff]
    %v4693 = vld [vmem:[#allocation2 + $0x1b2] sm:$0xff]
    %v4694 = vld [vmem:[#allocation2 + $0x1ba] sm:$0xff]
    %v4695 = vld [vmem:[#allocation2 + $0x1ca] sm:$0xff]
    %v4696 = vld [vmem:[#allocation2 + $0x1d2] sm:$0xff]
    %v4697 = vld [vmem:[#allocation2 + $0x1e2] sm:$0xff]
    %v4698 = vld [vmem:[#allocation2 + $0x1ea] sm:$0xff]
    %v4699 = vld [vmem:[#allocation2 + $0x1fa] sm:$0xff]
    %v4700 = vld [vmem:[#allocation2 + $0x202] sm:$0xff]
    %v4701 = vld [vmem:[#allocation2 + $0x212] sm:$0xff]
    %v4702 = vld [vmem:[#allocation2 + $0x21a] sm:$0xff]
    %v4703 = vld [vmem:[#allocation2 + $0x22a] sm:$0xff]
    %v4704 = vld [vmem:[#allocation2 + $0x232] sm:$0xff]
    %v4705 = vld [vmem:[#allocation2 + $0x242] sm:$0xff]
    %v4706 = vld [vmem:[#allocation2 + $0x24a] sm:$0xff]
    %v4707 = vld [vmem:[#allocation2 + $0x25a] sm:$0xff]
    %v4708 = vld [vmem:[#allocation2 + $0x262] sm:$0xff]
    %v4709 = vld [vmem:[#allocation2 + $0x272] sm:$0xff]
    %v4710 = vld [vmem:[#allocation2 + $0x27a] sm:$0xff]
    %v4711 = vld [vmem:[#allocation2 + $0x28a] sm:$0xff]
    %v4712 = vld [vmem:[#allocation2 + $0x292] sm:$0xff]
    %v4713 = vld [vmem:[#allocation2 + $0x2a2] sm:$0xff]
    %v4714 = vld [vmem:[#allocation2 + $0x2aa] sm:$0xff]
    %v4715 = vld [vmem:[#allocation2 + $0x2ba] sm:$0xff]
    %v4716 = vld [vmem:[#allocation2 + $0x2c2] sm:$0xff]
    %v4717 = vld [vmem:[#allocation2 + $0x2d2] sm:$0xff]
    %v4718 = vld [vmem:[#allocation2 + $0x2da] sm:$0xff]
    %v4719 = vld [vmem:[#allocation2 + $0x2ea] sm:$0xff]
    %v4720 = vld [vmem:[#allocation2 + $0x2f2] sm:$0xff]
    %v4721 = vld [vmem:[#allocation2 + $0x302] sm:$0xff]
    %v4722 = vld [vmem:[#allocation2 + $0x30a] sm:$0xff]
    %v4723 = vld [vmem:[#allocation2 + $0x31a] sm:$0xff]
    %v4724 = vld [vmem:[#allocation2 + $0x322] sm:$0xff]
    %4789 = vrot.lane.b32.xlu0 %v4661, 16
    %v4790 = vpop.permute.xlu0 %4789
    %4791 = vrot.lane.b32.xlu0 %v4662, 16
    %v4792 = vpop.permute.xlu0 %4791
    %4793 = vrot.lane.b32.xlu0 %v4663, 16
    %v4794 = vpop.permute.xlu0 %4793
    %4795 = vrot.lane.b32.xlu0 %v4664, 16
    %v4796 = vpop.permute.xlu0 %4795
    %4797 = vrot.lane.b32.xlu0 %v4665, 16
    %v4798 = vpop.permute.xlu0 %4797
    %4799 = vrot.lane.b32.xlu0 %v4666, 16
    %v4800 = vpop.permute.xlu0 %4799
    %4801 = vrot.lane.b32.xlu0 %v4667, 16
    %v4802 = vpop.permute.xlu0 %4801
    %4803 = vrot.lane.b32.xlu0 %v4668, 16
    %v4804 = vpop.permute.xlu0 %4803
    %4805 = vrot.lane.b32.xlu0 %v4669, 16
    %v4806 = vpop.permute.xlu0 %4805
    %4807 = vrot.lane.b32.xlu0 %v4670, 16
    %v4808 = vpop.permute.xlu0 %4807
    %4809 = vrot.lane.b32.xlu0 %v4671, 16
    %v4810 = vpop.permute.xlu0 %4809
    %4811 = vrot.lane.b32.xlu0 %v4672, 16
    %v4812 = vpop.permute.xlu0 %4811
    %4813 = vrot.lane.b32.xlu0 %v4673, 16
    %v4814 = vpop.permute.xlu0 %4813
    %4815 = vrot.lane.b32.xlu0 %v4674, 16
    %v4816 = vpop.permute.xlu0 %4815
    %4817 = vrot.lane.b32.xlu0 %v4675, 16
    %v4818 = vpop.permute.xlu0 %4817
    %4819 = vrot.lane.b32.xlu0 %v4676, 16
    %v4820 = vpop.permute.xlu0 %4819
    %4821 = vrot.lane.b32.xlu0 %v4677, 16
    %v4822 = vpop.permute.xlu0 %4821
    %4823 = vrot.lane.b32.xlu0 %v4678, 16
    %v4824 = vpop.permute.xlu0 %4823
    %4825 = vrot.lane.b32.xlu0 %v4679, 16
    %v4826 = vpop.permute.xlu0 %4825
    %4827 = vrot.lane.b32.xlu0 %v4680, 16
    %v4828 = vpop.permute.xlu0 %4827
    %4829 = vrot.lane.b32.xlu0 %v4681, 16
    %v4830 = vpop.permute.xlu0 %4829
    %4831 = vrot.lane.b32.xlu0 %v4682, 16
    %v4832 = vpop.permute.xlu0 %4831
    %4833 = vrot.lane.b32.xlu0 %v4683, 16
    %v4834 = vpop.permute.xlu0 %4833
    %4835 = vrot.lane.b32.xlu0 %v4684, 16
    %v4836 = vpop.permute.xlu0 %4835
    %4837 = vrot.lane.b32.xlu0 %v4685, 16
    %v4838 = vpop.permute.xlu0 %4837
    %4839 = vrot.lane.b32.xlu0 %v4686, 16
    %v4840 = vpop.permute.xlu0 %4839
    %4841 = vrot.lane.b32.xlu0 %v4687, 16
    %v4842 = vpop.permute.xlu0 %4841
    %4843 = vrot.lane.b32.xlu0 %v4688, 16
    %v4844 = vpop.permute.xlu0 %4843
    %4845 = vrot.lane.b32.xlu0 %v4689, 16
    %v4846 = vpop.permute.xlu0 %4845
    %4847 = vrot.lane.b32.xlu0 %v4690, 16
    %v4848 = vpop.permute.xlu0 %4847
    %4849 = vrot.lane.b32.xlu0 %v4691, 16
    %v4850 = vpop.permute.xlu0 %4849
    %4851 = vrot.lane.b32.xlu0 %v4692, 16
    %v4852 = vpop.permute.xlu0 %4851
    %4853 = vrot.lane.b32.xlu0 %v4693, 16
    %v4854 = vpop.permute.xlu0 %4853
    %4855 = vrot.lane.b32.xlu0 %v4694, 16
    %v4856 = vpop.permute.xlu0 %4855
    %4857 = vrot.lane.b32.xlu0 %v4695, 16
    %v4858 = vpop.permute.xlu0 %4857
    %4859 = vrot.lane.b32.xlu0 %v4696, 16
    %v4860 = vpop.permute.xlu0 %4859
    %4861 = vrot.lane.b32.xlu0 %v4697, 16
    %v4862 = vpop.permute.xlu0 %4861
    %4863 = vrot.lane.b32.xlu0 %v4698, 16
    %v4864 = vpop.permute.xlu0 %4863
    %4865 = vrot.lane.b32.xlu0 %v4699, 16
    %v4866 = vpop.permute.xlu0 %4865
    %4867 = vrot.lane.b32.xlu0 %v4700, 16
    %v4868 = vpop.permute.xlu0 %4867
    %4869 = vrot.lane.b32.xlu0 %v4701, 16
    %v4870 = vpop.permute.xlu0 %4869
    %4871 = vrot.lane.b32.xlu0 %v4702, 16
    %v4872 = vpop.permute.xlu0 %4871
    %4873 = vrot.lane.b32.xlu0 %v4703, 16
    %v4874 = vpop.permute.xlu0 %4873
    %4875 = vrot.lane.b32.xlu0 %v4704, 16
    %v4876 = vpop.permute.xlu0 %4875
    %4877 = vrot.lane.b32.xlu0 %v4705, 16
    %v4878 = vpop.permute.xlu0 %4877
    %4879 = vrot.lane.b32.xlu0 %v4706, 16
    %v4880 = vpop.permute.xlu0 %4879
    %4881 = vrot.lane.b32.xlu0 %v4707, 16
    %v4882 = vpop.permute.xlu0 %4881
    %4883 = vrot.lane.b32.xlu0 %v4708, 16
    %v4884 = vpop.permute.xlu0 %4883
    %4885 = vrot.lane.b32.xlu0 %v4709, 16
    %v4886 = vpop.permute.xlu0 %4885
    %4887 = vrot.lane.b32.xlu0 %v4710, 16
    %v4888 = vpop.permute.xlu0 %4887
    %4889 = vrot.lane.b32.xlu0 %v4711, 16
    %v4890 = vpop.permute.xlu0 %4889
    %4891 = vrot.lane.b32.xlu0 %v4712, 16
    %v4892 = vpop.permute.xlu0 %4891
    %4893 = vrot.lane.b32.xlu0 %v4713, 16
    %v4894 = vpop.permute.xlu0 %4893
    %4895 = vrot.lane.b32.xlu0 %v4714, 16
    %v4896 = vpop.permute.xlu0 %4895
    %4897 = vrot.lane.b32.xlu0 %v4715, 16
    %v4898 = vpop.permute.xlu0 %4897
    %4899 = vrot.lane.b32.xlu0 %v4716, 16
    %v4900 = vpop.permute.xlu0 %4899
    %4901 = vrot.lane.b32.xlu0 %v4717, 16
    %v4902 = vpop.permute.xlu0 %4901
    %4903 = vrot.lane.b32.xlu0 %v4718, 16
    %v4904 = vpop.permute.xlu0 %4903
    %4905 = vrot.lane.b32.xlu0 %v4719, 16
    %v4906 = vpop.permute.xlu0 %4905
    %4907 = vrot.lane.b32.xlu0 %v4720, 16
    %v4908 = vpop.permute.xlu0 %4907
    %4909 = vrot.lane.b32.xlu0 %v4721, 16
    %v4910 = vpop.permute.xlu0 %4909
    %4911 = vrot.lane.b32.xlu0 %v4722, 16
    %v4912 = vpop.permute.xlu0 %4911
    %4913 = vrot.lane.b32.xlu0 %v4723, 16
    %v4914 = vpop.permute.xlu0 %4913
    %4915 = vrot.lane.b32.xlu0 %v4724, 16
    %v4916 = vpop.permute.xlu0 %4915
    %vm4981 = vcmask 195712
    %4982 = vst.msk [vmem:[#allocation4] sm:$0xff] %vm4981, %v4790
    %4983 = vst.msk [vmem:[#allocation4 + $0x10] sm:$0xff] %vm4981, %v4792
    %4984 = vst.msk [vmem:[#allocation4 + $0x20] sm:$0xff] %vm4981, %v4794
    %4985 = vst.msk [vmem:[#allocation4 + $0x30] sm:$0xff] %vm4981, %v4796
    %4986 = vst.msk [vmem:[#allocation4 + $0x40] sm:$0xff] %vm4981, %v4798
    %4987 = vst.msk [vmem:[#allocation4 + $0x50] sm:$0xff] %vm4981, %v4800
    %4988 = vst.msk [vmem:[#allocation4 + $0x60] sm:$0xff] %vm4981, %v4802
    %4989 = vst.msk [vmem:[#allocation4 + $0x70] sm:$0xff] %vm4981, %v4804
    %4990 = vst.msk [vmem:[#allocation4 + $0x80] sm:$0xff] %vm4981, %v4806
    %4991 = vst.msk [vmem:[#allocation4 + $0x90] sm:$0xff] %vm4981, %v4808
    %4992 = vst.msk [vmem:[#allocation4 + $0xa0] sm:$0xff] %vm4981, %v4810
    %4993 = vst.msk [vmem:[#allocation4 + $0xb0] sm:$0xff] %vm4981, %v4812
    %4994 = vst.msk [vmem:[#allocation4 + $0xc0] sm:$0xff] %vm4981, %v4814
    %4995 = vst.msk [vmem:[#allocation4 + $0xd0] sm:$0xff] %vm4981, %v4816
    %4996 = vst.msk [vmem:[#allocation4 + $0xe0] sm:$0xff] %vm4981, %v4818
    %4997 = vst.msk [vmem:[#allocation4 + $0xf0] sm:$0xff] %vm4981, %v4820
    %4998 = vst.msk [vmem:[#allocation4 + $0x100] sm:$0xff] %vm4981, %v4822
    %4999 = vst.msk [vmem:[#allocation4 + $0x110] sm:$0xff] %vm4981, %v4824
    %5000 = vst.msk [vmem:[#allocation4 + $0x120] sm:$0xff] %vm4981, %v4826
    %5001 = vst.msk [vmem:[#allocation4 + $0x130] sm:$0xff] %vm4981, %v4828
    %5002 = vst.msk [vmem:[#allocation4 + $0x140] sm:$0xff] %vm4981, %v4830
    %5003 = vst.msk [vmem:[#allocation4 + $0x150] sm:$0xff] %vm4981, %v4832
    %5004 = vst.msk [vmem:[#allocation4 + $0x160] sm:$0xff] %vm4981, %v4834
    %5005 = vst.msk [vmem:[#allocation4 + $0x170] sm:$0xff] %vm4981, %v4836
    %5006 = vst.msk [vmem:[#allocation4 + $0x180] sm:$0xff] %vm4981, %v4838
    %5007 = vst.msk [vmem:[#allocation4 + $0x190] sm:$0xff] %vm4981, %v4840
    %5008 = vst.msk [vmem:[#allocation4 + $0x1a0] sm:$0xff] %vm4981, %v4842
    %5009 = vst.msk [vmem:[#allocation4 + $0x1b0] sm:$0xff] %vm4981, %v4844
    %5010 = vst.msk [vmem:[#allocation4 + $0x1c0] sm:$0xff] %vm4981, %v4846
    %5011 = vst.msk [vmem:[#allocation4 + $0x1d0] sm:$0xff] %vm4981, %v4848
    %5012 = vst.msk [vmem:[#allocation4 + $0x1e0] sm:$0xff] %vm4981, %v4850
    %5013 = vst.msk [vmem:[#allocation4 + $0x1f0] sm:$0xff] %vm4981, %v4852
    %5014 = vst.msk [vmem:[#allocation4 + $0x200] sm:$0xff] %vm4981, %v4854
    %5015 = vst.msk [vmem:[#allocation4 + $0x210] sm:$0xff] %vm4981, %v4856
    %5016 = vst.msk [vmem:[#allocation4 + $0x220] sm:$0xff] %vm4981, %v4858
    %5017 = vst.msk [vmem:[#allocation4 + $0x230] sm:$0xff] %vm4981, %v4860
    %5018 = vst.msk [vmem:[#allocation4 + $0x240] sm:$0xff] %vm4981, %v4862
    %5019 = vst.msk [vmem:[#allocation4 + $0x250] sm:$0xff] %vm4981, %v4864
    %5020 = vst.msk [vmem:[#allocation4 + $0x260] sm:$0xff] %vm4981, %v4866
    %5021 = vst.msk [vmem:[#allocation4 + $0x270] sm:$0xff] %vm4981, %v4868
    %5022 = vst.msk [vmem:[#allocation4 + $0x280] sm:$0xff] %vm4981, %v4870
    %5023 = vst.msk [vmem:[#allocation4 + $0x290] sm:$0xff] %vm4981, %v4872
    %5024 = vst.msk [vmem:[#allocation4 + $0x2a0] sm:$0xff] %vm4981, %v4874
    %5025 = vst.msk [vmem:[#allocation4 + $0x2b0] sm:$0xff] %vm4981, %v4876
    %5026 = vst.msk [vmem:[#allocation4 + $0x2c0] sm:$0xff] %vm4981, %v4878
    %5027 = vst.msk [vmem:[#allocation4 + $0x2d0] sm:$0xff] %vm4981, %v4880
    %5028 = vst.msk [vmem:[#allocation4 + $0x2e0] sm:$0xff] %vm4981, %v4882
    %5029 = vst.msk [vmem:[#allocation4 + $0x2f0] sm:$0xff] %vm4981, %v4884
    %5030 = vst.msk [vmem:[#allocation4 + $0x300] sm:$0xff] %vm4981, %v4886
    %5031 = vst.msk [vmem:[#allocation4 + $0x310] sm:$0xff] %vm4981, %v4888
    %5032 = vst.msk [vmem:[#allocation4 + $0x320] sm:$0xff] %vm4981, %v4890
    %5033 = vst.msk [vmem:[#allocation4 + $0x330] sm:$0xff] %vm4981, %v4892
    %5034 = vst.msk [vmem:[#allocation4 + $0x340] sm:$0xff] %vm4981, %v4894
    %5035 = vst.msk [vmem:[#allocation4 + $0x350] sm:$0xff] %vm4981, %v4896
    %5036 = vst.msk [vmem:[#allocation4 + $0x360] sm:$0xff] %vm4981, %v4898
    %5037 = vst.msk [vmem:[#allocation4 + $0x370] sm:$0xff] %vm4981, %v4900
    %5038 = vst.msk [vmem:[#allocation4 + $0x380] sm:$0xff] %vm4981, %v4902
    %5039 = vst.msk [vmem:[#allocation4 + $0x390] sm:$0xff] %vm4981, %v4904
    %5040 = vst.msk [vmem:[#allocation4 + $0x3a0] sm:$0xff] %vm4981, %v4906
    %5041 = vst.msk [vmem:[#allocation4 + $0x3b0] sm:$0xff] %vm4981, %v4908
    %5042 = vst.msk [vmem:[#allocation4 + $0x3c0] sm:$0xff] %vm4981, %v4910
    %5043 = vst.msk [vmem:[#allocation4 + $0x3d0] sm:$0xff] %vm4981, %v4912
    %5044 = vst.msk [vmem:[#allocation4 + $0x3e0] sm:$0xff] %vm4981, %v4914
    %5045 = vst.msk [vmem:[#allocation4 + $0x3f0] sm:$0xff] %vm4981, %v4916
    %v5046 = vld [vmem:[%s267] sm:$0xff]
    %v5047 = vld [vmem:[%s267 + $0x8] sm:$0xff]
    %v5048 = vld [vmem:[%s267 + $0x18] sm:$0xff]
    %v5049 = vld [vmem:[%s267 + $0x20] sm:$0xff]
    %v5050 = vld [vmem:[%s267 + $0x30] sm:$0xff]
    %v5051 = vld [vmem:[%s267 + $0x38] sm:$0xff]
    %v5052 = vld [vmem:[%s267 + $0x48] sm:$0xff]
    %v5053 = vld [vmem:[%s267 + $0x50] sm:$0xff]
    %v5054 = vld [vmem:[%s267 + $0x60] sm:$0xff]
    %v5055 = vld [vmem:[%s267 + $0x68] sm:$0xff]
    %v5056 = vld [vmem:[%s267 + $0x78] sm:$0xff]
    %v5057 = vld [vmem:[%s267 + $0x80] sm:$0xff]
    %v5058 = vld [vmem:[%s267 + $0x90] sm:$0xff]
    %v5059 = vld [vmem:[%s267 + $0x98] sm:$0xff]
    %v5060 = vld [vmem:[%s267 + $0xa8] sm:$0xff]
    %v5061 = vld [vmem:[%s267 + $0xb0] sm:$0xff]
    %v5062 = vld [vmem:[%s267 + $0xc0] sm:$0xff]
    %v5063 = vld [vmem:[%s267 + $0xc8] sm:$0xff]
    %v5064 = vld [vmem:[%s267 + $0xd8] sm:$0xff]
    %v5065 = vld [vmem:[%s267 + $0xe0] sm:$0xff]
    %v5066 = vld [vmem:[%s267 + $0xf0] sm:$0xff]
    %v5067 = vld [vmem:[%s267 + $0xf8] sm:$0xff]
    %v5068 = vld [vmem:[%s267 + $0x108] sm:$0xff]
    %v5069 = vld [vmem:[%s267 + $0x110] sm:$0xff]
    %v5070 = vld [vmem:[%s267 + $0x120] sm:$0xff]
    %v5071 = vld [vmem:[%s267 + $0x128] sm:$0xff]
    %v5072 = vld [vmem:[%s267 + $0x138] sm:$0xff]
    %v5073 = vld [vmem:[%s267 + $0x140] sm:$0xff]
    %v5074 = vld [vmem:[%s267 + $0x150] sm:$0xff]
    %v5075 = vld [vmem:[%s267 + $0x158] sm:$0xff]
    %v5076 = vld [vmem:[%s267 + $0x168] sm:$0xff]
    %v5077 = vld [vmem:[%s267 + $0x170] sm:$0xff]
    %v5078 = vld [vmem:[%s267 + $0x1b0] sm:$0xff]
    %v5079 = vld [vmem:[%s267 + $0x1b8] sm:$0xff]
    %v5080 = vld [vmem:[%s267 + $0x1c8] sm:$0xff]
    %v5081 = vld [vmem:[%s267 + $0x1d0] sm:$0xff]
    %v5082 = vld [vmem:[%s267 + $0x1e0] sm:$0xff]
    %v5083 = vld [vmem:[%s267 + $0x1e8] sm:$0xff]
    %v5084 = vld [vmem:[%s267 + $0x1f8] sm:$0xff]
    %v5085 = vld [vmem:[%s267 + $0x200] sm:$0xff]
    %v5086 = vld [vmem:[%s267 + $0x210] sm:$0xff]
    %v5087 = vld [vmem:[%s267 + $0x218] sm:$0xff]
    %v5088 = vld [vmem:[%s267 + $0x228] sm:$0xff]
    %v5089 = vld [vmem:[%s267 + $0x230] sm:$0xff]
    %v5090 = vld [vmem:[%s267 + $0x240] sm:$0xff]
    %v5091 = vld [vmem:[%s267 + $0x248] sm:$0xff]
    %v5092 = vld [vmem:[%s267 + $0x258] sm:$0xff]
    %v5093 = vld [vmem:[%s267 + $0x260] sm:$0xff]
    %v5094 = vld [vmem:[%s267 + $0x270] sm:$0xff]
    %v5095 = vld [vmem:[%s267 + $0x278] sm:$0xff]
    %v5096 = vld [vmem:[%s267 + $0x288] sm:$0xff]
    %v5097 = vld [vmem:[%s267 + $0x290] sm:$0xff]
    %v5098 = vld [vmem:[%s267 + $0x2a0] sm:$0xff]
    %v5099 = vld [vmem:[%s267 + $0x2a8] sm:$0xff]
    %v5100 = vld [vmem:[%s267 + $0x2b8] sm:$0xff]
    %v5101 = vld [vmem:[%s267 + $0x2c0] sm:$0xff]
    %v5102 = vld [vmem:[%s267 + $0x2d0] sm:$0xff]
    %v5103 = vld [vmem:[%s267 + $0x2d8] sm:$0xff]
    %v5104 = vld [vmem:[%s267 + $0x2e8] sm:$0xff]
    %v5105 = vld [vmem:[%s267 + $0x2f0] sm:$0xff]
    %v5106 = vld [vmem:[%s267 + $0x300] sm:$0xff]
    %v5107 = vld [vmem:[%s267 + $0x308] sm:$0xff]
    %v5108 = vld [vmem:[%s267 + $0x318] sm:$0xff]
    %v5109 = vld [vmem:[%s267 + $0x320] sm:$0xff]
    %5174 = vrot.lane.b32.xlu0 %v5046, 24
    %v5175 = vpop.permute.xlu0 %5174
    %5176 = vrot.lane.b32.xlu0 %v5047, 24
    %v5177 = vpop.permute.xlu0 %5176
    %5178 = vrot.lane.b32.xlu0 %v5048, 24
    %v5179 = vpop.permute.xlu0 %5178
    %5180 = vrot.lane.b32.xlu0 %v5049, 24
    %v5181 = vpop.permute.xlu0 %5180
    %5182 = vrot.lane.b32.xlu0 %v5050, 24
    %v5183 = vpop.permute.xlu0 %5182
    %5184 = vrot.lane.b32.xlu0 %v5051, 24
    %v5185 = vpop.permute.xlu0 %5184
    %5186 = vrot.lane.b32.xlu0 %v5052, 24
    %v5187 = vpop.permute.xlu0 %5186
    %5188 = vrot.lane.b32.xlu0 %v5053, 24
    %v5189 = vpop.permute.xlu0 %5188
    %5190 = vrot.lane.b32.xlu0 %v5054, 24
    %v5191 = vpop.permute.xlu0 %5190
    %5192 = vrot.lane.b32.xlu0 %v5055, 24
    %v5193 = vpop.permute.xlu0 %5192
    %5194 = vrot.lane.b32.xlu0 %v5056, 24
    %v5195 = vpop.permute.xlu0 %5194
    %5196 = vrot.lane.b32.xlu0 %v5057, 24
    %v5197 = vpop.permute.xlu0 %5196
    %5198 = vrot.lane.b32.xlu0 %v5058, 24
    %v5199 = vpop.permute.xlu0 %5198
    %5200 = vrot.lane.b32.xlu0 %v5059, 24
    %v5201 = vpop.permute.xlu0 %5200
    %5202 = vrot.lane.b32.xlu0 %v5060, 24
    %v5203 = vpop.permute.xlu0 %5202
    %5204 = vrot.lane.b32.xlu0 %v5061, 24
    %v5205 = vpop.permute.xlu0 %5204
    %5206 = vrot.lane.b32.xlu0 %v5062, 24
    %v5207 = vpop.permute.xlu0 %5206
    %5208 = vrot.lane.b32.xlu0 %v5063, 24
    %v5209 = vpop.permute.xlu0 %5208
    %5210 = vrot.lane.b32.xlu0 %v5064, 24
    %v5211 = vpop.permute.xlu0 %5210
    %5212 = vrot.lane.b32.xlu0 %v5065, 24
    %v5213 = vpop.permute.xlu0 %5212
    %5214 = vrot.lane.b32.xlu0 %v5066, 24
    %v5215 = vpop.permute.xlu0 %5214
    %5216 = vrot.lane.b32.xlu0 %v5067, 24
    %v5217 = vpop.permute.xlu0 %5216
    %5218 = vrot.lane.b32.xlu0 %v5068, 24
    %v5219 = vpop.permute.xlu0 %5218
    %5220 = vrot.lane.b32.xlu0 %v5069, 24
    %v5221 = vpop.permute.xlu0 %5220
    %5222 = vrot.lane.b32.xlu0 %v5070, 24
    %v5223 = vpop.permute.xlu0 %5222
    %5224 = vrot.lane.b32.xlu0 %v5071, 24
    %v5225 = vpop.permute.xlu0 %5224
    %5226 = vrot.lane.b32.xlu0 %v5072, 24
    %v5227 = vpop.permute.xlu0 %5226
    %5228 = vrot.lane.b32.xlu0 %v5073, 24
    %v5229 = vpop.permute.xlu0 %5228
    %5230 = vrot.lane.b32.xlu0 %v5074, 24
    %v5231 = vpop.permute.xlu0 %5230
    %5232 = vrot.lane.b32.xlu0 %v5075, 24
    %v5233 = vpop.permute.xlu0 %5232
    %5234 = vrot.lane.b32.xlu0 %v5076, 24
    %v5235 = vpop.permute.xlu0 %5234
    %5236 = vrot.lane.b32.xlu0 %v5077, 24
    %v5237 = vpop.permute.xlu0 %5236
    %5238 = vrot.lane.b32.xlu0 %v5078, 24
    %v5239 = vpop.permute.xlu0 %5238
    %5240 = vrot.lane.b32.xlu0 %v5079, 24
    %v5241 = vpop.permute.xlu0 %5240
    %5242 = vrot.lane.b32.xlu0 %v5080, 24
    %v5243 = vpop.permute.xlu0 %5242
    %5244 = vrot.lane.b32.xlu0 %v5081, 24
    %v5245 = vpop.permute.xlu0 %5244
    %5246 = vrot.lane.b32.xlu0 %v5082, 24
    %v5247 = vpop.permute.xlu0 %5246
    %5248 = vrot.lane.b32.xlu0 %v5083, 24
    %v5249 = vpop.permute.xlu0 %5248
    %5250 = vrot.lane.b32.xlu0 %v5084, 24
    %v5251 = vpop.permute.xlu0 %5250
    %5252 = vrot.lane.b32.xlu0 %v5085, 24
    %v5253 = vpop.permute.xlu0 %5252
    %5254 = vrot.lane.b32.xlu0 %v5086, 24
    %v5255 = vpop.permute.xlu0 %5254
    %5256 = vrot.lane.b32.xlu0 %v5087, 24
    %v5257 = vpop.permute.xlu0 %5256
    %5258 = vrot.lane.b32.xlu0 %v5088, 24
    %v5259 = vpop.permute.xlu0 %5258
    %5260 = vrot.lane.b32.xlu0 %v5089, 24
    %v5261 = vpop.permute.xlu0 %5260
    %5262 = vrot.lane.b32.xlu0 %v5090, 24
    %v5263 = vpop.permute.xlu0 %5262
    %5264 = vrot.lane.b32.xlu0 %v5091, 24
    %v5265 = vpop.permute.xlu0 %5264
    %5266 = vrot.lane.b32.xlu0 %v5092, 24
    %v5267 = vpop.permute.xlu0 %5266
    %5268 = vrot.lane.b32.xlu0 %v5093, 24
    %v5269 = vpop.permute.xlu0 %5268
    %5270 = vrot.lane.b32.xlu0 %v5094, 24
    %v5271 = vpop.permute.xlu0 %5270
    %5272 = vrot.lane.b32.xlu0 %v5095, 24
    %v5273 = vpop.permute.xlu0 %5272
    %5274 = vrot.lane.b32.xlu0 %v5096, 24
    %v5275 = vpop.permute.xlu0 %5274
    %5276 = vrot.lane.b32.xlu0 %v5097, 24
    %v5277 = vpop.permute.xlu0 %5276
    %5278 = vrot.lane.b32.xlu0 %v5098, 24
    %v5279 = vpop.permute.xlu0 %5278
    %5280 = vrot.lane.b32.xlu0 %v5099, 24
    %v5281 = vpop.permute.xlu0 %5280
    %5282 = vrot.lane.b32.xlu0 %v5100, 24
    %v5283 = vpop.permute.xlu0 %5282
    %5284 = vrot.lane.b32.xlu0 %v5101, 24
    %v5285 = vpop.permute.xlu0 %5284
    %5286 = vrot.lane.b32.xlu0 %v5102, 24
    %v5287 = vpop.permute.xlu0 %5286
    %5288 = vrot.lane.b32.xlu0 %v5103, 24
    %v5289 = vpop.permute.xlu0 %5288
    %5290 = vrot.lane.b32.xlu0 %v5104, 24
    %v5291 = vpop.permute.xlu0 %5290
    %5292 = vrot.lane.b32.xlu0 %v5105, 24
    %v5293 = vpop.permute.xlu0 %5292
    %5294 = vrot.lane.b32.xlu0 %v5106, 24
    %v5295 = vpop.permute.xlu0 %5294
    %5296 = vrot.lane.b32.xlu0 %v5107, 24
    %v5297 = vpop.permute.xlu0 %5296
    %5298 = vrot.lane.b32.xlu0 %v5108, 24
    %v5299 = vpop.permute.xlu0 %5298
    %5300 = vrot.lane.b32.xlu0 %v5109, 24
    %v5301 = vpop.permute.xlu0 %5300
    %vm5366 = vcmask 261312
    %5367 = vst.msk [vmem:[#allocation4] sm:$0xff] %vm5366, %v5175
    %5368 = vst.msk [vmem:[#allocation4 + $0x10] sm:$0xff] %vm5366, %v5177
    %5369 = vst.msk [vmem:[#allocation4 + $0x20] sm:$0xff] %vm5366, %v5179
    %5370 = vst.msk [vmem:[#allocation4 + $0x30] sm:$0xff] %vm5366, %v5181
    %5371 = vst.msk [vmem:[#allocation4 + $0x40] sm:$0xff] %vm5366, %v5183
    %5372 = vst.msk [vmem:[#allocation4 + $0x50] sm:$0xff] %vm5366, %v5185
    %5373 = vst.msk [vmem:[#allocation4 + $0x60] sm:$0xff] %vm5366, %v5187
    %5374 = vst.msk [vmem:[#allocation4 + $0x70] sm:$0xff] %vm5366, %v5189
    %5375 = vst.msk [vmem:[#allocation4 + $0x80] sm:$0xff] %vm5366, %v5191
    %5376 = vst.msk [vmem:[#allocation4 + $0x90] sm:$0xff] %vm5366, %v5193
    %5377 = vst.msk [vmem:[#allocation4 + $0xa0] sm:$0xff] %vm5366, %v5195
    %5378 = vst.msk [vmem:[#allocation4 + $0xb0] sm:$0xff] %vm5366, %v5197
    %5379 = vst.msk [vmem:[#allocation4 + $0xc0] sm:$0xff] %vm5366, %v5199
    %5380 = vst.msk [vmem:[#allocation4 + $0xd0] sm:$0xff] %vm5366, %v5201
    %5381 = vst.msk [vmem:[#allocation4 + $0xe0] sm:$0xff] %vm5366, %v5203
    %5382 = vst.msk [vmem:[#allocation4 + $0xf0] sm:$0xff] %vm5366, %v5205
    %5383 = vst.msk [vmem:[#allocation4 + $0x100] sm:$0xff] %vm5366, %v5207
    %5384 = vst.msk [vmem:[#allocation4 + $0x110] sm:$0xff] %vm5366, %v5209
    %5385 = vst.msk [vmem:[#allocation4 + $0x120] sm:$0xff] %vm5366, %v5211
    %5386 = vst.msk [vmem:[#allocation4 + $0x130] sm:$0xff] %vm5366, %v5213
    %5387 = vst.msk [vmem:[#allocation4 + $0x140] sm:$0xff] %vm5366, %v5215
    %5388 = vst.msk [vmem:[#allocation4 + $0x150] sm:$0xff] %vm5366, %v5217
    %5389 = vst.msk [vmem:[#allocation4 + $0x160] sm:$0xff] %vm5366, %v5219
    %5390 = vst.msk [vmem:[#allocation4 + $0x170] sm:$0xff] %vm5366, %v5221
    %5391 = vst.msk [vmem:[#allocation4 + $0x180] sm:$0xff] %vm5366, %v5223
    %5392 = vst.msk [vmem:[#allocation4 + $0x190] sm:$0xff] %vm5366, %v5225
    %5393 = vst.msk [vmem:[#allocation4 + $0x1a0] sm:$0xff] %vm5366, %v5227
    %5394 = vst.msk [vmem:[#allocation4 + $0x1b0] sm:$0xff] %vm5366, %v5229
    %5395 = vst.msk [vmem:[#allocation4 + $0x1c0] sm:$0xff] %vm5366, %v5231
    %5396 = vst.msk [vmem:[#allocation4 + $0x1d0] sm:$0xff] %vm5366, %v5233
    %5397 = vst.msk [vmem:[#allocation4 + $0x1e0] sm:$0xff] %vm5366, %v5235
    %5398 = vst.msk [vmem:[#allocation4 + $0x1f0] sm:$0xff] %vm5366, %v5237
    %5399 = vst.msk [vmem:[#allocation4 + $0x200] sm:$0xff] %vm5366, %v5239
    %5400 = vst.msk [vmem:[#allocation4 + $0x210] sm:$0xff] %vm5366, %v5241
    %5401 = vst.msk [vmem:[#allocation4 + $0x220] sm:$0xff] %vm5366, %v5243
    %5402 = vst.msk [vmem:[#allocation4 + $0x230] sm:$0xff] %vm5366, %v5245
    %5403 = vst.msk [vmem:[#allocation4 + $0x240] sm:$0xff] %vm5366, %v5247
    %5404 = vst.msk [vmem:[#allocation4 + $0x250] sm:$0xff] %vm5366, %v5249
    %5405 = vst.msk [vmem:[#allocation4 + $0x260] sm:$0xff] %vm5366, %v5251
    %5406 = vst.msk [vmem:[#allocation4 + $0x270] sm:$0xff] %vm5366, %v5253
    %5407 = vst.msk [vmem:[#allocation4 + $0x280] sm:$0xff] %vm5366, %v5255
    %5408 = vst.msk [vmem:[#allocation4 + $0x290] sm:$0xff] %vm5366, %v5257
    %5409 = vst.msk [vmem:[#allocation4 + $0x2a0] sm:$0xff] %vm5366, %v5259
    %5410 = vst.msk [vmem:[#allocation4 + $0x2b0] sm:$0xff] %vm5366, %v5261
    %5411 = vst.msk [vmem:[#allocation4 + $0x2c0] sm:$0xff] %vm5366, %v5263
    %5412 = vst.msk [vmem:[#allocation4 + $0x2d0] sm:$0xff] %vm5366, %v5265
    %5413 = vst.msk [vmem:[#allocation4 + $0x2e0] sm:$0xff] %vm5366, %v5267
    %5414 = vst.msk [vmem:[#allocation4 + $0x2f0] sm:$0xff] %vm5366, %v5269
    %5415 = vst.msk [vmem:[#allocation4 + $0x300] sm:$0xff] %vm5366, %v5271
    %5416 = vst.msk [vmem:[#allocation4 + $0x310] sm:$0xff] %vm5366, %v5273
    %5417 = vst.msk [vmem:[#allocation4 + $0x320] sm:$0xff] %vm5366, %v5275
    %5418 = vst.msk [vmem:[#allocation4 + $0x330] sm:$0xff] %vm5366, %v5277
    %5419 = vst.msk [vmem:[#allocation4 + $0x340] sm:$0xff] %vm5366, %v5279
    %5420 = vst.msk [vmem:[#allocation4 + $0x350] sm:$0xff] %vm5366, %v5281
    %5421 = vst.msk [vmem:[#allocation4 + $0x360] sm:$0xff] %vm5366, %v5283
    %5422 = vst.msk [vmem:[#allocation4 + $0x370] sm:$0xff] %vm5366, %v5285
    %5423 = vst.msk [vmem:[#allocation4 + $0x380] sm:$0xff] %vm5366, %v5287
    %5424 = vst.msk [vmem:[#allocation4 + $0x390] sm:$0xff] %vm5366, %v5289
    %5425 = vst.msk [vmem:[#allocation4 + $0x3a0] sm:$0xff] %vm5366, %v5291
    %5426 = vst.msk [vmem:[#allocation4 + $0x3b0] sm:$0xff] %vm5366, %v5293
    %5427 = vst.msk [vmem:[#allocation4 + $0x3c0] sm:$0xff] %vm5366, %v5295
    %5428 = vst.msk [vmem:[#allocation4 + $0x3d0] sm:$0xff] %vm5366, %v5297
    %5429 = vst.msk [vmem:[#allocation4 + $0x3e0] sm:$0xff] %vm5366, %v5299
    %5430 = vst.msk [vmem:[#allocation4 + $0x3f0] sm:$0xff] %vm5366, %v5301
    %v5431 = vld [vmem:[%s267 + $0x1] sm:$0xff]
    %v5432 = vld [vmem:[%s267 + $0x9] sm:$0xff]
    %v5433 = vld [vmem:[%s267 + $0x19] sm:$0xff]
    %v5434 = vld [vmem:[%s267 + $0x21] sm:$0xff]
    %v5435 = vld [vmem:[%s267 + $0x31] sm:$0xff]
    %v5436 = vld [vmem:[%s267 + $0x39] sm:$0xff]
    %v5437 = vld [vmem:[%s267 + $0x49] sm:$0xff]
    %v5438 = vld [vmem:[%s267 + $0x51] sm:$0xff]
    %v5439 = vld [vmem:[%s267 + $0x61] sm:$0xff]
    %v5440 = vld [vmem:[%s267 + $0x69] sm:$0xff]
    %v5441 = vld [vmem:[%s267 + $0x79] sm:$0xff]
    %v5442 = vld [vmem:[%s267 + $0x81] sm:$0xff]
    %v5443 = vld [vmem:[%s267 + $0x91] sm:$0xff]
    %v5444 = vld [vmem:[%s267 + $0x99] sm:$0xff]
    %v5445 = vld [vmem:[%s267 + $0xa9] sm:$0xff]
    %v5446 = vld [vmem:[%s267 + $0xb1] sm:$0xff]
    %v5447 = vld [vmem:[%s267 + $0xc1] sm:$0xff]
    %v5448 = vld [vmem:[%s267 + $0xc9] sm:$0xff]
    %v5449 = vld [vmem:[%s267 + $0xd9] sm:$0xff]
    %v5450 = vld [vmem:[%s267 + $0xe1] sm:$0xff]
    %v5451 = vld [vmem:[%s267 + $0xf1] sm:$0xff]
    %v5452 = vld [vmem:[%s267 + $0xf9] sm:$0xff]
    %v5453 = vld [vmem:[%s267 + $0x109] sm:$0xff]
    %v5454 = vld [vmem:[%s267 + $0x111] sm:$0xff]
    %v5455 = vld [vmem:[%s267 + $0x121] sm:$0xff]
    %v5456 = vld [vmem:[%s267 + $0x129] sm:$0xff]
    %v5457 = vld [vmem:[%s267 + $0x139] sm:$0xff]
    %v5458 = vld [vmem:[%s267 + $0x141] sm:$0xff]
    %v5459 = vld [vmem:[%s267 + $0x151] sm:$0xff]
    %v5460 = vld [vmem:[%s267 + $0x159] sm:$0xff]
    %v5461 = vld [vmem:[%s267 + $0x169] sm:$0xff]
    %v5462 = vld [vmem:[%s267 + $0x171] sm:$0xff]
    %v5463 = vld [vmem:[%s267 + $0x1b1] sm:$0xff]
    %v5464 = vld [vmem:[%s267 + $0x1b9] sm:$0xff]
    %v5465 = vld [vmem:[%s267 + $0x1c9] sm:$0xff]
    %v5466 = vld [vmem:[%s267 + $0x1d1] sm:$0xff]
    %v5467 = vld [vmem:[%s267 + $0x1e1] sm:$0xff]
    %v5468 = vld [vmem:[%s267 + $0x1e9] sm:$0xff]
    %v5469 = vld [vmem:[%s267 + $0x1f9] sm:$0xff]
    %v5470 = vld [vmem:[%s267 + $0x201] sm:$0xff]
    %v5471 = vld [vmem:[%s267 + $0x211] sm:$0xff]
    %v5472 = vld [vmem:[%s267 + $0x219] sm:$0xff]
    %v5473 = vld [vmem:[%s267 + $0x229] sm:$0xff]
    %v5474 = vld [vmem:[%s267 + $0x231] sm:$0xff]
    %v5475 = vld [vmem:[%s267 + $0x241] sm:$0xff]
    %v5476 = vld [vmem:[%s267 + $0x249] sm:$0xff]
    %v5477 = vld [vmem:[%s267 + $0x259] sm:$0xff]
    %v5478 = vld [vmem:[%s267 + $0x261] sm:$0xff]
    %v5479 = vld [vmem:[%s267 + $0x271] sm:$0xff]
    %v5480 = vld [vmem:[%s267 + $0x279] sm:$0xff]
    %v5481 = vld [vmem:[%s267 + $0x289] sm:$0xff]
    %v5482 = vld [vmem:[%s267 + $0x291] sm:$0xff]
    %v5483 = vld [vmem:[%s267 + $0x2a1] sm:$0xff]
    %v5484 = vld [vmem:[%s267 + $0x2a9] sm:$0xff]
    %v5485 = vld [vmem:[%s267 + $0x2b9] sm:$0xff]
    %v5486 = vld [vmem:[%s267 + $0x2c1] sm:$0xff]
    %v5487 = vld [vmem:[%s267 + $0x2d1] sm:$0xff]
    %v5488 = vld [vmem:[%s267 + $0x2d9] sm:$0xff]
    %v5489 = vld [vmem:[%s267 + $0x2e9] sm:$0xff]
    %v5490 = vld [vmem:[%s267 + $0x2f1] sm:$0xff]
    %v5491 = vld [vmem:[%s267 + $0x301] sm:$0xff]
    %v5492 = vld [vmem:[%s267 + $0x309] sm:$0xff]
    %v5493 = vld [vmem:[%s267 + $0x319] sm:$0xff]
    %v5494 = vld [vmem:[%s267 + $0x321] sm:$0xff]
    %5559 = vrot.lane.b32.xlu0 %v5431, 32
    %v5560 = vpop.permute.xlu0 %5559
    %5561 = vrot.lane.b32.xlu0 %v5432, 32
    %v5562 = vpop.permute.xlu0 %5561
    %5563 = vrot.lane.b32.xlu0 %v5433, 32
    %v5564 = vpop.permute.xlu0 %5563
    %5565 = vrot.lane.b32.xlu0 %v5434, 32
    %v5566 = vpop.permute.xlu0 %5565
    %5567 = vrot.lane.b32.xlu0 %v5435, 32
    %v5568 = vpop.permute.xlu0 %5567
    %5569 = vrot.lane.b32.xlu0 %v5436, 32
    %v5570 = vpop.permute.xlu0 %5569
    %5571 = vrot.lane.b32.xlu0 %v5437, 32
    %v5572 = vpop.permute.xlu0 %5571
    %5573 = vrot.lane.b32.xlu0 %v5438, 32
    %v5574 = vpop.permute.xlu0 %5573
    %5575 = vrot.lane.b32.xlu0 %v5439, 32
    %v5576 = vpop.permute.xlu0 %5575
    %5577 = vrot.lane.b32.xlu0 %v5440, 32
    %v5578 = vpop.permute.xlu0 %5577
    %5579 = vrot.lane.b32.xlu0 %v5441, 32
    %v5580 = vpop.permute.xlu0 %5579
    %5581 = vrot.lane.b32.xlu0 %v5442, 32
    %v5582 = vpop.permute.xlu0 %5581
    %5583 = vrot.lane.b32.xlu0 %v5443, 32
    %v5584 = vpop.permute.xlu0 %5583
    %5585 = vrot.lane.b32.xlu0 %v5444, 32
    %v5586 = vpop.permute.xlu0 %5585
    %5587 = vrot.lane.b32.xlu0 %v5445, 32
    %v5588 = vpop.permute.xlu0 %5587
    %5589 = vrot.lane.b32.xlu0 %v5446, 32
    %v5590 = vpop.permute.xlu0 %5589
    %5591 = vrot.lane.b32.xlu0 %v5447, 32
    %v5592 = vpop.permute.xlu0 %5591
    %5593 = vrot.lane.b32.xlu0 %v5448, 32
    %v5594 = vpop.permute.xlu0 %5593
    %5595 = vrot.lane.b32.xlu0 %v5449, 32
    %v5596 = vpop.permute.xlu0 %5595
    %5597 = vrot.lane.b32.xlu0 %v5450, 32
    %v5598 = vpop.permute.xlu0 %5597
    %5599 = vrot.lane.b32.xlu0 %v5451, 32
    %v5600 = vpop.permute.xlu0 %5599
    %5601 = vrot.lane.b32.xlu0 %v5452, 32
    %v5602 = vpop.permute.xlu0 %5601
    %5603 = vrot.lane.b32.xlu0 %v5453, 32
    %v5604 = vpop.permute.xlu0 %5603
    %5605 = vrot.lane.b32.xlu0 %v5454, 32
    %v5606 = vpop.permute.xlu0 %5605
    %5607 = vrot.lane.b32.xlu0 %v5455, 32
    %v5608 = vpop.permute.xlu0 %5607
    %5609 = vrot.lane.b32.xlu0 %v5456, 32
    %v5610 = vpop.permute.xlu0 %5609
    %5611 = vrot.lane.b32.xlu0 %v5457, 32
    %v5612 = vpop.permute.xlu0 %5611
    %5613 = vrot.lane.b32.xlu0 %v5458, 32
    %v5614 = vpop.permute.xlu0 %5613
    %5615 = vrot.lane.b32.xlu0 %v5459, 32
    %v5616 = vpop.permute.xlu0 %5615
    %5617 = vrot.lane.b32.xlu0 %v5460, 32
    %v5618 = vpop.permute.xlu0 %5617
    %5619 = vrot.lane.b32.xlu0 %v5461, 32
    %v5620 = vpop.permute.xlu0 %5619
    %5621 = vrot.lane.b32.xlu0 %v5462, 32
    %v5622 = vpop.permute.xlu0 %5621
    %5623 = vrot.lane.b32.xlu0 %v5463, 32
    %v5624 = vpop.permute.xlu0 %5623
    %5625 = vrot.lane.b32.xlu0 %v5464, 32
    %v5626 = vpop.permute.xlu0 %5625
    %5627 = vrot.lane.b32.xlu0 %v5465, 32
    %v5628 = vpop.permute.xlu0 %5627
    %5629 = vrot.lane.b32.xlu0 %v5466, 32
    %v5630 = vpop.permute.xlu0 %5629
    %5631 = vrot.lane.b32.xlu0 %v5467, 32
    %v5632 = vpop.permute.xlu0 %5631
    %5633 = vrot.lane.b32.xlu0 %v5468, 32
    %v5634 = vpop.permute.xlu0 %5633
    %5635 = vrot.lane.b32.xlu0 %v5469, 32
    %v5636 = vpop.permute.xlu0 %5635
    %5637 = vrot.lane.b32.xlu0 %v5470, 32
    %v5638 = vpop.permute.xlu0 %5637
    %5639 = vrot.lane.b32.xlu0 %v5471, 32
    %v5640 = vpop.permute.xlu0 %5639
    %5641 = vrot.lane.b32.xlu0 %v5472, 32
    %v5642 = vpop.permute.xlu0 %5641
    %5643 = vrot.lane.b32.xlu0 %v5473, 32
    %v5644 = vpop.permute.xlu0 %5643
    %5645 = vrot.lane.b32.xlu0 %v5474, 32
    %v5646 = vpop.permute.xlu0 %5645
    %5647 = vrot.lane.b32.xlu0 %v5475, 32
    %v5648 = vpop.permute.xlu0 %5647
    %5649 = vrot.lane.b32.xlu0 %v5476, 32
    %v5650 = vpop.permute.xlu0 %5649
    %5651 = vrot.lane.b32.xlu0 %v5477, 32
    %v5652 = vpop.permute.xlu0 %5651
    %5653 = vrot.lane.b32.xlu0 %v5478, 32
    %v5654 = vpop.permute.xlu0 %5653
    %5655 = vrot.lane.b32.xlu0 %v5479, 32
    %v5656 = vpop.permute.xlu0 %5655
    %5657 = vrot.lane.b32.xlu0 %v5480, 32
    %v5658 = vpop.permute.xlu0 %5657
    %5659 = vrot.lane.b32.xlu0 %v5481, 32
    %v5660 = vpop.permute.xlu0 %5659
    %5661 = vrot.lane.b32.xlu0 %v5482, 32
    %v5662 = vpop.permute.xlu0 %5661
    %5663 = vrot.lane.b32.xlu0 %v5483, 32
    %v5664 = vpop.permute.xlu0 %5663
    %5665 = vrot.lane.b32.xlu0 %v5484, 32
    %v5666 = vpop.permute.xlu0 %5665
    %5667 = vrot.lane.b32.xlu0 %v5485, 32
    %v5668 = vpop.permute.xlu0 %5667
    %5669 = vrot.lane.b32.xlu0 %v5486, 32
    %v5670 = vpop.permute.xlu0 %5669
    %5671 = vrot.lane.b32.xlu0 %v5487, 32
    %v5672 = vpop.permute.xlu0 %5671
    %5673 = vrot.lane.b32.xlu0 %v5488, 32
    %v5674 = vpop.permute.xlu0 %5673
    %5675 = vrot.lane.b32.xlu0 %v5489, 32
    %v5676 = vpop.permute.xlu0 %5675
    %5677 = vrot.lane.b32.xlu0 %v5490, 32
    %v5678 = vpop.permute.xlu0 %5677
    %5679 = vrot.lane.b32.xlu0 %v5491, 32
    %v5680 = vpop.permute.xlu0 %5679
    %5681 = vrot.lane.b32.xlu0 %v5492, 32
    %v5682 = vpop.permute.xlu0 %5681
    %5683 = vrot.lane.b32.xlu0 %v5493, 32
    %v5684 = vpop.permute.xlu0 %5683
    %5685 = vrot.lane.b32.xlu0 %v5494, 32
    %v5686 = vpop.permute.xlu0 %5685
    %vm5751 = vcmask 326912
    %5752 = vst.msk [vmem:[#allocation4] sm:$0xff] %vm5751, %v5560
    %5753 = vst.msk [vmem:[#allocation4 + $0x10] sm:$0xff] %vm5751, %v5562
    %5754 = vst.msk [vmem:[#allocation4 + $0x20] sm:$0xff] %vm5751, %v5564
    %5755 = vst.msk [vmem:[#allocation4 + $0x30] sm:$0xff] %vm5751, %v5566
    %5756 = vst.msk [vmem:[#allocation4 + $0x40] sm:$0xff] %vm5751, %v5568
    %5757 = vst.msk [vmem:[#allocation4 + $0x50] sm:$0xff] %vm5751, %v5570
    %5758 = vst.msk [vmem:[#allocation4 + $0x60] sm:$0xff] %vm5751, %v5572
    %5759 = vst.msk [vmem:[#allocation4 + $0x70] sm:$0xff] %vm5751, %v5574
    %5760 = vst.msk [vmem:[#allocation4 + $0x80] sm:$0xff] %vm5751, %v5576
    %5761 = vst.msk [vmem:[#allocation4 + $0x90] sm:$0xff] %vm5751, %v5578
    %5762 = vst.msk [vmem:[#allocation4 + $0xa0] sm:$0xff] %vm5751, %v5580
    %5763 = vst.msk [vmem:[#allocation4 + $0xb0] sm:$0xff] %vm5751, %v5582
    %5764 = vst.msk [vmem:[#allocation4 + $0xc0] sm:$0xff] %vm5751, %v5584
    %5765 = vst.msk [vmem:[#allocation4 + $0xd0] sm:$0xff] %vm5751, %v5586
    %5766 = vst.msk [vmem:[#allocation4 + $0xe0] sm:$0xff] %vm5751, %v5588
    %5767 = vst.msk [vmem:[#allocation4 + $0xf0] sm:$0xff] %vm5751, %v5590
    %5768 = vst.msk [vmem:[#allocation4 + $0x100] sm:$0xff] %vm5751, %v5592
    %5769 = vst.msk [vmem:[#allocation4 + $0x110] sm:$0xff] %vm5751, %v5594
    %5770 = vst.msk [vmem:[#allocation4 + $0x120] sm:$0xff] %vm5751, %v5596
    %5771 = vst.msk [vmem:[#allocation4 + $0x130] sm:$0xff] %vm5751, %v5598
    %5772 = vst.msk [vmem:[#allocation4 + $0x140] sm:$0xff] %vm5751, %v5600
    %5773 = vst.msk [vmem:[#allocation4 + $0x150] sm:$0xff] %vm5751, %v5602
    %5774 = vst.msk [vmem:[#allocation4 + $0x160] sm:$0xff] %vm5751, %v5604
    %5775 = vst.msk [vmem:[#allocation4 + $0x170] sm:$0xff] %vm5751, %v5606
    %5776 = vst.msk [vmem:[#allocation4 + $0x180] sm:$0xff] %vm5751, %v5608
    %5777 = vst.msk [vmem:[#allocation4 + $0x190] sm:$0xff] %vm5751, %v5610
    %5778 = vst.msk [vmem:[#allocation4 + $0x1a0] sm:$0xff] %vm5751, %v5612
    %5779 = vst.msk [vmem:[#allocation4 + $0x1b0] sm:$0xff] %vm5751, %v5614
    %5780 = vst.msk [vmem:[#allocation4 + $0x1c0] sm:$0xff] %vm5751, %v5616
    %5781 = vst.msk [vmem:[#allocation4 + $0x1d0] sm:$0xff] %vm5751, %v5618
    %5782 = vst.msk [vmem:[#allocation4 + $0x1e0] sm:$0xff] %vm5751, %v5620
    %5783 = vst.msk [vmem:[#allocation4 + $0x1f0] sm:$0xff] %vm5751, %v5622
    %5784 = vst.msk [vmem:[#allocation4 + $0x200] sm:$0xff] %vm5751, %v5624
    %5785 = vst.msk [vmem:[#allocation4 + $0x210] sm:$0xff] %vm5751, %v5626
    %5786 = vst.msk [vmem:[#allocation4 + $0x220] sm:$0xff] %vm5751, %v5628
    %5787 = vst.msk [vmem:[#allocation4 + $0x230] sm:$0xff] %vm5751, %v5630
    %5788 = vst.msk [vmem:[#allocation4 + $0x240] sm:$0xff] %vm5751, %v5632
    %5789 = vst.msk [vmem:[#allocation4 + $0x250] sm:$0xff] %vm5751, %v5634
    %5790 = vst.msk [vmem:[#allocation4 + $0x260] sm:$0xff] %vm5751, %v5636
    %5791 = vst.msk [vmem:[#allocation4 + $0x270] sm:$0xff] %vm5751, %v5638
    %5792 = vst.msk [vmem:[#allocation4 + $0x280] sm:$0xff] %vm5751, %v5640
    %5793 = vst.msk [vmem:[#allocation4 + $0x290] sm:$0xff] %vm5751, %v5642
    %5794 = vst.msk [vmem:[#allocation4 + $0x2a0] sm:$0xff] %vm5751, %v5644
    %5795 = vst.msk [vmem:[#allocation4 + $0x2b0] sm:$0xff] %vm5751, %v5646
    %5796 = vst.msk [vmem:[#allocation4 + $0x2c0] sm:$0xff] %vm5751, %v5648
    %5797 = vst.msk [vmem:[#allocation4 + $0x2d0] sm:$0xff] %vm5751, %v5650
    %5798 = vst.msk [vmem:[#allocation4 + $0x2e0] sm:$0xff] %vm5751, %v5652
    %5799 = vst.msk [vmem:[#allocation4 + $0x2f0] sm:$0xff] %vm5751, %v5654
    %5800 = vst.msk [vmem:[#allocation4 + $0x300] sm:$0xff] %vm5751, %v5656
    %5801 = vst.msk [vmem:[#allocation4 + $0x310] sm:$0xff] %vm5751, %v5658
    %5802 = vst.msk [vmem:[#allocation4 + $0x320] sm:$0xff] %vm5751, %v5660
    %5803 = vst.msk [vmem:[#allocation4 + $0x330] sm:$0xff] %vm5751, %v5662
    %5804 = vst.msk [vmem:[#allocation4 + $0x340] sm:$0xff] %vm5751, %v5664
    %5805 = vst.msk [vmem:[#allocation4 + $0x350] sm:$0xff] %vm5751, %v5666
    %5806 = vst.msk [vmem:[#allocation4 + $0x360] sm:$0xff] %vm5751, %v5668
    %5807 = vst.msk [vmem:[#allocation4 + $0x370] sm:$0xff] %vm5751, %v5670
    %5808 = vst.msk [vmem:[#allocation4 + $0x380] sm:$0xff] %vm5751, %v5672
    %5809 = vst.msk [vmem:[#allocation4 + $0x390] sm:$0xff] %vm5751, %v5674
    %5810 = vst.msk [vmem:[#allocation4 + $0x3a0] sm:$0xff] %vm5751, %v5676
    %5811 = vst.msk [vmem:[#allocation4 + $0x3b0] sm:$0xff] %vm5751, %v5678
    %5812 = vst.msk [vmem:[#allocation4 + $0x3c0] sm:$0xff] %vm5751, %v5680
    %5813 = vst.msk [vmem:[#allocation4 + $0x3d0] sm:$0xff] %vm5751, %v5682
    %5814 = vst.msk [vmem:[#allocation4 + $0x3e0] sm:$0xff] %vm5751, %v5684
    %5815 = vst.msk [vmem:[#allocation4 + $0x3f0] sm:$0xff] %vm5751, %v5686
    %v5816 = vld [vmem:[%s267 + $0x2] sm:$0xff]
    %v5817 = vld [vmem:[%s267 + $0xa] sm:$0xff]
    %v5818 = vld [vmem:[%s267 + $0x1a] sm:$0xff]
    %v5819 = vld [vmem:[%s267 + $0x22] sm:$0xff]
    %v5820 = vld [vmem:[%s267 + $0x32] sm:$0xff]
    %v5821 = vld [vmem:[%s267 + $0x3a] sm:$0xff]
    %v5822 = vld [vmem:[%s267 + $0x4a] sm:$0xff]
    %v5823 = vld [vmem:[%s267 + $0x52] sm:$0xff]
    %v5824 = vld [vmem:[%s267 + $0x62] sm:$0xff]
    %v5825 = vld [vmem:[%s267 + $0x6a] sm:$0xff]
    %v5826 = vld [vmem:[%s267 + $0x7a] sm:$0xff]
    %v5827 = vld [vmem:[%s267 + $0x82] sm:$0xff]
    %v5828 = vld [vmem:[%s267 + $0x92] sm:$0xff]
    %v5829 = vld [vmem:[%s267 + $0x9a] sm:$0xff]
    %v5830 = vld [vmem:[%s267 + $0xaa] sm:$0xff]
    %v5831 = vld [vmem:[%s267 + $0xb2] sm:$0xff]
    %v5832 = vld [vmem:[%s267 + $0xc2] sm:$0xff]
    %v5833 = vld [vmem:[%s267 + $0xca] sm:$0xff]
    %v5834 = vld [vmem:[%s267 + $0xda] sm:$0xff]
    %v5835 = vld [vmem:[%s267 + $0xe2] sm:$0xff]
    %v5836 = vld [vmem:[%s267 + $0xf2] sm:$0xff]
    %v5837 = vld [vmem:[%s267 + $0xfa] sm:$0xff]
    %v5838 = vld [vmem:[%s267 + $0x10a] sm:$0xff]
    %v5839 = vld [vmem:[%s267 + $0x112] sm:$0xff]
    %v5840 = vld [vmem:[%s267 + $0x122] sm:$0xff]
    %v5841 = vld [vmem:[%s267 + $0x12a] sm:$0xff]
    %v5842 = vld [vmem:[%s267 + $0x13a] sm:$0xff]
    %v5843 = vld [vmem:[%s267 + $0x142] sm:$0xff]
    %v5844 = vld [vmem:[%s267 + $0x152] sm:$0xff]
    %v5845 = vld [vmem:[%s267 + $0x15a] sm:$0xff]
    %v5846 = vld [vmem:[%s267 + $0x16a] sm:$0xff]
    %v5847 = vld [vmem:[%s267 + $0x172] sm:$0xff]
    %v5848 = vld [vmem:[%s267 + $0x1b2] sm:$0xff]
    %v5849 = vld [vmem:[%s267 + $0x1ba] sm:$0xff]
    %v5850 = vld [vmem:[%s267 + $0x1ca] sm:$0xff]
    %v5851 = vld [vmem:[%s267 + $0x1d2] sm:$0xff]
    %v5852 = vld [vmem:[%s267 + $0x1e2] sm:$0xff]
    %v5853 = vld [vmem:[%s267 + $0x1ea] sm:$0xff]
    %v5854 = vld [vmem:[%s267 + $0x1fa] sm:$0xff]
    %v5855 = vld [vmem:[%s267 + $0x202] sm:$0xff]
    %v5856 = vld [vmem:[%s267 + $0x212] sm:$0xff]
    %v5857 = vld [vmem:[%s267 + $0x21a] sm:$0xff]
    %v5858 = vld [vmem:[%s267 + $0x22a] sm:$0xff]
    %v5859 = vld [vmem:[%s267 + $0x232] sm:$0xff]
    %v5860 = vld [vmem:[%s267 + $0x242] sm:$0xff]
    %v5861 = vld [vmem:[%s267 + $0x24a] sm:$0xff]
    %v5862 = vld [vmem:[%s267 + $0x25a] sm:$0xff]
    %v5863 = vld [vmem:[%s267 + $0x262] sm:$0xff]
    %v5864 = vld [vmem:[%s267 + $0x272] sm:$0xff]
    %v5865 = vld [vmem:[%s267 + $0x27a] sm:$0xff]
    %v5866 = vld [vmem:[%s267 + $0x28a] sm:$0xff]
    %v5867 = vld [vmem:[%s267 + $0x292] sm:$0xff]
    %v5868 = vld [vmem:[%s267 + $0x2a2] sm:$0xff]
    %v5869 = vld [vmem:[%s267 + $0x2aa] sm:$0xff]
    %v5870 = vld [vmem:[%s267 + $0x2ba] sm:$0xff]
    %v5871 = vld [vmem:[%s267 + $0x2c2] sm:$0xff]
    %v5872 = vld [vmem:[%s267 + $0x2d2] sm:$0xff]
    %v5873 = vld [vmem:[%s267 + $0x2da] sm:$0xff]
    %v5874 = vld [vmem:[%s267 + $0x2ea] sm:$0xff]
    %v5875 = vld [vmem:[%s267 + $0x2f2] sm:$0xff]
    %v5876 = vld [vmem:[%s267 + $0x302] sm:$0xff]
    %v5877 = vld [vmem:[%s267 + $0x30a] sm:$0xff]
    %v5878 = vld [vmem:[%s267 + $0x31a] sm:$0xff]
    %v5879 = vld [vmem:[%s267 + $0x322] sm:$0xff]
    %5944 = vrot.lane.b32.xlu0 %v5816, 40
    %v5945 = vpop.permute.xlu0 %5944
    %5946 = vrot.lane.b32.xlu0 %v5817, 40
    %v5947 = vpop.permute.xlu0 %5946
    %5948 = vrot.lane.b32.xlu0 %v5818, 40
    %v5949 = vpop.permute.xlu0 %5948
    %5950 = vrot.lane.b32.xlu0 %v5819, 40
    %v5951 = vpop.permute.xlu0 %5950
    %5952 = vrot.lane.b32.xlu0 %v5820, 40
    %v5953 = vpop.permute.xlu0 %5952
    %5954 = vrot.lane.b32.xlu0 %v5821, 40
    %v5955 = vpop.permute.xlu0 %5954
    %5956 = vrot.lane.b32.xlu0 %v5822, 40
    %v5957 = vpop.permute.xlu0 %5956
    %5958 = vrot.lane.b32.xlu0 %v5823, 40
    %v5959 = vpop.permute.xlu0 %5958
    %5960 = vrot.lane.b32.xlu0 %v5824, 40
    %v5961 = vpop.permute.xlu0 %5960
    %5962 = vrot.lane.b32.xlu0 %v5825, 40
    %v5963 = vpop.permute.xlu0 %5962
    %5964 = vrot.lane.b32.xlu0 %v5826, 40
    %v5965 = vpop.permute.xlu0 %5964
    %5966 = vrot.lane.b32.xlu0 %v5827, 40
    %v5967 = vpop.permute.xlu0 %5966
    %5968 = vrot.lane.b32.xlu0 %v5828, 40
    %v5969 = vpop.permute.xlu0 %5968
    %5970 = vrot.lane.b32.xlu0 %v5829, 40
    %v5971 = vpop.permute.xlu0 %5970
    %5972 = vrot.lane.b32.xlu0 %v5830, 40
    %v5973 = vpop.permute.xlu0 %5972
    %5974 = vrot.lane.b32.xlu0 %v5831, 40
    %v5975 = vpop.permute.xlu0 %5974
    %5976 = vrot.lane.b32.xlu0 %v5832, 40
    %v5977 = vpop.permute.xlu0 %5976
    %5978 = vrot.lane.b32.xlu0 %v5833, 40
    %v5979 = vpop.permute.xlu0 %5978
    %5980 = vrot.lane.b32.xlu0 %v5834, 40
    %v5981 = vpop.permute.xlu0 %5980
    %5982 = vrot.lane.b32.xlu0 %v5835, 40
    %v5983 = vpop.permute.xlu0 %5982
    %5984 = vrot.lane.b32.xlu0 %v5836, 40
    %v5985 = vpop.permute.xlu0 %5984
    %5986 = vrot.lane.b32.xlu0 %v5837, 40
    %v5987 = vpop.permute.xlu0 %5986
    %5988 = vrot.lane.b32.xlu0 %v5838, 40
    %v5989 = vpop.permute.xlu0 %5988
    %5990 = vrot.lane.b32.xlu0 %v5839, 40
    %v5991 = vpop.permute.xlu0 %5990
    %5992 = vrot.lane.b32.xlu0 %v5840, 40
    %v5993 = vpop.permute.xlu0 %5992
    %5994 = vrot.lane.b32.xlu0 %v5841, 40
    %v5995 = vpop.permute.xlu0 %5994
    %5996 = vrot.lane.b32.xlu0 %v5842, 40
    %v5997 = vpop.permute.xlu0 %5996
    %5998 = vrot.lane.b32.xlu0 %v5843, 40
    %v5999 = vpop.permute.xlu0 %5998
    %6000 = vrot.lane.b32.xlu0 %v5844, 40
    %v6001 = vpop.permute.xlu0 %6000
    %6002 = vrot.lane.b32.xlu0 %v5845, 40
    %v6003 = vpop.permute.xlu0 %6002
    %6004 = vrot.lane.b32.xlu0 %v5846, 40
    %v6005 = vpop.permute.xlu0 %6004
    %6006 = vrot.lane.b32.xlu0 %v5847, 40
    %v6007 = vpop.permute.xlu0 %6006
    %6008 = vrot.lane.b32.xlu0 %v5848, 40
    %v6009 = vpop.permute.xlu0 %6008
    %6010 = vrot.lane.b32.xlu0 %v5849, 40
    %v6011 = vpop.permute.xlu0 %6010
    %6012 = vrot.lane.b32.xlu0 %v5850, 40
    %v6013 = vpop.permute.xlu0 %6012
    %6014 = vrot.lane.b32.xlu0 %v5851, 40
    %v6015 = vpop.permute.xlu0 %6014
    %6016 = vrot.lane.b32.xlu0 %v5852, 40
    %v6017 = vpop.permute.xlu0 %6016
    %6018 = vrot.lane.b32.xlu0 %v5853, 40
    %v6019 = vpop.permute.xlu0 %6018
    %6020 = vrot.lane.b32.xlu0 %v5854, 40
    %v6021 = vpop.permute.xlu0 %6020
    %6022 = vrot.lane.b32.xlu0 %v5855, 40
    %v6023 = vpop.permute.xlu0 %6022
    %6024 = vrot.lane.b32.xlu0 %v5856, 40
    %v6025 = vpop.permute.xlu0 %6024
    %6026 = vrot.lane.b32.xlu0 %v5857, 40
    %v6027 = vpop.permute.xlu0 %6026
    %6028 = vrot.lane.b32.xlu0 %v5858, 40
    %v6029 = vpop.permute.xlu0 %6028
    %6030 = vrot.lane.b32.xlu0 %v5859, 40
    %v6031 = vpop.permute.xlu0 %6030
    %6032 = vrot.lane.b32.xlu0 %v5860, 40
    %v6033 = vpop.permute.xlu0 %6032
    %6034 = vrot.lane.b32.xlu0 %v5861, 40
    %v6035 = vpop.permute.xlu0 %6034
    %6036 = vrot.lane.b32.xlu0 %v5862, 40
    %v6037 = vpop.permute.xlu0 %6036
    %6038 = vrot.lane.b32.xlu0 %v5863, 40
    %v6039 = vpop.permute.xlu0 %6038
    %6040 = vrot.lane.b32.xlu0 %v5864, 40
    %v6041 = vpop.permute.xlu0 %6040
    %6042 = vrot.lane.b32.xlu0 %v5865, 40
    %v6043 = vpop.permute.xlu0 %6042
    %6044 = vrot.lane.b32.xlu0 %v5866, 40
    %v6045 = vpop.permute.xlu0 %6044
    %6046 = vrot.lane.b32.xlu0 %v5867, 40
    %v6047 = vpop.permute.xlu0 %6046
    %6048 = vrot.lane.b32.xlu0 %v5868, 40
    %v6049 = vpop.permute.xlu0 %6048
    %6050 = vrot.lane.b32.xlu0 %v5869, 40
    %v6051 = vpop.permute.xlu0 %6050
    %6052 = vrot.lane.b32.xlu0 %v5870, 40
    %v6053 = vpop.permute.xlu0 %6052
    %6054 = vrot.lane.b32.xlu0 %v5871, 40
    %v6055 = vpop.permute.xlu0 %6054
    %6056 = vrot.lane.b32.xlu0 %v5872, 40
    %v6057 = vpop.permute.xlu0 %6056
    %6058 = vrot.lane.b32.xlu0 %v5873, 40
    %v6059 = vpop.permute.xlu0 %6058
    %6060 = vrot.lane.b32.xlu0 %v5874, 40
    %v6061 = vpop.permute.xlu0 %6060
    %6062 = vrot.lane.b32.xlu0 %v5875, 40
    %v6063 = vpop.permute.xlu0 %6062
    %6064 = vrot.lane.b32.xlu0 %v5876, 40
    %v6065 = vpop.permute.xlu0 %6064
    %6066 = vrot.lane.b32.xlu0 %v5877, 40
    %v6067 = vpop.permute.xlu0 %6066
    %6068 = vrot.lane.b32.xlu0 %v5878, 40
    %v6069 = vpop.permute.xlu0 %6068
    %6070 = vrot.lane.b32.xlu0 %v5879, 40
    %v6071 = vpop.permute.xlu0 %6070
    %vm6136 = vcmask 392512
    %6137 = vst.msk [vmem:[#allocation4] sm:$0xff] %vm6136, %v5945
    %6138 = vst.msk [vmem:[#allocation4 + $0x10] sm:$0xff] %vm6136, %v5947
    %6139 = vst.msk [vmem:[#allocation4 + $0x20] sm:$0xff] %vm6136, %v5949
    %6140 = vst.msk [vmem:[#allocation4 + $0x30] sm:$0xff] %vm6136, %v5951
    %6141 = vst.msk [vmem:[#allocation4 + $0x40] sm:$0xff] %vm6136, %v5953
    %6142 = vst.msk [vmem:[#allocation4 + $0x50] sm:$0xff] %vm6136, %v5955
    %6143 = vst.msk [vmem:[#allocation4 + $0x60] sm:$0xff] %vm6136, %v5957
    %6144 = vst.msk [vmem:[#allocation4 + $0x70] sm:$0xff] %vm6136, %v5959
    %6145 = vst.msk [vmem:[#allocation4 + $0x80] sm:$0xff] %vm6136, %v5961
    %6146 = vst.msk [vmem:[#allocation4 + $0x90] sm:$0xff] %vm6136, %v5963
    %6147 = vst.msk [vmem:[#allocation4 + $0xa0] sm:$0xff] %vm6136, %v5965
    %6148 = vst.msk [vmem:[#allocation4 + $0xb0] sm:$0xff] %vm6136, %v5967
    %6149 = vst.msk [vmem:[#allocation4 + $0xc0] sm:$0xff] %vm6136, %v5969
    %6150 = vst.msk [vmem:[#allocation4 + $0xd0] sm:$0xff] %vm6136, %v5971
    %6151 = vst.msk [vmem:[#allocation4 + $0xe0] sm:$0xff] %vm6136, %v5973
    %6152 = vst.msk [vmem:[#allocation4 + $0xf0] sm:$0xff] %vm6136, %v5975
    %6153 = vst.msk [vmem:[#allocation4 + $0x100] sm:$0xff] %vm6136, %v5977
    %6154 = vst.msk [vmem:[#allocation4 + $0x110] sm:$0xff] %vm6136, %v5979
    %6155 = vst.msk [vmem:[#allocation4 + $0x120] sm:$0xff] %vm6136, %v5981
    %6156 = vst.msk [vmem:[#allocation4 + $0x130] sm:$0xff] %vm6136, %v5983
    %6157 = vst.msk [vmem:[#allocation4 + $0x140] sm:$0xff] %vm6136, %v5985
    %6158 = vst.msk [vmem:[#allocation4 + $0x150] sm:$0xff] %vm6136, %v5987
    %6159 = vst.msk [vmem:[#allocation4 + $0x160] sm:$0xff] %vm6136, %v5989
    %6160 = vst.msk [vmem:[#allocation4 + $0x170] sm:$0xff] %vm6136, %v5991
    %6161 = vst.msk [vmem:[#allocation4 + $0x180] sm:$0xff] %vm6136, %v5993
    %6162 = vst.msk [vmem:[#allocation4 + $0x190] sm:$0xff] %vm6136, %v5995
    %6163 = vst.msk [vmem:[#allocation4 + $0x1a0] sm:$0xff] %vm6136, %v5997
    %6164 = vst.msk [vmem:[#allocation4 + $0x1b0] sm:$0xff] %vm6136, %v5999
    %6165 = vst.msk [vmem:[#allocation4 + $0x1c0] sm:$0xff] %vm6136, %v6001
    %6166 = vst.msk [vmem:[#allocation4 + $0x1d0] sm:$0xff] %vm6136, %v6003
    %6167 = vst.msk [vmem:[#allocation4 + $0x1e0] sm:$0xff] %vm6136, %v6005
    %6168 = vst.msk [vmem:[#allocation4 + $0x1f0] sm:$0xff] %vm6136, %v6007
    %6169 = vst.msk [vmem:[#allocation4 + $0x200] sm:$0xff] %vm6136, %v6009
    %6170 = vst.msk [vmem:[#allocation4 + $0x210] sm:$0xff] %vm6136, %v6011
    %6171 = vst.msk [vmem:[#allocation4 + $0x220] sm:$0xff] %vm6136, %v6013
    %6172 = vst.msk [vmem:[#allocation4 + $0x230] sm:$0xff] %vm6136, %v6015
    %6173 = vst.msk [vmem:[#allocation4 + $0x240] sm:$0xff] %vm6136, %v6017
    %6174 = vst.msk [vmem:[#allocation4 + $0x250] sm:$0xff] %vm6136, %v6019
    %6175 = vst.msk [vmem:[#allocation4 + $0x260] sm:$0xff] %vm6136, %v6021
    %6176 = vst.msk [vmem:[#allocation4 + $0x270] sm:$0xff] %vm6136, %v6023
    %6177 = vst.msk [vmem:[#allocation4 + $0x280] sm:$0xff] %vm6136, %v6025
    %6178 = vst.msk [vmem:[#allocation4 + $0x290] sm:$0xff] %vm6136, %v6027
    %6179 = vst.msk [vmem:[#allocation4 + $0x2a0] sm:$0xff] %vm6136, %v6029
    %6180 = vst.msk [vmem:[#allocation4 + $0x2b0] sm:$0xff] %vm6136, %v6031
    %6181 = vst.msk [vmem:[#allocation4 + $0x2c0] sm:$0xff] %vm6136, %v6033
    %6182 = vst.msk [vmem:[#allocation4 + $0x2d0] sm:$0xff] %vm6136, %v6035
    %6183 = vst.msk [vmem:[#allocation4 + $0x2e0] sm:$0xff] %vm6136, %v6037
    %6184 = vst.msk [vmem:[#allocation4 + $0x2f0] sm:$0xff] %vm6136, %v6039
    %6185 = vst.msk [vmem:[#allocation4 + $0x300] sm:$0xff] %vm6136, %v6041
    %6186 = vst.msk [vmem:[#allocation4 + $0x310] sm:$0xff] %vm6136, %v6043
    %6187 = vst.msk [vmem:[#allocation4 + $0x320] sm:$0xff] %vm6136, %v6045
    %6188 = vst.msk [vmem:[#allocation4 + $0x330] sm:$0xff] %vm6136, %v6047
    %6189 = vst.msk [vmem:[#allocation4 + $0x340] sm:$0xff] %vm6136, %v6049
    %6190 = vst.msk [vmem:[#allocation4 + $0x350] sm:$0xff] %vm6136, %v6051
    %6191 = vst.msk [vmem:[#allocation4 + $0x360] sm:$0xff] %vm6136, %v6053
    %6192 = vst.msk [vmem:[#allocation4 + $0x370] sm:$0xff] %vm6136, %v6055
    %6193 = vst.msk [vmem:[#allocation4 + $0x380] sm:$0xff] %vm6136, %v6057
    %6194 = vst.msk [vmem:[#allocation4 + $0x390] sm:$0xff] %vm6136, %v6059
    %6195 = vst.msk [vmem:[#allocation4 + $0x3a0] sm:$0xff] %vm6136, %v6061
    %6196 = vst.msk [vmem:[#allocation4 + $0x3b0] sm:$0xff] %vm6136, %v6063
    %6197 = vst.msk [vmem:[#allocation4 + $0x3c0] sm:$0xff] %vm6136, %v6065
    %6198 = vst.msk [vmem:[#allocation4 + $0x3d0] sm:$0xff] %vm6136, %v6067
    %6199 = vst.msk [vmem:[#allocation4 + $0x3e0] sm:$0xff] %vm6136, %v6069
    %6200 = vst.msk [vmem:[#allocation4 + $0x3f0] sm:$0xff] %vm6136, %v6071
    %v6201 = vld [vmem:[%s2386] sm:$0xff]
    %v6202 = vld [vmem:[%s2386 + $0x8] sm:$0xff]
    %v6203 = vld [vmem:[%s2386 + $0x18] sm:$0xff]
    %v6204 = vld [vmem:[%s2386 + $0x20] sm:$0xff]
    %v6205 = vld [vmem:[%s2386 + $0x30] sm:$0xff]
    %v6206 = vld [vmem:[%s2386 + $0x38] sm:$0xff]
    %v6207 = vld [vmem:[%s2386 + $0x48] sm:$0xff]
    %v6208 = vld [vmem:[%s2386 + $0x50] sm:$0xff]
    %v6209 = vld [vmem:[%s2386 + $0x60] sm:$0xff]
    %v6210 = vld [vmem:[%s2386 + $0x68] sm:$0xff]
    %v6211 = vld [vmem:[%s2386 + $0x78] sm:$0xff]
    %v6212 = vld [vmem:[%s2386 + $0x80] sm:$0xff]
    %v6213 = vld [vmem:[%s2386 + $0x90] sm:$0xff]
    %v6214 = vld [vmem:[%s2386 + $0x98] sm:$0xff]
    %v6215 = vld [vmem:[%s2386 + $0xa8] sm:$0xff]
    %v6216 = vld [vmem:[%s2386 + $0xb0] sm:$0xff]
    %v6217 = vld [vmem:[%s2386 + $0xc0] sm:$0xff]
    %v6218 = vld [vmem:[%s2386 + $0xc8] sm:$0xff]
    %v6219 = vld [vmem:[%s2386 + $0xd8] sm:$0xff]
    %v6220 = vld [vmem:[%s2386 + $0xe0] sm:$0xff]
    %v6221 = vld [vmem:[%s2386 + $0xf0] sm:$0xff]
    %v6222 = vld [vmem:[%s2386 + $0xf8] sm:$0xff]
    %v6223 = vld [vmem:[%s2386 + $0x108] sm:$0xff]
    %v6224 = vld [vmem:[%s2386 + $0x110] sm:$0xff]
    %v6225 = vld [vmem:[%s2386 + $0x120] sm:$0xff]
    %v6226 = vld [vmem:[%s2386 + $0x128] sm:$0xff]
    %v6227 = vld [vmem:[%s2386 + $0x138] sm:$0xff]
    %v6228 = vld [vmem:[%s2386 + $0x140] sm:$0xff]
    %v6229 = vld [vmem:[%s2386 + $0x150] sm:$0xff]
    %v6230 = vld [vmem:[%s2386 + $0x158] sm:$0xff]
    %v6231 = vld [vmem:[%s2386 + $0x168] sm:$0xff]
    %v6232 = vld [vmem:[%s2386 + $0x170] sm:$0xff]
    %v6233 = vld [vmem:[%s2386 + $0x1b0] sm:$0xff]
    %v6234 = vld [vmem:[%s2386 + $0x1b8] sm:$0xff]
    %v6235 = vld [vmem:[%s2386 + $0x1c8] sm:$0xff]
    %v6236 = vld [vmem:[%s2386 + $0x1d0] sm:$0xff]
    %v6237 = vld [vmem:[%s2386 + $0x1e0] sm:$0xff]
    %v6238 = vld [vmem:[%s2386 + $0x1e8] sm:$0xff]
    %v6239 = vld [vmem:[%s2386 + $0x1f8] sm:$0xff]
    %v6240 = vld [vmem:[%s2386 + $0x200] sm:$0xff]
    %v6241 = vld [vmem:[%s2386 + $0x210] sm:$0xff]
    %v6242 = vld [vmem:[%s2386 + $0x218] sm:$0xff]
    %v6243 = vld [vmem:[%s2386 + $0x228] sm:$0xff]
    %v6244 = vld [vmem:[%s2386 + $0x230] sm:$0xff]
    %v6245 = vld [vmem:[%s2386 + $0x240] sm:$0xff]
    %v6246 = vld [vmem:[%s2386 + $0x248] sm:$0xff]
    %v6247 = vld [vmem:[%s2386 + $0x258] sm:$0xff]
    %v6248 = vld [vmem:[%s2386 + $0x260] sm:$0xff]
    %v6249 = vld [vmem:[%s2386 + $0x270] sm:$0xff]
    %v6250 = vld [vmem:[%s2386 + $0x278] sm:$0xff]
    %v6251 = vld [vmem:[%s2386 + $0x288] sm:$0xff]
    %v6252 = vld [vmem:[%s2386 + $0x290] sm:$0xff]
    %v6253 = vld [vmem:[%s2386 + $0x2a0] sm:$0xff]
    %v6254 = vld [vmem:[%s2386 + $0x2a8] sm:$0xff]
    %v6255 = vld [vmem:[%s2386 + $0x2b8] sm:$0xff]
    %v6256 = vld [vmem:[%s2386 + $0x2c0] sm:$0xff]
    %v6257 = vld [vmem:[%s2386 + $0x2d0] sm:$0xff]
    %v6258 = vld [vmem:[%s2386 + $0x2d8] sm:$0xff]
    %v6259 = vld [vmem:[%s2386 + $0x2e8] sm:$0xff]
    %v6260 = vld [vmem:[%s2386 + $0x2f0] sm:$0xff]
    %v6261 = vld [vmem:[%s2386 + $0x300] sm:$0xff]
    %v6262 = vld [vmem:[%s2386 + $0x308] sm:$0xff]
    %v6263 = vld [vmem:[%s2386 + $0x318] sm:$0xff]
    %v6264 = vld [vmem:[%s2386 + $0x320] sm:$0xff]
    %6329 = vrot.lane.b32.xlu0 %v6201, 48
    %v6330 = vpop.permute.xlu0 %6329
    %6331 = vrot.lane.b32.xlu0 %v6202, 48
    %v6332 = vpop.permute.xlu0 %6331
    %6333 = vrot.lane.b32.xlu0 %v6203, 48
    %v6334 = vpop.permute.xlu0 %6333
    %6335 = vrot.lane.b32.xlu0 %v6204, 48
    %v6336 = vpop.permute.xlu0 %6335
    %6337 = vrot.lane.b32.xlu0 %v6205, 48
    %v6338 = vpop.permute.xlu0 %6337
    %6339 = vrot.lane.b32.xlu0 %v6206, 48
    %v6340 = vpop.permute.xlu0 %6339
    %6341 = vrot.lane.b32.xlu0 %v6207, 48
    %v6342 = vpop.permute.xlu0 %6341
    %6343 = vrot.lane.b32.xlu0 %v6208, 48
    %v6344 = vpop.permute.xlu0 %6343
    %6345 = vrot.lane.b32.xlu0 %v6209, 48
    %v6346 = vpop.permute.xlu0 %6345
    %6347 = vrot.lane.b32.xlu0 %v6210, 48
    %v6348 = vpop.permute.xlu0 %6347
    %6349 = vrot.lane.b32.xlu0 %v6211, 48
    %v6350 = vpop.permute.xlu0 %6349
    %6351 = vrot.lane.b32.xlu0 %v6212, 48
    %v6352 = vpop.permute.xlu0 %6351
    %6353 = vrot.lane.b32.xlu0 %v6213, 48
    %v6354 = vpop.permute.xlu0 %6353
    %6355 = vrot.lane.b32.xlu0 %v6214, 48
    %v6356 = vpop.permute.xlu0 %6355
    %6357 = vrot.lane.b32.xlu0 %v6215, 48
    %v6358 = vpop.permute.xlu0 %6357
    %6359 = vrot.lane.b32.xlu0 %v6216, 48
    %v6360 = vpop.permute.xlu0 %6359
    %6361 = vrot.lane.b32.xlu0 %v6217, 48
    %v6362 = vpop.permute.xlu0 %6361
    %6363 = vrot.lane.b32.xlu0 %v6218, 48
    %v6364 = vpop.permute.xlu0 %6363
    %6365 = vrot.lane.b32.xlu0 %v6219, 48
    %v6366 = vpop.permute.xlu0 %6365
    %6367 = vrot.lane.b32.xlu0 %v6220, 48
    %v6368 = vpop.permute.xlu0 %6367
    %6369 = vrot.lane.b32.xlu0 %v6221, 48
    %v6370 = vpop.permute.xlu0 %6369
    %6371 = vrot.lane.b32.xlu0 %v6222, 48
    %v6372 = vpop.permute.xlu0 %6371
    %6373 = vrot.lane.b32.xlu0 %v6223, 48
    %v6374 = vpop.permute.xlu0 %6373
    %6375 = vrot.lane.b32.xlu0 %v6224, 48
    %v6376 = vpop.permute.xlu0 %6375
    %6377 = vrot.lane.b32.xlu0 %v6225, 48
    %v6378 = vpop.permute.xlu0 %6377
    %6379 = vrot.lane.b32.xlu0 %v6226, 48
    %v6380 = vpop.permute.xlu0 %6379
    %6381 = vrot.lane.b32.xlu0 %v6227, 48
    %v6382 = vpop.permute.xlu0 %6381
    %6383 = vrot.lane.b32.xlu0 %v6228, 48
    %v6384 = vpop.permute.xlu0 %6383
    %6385 = vrot.lane.b32.xlu0 %v6229, 48
    %v6386 = vpop.permute.xlu0 %6385
    %6387 = vrot.lane.b32.xlu0 %v6230, 48
    %v6388 = vpop.permute.xlu0 %6387
    %6389 = vrot.lane.b32.xlu0 %v6231, 48
    %v6390 = vpop.permute.xlu0 %6389
    %6391 = vrot.lane.b32.xlu0 %v6232, 48
    %v6392 = vpop.permute.xlu0 %6391
    %6393 = vrot.lane.b32.xlu0 %v6233, 48
    %v6394 = vpop.permute.xlu0 %6393
    %6395 = vrot.lane.b32.xlu0 %v6234, 48
    %v6396 = vpop.permute.xlu0 %6395
    %6397 = vrot.lane.b32.xlu0 %v6235, 48
    %v6398 = vpop.permute.xlu0 %6397
    %6399 = vrot.lane.b32.xlu0 %v6236, 48
    %v6400 = vpop.permute.xlu0 %6399
    %6401 = vrot.lane.b32.xlu0 %v6237, 48
    %v6402 = vpop.permute.xlu0 %6401
    %6403 = vrot.lane.b32.xlu0 %v6238, 48
    %v6404 = vpop.permute.xlu0 %6403
    %6405 = vrot.lane.b32.xlu0 %v6239, 48
    %v6406 = vpop.permute.xlu0 %6405
    %6407 = vrot.lane.b32.xlu0 %v6240, 48
    %v6408 = vpop.permute.xlu0 %6407
    %6409 = vrot.lane.b32.xlu0 %v6241, 48
    %v6410 = vpop.permute.xlu0 %6409
    %6411 = vrot.lane.b32.xlu0 %v6242, 48
    %v6412 = vpop.permute.xlu0 %6411
    %6413 = vrot.lane.b32.xlu0 %v6243, 48
    %v6414 = vpop.permute.xlu0 %6413
    %6415 = vrot.lane.b32.xlu0 %v6244, 48
    %v6416 = vpop.permute.xlu0 %6415
    %6417 = vrot.lane.b32.xlu0 %v6245, 48
    %v6418 = vpop.permute.xlu0 %6417
    %6419 = vrot.lane.b32.xlu0 %v6246, 48
    %v6420 = vpop.permute.xlu0 %6419
    %6421 = vrot.lane.b32.xlu0 %v6247, 48
    %v6422 = vpop.permute.xlu0 %6421
    %6423 = vrot.lane.b32.xlu0 %v6248, 48
    %v6424 = vpop.permute.xlu0 %6423
    %6425 = vrot.lane.b32.xlu0 %v6249, 48
    %v6426 = vpop.permute.xlu0 %6425
    %6427 = vrot.lane.b32.xlu0 %v6250, 48
    %v6428 = vpop.permute.xlu0 %6427
    %6429 = vrot.lane.b32.xlu0 %v6251, 48
    %v6430 = vpop.permute.xlu0 %6429
    %6431 = vrot.lane.b32.xlu0 %v6252, 48
    %v6432 = vpop.permute.xlu0 %6431
    %6433 = vrot.lane.b32.xlu0 %v6253, 48
    %v6434 = vpop.permute.xlu0 %6433
    %6435 = vrot.lane.b32.xlu0 %v6254, 48
    %v6436 = vpop.permute.xlu0 %6435
    %6437 = vrot.lane.b32.xlu0 %v6255, 48
    %v6438 = vpop.permute.xlu0 %6437
    %6439 = vrot.lane.b32.xlu0 %v6256, 48
    %v6440 = vpop.permute.xlu0 %6439
    %6441 = vrot.lane.b32.xlu0 %v6257, 48
    %v6442 = vpop.permute.xlu0 %6441
    %6443 = vrot.lane.b32.xlu0 %v6258, 48
    %v6444 = vpop.permute.xlu0 %6443
    %6445 = vrot.lane.b32.xlu0 %v6259, 48
    %v6446 = vpop.permute.xlu0 %6445
    %6447 = vrot.lane.b32.xlu0 %v6260, 48
    %v6448 = vpop.permute.xlu0 %6447
    %6449 = vrot.lane.b32.xlu0 %v6261, 48
    %v6450 = vpop.permute.xlu0 %6449
    %6451 = vrot.lane.b32.xlu0 %v6262, 48
    %v6452 = vpop.permute.xlu0 %6451
    %6453 = vrot.lane.b32.xlu0 %v6263, 48
    %v6454 = vpop.permute.xlu0 %6453
    %6455 = vrot.lane.b32.xlu0 %v6264, 48
    %v6456 = vpop.permute.xlu0 %6455
    %vm6521 = vcmask 458112
    %6522 = vst.msk [vmem:[#allocation4] sm:$0xff] %vm6521, %v6330
    %6523 = vst.msk [vmem:[#allocation4 + $0x10] sm:$0xff] %vm6521, %v6332
    %6524 = vst.msk [vmem:[#allocation4 + $0x20] sm:$0xff] %vm6521, %v6334
    %6525 = vst.msk [vmem:[#allocation4 + $0x30] sm:$0xff] %vm6521, %v6336
    %6526 = vst.msk [vmem:[#allocation4 + $0x40] sm:$0xff] %vm6521, %v6338
    %6527 = vst.msk [vmem:[#allocation4 + $0x50] sm:$0xff] %vm6521, %v6340
    %6528 = vst.msk [vmem:[#allocation4 + $0x60] sm:$0xff] %vm6521, %v6342
    %6529 = vst.msk [vmem:[#allocation4 + $0x70] sm:$0xff] %vm6521, %v6344
    %6530 = vst.msk [vmem:[#allocation4 + $0x80] sm:$0xff] %vm6521, %v6346
    %6531 = vst.msk [vmem:[#allocation4 + $0x90] sm:$0xff] %vm6521, %v6348
    %6532 = vst.msk [vmem:[#allocation4 + $0xa0] sm:$0xff] %vm6521, %v6350
    %6533 = vst.msk [vmem:[#allocation4 + $0xb0] sm:$0xff] %vm6521, %v6352
    %6534 = vst.msk [vmem:[#allocation4 + $0xc0] sm:$0xff] %vm6521, %v6354
    %6535 = vst.msk [vmem:[#allocation4 + $0xd0] sm:$0xff] %vm6521, %v6356
    %6536 = vst.msk [vmem:[#allocation4 + $0xe0] sm:$0xff] %vm6521, %v6358
    %6537 = vst.msk [vmem:[#allocation4 + $0xf0] sm:$0xff] %vm6521, %v6360
    %6538 = vst.msk [vmem:[#allocation4 + $0x100] sm:$0xff] %vm6521, %v6362
    %6539 = vst.msk [vmem:[#allocation4 + $0x110] sm:$0xff] %vm6521, %v6364
    %6540 = vst.msk [vmem:[#allocation4 + $0x120] sm:$0xff] %vm6521, %v6366
    %6541 = vst.msk [vmem:[#allocation4 + $0x130] sm:$0xff] %vm6521, %v6368
    %6542 = vst.msk [vmem:[#allocation4 + $0x140] sm:$0xff] %vm6521, %v6370
    %6543 = vst.msk [vmem:[#allocation4 + $0x150] sm:$0xff] %vm6521, %v6372
    %6544 = vst.msk [vmem:[#allocation4 + $0x160] sm:$0xff] %vm6521, %v6374
    %6545 = vst.msk [vmem:[#allocation4 + $0x170] sm:$0xff] %vm6521, %v6376
    %6546 = vst.msk [vmem:[#allocation4 + $0x180] sm:$0xff] %vm6521, %v6378
    %6547 = vst.msk [vmem:[#allocation4 + $0x190] sm:$0xff] %vm6521, %v6380
    %6548 = vst.msk [vmem:[#allocation4 + $0x1a0] sm:$0xff] %vm6521, %v6382
    %6549 = vst.msk [vmem:[#allocation4 + $0x1b0] sm:$0xff] %vm6521, %v6384
    %6550 = vst.msk [vmem:[#allocation4 + $0x1c0] sm:$0xff] %vm6521, %v6386
    %6551 = vst.msk [vmem:[#allocation4 + $0x1d0] sm:$0xff] %vm6521, %v6388
    %6552 = vst.msk [vmem:[#allocation4 + $0x1e0] sm:$0xff] %vm6521, %v6390
    %6553 = vst.msk [vmem:[#allocation4 + $0x1f0] sm:$0xff] %vm6521, %v6392
    %6554 = vst.msk [vmem:[#allocation4 + $0x200] sm:$0xff] %vm6521, %v6394
    %6555 = vst.msk [vmem:[#allocation4 + $0x210] sm:$0xff] %vm6521, %v6396
    %6556 = vst.msk [vmem:[#allocation4 + $0x220] sm:$0xff] %vm6521, %v6398
    %6557 = vst.msk [vmem:[#allocation4 + $0x230] sm:$0xff] %vm6521, %v6400
    %6558 = vst.msk [vmem:[#allocation4 + $0x240] sm:$0xff] %vm6521, %v6402
    %6559 = vst.msk [vmem:[#allocation4 + $0x250] sm:$0xff] %vm6521, %v6404
    %6560 = vst.msk [vmem:[#allocation4 + $0x260] sm:$0xff] %vm6521, %v6406
    %6561 = vst.msk [vmem:[#allocation4 + $0x270] sm:$0xff] %vm6521, %v6408
    %6562 = vst.msk [vmem:[#allocation4 + $0x280] sm:$0xff] %vm6521, %v6410
    %6563 = vst.msk [vmem:[#allocation4 + $0x290] sm:$0xff] %vm6521, %v6412
    %6564 = vst.msk [vmem:[#allocation4 + $0x2a0] sm:$0xff] %vm6521, %v6414
    %6565 = vst.msk [vmem:[#allocation4 + $0x2b0] sm:$0xff] %vm6521, %v6416
    %6566 = vst.msk [vmem:[#allocation4 + $0x2c0] sm:$0xff] %vm6521, %v6418
    %6567 = vst.msk [vmem:[#allocation4 + $0x2d0] sm:$0xff] %vm6521, %v6420
    %6568 = vst.msk [vmem:[#allocation4 + $0x2e0] sm:$0xff] %vm6521, %v6422
    %6569 = vst.msk [vmem:[#allocation4 + $0x2f0] sm:$0xff] %vm6521, %v6424
    %6570 = vst.msk [vmem:[#allocation4 + $0x300] sm:$0xff] %vm6521, %v6426
    %6571 = vst.msk [vmem:[#allocation4 + $0x310] sm:$0xff] %vm6521, %v6428
    %6572 = vst.msk [vmem:[#allocation4 + $0x320] sm:$0xff] %vm6521, %v6430
    %6573 = vst.msk [vmem:[#allocation4 + $0x330] sm:$0xff] %vm6521, %v6432
    %6574 = vst.msk [vmem:[#allocation4 + $0x340] sm:$0xff] %vm6521, %v6434
    %6575 = vst.msk [vmem:[#allocation4 + $0x350] sm:$0xff] %vm6521, %v6436
    %6576 = vst.msk [vmem:[#allocation4 + $0x360] sm:$0xff] %vm6521, %v6438
    %6577 = vst.msk [vmem:[#allocation4 + $0x370] sm:$0xff] %vm6521, %v6440
    %6578 = vst.msk [vmem:[#allocation4 + $0x380] sm:$0xff] %vm6521, %v6442
    %6579 = vst.msk [vmem:[#allocation4 + $0x390] sm:$0xff] %vm6521, %v6444
    %6580 = vst.msk [vmem:[#allocation4 + $0x3a0] sm:$0xff] %vm6521, %v6446
    %6581 = vst.msk [vmem:[#allocation4 + $0x3b0] sm:$0xff] %vm6521, %v6448
    %6582 = vst.msk [vmem:[#allocation4 + $0x3c0] sm:$0xff] %vm6521, %v6450
    %6583 = vst.msk [vmem:[#allocation4 + $0x3d0] sm:$0xff] %vm6521, %v6452
    %6584 = vst.msk [vmem:[#allocation4 + $0x3e0] sm:$0xff] %vm6521, %v6454
    %6585 = vst.msk [vmem:[#allocation4 + $0x3f0] sm:$0xff] %vm6521, %v6456
    %v6586 = vld [vmem:[%s2386 + $0x1] sm:$0xff]
    %v6587 = vld [vmem:[%s2386 + $0x9] sm:$0xff]
    %v6588 = vld [vmem:[%s2386 + $0x19] sm:$0xff]
    %v6589 = vld [vmem:[%s2386 + $0x21] sm:$0xff]
    %v6590 = vld [vmem:[%s2386 + $0x31] sm:$0xff]
    %v6591 = vld [vmem:[%s2386 + $0x39] sm:$0xff]
    %v6592 = vld [vmem:[%s2386 + $0x49] sm:$0xff]
    %v6593 = vld [vmem:[%s2386 + $0x51] sm:$0xff]
    %v6594 = vld [vmem:[%s2386 + $0x61] sm:$0xff]
    %v6595 = vld [vmem:[%s2386 + $0x69] sm:$0xff]
    %v6596 = vld [vmem:[%s2386 + $0x79] sm:$0xff]
    %v6597 = vld [vmem:[%s2386 + $0x81] sm:$0xff]
    %v6598 = vld [vmem:[%s2386 + $0x91] sm:$0xff]
    %v6599 = vld [vmem:[%s2386 + $0x99] sm:$0xff]
    %v6600 = vld [vmem:[%s2386 + $0xa9] sm:$0xff]
    %v6601 = vld [vmem:[%s2386 + $0xb1] sm:$0xff]
    %v6602 = vld [vmem:[%s2386 + $0xc1] sm:$0xff]
    %v6603 = vld [vmem:[%s2386 + $0xc9] sm:$0xff]
    %v6604 = vld [vmem:[%s2386 + $0xd9] sm:$0xff]
    %v6605 = vld [vmem:[%s2386 + $0xe1] sm:$0xff]
    %v6606 = vld [vmem:[%s2386 + $0xf1] sm:$0xff]
    %v6607 = vld [vmem:[%s2386 + $0xf9] sm:$0xff]
    %v6608 = vld [vmem:[%s2386 + $0x109] sm:$0xff]
    %v6609 = vld [vmem:[%s2386 + $0x111] sm:$0xff]
    %v6610 = vld [vmem:[%s2386 + $0x121] sm:$0xff]
    %v6611 = vld [vmem:[%s2386 + $0x129] sm:$0xff]
    %v6612 = vld [vmem:[%s2386 + $0x139] sm:$0xff]
    %v6613 = vld [vmem:[%s2386 + $0x141] sm:$0xff]
    %v6614 = vld [vmem:[%s2386 + $0x151] sm:$0xff]
    %v6615 = vld [vmem:[%s2386 + $0x159] sm:$0xff]
    %v6616 = vld [vmem:[%s2386 + $0x169] sm:$0xff]
    %v6617 = vld [vmem:[%s2386 + $0x171] sm:$0xff]
    %v6618 = vld [vmem:[%s2386 + $0x1b1] sm:$0xff]
    %v6619 = vld [vmem:[%s2386 + $0x1b9] sm:$0xff]
    %v6620 = vld [vmem:[%s2386 + $0x1c9] sm:$0xff]
    %v6621 = vld [vmem:[%s2386 + $0x1d1] sm:$0xff]
    %v6622 = vld [vmem:[%s2386 + $0x1e1] sm:$0xff]
    %v6623 = vld [vmem:[%s2386 + $0x1e9] sm:$0xff]
    %v6624 = vld [vmem:[%s2386 + $0x1f9] sm:$0xff]
    %v6625 = vld [vmem:[%s2386 + $0x201] sm:$0xff]
    %v6626 = vld [vmem:[%s2386 + $0x211] sm:$0xff]
    %v6627 = vld [vmem:[%s2386 + $0x219] sm:$0xff]
    %v6628 = vld [vmem:[%s2386 + $0x229] sm:$0xff]
    %v6629 = vld [vmem:[%s2386 + $0x231] sm:$0xff]
    %v6630 = vld [vmem:[%s2386 + $0x241] sm:$0xff]
    %v6631 = vld [vmem:[%s2386 + $0x249] sm:$0xff]
    %v6632 = vld [vmem:[%s2386 + $0x259] sm:$0xff]
    %v6633 = vld [vmem:[%s2386 + $0x261] sm:$0xff]
    %v6634 = vld [vmem:[%s2386 + $0x271] sm:$0xff]
    %v6635 = vld [vmem:[%s2386 + $0x279] sm:$0xff]
    %v6636 = vld [vmem:[%s2386 + $0x289] sm:$0xff]
    %v6637 = vld [vmem:[%s2386 + $0x291] sm:$0xff]
    %v6638 = vld [vmem:[%s2386 + $0x2a1] sm:$0xff]
    %v6639 = vld [vmem:[%s2386 + $0x2a9] sm:$0xff]
    %v6640 = vld [vmem:[%s2386 + $0x2b9] sm:$0xff]
    %v6641 = vld [vmem:[%s2386 + $0x2c1] sm:$0xff]
    %v6642 = vld [vmem:[%s2386 + $0x2d1] sm:$0xff]
    %v6643 = vld [vmem:[%s2386 + $0x2d9] sm:$0xff]
    %v6644 = vld [vmem:[%s2386 + $0x2e9] sm:$0xff]
    %v6645 = vld [vmem:[%s2386 + $0x2f1] sm:$0xff]
    %v6646 = vld [vmem:[%s2386 + $0x301] sm:$0xff]
    %v6647 = vld [vmem:[%s2386 + $0x309] sm:$0xff]
    %v6648 = vld [vmem:[%s2386 + $0x319] sm:$0xff]
    %v6649 = vld [vmem:[%s2386 + $0x321] sm:$0xff]
    %6714 = vrot.lane.b32.xlu0 %v6586, 56
    %v6715 = vpop.permute.xlu0 %6714
    %6716 = vrot.lane.b32.xlu0 %v6587, 56
    %v6717 = vpop.permute.xlu0 %6716
    %6718 = vrot.lane.b32.xlu0 %v6588, 56
    %v6719 = vpop.permute.xlu0 %6718
    %6720 = vrot.lane.b32.xlu0 %v6589, 56
    %v6721 = vpop.permute.xlu0 %6720
    %6722 = vrot.lane.b32.xlu0 %v6590, 56
    %v6723 = vpop.permute.xlu0 %6722
    %6724 = vrot.lane.b32.xlu0 %v6591, 56
    %v6725 = vpop.permute.xlu0 %6724
    %6726 = vrot.lane.b32.xlu0 %v6592, 56
    %v6727 = vpop.permute.xlu0 %6726
    %6728 = vrot.lane.b32.xlu0 %v6593, 56
    %v6729 = vpop.permute.xlu0 %6728
    %6730 = vrot.lane.b32.xlu0 %v6594, 56
    %v6731 = vpop.permute.xlu0 %6730
    %6732 = vrot.lane.b32.xlu0 %v6595, 56
    %v6733 = vpop.permute.xlu0 %6732
    %6734 = vrot.lane.b32.xlu0 %v6596, 56
    %v6735 = vpop.permute.xlu0 %6734
    %6736 = vrot.lane.b32.xlu0 %v6597, 56
    %v6737 = vpop.permute.xlu0 %6736
    %6738 = vrot.lane.b32.xlu0 %v6598, 56
    %v6739 = vpop.permute.xlu0 %6738
    %6740 = vrot.lane.b32.xlu0 %v6599, 56
    %v6741 = vpop.permute.xlu0 %6740
    %6742 = vrot.lane.b32.xlu0 %v6600, 56
    %v6743 = vpop.permute.xlu0 %6742
    %6744 = vrot.lane.b32.xlu0 %v6601, 56
    %v6745 = vpop.permute.xlu0 %6744
    %6746 = vrot.lane.b32.xlu0 %v6602, 56
    %v6747 = vpop.permute.xlu0 %6746
    %6748 = vrot.lane.b32.xlu0 %v6603, 56
    %v6749 = vpop.permute.xlu0 %6748
    %6750 = vrot.lane.b32.xlu0 %v6604, 56
    %v6751 = vpop.permute.xlu0 %6750
    %6752 = vrot.lane.b32.xlu0 %v6605, 56
    %v6753 = vpop.permute.xlu0 %6752
    %6754 = vrot.lane.b32.xlu0 %v6606, 56
    %v6755 = vpop.permute.xlu0 %6754
    %6756 = vrot.lane.b32.xlu0 %v6607, 56
    %v6757 = vpop.permute.xlu0 %6756
    %6758 = vrot.lane.b32.xlu0 %v6608, 56
    %v6759 = vpop.permute.xlu0 %6758
    %6760 = vrot.lane.b32.xlu0 %v6609, 56
    %v6761 = vpop.permute.xlu0 %6760
    %6762 = vrot.lane.b32.xlu0 %v6610, 56
    %v6763 = vpop.permute.xlu0 %6762
    %6764 = vrot.lane.b32.xlu0 %v6611, 56
    %v6765 = vpop.permute.xlu0 %6764
    %6766 = vrot.lane.b32.xlu0 %v6612, 56
    %v6767 = vpop.permute.xlu0 %6766
    %6768 = vrot.lane.b32.xlu0 %v6613, 56
    %v6769 = vpop.permute.xlu0 %6768
    %6770 = vrot.lane.b32.xlu0 %v6614, 56
    %v6771 = vpop.permute.xlu0 %6770
    %6772 = vrot.lane.b32.xlu0 %v6615, 56
    %v6773 = vpop.permute.xlu0 %6772
    %6774 = vrot.lane.b32.xlu0 %v6616, 56
    %v6775 = vpop.permute.xlu0 %6774
    %6776 = vrot.lane.b32.xlu0 %v6617, 56
    %v6777 = vpop.permute.xlu0 %6776
    %6778 = vrot.lane.b32.xlu0 %v6618, 56
    %v6779 = vpop.permute.xlu0 %6778
    %6780 = vrot.lane.b32.xlu0 %v6619, 56
    %v6781 = vpop.permute.xlu0 %6780
    %6782 = vrot.lane.b32.xlu0 %v6620, 56
    %v6783 = vpop.permute.xlu0 %6782
    %6784 = vrot.lane.b32.xlu0 %v6621, 56
    %v6785 = vpop.permute.xlu0 %6784
    %6786 = vrot.lane.b32.xlu0 %v6622, 56
    %v6787 = vpop.permute.xlu0 %6786
    %6788 = vrot.lane.b32.xlu0 %v6623, 56
    %v6789 = vpop.permute.xlu0 %6788
    %6790 = vrot.lane.b32.xlu0 %v6624, 56
    %v6791 = vpop.permute.xlu0 %6790
    %6792 = vrot.lane.b32.xlu0 %v6625, 56
    %v6793 = vpop.permute.xlu0 %6792
    %6794 = vrot.lane.b32.xlu0 %v6626, 56
    %v6795 = vpop.permute.xlu0 %6794
    %6796 = vrot.lane.b32.xlu0 %v6627, 56
    %v6797 = vpop.permute.xlu0 %6796
    %6798 = vrot.lane.b32.xlu0 %v6628, 56
    %v6799 = vpop.permute.xlu0 %6798
    %6800 = vrot.lane.b32.xlu0 %v6629, 56
    %v6801 = vpop.permute.xlu0 %6800
    %6802 = vrot.lane.b32.xlu0 %v6630, 56
    %v6803 = vpop.permute.xlu0 %6802
    %6804 = vrot.lane.b32.xlu0 %v6631, 56
    %v6805 = vpop.permute.xlu0 %6804
    %6806 = vrot.lane.b32.xlu0 %v6632, 56
    %v6807 = vpop.permute.xlu0 %6806
    %6808 = vrot.lane.b32.xlu0 %v6633, 56
    %v6809 = vpop.permute.xlu0 %6808
    %6810 = vrot.lane.b32.xlu0 %v6634, 56
    %v6811 = vpop.permute.xlu0 %6810
    %6812 = vrot.lane.b32.xlu0 %v6635, 56
    %v6813 = vpop.permute.xlu0 %6812
    %6814 = vrot.lane.b32.xlu0 %v6636, 56
    %v6815 = vpop.permute.xlu0 %6814
    %6816 = vrot.lane.b32.xlu0 %v6637, 56
    %v6817 = vpop.permute.xlu0 %6816
    %6818 = vrot.lane.b32.xlu0 %v6638, 56
    %v6819 = vpop.permute.xlu0 %6818
    %6820 = vrot.lane.b32.xlu0 %v6639, 56
    %v6821 = vpop.permute.xlu0 %6820
    %6822 = vrot.lane.b32.xlu0 %v6640, 56
    %v6823 = vpop.permute.xlu0 %6822
    %6824 = vrot.lane.b32.xlu0 %v6641, 56
    %v6825 = vpop.permute.xlu0 %6824
    %6826 = vrot.lane.b32.xlu0 %v6642, 56
    %v6827 = vpop.permute.xlu0 %6826
    %6828 = vrot.lane.b32.xlu0 %v6643, 56
    %v6829 = vpop.permute.xlu0 %6828
    %6830 = vrot.lane.b32.xlu0 %v6644, 56
    %v6831 = vpop.permute.xlu0 %6830
    %6832 = vrot.lane.b32.xlu0 %v6645, 56
    %v6833 = vpop.permute.xlu0 %6832
    %6834 = vrot.lane.b32.xlu0 %v6646, 56
    %v6835 = vpop.permute.xlu0 %6834
    %6836 = vrot.lane.b32.xlu0 %v6647, 56
    %v6837 = vpop.permute.xlu0 %6836
    %6838 = vrot.lane.b32.xlu0 %v6648, 56
    %v6839 = vpop.permute.xlu0 %6838
    %6840 = vrot.lane.b32.xlu0 %v6649, 56
    %v6841 = vpop.permute.xlu0 %6840
    %vm6906 = vcmask 523712
    %6907 = vst.msk [vmem:[#allocation4] sm:$0xff] %vm6906, %v6715
    %6908 = vst.msk [vmem:[#allocation4 + $0x10] sm:$0xff] %vm6906, %v6717
    %6909 = vst.msk [vmem:[#allocation4 + $0x20] sm:$0xff] %vm6906, %v6719
    %6910 = vst.msk [vmem:[#allocation4 + $0x30] sm:$0xff] %vm6906, %v6721
    %6911 = vst.msk [vmem:[#allocation4 + $0x40] sm:$0xff] %vm6906, %v6723
    %6912 = vst.msk [vmem:[#allocation4 + $0x50] sm:$0xff] %vm6906, %v6725
    %6913 = vst.msk [vmem:[#allocation4 + $0x60] sm:$0xff] %vm6906, %v6727
    %6914 = vst.msk [vmem:[#allocation4 + $0x70] sm:$0xff] %vm6906, %v6729
    %6915 = vst.msk [vmem:[#allocation4 + $0x80] sm:$0xff] %vm6906, %v6731
    %6916 = vst.msk [vmem:[#allocation4 + $0x90] sm:$0xff] %vm6906, %v6733
    %6917 = vst.msk [vmem:[#allocation4 + $0xa0] sm:$0xff] %vm6906, %v6735
    %6918 = vst.msk [vmem:[#allocation4 + $0xb0] sm:$0xff] %vm6906, %v6737
    %6919 = vst.msk [vmem:[#allocation4 + $0xc0] sm:$0xff] %vm6906, %v6739
    %6920 = vst.msk [vmem:[#allocation4 + $0xd0] sm:$0xff] %vm6906, %v6741
    %6921 = vst.msk [vmem:[#allocation4 + $0xe0] sm:$0xff] %vm6906, %v6743
    %6922 = vst.msk [vmem:[#allocation4 + $0xf0] sm:$0xff] %vm6906, %v6745
    %6923 = vst.msk [vmem:[#allocation4 + $0x100] sm:$0xff] %vm6906, %v6747
    %6924 = vst.msk [vmem:[#allocation4 + $0x110] sm:$0xff] %vm6906, %v6749
    %6925 = vst.msk [vmem:[#allocation4 + $0x120] sm:$0xff] %vm6906, %v6751
    %6926 = vst.msk [vmem:[#allocation4 + $0x130] sm:$0xff] %vm6906, %v6753
    %6927 = vst.msk [vmem:[#allocation4 + $0x140] sm:$0xff] %vm6906, %v6755
    %6928 = vst.msk [vmem:[#allocation4 + $0x150] sm:$0xff] %vm6906, %v6757
    %6929 = vst.msk [vmem:[#allocation4 + $0x160] sm:$0xff] %vm6906, %v6759
    %6930 = vst.msk [vmem:[#allocation4 + $0x170] sm:$0xff] %vm6906, %v6761
    %6931 = vst.msk [vmem:[#allocation4 + $0x180] sm:$0xff] %vm6906, %v6763
    %6932 = vst.msk [vmem:[#allocation4 + $0x190] sm:$0xff] %vm6906, %v6765
    %6933 = vst.msk [vmem:[#allocation4 + $0x1a0] sm:$0xff] %vm6906, %v6767
    %6934 = vst.msk [vmem:[#allocation4 + $0x1b0] sm:$0xff] %vm6906, %v6769
    %6935 = vst.msk [vmem:[#allocation4 + $0x1c0] sm:$0xff] %vm6906, %v6771
    %6936 = vst.msk [vmem:[#allocation4 + $0x1d0] sm:$0xff] %vm6906, %v6773
    %6937 = vst.msk [vmem:[#allocation4 + $0x1e0] sm:$0xff] %vm6906, %v6775
    %6938 = vst.msk [vmem:[#allocation4 + $0x1f0] sm:$0xff] %vm6906, %v6777
    %6939 = vst.msk [vmem:[#allocation4 + $0x200] sm:$0xff] %vm6906, %v6779
    %6940 = vst.msk [vmem:[#allocation4 + $0x210] sm:$0xff] %vm6906, %v6781
    %6941 = vst.msk [vmem:[#allocation4 + $0x220] sm:$0xff] %vm6906, %v6783
    %6942 = vst.msk [vmem:[#allocation4 + $0x230] sm:$0xff] %vm6906, %v6785
    %6943 = vst.msk [vmem:[#allocation4 + $0x240] sm:$0xff] %vm6906, %v6787
    %6944 = vst.msk [vmem:[#allocation4 + $0x250] sm:$0xff] %vm6906, %v6789
    %6945 = vst.msk [vmem:[#allocation4 + $0x260] sm:$0xff] %vm6906, %v6791
    %6946 = vst.msk [vmem:[#allocation4 + $0x270] sm:$0xff] %vm6906, %v6793
    %6947 = vst.msk [vmem:[#allocation4 + $0x280] sm:$0xff] %vm6906, %v6795
    %6948 = vst.msk [vmem:[#allocation4 + $0x290] sm:$0xff] %vm6906, %v6797
    %6949 = vst.msk [vmem:[#allocation4 + $0x2a0] sm:$0xff] %vm6906, %v6799
    %6950 = vst.msk [vmem:[#allocation4 + $0x2b0] sm:$0xff] %vm6906, %v6801
    %6951 = vst.msk [vmem:[#allocation4 + $0x2c0] sm:$0xff] %vm6906, %v6803
    %6952 = vst.msk [vmem:[#allocation4 + $0x2d0] sm:$0xff] %vm6906, %v6805
    %6953 = vst.msk [vmem:[#allocation4 + $0x2e0] sm:$0xff] %vm6906, %v6807
    %6954 = vst.msk [vmem:[#allocation4 + $0x2f0] sm:$0xff] %vm6906, %v6809
    %6955 = vst.msk [vmem:[#allocation4 + $0x300] sm:$0xff] %vm6906, %v6811
    %6956 = vst.msk [vmem:[#allocation4 + $0x310] sm:$0xff] %vm6906, %v6813
    %6957 = vst.msk [vmem:[#allocation4 + $0x320] sm:$0xff] %vm6906, %v6815
    %6958 = vst.msk [vmem:[#allocation4 + $0x330] sm:$0xff] %vm6906, %v6817
    %6959 = vst.msk [vmem:[#allocation4 + $0x340] sm:$0xff] %vm6906, %v6819
    %6960 = vst.msk [vmem:[#allocation4 + $0x350] sm:$0xff] %vm6906, %v6821
    %6961 = vst.msk [vmem:[#allocation4 + $0x360] sm:$0xff] %vm6906, %v6823
    %6962 = vst.msk [vmem:[#allocation4 + $0x370] sm:$0xff] %vm6906, %v6825
    %6963 = vst.msk [vmem:[#allocation4 + $0x380] sm:$0xff] %vm6906, %v6827
    %6964 = vst.msk [vmem:[#allocation4 + $0x390] sm:$0xff] %vm6906, %v6829
    %6965 = vst.msk [vmem:[#allocation4 + $0x3a0] sm:$0xff] %vm6906, %v6831
    %6966 = vst.msk [vmem:[#allocation4 + $0x3b0] sm:$0xff] %vm6906, %v6833
    %6967 = vst.msk [vmem:[#allocation4 + $0x3c0] sm:$0xff] %vm6906, %v6835
    %6968 = vst.msk [vmem:[#allocation4 + $0x3d0] sm:$0xff] %vm6906, %v6837
    %6969 = vst.msk [vmem:[#allocation4 + $0x3e0] sm:$0xff] %vm6906, %v6839
    %6970 = vst.msk [vmem:[#allocation4 + $0x3f0] sm:$0xff] %vm6906, %v6841
    %v6971 = vld [vmem:[%s2386 + $0x2] sm:$0xff]
    %v6972 = vld [vmem:[%s2386 + $0xa] sm:$0xff]
    %v6973 = vld [vmem:[%s2386 + $0x1a] sm:$0xff]
    %v6974 = vld [vmem:[%s2386 + $0x22] sm:$0xff]
    %v6975 = vld [vmem:[%s2386 + $0x32] sm:$0xff]
    %v6976 = vld [vmem:[%s2386 + $0x3a] sm:$0xff]
    %v6977 = vld [vmem:[%s2386 + $0x4a] sm:$0xff]
    %v6978 = vld [vmem:[%s2386 + $0x52] sm:$0xff]
    %v6979 = vld [vmem:[%s2386 + $0x62] sm:$0xff]
    %v6980 = vld [vmem:[%s2386 + $0x6a] sm:$0xff]
    %v6981 = vld [vmem:[%s2386 + $0x7a] sm:$0xff]
    %v6982 = vld [vmem:[%s2386 + $0x82] sm:$0xff]
    %v6983 = vld [vmem:[%s2386 + $0x92] sm:$0xff]
    %v6984 = vld [vmem:[%s2386 + $0x9a] sm:$0xff]
    %v6985 = vld [vmem:[%s2386 + $0xaa] sm:$0xff]
    %v6986 = vld [vmem:[%s2386 + $0xb2] sm:$0xff]
    %v6987 = vld [vmem:[%s2386 + $0xc2] sm:$0xff]
    %v6988 = vld [vmem:[%s2386 + $0xca] sm:$0xff]
    %v6989 = vld [vmem:[%s2386 + $0xda] sm:$0xff]
    %v6990 = vld [vmem:[%s2386 + $0xe2] sm:$0xff]
    %v6991 = vld [vmem:[%s2386 + $0xf2] sm:$0xff]
    %v6992 = vld [vmem:[%s2386 + $0xfa] sm:$0xff]
    %v6993 = vld [vmem:[%s2386 + $0x10a] sm:$0xff]
    %v6994 = vld [vmem:[%s2386 + $0x112] sm:$0xff]
    %v6995 = vld [vmem:[%s2386 + $0x122] sm:$0xff]
    %v6996 = vld [vmem:[%s2386 + $0x12a] sm:$0xff]
    %v6997 = vld [vmem:[%s2386 + $0x13a] sm:$0xff]
    %v6998 = vld [vmem:[%s2386 + $0x142] sm:$0xff]
    %v6999 = vld [vmem:[%s2386 + $0x152] sm:$0xff]
    %v7000 = vld [vmem:[%s2386 + $0x15a] sm:$0xff]
    %v7001 = vld [vmem:[%s2386 + $0x16a] sm:$0xff]
    %v7002 = vld [vmem:[%s2386 + $0x172] sm:$0xff]
    %v7003 = vld [vmem:[%s2386 + $0x1b2] sm:$0xff]
    %v7004 = vld [vmem:[%s2386 + $0x1ba] sm:$0xff]
    %v7005 = vld [vmem:[%s2386 + $0x1ca] sm:$0xff]
    %v7006 = vld [vmem:[%s2386 + $0x1d2] sm:$0xff]
    %v7007 = vld [vmem:[%s2386 + $0x1e2] sm:$0xff]
    %v7008 = vld [vmem:[%s2386 + $0x1ea] sm:$0xff]
    %v7009 = vld [vmem:[%s2386 + $0x1fa] sm:$0xff]
    %v7010 = vld [vmem:[%s2386 + $0x202] sm:$0xff]
    %v7011 = vld [vmem:[%s2386 + $0x212] sm:$0xff]
    %v7012 = vld [vmem:[%s2386 + $0x21a] sm:$0xff]
    %v7013 = vld [vmem:[%s2386 + $0x22a] sm:$0xff]
    %v7014 = vld [vmem:[%s2386 + $0x232] sm:$0xff]
    %v7015 = vld [vmem:[%s2386 + $0x242] sm:$0xff]
    %v7016 = vld [vmem:[%s2386 + $0x24a] sm:$0xff]
    %v7017 = vld [vmem:[%s2386 + $0x25a] sm:$0xff]
    %v7018 = vld [vmem:[%s2386 + $0x262] sm:$0xff]
    %v7019 = vld [vmem:[%s2386 + $0x272] sm:$0xff]
    %v7020 = vld [vmem:[%s2386 + $0x27a] sm:$0xff]
    %v7021 = vld [vmem:[%s2386 + $0x28a] sm:$0xff]
    %v7022 = vld [vmem:[%s2386 + $0x292] sm:$0xff]
    %v7023 = vld [vmem:[%s2386 + $0x2a2] sm:$0xff]
    %v7024 = vld [vmem:[%s2386 + $0x2aa] sm:$0xff]
    %v7025 = vld [vmem:[%s2386 + $0x2ba] sm:$0xff]
    %v7026 = vld [vmem:[%s2386 + $0x2c2] sm:$0xff]
    %v7027 = vld [vmem:[%s2386 + $0x2d2] sm:$0xff]
    %v7028 = vld [vmem:[%s2386 + $0x2da] sm:$0xff]
    %v7029 = vld [vmem:[%s2386 + $0x2ea] sm:$0xff]
    %v7030 = vld [vmem:[%s2386 + $0x2f2] sm:$0xff]
    %v7031 = vld [vmem:[%s2386 + $0x302] sm:$0xff]
    %v7032 = vld [vmem:[%s2386 + $0x30a] sm:$0xff]
    %v7033 = vld [vmem:[%s2386 + $0x31a] sm:$0xff]
    %v7034 = vld [vmem:[%s2386 + $0x322] sm:$0xff]
    %7099 = vrot.lane.b32.xlu0 %v6971, 64
    %v7100 = vpop.permute.xlu0 %7099
    %7101 = vrot.lane.b32.xlu0 %v6972, 64
    %v7102 = vpop.permute.xlu0 %7101
    %7103 = vrot.lane.b32.xlu0 %v6973, 64
    %v7104 = vpop.permute.xlu0 %7103
    %7105 = vrot.lane.b32.xlu0 %v6974, 64
    %v7106 = vpop.permute.xlu0 %7105
    %7107 = vrot.lane.b32.xlu0 %v6975, 64
    %v7108 = vpop.permute.xlu0 %7107
    %7109 = vrot.lane.b32.xlu0 %v6976, 64
    %v7110 = vpop.permute.xlu0 %7109
    %7111 = vrot.lane.b32.xlu0 %v6977, 64
    %v7112 = vpop.permute.xlu0 %7111
    %7113 = vrot.lane.b32.xlu0 %v6978, 64
    %v7114 = vpop.permute.xlu0 %7113
    %7115 = vrot.lane.b32.xlu0 %v6979, 64
    %v7116 = vpop.permute.xlu0 %7115
    %7117 = vrot.lane.b32.xlu0 %v6980, 64
    %v7118 = vpop.permute.xlu0 %7117
    %7119 = vrot.lane.b32.xlu0 %v6981, 64
    %v7120 = vpop.permute.xlu0 %7119
    %7121 = vrot.lane.b32.xlu0 %v6982, 64
    %v7122 = vpop.permute.xlu0 %7121
    %7123 = vrot.lane.b32.xlu0 %v6983, 64
    %v7124 = vpop.permute.xlu0 %7123
    %7125 = vrot.lane.b32.xlu0 %v6984, 64
    %v7126 = vpop.permute.xlu0 %7125
    %7127 = vrot.lane.b32.xlu0 %v6985, 64
    %v7128 = vpop.permute.xlu0 %7127
    %7129 = vrot.lane.b32.xlu0 %v6986, 64
    %v7130 = vpop.permute.xlu0 %7129
    %7131 = vrot.lane.b32.xlu0 %v6987, 64
    %v7132 = vpop.permute.xlu0 %7131
    %7133 = vrot.lane.b32.xlu0 %v6988, 64
    %v7134 = vpop.permute.xlu0 %7133
    %7135 = vrot.lane.b32.xlu0 %v6989, 64
    %v7136 = vpop.permute.xlu0 %7135
    %7137 = vrot.lane.b32.xlu0 %v6990, 64
    %v7138 = vpop.permute.xlu0 %7137
    %7139 = vrot.lane.b32.xlu0 %v6991, 64
    %v7140 = vpop.permute.xlu0 %7139
    %7141 = vrot.lane.b32.xlu0 %v6992, 64
    %v7142 = vpop.permute.xlu0 %7141
    %7143 = vrot.lane.b32.xlu0 %v6993, 64
    %v7144 = vpop.permute.xlu0 %7143
    %7145 = vrot.lane.b32.xlu0 %v6994, 64
    %v7146 = vpop.permute.xlu0 %7145
    %7147 = vrot.lane.b32.xlu0 %v6995, 64
    %v7148 = vpop.permute.xlu0 %7147
    %7149 = vrot.lane.b32.xlu0 %v6996, 64
    %v7150 = vpop.permute.xlu0 %7149
    %7151 = vrot.lane.b32.xlu0 %v6997, 64
    %v7152 = vpop.permute.xlu0 %7151
    %7153 = vrot.lane.b32.xlu0 %v6998, 64
    %v7154 = vpop.permute.xlu0 %7153
    %7155 = vrot.lane.b32.xlu0 %v6999, 64
    %v7156 = vpop.permute.xlu0 %7155
    %7157 = vrot.lane.b32.xlu0 %v7000, 64
    %v7158 = vpop.permute.xlu0 %7157
    %7159 = vrot.lane.b32.xlu0 %v7001, 64
    %v7160 = vpop.permute.xlu0 %7159
    %7161 = vrot.lane.b32.xlu0 %v7002, 64
    %v7162 = vpop.permute.xlu0 %7161
    %7163 = vrot.lane.b32.xlu0 %v7003, 64
    %v7164 = vpop.permute.xlu0 %7163
    %7165 = vrot.lane.b32.xlu0 %v7004, 64
    %v7166 = vpop.permute.xlu0 %7165
    %7167 = vrot.lane.b32.xlu0 %v7005, 64
    %v7168 = vpop.permute.xlu0 %7167
    %7169 = vrot.lane.b32.xlu0 %v7006, 64
    %v7170 = vpop.permute.xlu0 %7169
    %7171 = vrot.lane.b32.xlu0 %v7007, 64
    %v7172 = vpop.permute.xlu0 %7171
    %7173 = vrot.lane.b32.xlu0 %v7008, 64
    %v7174 = vpop.permute.xlu0 %7173
    %7175 = vrot.lane.b32.xlu0 %v7009, 64
    %v7176 = vpop.permute.xlu0 %7175
    %7177 = vrot.lane.b32.xlu0 %v7010, 64
    %v7178 = vpop.permute.xlu0 %7177
    %7179 = vrot.lane.b32.xlu0 %v7011, 64
    %v7180 = vpop.permute.xlu0 %7179
    %7181 = vrot.lane.b32.xlu0 %v7012, 64
    %v7182 = vpop.permute.xlu0 %7181
    %7183 = vrot.lane.b32.xlu0 %v7013, 64
    %v7184 = vpop.permute.xlu0 %7183
    %7185 = vrot.lane.b32.xlu0 %v7014, 64
    %v7186 = vpop.permute.xlu0 %7185
    %7187 = vrot.lane.b32.xlu0 %v7015, 64
    %v7188 = vpop.permute.xlu0 %7187
    %7189 = vrot.lane.b32.xlu0 %v7016, 64
    %v7190 = vpop.permute.xlu0 %7189
    %7191 = vrot.lane.b32.xlu0 %v7017, 64
    %v7192 = vpop.permute.xlu0 %7191
    %7193 = vrot.lane.b32.xlu0 %v7018, 64
    %v7194 = vpop.permute.xlu0 %7193
    %7195 = vrot.lane.b32.xlu0 %v7019, 64
    %v7196 = vpop.permute.xlu0 %7195
    %7197 = vrot.lane.b32.xlu0 %v7020, 64
    %v7198 = vpop.permute.xlu0 %7197
    %7199 = vrot.lane.b32.xlu0 %v7021, 64
    %v7200 = vpop.permute.xlu0 %7199
    %7201 = vrot.lane.b32.xlu0 %v7022, 64
    %v7202 = vpop.permute.xlu0 %7201
    %7203 = vrot.lane.b32.xlu0 %v7023, 64
    %v7204 = vpop.permute.xlu0 %7203
    %7205 = vrot.lane.b32.xlu0 %v7024, 64
    %v7206 = vpop.permute.xlu0 %7205
    %7207 = vrot.lane.b32.xlu0 %v7025, 64
    %v7208 = vpop.permute.xlu0 %7207
    %7209 = vrot.lane.b32.xlu0 %v7026, 64
    %v7210 = vpop.permute.xlu0 %7209
    %7211 = vrot.lane.b32.xlu0 %v7027, 64
    %v7212 = vpop.permute.xlu0 %7211
    %7213 = vrot.lane.b32.xlu0 %v7028, 64
    %v7214 = vpop.permute.xlu0 %7213
    %7215 = vrot.lane.b32.xlu0 %v7029, 64
    %v7216 = vpop.permute.xlu0 %7215
    %7217 = vrot.lane.b32.xlu0 %v7030, 64
    %v7218 = vpop.permute.xlu0 %7217
    %7219 = vrot.lane.b32.xlu0 %v7031, 64
    %v7220 = vpop.permute.xlu0 %7219
    %7221 = vrot.lane.b32.xlu0 %v7032, 64
    %v7222 = vpop.permute.xlu0 %7221
    %7223 = vrot.lane.b32.xlu0 %v7033, 64
    %v7224 = vpop.permute.xlu0 %7223
    %7225 = vrot.lane.b32.xlu0 %v7034, 64
    %v7226 = vpop.permute.xlu0 %7225
    %vm7291 = vcmask 589312
    %7292 = vst.msk [vmem:[#allocation4] sm:$0xff] %vm7291, %v7100
    %7293 = vst.msk [vmem:[#allocation4 + $0x10] sm:$0xff] %vm7291, %v7102
    %7294 = vst.msk [vmem:[#allocation4 + $0x20] sm:$0xff] %vm7291, %v7104
    %7295 = vst.msk [vmem:[#allocation4 + $0x30] sm:$0xff] %vm7291, %v7106
    %7296 = vst.msk [vmem:[#allocation4 + $0x40] sm:$0xff] %vm7291, %v7108
    %7297 = vst.msk [vmem:[#allocation4 + $0x50] sm:$0xff] %vm7291, %v7110
    %7298 = vst.msk [vmem:[#allocation4 + $0x60] sm:$0xff] %vm7291, %v7112
    %7299 = vst.msk [vmem:[#allocation4 + $0x70] sm:$0xff] %vm7291, %v7114
    %7300 = vst.msk [vmem:[#allocation4 + $0x80] sm:$0xff] %vm7291, %v7116
    %7301 = vst.msk [vmem:[#allocation4 + $0x90] sm:$0xff] %vm7291, %v7118
    %7302 = vst.msk [vmem:[#allocation4 + $0xa0] sm:$0xff] %vm7291, %v7120
    %7303 = vst.msk [vmem:[#allocation4 + $0xb0] sm:$0xff] %vm7291, %v7122
    %7304 = vst.msk [vmem:[#allocation4 + $0xc0] sm:$0xff] %vm7291, %v7124
    %7305 = vst.msk [vmem:[#allocation4 + $0xd0] sm:$0xff] %vm7291, %v7126
    %7306 = vst.msk [vmem:[#allocation4 + $0xe0] sm:$0xff] %vm7291, %v7128
    %7307 = vst.msk [vmem:[#allocation4 + $0xf0] sm:$0xff] %vm7291, %v7130
    %7308 = vst.msk [vmem:[#allocation4 + $0x100] sm:$0xff] %vm7291, %v7132
    %7309 = vst.msk [vmem:[#allocation4 + $0x110] sm:$0xff] %vm7291, %v7134
    %7310 = vst.msk [vmem:[#allocation4 + $0x120] sm:$0xff] %vm7291, %v7136
    %7311 = vst.msk [vmem:[#allocation4 + $0x130] sm:$0xff] %vm7291, %v7138
    %7312 = vst.msk [vmem:[#allocation4 + $0x140] sm:$0xff] %vm7291, %v7140
    %7313 = vst.msk [vmem:[#allocation4 + $0x150] sm:$0xff] %vm7291, %v7142
    %7314 = vst.msk [vmem:[#allocation4 + $0x160] sm:$0xff] %vm7291, %v7144
    %7315 = vst.msk [vmem:[#allocation4 + $0x170] sm:$0xff] %vm7291, %v7146
    %7316 = vst.msk [vmem:[#allocation4 + $0x180] sm:$0xff] %vm7291, %v7148
    %7317 = vst.msk [vmem:[#allocation4 + $0x190] sm:$0xff] %vm7291, %v7150
    %7318 = vst.msk [vmem:[#allocation4 + $0x1a0] sm:$0xff] %vm7291, %v7152
    %7319 = vst.msk [vmem:[#allocation4 + $0x1b0] sm:$0xff] %vm7291, %v7154
    %7320 = vst.msk [vmem:[#allocation4 + $0x1c0] sm:$0xff] %vm7291, %v7156
    %7321 = vst.msk [vmem:[#allocation4 + $0x1d0] sm:$0xff] %vm7291, %v7158
    %7322 = vst.msk [vmem:[#allocation4 + $0x1e0] sm:$0xff] %vm7291, %v7160
    %7323 = vst.msk [vmem:[#allocation4 + $0x1f0] sm:$0xff] %vm7291, %v7162
    %7324 = vst.msk [vmem:[#allocation4 + $0x200] sm:$0xff] %vm7291, %v7164
    %7325 = vst.msk [vmem:[#allocation4 + $0x210] sm:$0xff] %vm7291, %v7166
    %7326 = vst.msk [vmem:[#allocation4 + $0x220] sm:$0xff] %vm7291, %v7168
    %7327 = vst.msk [vmem:[#allocation4 + $0x230] sm:$0xff] %vm7291, %v7170
    %7328 = vst.msk [vmem:[#allocation4 + $0x240] sm:$0xff] %vm7291, %v7172
    %7329 = vst.msk [vmem:[#allocation4 + $0x250] sm:$0xff] %vm7291, %v7174
    %7330 = vst.msk [vmem:[#allocation4 + $0x260] sm:$0xff] %vm7291, %v7176
    %7331 = vst.msk [vmem:[#allocation4 + $0x270] sm:$0xff] %vm7291, %v7178
    %7332 = vst.msk [vmem:[#allocation4 + $0x280] sm:$0xff] %vm7291, %v7180
    %7333 = vst.msk [vmem:[#allocation4 + $0x290] sm:$0xff] %vm7291, %v7182
    %7334 = vst.msk [vmem:[#allocation4 + $0x2a0] sm:$0xff] %vm7291, %v7184
    %7335 = vst.msk [vmem:[#allocation4 + $0x2b0] sm:$0xff] %vm7291, %v7186
    %7336 = vst.msk [vmem:[#allocation4 + $0x2c0] sm:$0xff] %vm7291, %v7188
    %7337 = vst.msk [vmem:[#allocation4 + $0x2d0] sm:$0xff] %vm7291, %v7190
    %7338 = vst.msk [vmem:[#allocation4 + $0x2e0] sm:$0xff] %vm7291, %v7192
    %7339 = vst.msk [vmem:[#allocation4 + $0x2f0] sm:$0xff] %vm7291, %v7194
    %7340 = vst.msk [vmem:[#allocation4 + $0x300] sm:$0xff] %vm7291, %v7196
    %7341 = vst.msk [vmem:[#allocation4 + $0x310] sm:$0xff] %vm7291, %v7198
    %7342 = vst.msk [vmem:[#allocation4 + $0x320] sm:$0xff] %vm7291, %v7200
    %7343 = vst.msk [vmem:[#allocation4 + $0x330] sm:$0xff] %vm7291, %v7202
    %7344 = vst.msk [vmem:[#allocation4 + $0x340] sm:$0xff] %vm7291, %v7204
    %7345 = vst.msk [vmem:[#allocation4 + $0x350] sm:$0xff] %vm7291, %v7206
    %7346 = vst.msk [vmem:[#allocation4 + $0x360] sm:$0xff] %vm7291, %v7208
    %7347 = vst.msk [vmem:[#allocation4 + $0x370] sm:$0xff] %vm7291, %v7210
    %7348 = vst.msk [vmem:[#allocation4 + $0x380] sm:$0xff] %vm7291, %v7212
    %7349 = vst.msk [vmem:[#allocation4 + $0x390] sm:$0xff] %vm7291, %v7214
    %7350 = vst.msk [vmem:[#allocation4 + $0x3a0] sm:$0xff] %vm7291, %v7216
    %7351 = vst.msk [vmem:[#allocation4 + $0x3b0] sm:$0xff] %vm7291, %v7218
    %7352 = vst.msk [vmem:[#allocation4 + $0x3c0] sm:$0xff] %vm7291, %v7220
    %7353 = vst.msk [vmem:[#allocation4 + $0x3d0] sm:$0xff] %vm7291, %v7222
    %7354 = vst.msk [vmem:[#allocation4 + $0x3e0] sm:$0xff] %vm7291, %v7224
    %7355 = vst.msk [vmem:[#allocation4 + $0x3f0] sm:$0xff] %vm7291, %v7226
    %v7356 = vld [vmem:[#allocation4] sm:$0xff]
    %v7357 = vld [vmem:[#allocation4 + $0x10] sm:$0xff]
    %v7358 = vld [vmem:[#allocation4 + $0x20] sm:$0xff]
    %v7359 = vld [vmem:[#allocation4 + $0x30] sm:$0xff]
    %v7360 = vld [vmem:[#allocation4 + $0x40] sm:$0xff]
    %v7361 = vld [vmem:[#allocation4 + $0x50] sm:$0xff]
    %v7362 = vld [vmem:[#allocation4 + $0x60] sm:$0xff]
    %v7363 = vld [vmem:[#allocation4 + $0x70] sm:$0xff]
    %v7364 = vld [vmem:[#allocation4 + $0x80] sm:$0xff]
    %v7365 = vld [vmem:[#allocation4 + $0x90] sm:$0xff]
    %v7366 = vld [vmem:[#allocation4 + $0xa0] sm:$0xff]
    %v7367 = vld [vmem:[#allocation4 + $0xb0] sm:$0xff]
    %v7368 = vld [vmem:[#allocation4 + $0xc0] sm:$0xff]
    %v7369 = vld [vmem:[#allocation4 + $0xd0] sm:$0xff]
    %v7370 = vld [vmem:[#allocation4 + $0xe0] sm:$0xff]
    %v7371 = vld [vmem:[#allocation4 + $0xf0] sm:$0xff]
    %v7372 = vld [vmem:[#allocation4 + $0x100] sm:$0xff]
    %v7373 = vld [vmem:[#allocation4 + $0x110] sm:$0xff]
    %v7374 = vld [vmem:[#allocation4 + $0x120] sm:$0xff]
    %v7375 = vld [vmem:[#allocation4 + $0x130] sm:$0xff]
    %v7376 = vld [vmem:[#allocation4 + $0x140] sm:$0xff]
    %v7377 = vld [vmem:[#allocation4 + $0x150] sm:$0xff]
    %v7378 = vld [vmem:[#allocation4 + $0x160] sm:$0xff]
    %v7379 = vld [vmem:[#allocation4 + $0x170] sm:$0xff]
    %v7380 = vld [vmem:[#allocation4 + $0x180] sm:$0xff]
    %v7381 = vld [vmem:[#allocation4 + $0x190] sm:$0xff]
    %v7382 = vld [vmem:[#allocation4 + $0x1a0] sm:$0xff]
    %v7383 = vld [vmem:[#allocation4 + $0x1b0] sm:$0xff]
    %v7384 = vld [vmem:[#allocation4 + $0x1c0] sm:$0xff]
    %v7385 = vld [vmem:[#allocation4 + $0x1d0] sm:$0xff]
    %v7386 = vld [vmem:[#allocation4 + $0x1e0] sm:$0xff]
    %v7387 = vld [vmem:[#allocation4 + $0x1f0] sm:$0xff]
    %v7388 = vld [vmem:[#allocation4 + $0x200] sm:$0xff]
    %v7389 = vld [vmem:[#allocation4 + $0x210] sm:$0xff]
    %v7390 = vld [vmem:[#allocation4 + $0x220] sm:$0xff]
    %v7391 = vld [vmem:[#allocation4 + $0x230] sm:$0xff]
    %v7392 = vld [vmem:[#allocation4 + $0x240] sm:$0xff]
    %v7393 = vld [vmem:[#allocation4 + $0x250] sm:$0xff]
    %v7394 = vld [vmem:[#allocation4 + $0x260] sm:$0xff]
    %v7395 = vld [vmem:[#allocation4 + $0x270] sm:$0xff]
    %v7396 = vld [vmem:[#allocation4 + $0x280] sm:$0xff]
    %v7397 = vld [vmem:[#allocation4 + $0x290] sm:$0xff]
    %v7398 = vld [vmem:[#allocation4 + $0x2a0] sm:$0xff]
    %v7399 = vld [vmem:[#allocation4 + $0x2b0] sm:$0xff]
    %v7400 = vld [vmem:[#allocation4 + $0x2c0] sm:$0xff]
    %v7401 = vld [vmem:[#allocation4 + $0x2d0] sm:$0xff]
    %v7402 = vld [vmem:[#allocation4 + $0x2e0] sm:$0xff]
    %v7403 = vld [vmem:[#allocation4 + $0x2f0] sm:$0xff]
    %v7404 = vld [vmem:[#allocation4 + $0x300] sm:$0xff]
    %v7405 = vld [vmem:[#allocation4 + $0x310] sm:$0xff]
    %v7406 = vld [vmem:[#allocation4 + $0x320] sm:$0xff]
    %v7407 = vld [vmem:[#allocation4 + $0x330] sm:$0xff]
    %v7408 = vld [vmem:[#allocation4 + $0x340] sm:$0xff]
    %v7409 = vld [vmem:[#allocation4 + $0x350] sm:$0xff]
    %v7410 = vld [vmem:[#allocation4 + $0x360] sm:$0xff]
    %v7411 = vld [vmem:[#allocation4 + $0x370] sm:$0xff]
    %v7412 = vld [vmem:[#allocation4 + $0x380] sm:$0xff]
    %v7413 = vld [vmem:[#allocation4 + $0x390] sm:$0xff]
    %v7414 = vld [vmem:[#allocation4 + $0x3a0] sm:$0xff]
    %v7415 = vld [vmem:[#allocation4 + $0x3b0] sm:$0xff]
    %v7416 = vld [vmem:[#allocation4 + $0x3c0] sm:$0xff]
    %v7417 = vld [vmem:[#allocation4 + $0x3d0] sm:$0xff]
    %v7418 = vld [vmem:[#allocation4 + $0x3e0] sm:$0xff]
    %v7419 = vld [vmem:[#allocation4 + $0x3f0] sm:$0xff]
    %v7420 = vld [vmem:[%s3] sm:$0xff]
    %v7421 = vld [vmem:[%s3 + $0x8] sm:$0xff]
    %v7422 = vld [vmem:[%s3 + $0x10] sm:$0xff]
    %v7423 = vld [vmem:[%s3 + $0x18] sm:$0xff]
    %v7424 = vld [vmem:[%s3 + $0x20] sm:$0xff]
    %v7425 = vld [vmem:[%s3 + $0x28] sm:$0xff]
    %v7426 = vld [vmem:[%s3 + $0x30] sm:$0xff]
    %v7427 = vld [vmem:[%s3 + $0x38] sm:$0xff]
    %v7428 = vld [vmem:[%s3 + $0x40] sm:$0xff]
    %v7429 = vld [vmem:[%s4] sm:$0x1]
    %v7431 = vperm.slane %v7429, 0
    %vm7433 = vcmask 588800
    %v7435 = vsel %vm7433, %v7356, 0
    %v7438 = vsel %vm7433, %v7357, 0
    %v7441 = vsel %vm7433, %v7358, 0
    %v7444 = vsel %vm7433, %v7359, 0
    %v7447 = vsel %vm7433, %v7360, 0
    %v7450 = vsel %vm7433, %v7361, 0
    %v7453 = vsel %vm7433, %v7362, 0
    %v7456 = vsel %vm7433, %v7363, 0
    %v7459 = vsel %vm7433, %v7364, 0
    %v7462 = vsel %vm7433, %v7365, 0
    %v7465 = vsel %vm7433, %v7366, 0
    %v7468 = vsel %vm7433, %v7367, 0
    %v7471 = vsel %vm7433, %v7368, 0
    %v7474 = vsel %vm7433, %v7369, 0
    %v7477 = vsel %vm7433, %v7370, 0
    %v7480 = vsel %vm7433, %v7371, 0
    %v7483 = vsel %vm7433, %v7372, 0
    %v7486 = vsel %vm7433, %v7373, 0
    %v7489 = vsel %vm7433, %v7374, 0
    %v7492 = vsel %vm7433, %v7375, 0
    %v7495 = vsel %vm7433, %v7376, 0
    %v7498 = vsel %vm7433, %v7377, 0
    %v7501 = vsel %vm7433, %v7378, 0
    %v7504 = vsel %vm7433, %v7379, 0
    %v7507 = vsel %vm7433, %v7380, 0
    %v7510 = vsel %vm7433, %v7381, 0
    %v7513 = vsel %vm7433, %v7382, 0
    %v7516 = vsel %vm7433, %v7383, 0
    %v7519 = vsel %vm7433, %v7384, 0
    %v7522 = vsel %vm7433, %v7385, 0
    %v7525 = vsel %vm7433, %v7386, 0
    %v7528 = vsel %vm7433, %v7387, 0
    %v7531 = vsel %vm7433, %v7388, 0
    %v7534 = vsel %vm7433, %v7389, 0
    %v7537 = vsel %vm7433, %v7390, 0
    %v7540 = vsel %vm7433, %v7391, 0
    %v7543 = vsel %vm7433, %v7392, 0
    %v7546 = vsel %vm7433, %v7393, 0
    %v7549 = vsel %vm7433, %v7394, 0
    %v7552 = vsel %vm7433, %v7395, 0
    %v7555 = vsel %vm7433, %v7396, 0
    %v7558 = vsel %vm7433, %v7397, 0
    %v7561 = vsel %vm7433, %v7398, 0
    %v7564 = vsel %vm7433, %v7399, 0
    %v7567 = vsel %vm7433, %v7400, 0
    %v7570 = vsel %vm7433, %v7401, 0
    %v7573 = vsel %vm7433, %v7402, 0
    %v7576 = vsel %vm7433, %v7403, 0
    %v7579 = vsel %vm7433, %v7404, 0
    %v7582 = vsel %vm7433, %v7405, 0
    %v7585 = vsel %vm7433, %v7406, 0
    %v7588 = vsel %vm7433, %v7407, 0
    %v7591 = vsel %vm7433, %v7408, 0
    %v7594 = vsel %vm7433, %v7409, 0
    %v7597 = vsel %vm7433, %v7410, 0
    %v7600 = vsel %vm7433, %v7411, 0
    %v7603 = vsel %vm7433, %v7412, 0
    %v7606 = vsel %vm7433, %v7413, 0
    %v7609 = vsel %vm7433, %v7414, 0
    %v7612 = vsel %vm7433, %v7415, 0
    %v7615 = vsel %vm7433, %v7416, 0
    %v7618 = vsel %vm7433, %v7417, 0
    %v7621 = vsel %vm7433, %v7418, 0
    %v7624 = vsel %vm7433, %v7419, 0
    %7626 = vmatpush.msra.mxu0 0.0
    %7627 = vmatpush.msra.mxu0 0.0
    %7628 = vmatpush.msra.mxu0 0.0
    %7629 = vmatpush.msra.mxu0 0.0
    %7630 = vmatpush.msra.mxu0 0.0
    %7631 = vmatpush.msra.mxu0 0.0
    %7632 = vmatpush.msra.mxu0 0.0
    %7633 = vmatpush.msra.mxu0 %v7428
    %7634 = vmatpush.msra.mxu0 %v7427
    %7635 = vmatpush.msra.mxu0 %v7426
    %7636 = vmatpush.msra.mxu0 %v7425
    %7637 = vmatpush.msra.mxu0 %v7424
    %7638 = vmatpush.msra.mxu0 %v7423
    %7639 = vmatpush.msra.mxu0 %v7422
    %7640 = vmatpush.msra.mxu0 %v7421
    %7641 = vmatpush.msra.mxu0 %v7420
    %7642 = vmatmul.f32.gmra.mxu0 %v7435
    %v7643 = vpop.f32.mrf.mxu0
    %v7644 = vadd.f32 %v7431, %v7643
    %7645 = vmatmul.f32.gmra.mxu0 %v7438
    %v7646 = vpop.f32.mrf.mxu0
    %v7647 = vadd.f32 %v7431, %v7646
    %7648 = vmatmul.f32.gmra.mxu0 %v7441
    %v7649 = vpop.f32.mrf.mxu0
    %v7650 = vadd.f32 %v7431, %v7649
    %7651 = vmatmul.f32.gmra.mxu0 %v7444
    %v7652 = vpop.f32.mrf.mxu0
    %v7653 = vadd.f32 %v7431, %v7652
    %7654 = vmatmul.f32.gmra.mxu0 %v7447
    %v7655 = vpop.f32.mrf.mxu0
    %v7656 = vadd.f32 %v7431, %v7655
    %7657 = vmatmul.f32.gmra.mxu0 %v7450
    %v7658 = vpop.f32.mrf.mxu0
    %v7659 = vadd.f32 %v7431, %v7658
    %7660 = vmatmul.f32.gmra.mxu0 %v7453
    %v7661 = vpop.f32.mrf.mxu0
    %v7662 = vadd.f32 %v7431, %v7661
    %7663 = vmatmul.f32.gmra.mxu0 %v7456
    %v7664 = vpop.f32.mrf.mxu0
    %v7665 = vadd.f32 %v7431, %v7664
    %7666 = vmatmul.f32.gmra.mxu0 %v7459
    %v7667 = vpop.f32.mrf.mxu0
    %v7668 = vadd.f32 %v7431, %v7667
    %7669 = vmatmul.f32.gmra.mxu0 %v7462
    %v7670 = vpop.f32.mrf.mxu0
    %v7671 = vadd.f32 %v7431, %v7670
    %7672 = vmatmul.f32.gmra.mxu0 %v7465
    %v7673 = vpop.f32.mrf.mxu0
    %v7674 = vadd.f32 %v7431, %v7673
    %7675 = vmatmul.f32.gmra.mxu0 %v7468
    %v7676 = vpop.f32.mrf.mxu0
    %v7677 = vadd.f32 %v7431, %v7676
    %7678 = vmatmul.f32.gmra.mxu0 %v7471
    %v7679 = vpop.f32.mrf.mxu0
    %v7680 = vadd.f32 %v7431, %v7679
    %7681 = vmatmul.f32.gmra.mxu0 %v7474
    %v7682 = vpop.f32.mrf.mxu0
    %v7683 = vadd.f32 %v7431, %v7682
    %7684 = vmatmul.f32.gmra.mxu0 %v7477
    %v7685 = vpop.f32.mrf.mxu0
    %v7686 = vadd.f32 %v7431, %v7685
    %7687 = vmatmul.f32.gmra.mxu0 %v7480
    %v7688 = vpop.f32.mrf.mxu0
    %v7689 = vadd.f32 %v7431, %v7688
    %7690 = vmatmul.f32.gmra.mxu0 %v7483
    %v7691 = vpop.f32.mrf.mxu0
    %v7692 = vadd.f32 %v7431, %v7691
    %7693 = vmatmul.f32.gmra.mxu0 %v7486
    %v7694 = vpop.f32.mrf.mxu0
    %v7695 = vadd.f32 %v7431, %v7694
    %7696 = vmatmul.f32.gmra.mxu0 %v7489
    %v7697 = vpop.f32.mrf.mxu0
    %v7698 = vadd.f32 %v7431, %v7697
    %7699 = vmatmul.f32.gmra.mxu0 %v7492
    %v7700 = vpop.f32.mrf.mxu0
    %v7701 = vadd.f32 %v7431, %v7700
    %7702 = vmatmul.f32.gmra.mxu0 %v7495
    %v7703 = vpop.f32.mrf.mxu0
    %v7704 = vadd.f32 %v7431, %v7703
    %7705 = vmatmul.f32.gmra.mxu0 %v7498
    %v7706 = vpop.f32.mrf.mxu0
    %v7707 = vadd.f32 %v7431, %v7706
    %7708 = vmatmul.f32.gmra.mxu0 %v7501
    %v7709 = vpop.f32.mrf.mxu0
    %v7710 = vadd.f32 %v7431, %v7709
    %7711 = vmatmul.f32.gmra.mxu0 %v7504
    %v7712 = vpop.f32.mrf.mxu0
    %v7713 = vadd.f32 %v7431, %v7712
    %7714 = vmatmul.f32.gmra.mxu0 %v7507
    %v7715 = vpop.f32.mrf.mxu0
    %v7716 = vadd.f32 %v7431, %v7715
    %7717 = vmatmul.f32.gmra.mxu0 %v7510
    %v7718 = vpop.f32.mrf.mxu0
    %v7719 = vadd.f32 %v7431, %v7718
    %7720 = vmatmul.f32.gmra.mxu0 %v7513
    %v7721 = vpop.f32.mrf.mxu0
    %v7722 = vadd.f32 %v7431, %v7721
    %7723 = vmatmul.f32.gmra.mxu0 %v7516
    %v7724 = vpop.f32.mrf.mxu0
    %v7725 = vadd.f32 %v7431, %v7724
    %7726 = vmatmul.f32.gmra.mxu0 %v7519
    %v7727 = vpop.f32.mrf.mxu0
    %v7728 = vadd.f32 %v7431, %v7727
    %7729 = vmatmul.f32.gmra.mxu0 %v7522
    %v7730 = vpop.f32.mrf.mxu0
    %v7731 = vadd.f32 %v7431, %v7730
    %7732 = vmatmul.f32.gmra.mxu0 %v7525
    %v7733 = vpop.f32.mrf.mxu0
    %v7734 = vadd.f32 %v7431, %v7733
    %7735 = vmatmul.f32.gmra.mxu0 %v7528
    %v7736 = vpop.f32.mrf.mxu0
    %v7737 = vadd.f32 %v7431, %v7736
    %7738 = vmatmul.f32.gmra.mxu0 %v7531
    %v7739 = vpop.f32.mrf.mxu0
    %v7740 = vadd.f32 %v7431, %v7739
    %7741 = vmatmul.f32.gmra.mxu0 %v7534
    %v7742 = vpop.f32.mrf.mxu0
    %v7743 = vadd.f32 %v7431, %v7742
    %7744 = vmatmul.f32.gmra.mxu0 %v7537
    %v7745 = vpop.f32.mrf.mxu0
    %v7746 = vadd.f32 %v7431, %v7745
    %7747 = vmatmul.f32.gmra.mxu0 %v7540
    %v7748 = vpop.f32.mrf.mxu0
    %v7749 = vadd.f32 %v7431, %v7748
    %7750 = vmatmul.f32.gmra.mxu0 %v7543
    %v7751 = vpop.f32.mrf.mxu0
    %v7752 = vadd.f32 %v7431, %v7751
    %7753 = vmatmul.f32.gmra.mxu0 %v7546
    %v7754 = vpop.f32.mrf.mxu0
    %v7755 = vadd.f32 %v7431, %v7754
    %7756 = vmatmul.f32.gmra.mxu0 %v7549
    %v7757 = vpop.f32.mrf.mxu0
    %v7758 = vadd.f32 %v7431, %v7757
    %7759 = vmatmul.f32.gmra.mxu0 %v7552
    %v7760 = vpop.f32.mrf.mxu0
    %v7761 = vadd.f32 %v7431, %v7760
    %7762 = vmatmul.f32.gmra.mxu0 %v7555
    %v7763 = vpop.f32.mrf.mxu0
    %v7764 = vadd.f32 %v7431, %v7763
    %7765 = vmatmul.f32.gmra.mxu0 %v7558
    %v7766 = vpop.f32.mrf.mxu0
    %v7767 = vadd.f32 %v7431, %v7766
    %7768 = vmatmul.f32.gmra.mxu0 %v7561
    %v7769 = vpop.f32.mrf.mxu0
    %v7770 = vadd.f32 %v7431, %v7769
    %7771 = vmatmul.f32.gmra.mxu0 %v7564
    %v7772 = vpop.f32.mrf.mxu0
    %v7773 = vadd.f32 %v7431, %v7772
    %7774 = vmatmul.f32.gmra.mxu0 %v7567
    %v7775 = vpop.f32.mrf.mxu0
    %v7776 = vadd.f32 %v7431, %v7775
    %7777 = vmatmul.f32.gmra.mxu0 %v7570
    %v7778 = vpop.f32.mrf.mxu0
    %v7779 = vadd.f32 %v7431, %v7778
    %7780 = vmatmul.f32.gmra.mxu0 %v7573
    %v7781 = vpop.f32.mrf.mxu0
    %v7782 = vadd.f32 %v7431, %v7781
    %7783 = vmatmul.f32.gmra.mxu0 %v7576
    %v7784 = vpop.f32.mrf.mxu0
    %v7785 = vadd.f32 %v7431, %v7784
    %7786 = vmatmul.f32.gmra.mxu0 %v7579
    %v7787 = vpop.f32.mrf.mxu0
    %v7788 = vadd.f32 %v7431, %v7787
    %7789 = vmatmul.f32.gmra.mxu0 %v7582
    %v7790 = vpop.f32.mrf.mxu0
    %v7791 = vadd.f32 %v7431, %v7790
    %7792 = vmatmul.f32.gmra.mxu0 %v7585
    %v7793 = vpop.f32.mrf.mxu0
    %v7794 = vadd.f32 %v7431, %v7793
    %7795 = vmatmul.f32.gmra.mxu0 %v7588
    %v7796 = vpop.f32.mrf.mxu0
    %v7797 = vadd.f32 %v7431, %v7796
    %7798 = vmatmul.f32.gmra.mxu0 %v7591
    %v7799 = vpop.f32.mrf.mxu0
    %v7800 = vadd.f32 %v7431, %v7799
    %7801 = vmatmul.f32.gmra.mxu0 %v7594
    %v7802 = vpop.f32.mrf.mxu0
    %v7803 = vadd.f32 %v7431, %v7802
    %7804 = vmatmul.f32.gmra.mxu0 %v7597
    %v7805 = vpop.f32.mrf.mxu0
    %v7806 = vadd.f32 %v7431, %v7805
    %7807 = vmatmul.f32.gmra.mxu0 %v7600
    %v7808 = vpop.f32.mrf.mxu0
    %v7809 = vadd.f32 %v7431, %v7808
    %7810 = vmatmul.f32.gmra.mxu0 %v7603
    %v7811 = vpop.f32.mrf.mxu0
    %v7812 = vadd.f32 %v7431, %v7811
    %7813 = vmatmul.f32.gmra.mxu0 %v7606
    %v7814 = vpop.f32.mrf.mxu0
    %v7815 = vadd.f32 %v7431, %v7814
    %7816 = vmatmul.f32.gmra.mxu0 %v7609
    %v7817 = vpop.f32.mrf.mxu0
    %v7818 = vadd.f32 %v7431, %v7817
    %7819 = vmatmul.f32.gmra.mxu0 %v7612
    %v7820 = vpop.f32.mrf.mxu0
    %v7821 = vadd.f32 %v7431, %v7820
    %7822 = vmatmul.f32.gmra.mxu0 %v7615
    %v7823 = vpop.f32.mrf.mxu0
    %v7824 = vadd.f32 %v7431, %v7823
    %7825 = vmatmul.f32.gmra.mxu0 %v7618
    %v7826 = vpop.f32.mrf.mxu0
    %v7827 = vadd.f32 %v7431, %v7826
    %7828 = vmatmul.f32.gmra.mxu0 %v7621
    %v7829 = vpop.f32.mrf.mxu0
    %v7830 = vadd.f32 %v7431, %v7829
    %7831 = vmatmul.f32.gmra.mxu0 %v7624
    %v7832 = vpop.f32.mrf.mxu0
    %v7833 = vadd.f32 %v7431, %v7832
    %7834 = vdwg.mxu0
    %v7835 = vmax.f32 %v7644, 0.0
    %v7836 = vmax.f32 %v7647, 0.0
    %v7837 = vmax.f32 %v7650, 0.0
    %v7838 = vmax.f32 %v7653, 0.0
    %v7839 = vmax.f32 %v7656, 0.0
    %v7840 = vmax.f32 %v7659, 0.0
    %v7841 = vmax.f32 %v7662, 0.0
    %v7842 = vmax.f32 %v7665, 0.0
    %v7843 = vmax.f32 %v7668, 0.0
    %v7844 = vmax.f32 %v7671, 0.0
    %v7845 = vmax.f32 %v7674, 0.0
    %v7846 = vmax.f32 %v7677, 0.0
    %v7847 = vmax.f32 %v7680, 0.0
    %v7848 = vmax.f32 %v7683, 0.0
    %v7849 = vmax.f32 %v7686, 0.0
    %v7850 = vmax.f32 %v7689, 0.0
    %v7851 = vmax.f32 %v7692, 0.0
    %v7852 = vmax.f32 %v7695, 0.0
    %v7853 = vmax.f32 %v7698, 0.0
    %v7854 = vmax.f32 %v7701, 0.0
    %v7855 = vmax.f32 %v7704, 0.0
    %v7856 = vmax.f32 %v7707, 0.0
    %v7857 = vmax.f32 %v7710, 0.0
    %v7858 = vmax.f32 %v7713, 0.0
    %v7859 = vmax.f32 %v7716, 0.0
    %v7860 = vmax.f32 %v7719, 0.0
    %v7861 = vmax.f32 %v7722, 0.0
    %v7862 = vmax.f32 %v7725, 0.0
    %v7863 = vmax.f32 %v7728, 0.0
    %v7864 = vmax.f32 %v7731, 0.0
    %v7865 = vmax.f32 %v7734, 0.0
    %v7866 = vmax.f32 %v7737, 0.0
    %v7867 = vmax.f32 %v7740, 0.0
    %v7868 = vmax.f32 %v7743, 0.0
    %v7869 = vmax.f32 %v7746, 0.0
    %v7870 = vmax.f32 %v7749, 0.0
    %v7871 = vmax.f32 %v7752, 0.0
    %v7872 = vmax.f32 %v7755, 0.0
    %v7873 = vmax.f32 %v7758, 0.0
    %v7874 = vmax.f32 %v7761, 0.0
    %v7875 = vmax.f32 %v7764, 0.0
    %v7876 = vmax.f32 %v7767, 0.0
    %v7877 = vmax.f32 %v7770, 0.0
    %v7878 = vmax.f32 %v7773, 0.0
    %v7879 = vmax.f32 %v7776, 0.0
    %v7880 = vmax.f32 %v7779, 0.0
    %v7881 = vmax.f32 %v7782, 0.0
    %v7882 = vmax.f32 %v7785, 0.0
    %v7883 = vmax.f32 %v7788, 0.0
    %v7884 = vmax.f32 %v7791, 0.0
    %v7885 = vmax.f32 %v7794, 0.0
    %v7886 = vmax.f32 %v7797, 0.0
    %v7887 = vmax.f32 %v7800, 0.0
    %v7888 = vmax.f32 %v7803, 0.0
    %v7889 = vmax.f32 %v7806, 0.0
    %v7890 = vmax.f32 %v7809, 0.0
    %v7891 = vmax.f32 %v7812, 0.0
    %v7892 = vmax.f32 %v7815, 0.0
    %v7893 = vmax.f32 %v7818, 0.0
    %v7894 = vmax.f32 %v7821, 0.0
    %v7895 = vmax.f32 %v7824, 0.0
    %v7896 = vmax.f32 %v7827, 0.0
    %v7897 = vmax.f32 %v7830, 0.0
    %v7898 = vmax.f32 %v7833, 0.0
    %v7899 = vmax.f32 %v7835, %v7837
    %v7900 = vmax.f32 %v7836, %v7838
    %v7901 = vmax.f32 %v7839, %v7841
    %v7902 = vmax.f32 %v7840, %v7842
    %v7903 = vmax.f32 %v7843, %v7845
    %v7904 = vmax.f32 %v7844, %v7846
    %v7905 = vmax.f32 %v7847, %v7849
    %v7906 = vmax.f32 %v7848, %v7850
    %v7907 = vmax.f32 %v7851, %v7853
    %v7908 = vmax.f32 %v7852, %v7854
    %v7909 = vmax.f32 %v7855, %v7857
    %v7910 = vmax.f32 %v7856, %v7858
    %v7911 = vmax.f32 %v7859, %v7861
    %v7912 = vmax.f32 %v7860, %v7862
    %v7913 = vmax.f32 %v7863, %v7865
    %v7914 = vmax.f32 %v7864, %v7866
    %v7915 = vmax.f32 %v7867, %v7869
    %v7916 = vmax.f32 %v7868, %v7870
    %v7917 = vmax.f32 %v7871, %v7873
    %v7918 = vmax.f32 %v7872, %v7874
    %v7919 = vmax.f32 %v7875, %v7877
    %v7920 = vmax.f32 %v7876, %v7878
    %v7921 = vmax.f32 %v7879, %v7881
    %v7922 = vmax.f32 %v7880, %v7882
    %v7923 = vmax.f32 %v7883, %v7885
    %v7924 = vmax.f32 %v7884, %v7886
    %v7925 = vmax.f32 %v7887, %v7889
    %v7926 = vmax.f32 %v7888, %v7890
    %v7927 = vmax.f32 %v7891, %v7893
    %v7928 = vmax.f32 %v7892, %v7894
    %v7929 = vmax.f32 %v7895, %v7897
    %v7930 = vmax.f32 %v7896, %v7898
    %v7947 = vrot.slane %v7899, 1
    %v7948 = vrot.slane %v7901, 1
    %v7949 = vrot.slane %v7903, 1
    %v7950 = vrot.slane %v7905, 1
    %v7951 = vrot.slane %v7907, 1
    %v7952 = vrot.slane %v7909, 1
    %v7953 = vrot.slane %v7911, 1
    %v7954 = vrot.slane %v7913, 1
    %v7955 = vrot.slane %v7915, 1
    %v7956 = vrot.slane %v7917, 1
    %v7957 = vrot.slane %v7919, 1
    %v7958 = vrot.slane %v7921, 1
    %v7959 = vrot.slane %v7923, 1
    %v7960 = vrot.slane %v7925, 1
    %v7961 = vrot.slane %v7927, 1
    %v7962 = vrot.slane %v7929, 1
    %v7979 = vmax.f32 %v7899, %v7947
    %v7980 = vmax.f32 %v7901, %v7948
    %v7981 = vmax.f32 %v7903, %v7949
    %v7982 = vmax.f32 %v7905, %v7950
    %v7983 = vmax.f32 %v7907, %v7951
    %v7984 = vmax.f32 %v7909, %v7952
    %v7985 = vmax.f32 %v7911, %v7953
    %v7986 = vmax.f32 %v7913, %v7954
    %v7987 = vmax.f32 %v7915, %v7955
    %v7988 = vmax.f32 %v7917, %v7956
    %v7989 = vmax.f32 %v7919, %v7957
    %v7990 = vmax.f32 %v7921, %v7958
    %v7991 = vmax.f32 %v7923, %v7959
    %v7992 = vmax.f32 %v7925, %v7960
    %v7993 = vmax.f32 %v7927, %v7961
    %v7994 = vmax.f32 %v7929, %v7962
    %s7995 = scalar_lea.vmem [#allocation3], 16
    %vm7996 = vcmask 57344
    %7997 = vst.msk [vmem:[%s7995 + $0x1] sm:$0x1] %vm7996, %v7979
    %7998 = vst.msk [vmem:[%s7995 + $0x11] sm:$0x1] %vm7996, %v7980
    %7999 = vst.msk [vmem:[%s7995 + $0x21] sm:$0x1] %vm7996, %v7981
    %8000 = vst.msk [vmem:[%s7995 + $0x31] sm:$0x1] %vm7996, %v7982
    %8001 = vst.msk [vmem:[%s7995 + $0x41] sm:$0x1] %vm7996, %v7983
    %8002 = vst.msk [vmem:[%s7995 + $0x51] sm:$0x1] %vm7996, %v7984
    %8003 = vst.msk [vmem:[%s7995 + $0x61] sm:$0x1] %vm7996, %v7985
    %8004 = vst.msk [vmem:[%s7995 + $0x71] sm:$0x1] %vm7996, %v7986
    %8005 = vst.msk [vmem:[%s7995 + $0xa1] sm:$0x1] %vm7996, %v7987
    %8006 = vst.msk [vmem:[%s7995 + $0xb1] sm:$0x1] %vm7996, %v7988
    %8007 = vst.msk [vmem:[%s7995 + $0xc1] sm:$0x1] %vm7996, %v7989
    %8008 = vst.msk [vmem:[%s7995 + $0xd1] sm:$0x1] %vm7996, %v7990
    %8009 = vst.msk [vmem:[%s7995 + $0xe1] sm:$0x1] %vm7996, %v7991
    %8010 = vst.msk [vmem:[%s7995 + $0xf1] sm:$0x1] %vm7996, %v7992
    %8011 = vst.msk [vmem:[%s7995 + $0x101] sm:$0x1] %vm7996, %v7993
    %8012 = vst.msk [vmem:[%s7995 + $0x111] sm:$0x1] %vm7996, %v7994
    %vm8013 = vcmask 59394
    %8014 = vst.msk [vmem:[%s7995] sm:$0x4] %vm8013, %v7979
    %8015 = vst.msk [vmem:[%s7995 + $0x10] sm:$0x4] %vm8013, %v7980
    %8016 = vst.msk [vmem:[%s7995 + $0x20] sm:$0x4] %vm8013, %v7981
    %8017 = vst.msk [vmem:[%s7995 + $0x30] sm:$0x4] %vm8013, %v7982
    %8018 = vst.msk [vmem:[%s7995 + $0x40] sm:$0x4] %vm8013, %v7983
    %8019 = vst.msk [vmem:[%s7995 + $0x50] sm:$0x4] %vm8013, %v7984
    %8020 = vst.msk [vmem:[%s7995 + $0x60] sm:$0x4] %vm8013, %v7985
    %8021 = vst.msk [vmem:[%s7995 + $0x70] sm:$0x4] %vm8013, %v7986
    %8022 = vst.msk [vmem:[%s7995 + $0xa0] sm:$0x4] %vm8013, %v7987
    %8023 = vst.msk [vmem:[%s7995 + $0xb0] sm:$0x4] %vm8013, %v7988
    %8024 = vst.msk [vmem:[%s7995 + $0xc0] sm:$0x4] %vm8013, %v7989
    %8025 = vst.msk [vmem:[%s7995 + $0xd0] sm:$0x4] %vm8013, %v7990
    %8026 = vst.msk [vmem:[%s7995 + $0xe0] sm:$0x4] %vm8013, %v7991
    %8027 = vst.msk [vmem:[%s7995 + $0xf0] sm:$0x4] %vm8013, %v7992
    %8028 = vst.msk [vmem:[%s7995 + $0x100] sm:$0x4] %vm8013, %v7993
    %8029 = vst.msk [vmem:[%s7995 + $0x110] sm:$0x4] %vm8013, %v7994
    %vm8030 = vcmask 61444
    %8031 = vst.msk [vmem:[%s7995 - $0x1] sm:$0x10] %vm8030, %v7979
    %8032 = vst.msk [vmem:[%s7995 + $0xf] sm:$0x10] %vm8030, %v7980
    %8033 = vst.msk [vmem:[%s7995 + $0x1f] sm:$0x10] %vm8030, %v7981
    %8034 = vst.msk [vmem:[%s7995 + $0x2f] sm:$0x10] %vm8030, %v7982
    %8035 = vst.msk [vmem:[%s7995 + $0x3f] sm:$0x10] %vm8030, %v7983
    %8036 = vst.msk [vmem:[%s7995 + $0x4f] sm:$0x10] %vm8030, %v7984
    %8037 = vst.msk [vmem:[%s7995 + $0x5f] sm:$0x10] %vm8030, %v7985
    %8038 = vst.msk [vmem:[%s7995 + $0x6f] sm:$0x10] %vm8030, %v7986
    %8039 = vst.msk [vmem:[%s7995 + $0x9f] sm:$0x10] %vm8030, %v7987
    %8040 = vst.msk [vmem:[%s7995 + $0xaf] sm:$0x10] %vm8030, %v7988
    %8041 = vst.msk [vmem:[%s7995 + $0xbf] sm:$0x10] %vm8030, %v7989
    %8042 = vst.msk [vmem:[%s7995 + $0xcf] sm:$0x10] %vm8030, %v7990
    %8043 = vst.msk [vmem:[%s7995 + $0xdf] sm:$0x10] %vm8030, %v7991
    %8044 = vst.msk [vmem:[%s7995 + $0xef] sm:$0x10] %vm8030, %v7992
    %8045 = vst.msk [vmem:[%s7995 + $0xff] sm:$0x10] %vm8030, %v7993
    %8046 = vst.msk [vmem:[%s7995 + $0x10f] sm:$0x10] %vm8030, %v7994
    %vm8047 = vcmask 63494
    %8048 = vst.msk [vmem:[%s7995 - $0x2] sm:$0x40] %vm8047, %v7979
    %8049 = vst.msk [vmem:[%s7995 + $0xe] sm:$0x40] %vm8047, %v7980
    %8050 = vst.msk [vmem:[%s7995 + $0x1e] sm:$0x40] %vm8047, %v7981
    %8051 = vst.msk [vmem:[%s7995 + $0x2e] sm:$0x40] %vm8047, %v7982
    %8052 = vst.msk [vmem:[%s7995 + $0x3e] sm:$0x40] %vm8047, %v7983
    %8053 = vst.msk [vmem:[%s7995 + $0x4e] sm:$0x40] %vm8047, %v7984
    %8054 = vst.msk [vmem:[%s7995 + $0x5e] sm:$0x40] %vm8047, %v7985
    %8055 = vst.msk [vmem:[%s7995 + $0x6e] sm:$0x40] %vm8047, %v7986
    %8056 = vst.msk [vmem:[%s7995 + $0x9e] sm:$0x40] %vm8047, %v7987
    %8057 = vst.msk [vmem:[%s7995 + $0xae] sm:$0x40] %vm8047, %v7988
    %8058 = vst.msk [vmem:[%s7995 + $0xbe] sm:$0x40] %vm8047, %v7989
    %8059 = vst.msk [vmem:[%s7995 + $0xce] sm:$0x40] %vm8047, %v7990
    %8060 = vst.msk [vmem:[%s7995 + $0xde] sm:$0x40] %vm8047, %v7991
    %8061 = vst.msk [vmem:[%s7995 + $0xee] sm:$0x40] %vm8047, %v7992
    %8062 = vst.msk [vmem:[%s7995 + $0xfe] sm:$0x40] %vm8047, %v7993
    %8063 = vst.msk [vmem:[%s7995 + $0x10e] sm:$0x40] %vm8047, %v7994
    %v8080 = vrot.slane %v7900, 1
    %v8081 = vrot.slane %v7902, 1
    %v8082 = vrot.slane %v7904, 1
    %v8083 = vrot.slane %v7906, 1
    %v8084 = vrot.slane %v7908, 1
    %v8085 = vrot.slane %v7910, 1
    %v8086 = vrot.slane %v7912, 1
    %v8087 = vrot.slane %v7914, 1
    %v8088 = vrot.slane %v7916, 1
    %v8089 = vrot.slane %v7918, 1
    %v8090 = vrot.slane %v7920, 1
    %v8091 = vrot.slane %v7922, 1
    %v8092 = vrot.slane %v7924, 1
    %v8093 = vrot.slane %v7926, 1
    %v8094 = vrot.slane %v7928, 1
    %v8095 = vrot.slane %v7930, 1
    %v8112 = vmax.f32 %v7900, %v8080
    %v8113 = vmax.f32 %v7902, %v8081
    %v8114 = vmax.f32 %v7904, %v8082
    %v8115 = vmax.f32 %v7906, %v8083
    %v8116 = vmax.f32 %v7908, %v8084
    %v8117 = vmax.f32 %v7910, %v8085
    %v8118 = vmax.f32 %v7912, %v8086
    %v8119 = vmax.f32 %v7914, %v8087
    %v8120 = vmax.f32 %v7916, %v8088
    %v8121 = vmax.f32 %v7918, %v8089
    %v8122 = vmax.f32 %v7920, %v8090
    %v8123 = vmax.f32 %v7922, %v8091
    %v8124 = vmax.f32 %v7924, %v8092
    %v8125 = vmax.f32 %v7926, %v8093
    %v8126 = vmax.f32 %v7928, %v8094
    %v8127 = vmax.f32 %v7930, %v8095
    %8128 = vst.msk [vmem:[%s7995 + $0x5] sm:$0x1] %vm7996, %v8112
    %8129 = vst.msk [vmem:[%s7995 + $0x15] sm:$0x1] %vm7996, %v8113
    %8130 = vst.msk [vmem:[%s7995 + $0x25] sm:$0x1] %vm7996, %v8114
    %8131 = vst.msk [vmem:[%s7995 + $0x35] sm:$0x1] %vm7996, %v8115
    %8132 = vst.msk [vmem:[%s7995 + $0x45] sm:$0x1] %vm7996, %v8116
    %8133 = vst.msk [vmem:[%s7995 + $0x55] sm:$0x1] %vm7996, %v8117
    %8134 = vst.msk [vmem:[%s7995 + $0x65] sm:$0x1] %vm7996, %v8118
    %8135 = vst.msk [vmem:[%s7995 + $0x75] sm:$0x1] %vm7996, %v8119
    %8136 = vst.msk [vmem:[%s7995 + $0xa5] sm:$0x1] %vm7996, %v8120
    %8137 = vst.msk [vmem:[%s7995 + $0xb5] sm:$0x1] %vm7996, %v8121
    %8138 = vst.msk [vmem:[%s7995 + $0xc5] sm:$0x1] %vm7996, %v8122
    %8139 = vst.msk [vmem:[%s7995 + $0xd5] sm:$0x1] %vm7996, %v8123
    %8140 = vst.msk [vmem:[%s7995 + $0xe5] sm:$0x1] %vm7996, %v8124
    %8141 = vst.msk [vmem:[%s7995 + $0xf5] sm:$0x1] %vm7996, %v8125
    %8142 = vst.msk [vmem:[%s7995 + $0x105] sm:$0x1] %vm7996, %v8126
    %8143 = vst.msk [vmem:[%s7995 + $0x115] sm:$0x1] %vm7996, %v8127
    %8144 = vst.msk [vmem:[%s7995 + $0x4] sm:$0x4] %vm8013, %v8112
    %8145 = vst.msk [vmem:[%s7995 + $0x14] sm:$0x4] %vm8013, %v8113
    %8146 = vst.msk [vmem:[%s7995 + $0x24] sm:$0x4] %vm8013, %v8114
    %8147 = vst.msk [vmem:[%s7995 + $0x34] sm:$0x4] %vm8013, %v8115
    %8148 = vst.msk [vmem:[%s7995 + $0x44] sm:$0x4] %vm8013, %v8116
    %8149 = vst.msk [vmem:[%s7995 + $0x54] sm:$0x4] %vm8013, %v8117
    %8150 = vst.msk [vmem:[%s7995 + $0x64] sm:$0x4] %vm8013, %v8118
    %8151 = vst.msk [vmem:[%s7995 + $0x74] sm:$0x4] %vm8013, %v8119
    %8152 = vst.msk [vmem:[%s7995 + $0xa4] sm:$0x4] %vm8013, %v8120
    %8153 = vst.msk [vmem:[%s7995 + $0xb4] sm:$0x4] %vm8013, %v8121
    %8154 = vst.msk [vmem:[%s7995 + $0xc4] sm:$0x4] %vm8013, %v8122
    %8155 = vst.msk [vmem:[%s7995 + $0xd4] sm:$0x4] %vm8013, %v8123
    %8156 = vst.msk [vmem:[%s7995 + $0xe4] sm:$0x4] %vm8013, %v8124
    %8157 = vst.msk [vmem:[%s7995 + $0xf4] sm:$0x4] %vm8013, %v8125
    %8158 = vst.msk [vmem:[%s7995 + $0x104] sm:$0x4] %vm8013, %v8126
    %8159 = vst.msk [vmem:[%s7995 + $0x114] sm:$0x4] %vm8013, %v8127
    %8160 = vst.msk [vmem:[%s7995 + $0x3] sm:$0x10] %vm8030, %v8112
    %8161 = vst.msk [vmem:[%s7995 + $0x13] sm:$0x10] %vm8030, %v8113
    %8162 = vst.msk [vmem:[%s7995 + $0x23] sm:$0x10] %vm8030, %v8114
    %8163 = vst.msk [vmem:[%s7995 + $0x33] sm:$0x10] %vm8030, %v8115
    %8164 = vst.msk [vmem:[%s7995 + $0x43] sm:$0x10] %vm8030, %v8116
    %8165 = vst.msk [vmem:[%s7995 + $0x53] sm:$0x10] %vm8030, %v8117
    %8166 = vst.msk [vmem:[%s7995 + $0x63] sm:$0x10] %vm8030, %v8118
    %8167 = vst.msk [vmem:[%s7995 + $0x73] sm:$0x10] %vm8030, %v8119
    %8168 = vst.msk [vmem:[%s7995 + $0xa3] sm:$0x10] %vm8030, %v8120
    %8169 = vst.msk [vmem:[%s7995 + $0xb3] sm:$0x10] %vm8030, %v8121
    %8170 = vst.msk [vmem:[%s7995 + $0xc3] sm:$0x10] %vm8030, %v8122
    %8171 = vst.msk [vmem:[%s7995 + $0xd3] sm:$0x10] %vm8030, %v8123
    %8172 = vst.msk [vmem:[%s7995 + $0xe3] sm:$0x10] %vm8030, %v8124
    %8173 = vst.msk [vmem:[%s7995 + $0xf3] sm:$0x10] %vm8030, %v8125
    %8174 = vst.msk [vmem:[%s7995 + $0x103] sm:$0x10] %vm8030, %v8126
    %8175 = vst.msk [vmem:[%s7995 + $0x113] sm:$0x10] %vm8030, %v8127
    %8176 = vst.msk [vmem:[%s7995 + $0x2] sm:$0x40] %vm8047, %v8112
    %8177 = vst.msk [vmem:[%s7995 + $0x12] sm:$0x40] %vm8047, %v8113
    %8178 = vst.msk [vmem:[%s7995 + $0x22] sm:$0x40] %vm8047, %v8114
    %8179 = vst.msk [vmem:[%s7995 + $0x32] sm:$0x40] %vm8047, %v8115
    %8180 = vst.msk [vmem:[%s7995 + $0x42] sm:$0x40] %vm8047, %v8116
    %8181 = vst.msk [vmem:[%s7995 + $0x52] sm:$0x40] %vm8047, %v8117
    %8182 = vst.msk [vmem:[%s7995 + $0x62] sm:$0x40] %vm8047, %v8118
    %8183 = vst.msk [vmem:[%s7995 + $0x72] sm:$0x40] %vm8047, %v8119
    %8184 = vst.msk [vmem:[%s7995 + $0xa2] sm:$0x40] %vm8047, %v8120
    %8185 = vst.msk [vmem:[%s7995 + $0xb2] sm:$0x40] %vm8047, %v8121
    %8186 = vst.msk [vmem:[%s7995 + $0xc2] sm:$0x40] %vm8047, %v8122
    %8187 = vst.msk [vmem:[%s7995 + $0xd2] sm:$0x40] %vm8047, %v8123
    %8188 = vst.msk [vmem:[%s7995 + $0xe2] sm:$0x40] %vm8047, %v8124
    %8189 = vst.msk [vmem:[%s7995 + $0xf2] sm:$0x40] %vm8047, %v8125
    %8190 = vst.msk [vmem:[%s7995 + $0x102] sm:$0x40] %vm8047, %v8126
    %8191 = vst.msk [vmem:[%s7995 + $0x112] sm:$0x40] %vm8047, %v8127
    %v8192 = vld [vmem:[#allocation3] sm:$0xff]
    %v8193 = vld [vmem:[#allocation3 + $0x10] sm:$0xff]
    %v8194 = vld [vmem:[#allocation3 + $0x20] sm:$0xff]
    %v8195 = vld [vmem:[#allocation3 + $0x30] sm:$0xff]
    %v8196 = vld [vmem:[#allocation3 + $0x40] sm:$0xff]
    %v8197 = vld [vmem:[#allocation3 + $0x50] sm:$0xff]
    %v8198 = vld [vmem:[#allocation3 + $0x60] sm:$0xff]
    %v8199 = vld [vmem:[#allocation3 + $0x70] sm:$0xff]
    %v8200 = vld [vmem:[#allocation3 + $0xa0] sm:$0xff]
    %v8201 = vld [vmem:[#allocation3 + $0xb0] sm:$0xff]
    %v8202 = vld [vmem:[#allocation3 + $0xc0] sm:$0xff]
    %v8203 = vld [vmem:[#allocation3 + $0xd0] sm:$0xff]
    %v8204 = vld [vmem:[#allocation3 + $0xe0] sm:$0xff]
    %v8205 = vld [vmem:[#allocation3 + $0xf0] sm:$0xff]
    %v8206 = vld [vmem:[#allocation3 + $0x100] sm:$0xff]
    %v8207 = vld [vmem:[#allocation3 + $0x110] sm:$0xff]
    %8208 = vst.msk [vmem:[#allocation4] sm:$0xff] %vm51, %v8192
    %8209 = vst.msk [vmem:[#allocation4 + $0x10] sm:$0xff] %vm51, %v8193
    %8210 = vst.msk [vmem:[#allocation4 + $0x20] sm:$0xff] %vm51, %v8194
    %8211 = vst.msk [vmem:[#allocation4 + $0x30] sm:$0xff] %vm51, %v8195
    %8212 = vst.msk [vmem:[#allocation4 + $0x40] sm:$0xff] %vm51, %v8196
    %8213 = vst.msk [vmem:[#allocation4 + $0x50] sm:$0xff] %vm51, %v8197
    %8214 = vst.msk [vmem:[#allocation4 + $0x60] sm:$0xff] %vm51, %v8198
    %8215 = vst.msk [vmem:[#allocation4 + $0x70] sm:$0xff] %vm51, %v8199
    %8216 = vst.msk [vmem:[#allocation4 + $0x80] sm:$0xff] %vm51, %v8200
    %8217 = vst.msk [vmem:[#allocation4 + $0x90] sm:$0xff] %vm51, %v8201
    %8218 = vst.msk [vmem:[#allocation4 + $0xa0] sm:$0xff] %vm51, %v8202
    %8219 = vst.msk [vmem:[#allocation4 + $0xb0] sm:$0xff] %vm51, %v8203
    %8220 = vst.msk [vmem:[#allocation4 + $0xc0] sm:$0xff] %vm51, %v8204
    %8221 = vst.msk [vmem:[#allocation4 + $0xd0] sm:$0xff] %vm51, %v8205
    %8222 = vst.msk [vmem:[#allocation4 + $0xe0] sm:$0xff] %vm51, %v8206
    %8223 = vst.msk [vmem:[#allocation4 + $0xf0] sm:$0xff] %vm51, %v8207
    %v8224 = vld [vmem:[#allocation3 + $0x1] sm:$0xff]
    %v8225 = vld [vmem:[#allocation3 + $0x11] sm:$0xff]
    %v8226 = vld [vmem:[#allocation3 + $0x21] sm:$0xff]
    %v8227 = vld [vmem:[#allocation3 + $0x31] sm:$0xff]
    %v8228 = vld [vmem:[#allocation3 + $0x41] sm:$0xff]
    %v8229 = vld [vmem:[#allocation3 + $0x51] sm:$0xff]
    %v8230 = vld [vmem:[#allocation3 + $0x61] sm:$0xff]
    %v8231 = vld [vmem:[#allocation3 + $0x71] sm:$0xff]
    %v8232 = vld [vmem:[#allocation3 + $0xa1] sm:$0xff]
    %v8233 = vld [vmem:[#allocation3 + $0xb1] sm:$0xff]
    %v8234 = vld [vmem:[#allocation3 + $0xc1] sm:$0xff]
    %v8235 = vld [vmem:[#allocation3 + $0xd1] sm:$0xff]
    %v8236 = vld [vmem:[#allocation3 + $0xe1] sm:$0xff]
    %v8237 = vld [vmem:[#allocation3 + $0xf1] sm:$0xff]
    %v8238 = vld [vmem:[#allocation3 + $0x101] sm:$0xff]
    %v8239 = vld [vmem:[#allocation3 + $0x111] sm:$0xff]
    %8256 = vrot.lane.b32.xlu0 %v8224, 8
    %v8257 = vpop.permute.xlu0 %8256
    %8258 = vrot.lane.b32.xlu0 %v8225, 8
    %v8259 = vpop.permute.xlu0 %8258
    %8260 = vrot.lane.b32.xlu0 %v8226, 8
    %v8261 = vpop.permute.xlu0 %8260
    %8262 = vrot.lane.b32.xlu0 %v8227, 8
    %v8263 = vpop.permute.xlu0 %8262
    %8264 = vrot.lane.b32.xlu0 %v8228, 8
    %v8265 = vpop.permute.xlu0 %8264
    %8266 = vrot.lane.b32.xlu0 %v8229, 8
    %v8267 = vpop.permute.xlu0 %8266
    %8268 = vrot.lane.b32.xlu0 %v8230, 8
    %v8269 = vpop.permute.xlu0 %8268
    %8270 = vrot.lane.b32.xlu0 %v8231, 8
    %v8271 = vpop.permute.xlu0 %8270
    %8272 = vrot.lane.b32.xlu0 %v8232, 8
    %v8273 = vpop.permute.xlu0 %8272
    %8274 = vrot.lane.b32.xlu0 %v8233, 8
    %v8275 = vpop.permute.xlu0 %8274
    %8276 = vrot.lane.b32.xlu0 %v8234, 8
    %v8277 = vpop.permute.xlu0 %8276
    %8278 = vrot.lane.b32.xlu0 %v8235, 8
    %v8279 = vpop.permute.xlu0 %8278
    %8280 = vrot.lane.b32.xlu0 %v8236, 8
    %v8281 = vpop.permute.xlu0 %8280
    %8282 = vrot.lane.b32.xlu0 %v8237, 8
    %v8283 = vpop.permute.xlu0 %8282
    %8284 = vrot.lane.b32.xlu0 %v8238, 8
    %v8285 = vpop.permute.xlu0 %8284
    %8286 = vrot.lane.b32.xlu0 %v8239, 8
    %v8287 = vpop.permute.xlu0 %8286
    %8304 = vst.msk [vmem:[#allocation4] sm:$0xff] %vm4596, %v8257
    %8305 = vst.msk [vmem:[#allocation4 + $0x10] sm:$0xff] %vm4596, %v8259
    %8306 = vst.msk [vmem:[#allocation4 + $0x20] sm:$0xff] %vm4596, %v8261
    %8307 = vst.msk [vmem:[#allocation4 + $0x30] sm:$0xff] %vm4596, %v8263
    %8308 = vst.msk [vmem:[#allocation4 + $0x40] sm:$0xff] %vm4596, %v8265
    %8309 = vst.msk [vmem:[#allocation4 + $0x50] sm:$0xff] %vm4596, %v8267
    %8310 = vst.msk [vmem:[#allocation4 + $0x60] sm:$0xff] %vm4596, %v8269
    %8311 = vst.msk [vmem:[#allocation4 + $0x70] sm:$0xff] %vm4596, %v8271
    %8312 = vst.msk [vmem:[#allocation4 + $0x80] sm:$0xff] %vm4596, %v8273
    %8313 = vst.msk [vmem:[#allocation4 + $0x90] sm:$0xff] %vm4596, %v8275
    %8314 = vst.msk [vmem:[#allocation4 + $0xa0] sm:$0xff] %vm4596, %v8277
    %8315 = vst.msk [vmem:[#allocation4 + $0xb0] sm:$0xff] %vm4596, %v8279
    %8316 = vst.msk [vmem:[#allocation4 + $0xc0] sm:$0xff] %vm4596, %v8281
    %8317 = vst.msk [vmem:[#allocation4 + $0xd0] sm:$0xff] %vm4596, %v8283
    %8318 = vst.msk [vmem:[#allocation4 + $0xe0] sm:$0xff] %vm4596, %v8285
    %8319 = vst.msk [vmem:[#allocation4 + $0xf0] sm:$0xff] %vm4596, %v8287
    %v8320 = vld [vmem:[#allocation3 + $0x2] sm:$0xff]
    %v8321 = vld [vmem:[#allocation3 + $0x12] sm:$0xff]
    %v8322 = vld [vmem:[#allocation3 + $0x22] sm:$0xff]
    %v8323 = vld [vmem:[#allocation3 + $0x32] sm:$0xff]
    %v8324 = vld [vmem:[#allocation3 + $0x42] sm:$0xff]
    %v8325 = vld [vmem:[#allocation3 + $0x52] sm:$0xff]
    %v8326 = vld [vmem:[#allocation3 + $0x62] sm:$0xff]
    %v8327 = vld [vmem:[#allocation3 + $0x72] sm:$0xff]
    %v8328 = vld [vmem:[#allocation3 + $0xa2] sm:$0xff]
    %v8329 = vld [vmem:[#allocation3 + $0xb2] sm:$0xff]
    %v8330 = vld [vmem:[#allocation3 + $0xc2] sm:$0xff]
    %v8331 = vld [vmem:[#allocation3 + $0xd2] sm:$0xff]
    %v8332 = vld [vmem:[#allocation3 + $0xe2] sm:$0xff]
    %v8333 = vld [vmem:[#allocation3 + $0xf2] sm:$0xff]
    %v8334 = vld [vmem:[#allocation3 + $0x102] sm:$0xff]
    %v8335 = vld [vmem:[#allocation3 + $0x112] sm:$0xff]
    %8352 = vrot.lane.b32.xlu0 %v8320, 16
    %v8353 = vpop.permute.xlu0 %8352
    %8354 = vrot.lane.b32.xlu0 %v8321, 16
    %v8355 = vpop.permute.xlu0 %8354
    %8356 = vrot.lane.b32.xlu0 %v8322, 16
    %v8357 = vpop.permute.xlu0 %8356
    %8358 = vrot.lane.b32.xlu0 %v8323, 16
    %v8359 = vpop.permute.xlu0 %8358
    %8360 = vrot.lane.b32.xlu0 %v8324, 16
    %v8361 = vpop.permute.xlu0 %8360
    %8362 = vrot.lane.b32.xlu0 %v8325, 16
    %v8363 = vpop.permute.xlu0 %8362
    %8364 = vrot.lane.b32.xlu0 %v8326, 16
    %v8365 = vpop.permute.xlu0 %8364
    %8366 = vrot.lane.b32.xlu0 %v8327, 16
    %v8367 = vpop.permute.xlu0 %8366
    %8368 = vrot.lane.b32.xlu0 %v8328, 16
    %v8369 = vpop.permute.xlu0 %8368
    %8370 = vrot.lane.b32.xlu0 %v8329, 16
    %v8371 = vpop.permute.xlu0 %8370
    %8372 = vrot.lane.b32.xlu0 %v8330, 16
    %v8373 = vpop.permute.xlu0 %8372
    %8374 = vrot.lane.b32.xlu0 %v8331, 16
    %v8375 = vpop.permute.xlu0 %8374
    %8376 = vrot.lane.b32.xlu0 %v8332, 16
    %v8377 = vpop.permute.xlu0 %8376
    %8378 = vrot.lane.b32.xlu0 %v8333, 16
    %v8379 = vpop.permute.xlu0 %8378
    %8380 = vrot.lane.b32.xlu0 %v8334, 16
    %v8381 = vpop.permute.xlu0 %8380
    %8382 = vrot.lane.b32.xlu0 %v8335, 16
    %v8383 = vpop.permute.xlu0 %8382
    %8400 = vst.msk [vmem:[#allocation4] sm:$0xff] %vm4981, %v8353
    %8401 = vst.msk [vmem:[#allocation4 + $0x10] sm:$0xff] %vm4981, %v8355
    %8402 = vst.msk [vmem:[#allocation4 + $0x20] sm:$0xff] %vm4981, %v8357
    %8403 = vst.msk [vmem:[#allocation4 + $0x30] sm:$0xff] %vm4981, %v8359
    %8404 = vst.msk [vmem:[#allocation4 + $0x40] sm:$0xff] %vm4981, %v8361
    %8405 = vst.msk [vmem:[#allocation4 + $0x50] sm:$0xff] %vm4981, %v8363
    %8406 = vst.msk [vmem:[#allocation4 + $0x60] sm:$0xff] %vm4981, %v8365
    %8407 = vst.msk [vmem:[#allocation4 + $0x70] sm:$0xff] %vm4981, %v8367
    %8408 = vst.msk [vmem:[#allocation4 + $0x80] sm:$0xff] %vm4981, %v8369
    %8409 = vst.msk [vmem:[#allocation4 + $0x90] sm:$0xff] %vm4981, %v8371
    %8410 = vst.msk [vmem:[#allocation4 + $0xa0] sm:$0xff] %vm4981, %v8373
    %8411 = vst.msk [vmem:[#allocation4 + $0xb0] sm:$0xff] %vm4981, %v8375
    %8412 = vst.msk [vmem:[#allocation4 + $0xc0] sm:$0xff] %vm4981, %v8377
    %8413 = vst.msk [vmem:[#allocation4 + $0xd0] sm:$0xff] %vm4981, %v8379
    %8414 = vst.msk [vmem:[#allocation4 + $0xe0] sm:$0xff] %vm4981, %v8381
    %8415 = vst.msk [vmem:[#allocation4 + $0xf0] sm:$0xff] %vm4981, %v8383
    %v8416 = vld [vmem:[%s7995] sm:$0xff]
    %v8417 = vld [vmem:[%s7995 + $0x10] sm:$0xff]
    %v8418 = vld [vmem:[%s7995 + $0x20] sm:$0xff]
    %v8419 = vld [vmem:[%s7995 + $0x30] sm:$0xff]
    %v8420 = vld [vmem:[%s7995 + $0x40] sm:$0xff]
    %v8421 = vld [vmem:[%s7995 + $0x50] sm:$0xff]
    %v8422 = vld [vmem:[%s7995 + $0x60] sm:$0xff]
    %v8423 = vld [vmem:[%s7995 + $0x70] sm:$0xff]
    %v8424 = vld [vmem:[%s7995 + $0xa0] sm:$0xff]
    %v8425 = vld [vmem:[%s7995 + $0xb0] sm:$0xff]
    %v8426 = vld [vmem:[%s7995 + $0xc0] sm:$0xff]
    %v8427 = vld [vmem:[%s7995 + $0xd0] sm:$0xff]
    %v8428 = vld [vmem:[%s7995 + $0xe0] sm:$0xff]
    %v8429 = vld [vmem:[%s7995 + $0xf0] sm:$0xff]
    %v8430 = vld [vmem:[%s7995 + $0x100] sm:$0xff]
    %v8431 = vld [vmem:[%s7995 + $0x110] sm:$0xff]
    %8448 = vrot.lane.b32.xlu0 %v8416, 24
    %v8449 = vpop.permute.xlu0 %8448
    %8450 = vrot.lane.b32.xlu0 %v8417, 24
    %v8451 = vpop.permute.xlu0 %8450
    %8452 = vrot.lane.b32.xlu0 %v8418, 24
    %v8453 = vpop.permute.xlu0 %8452
    %8454 = vrot.lane.b32.xlu0 %v8419, 24
    %v8455 = vpop.permute.xlu0 %8454
    %8456 = vrot.lane.b32.xlu0 %v8420, 24
    %v8457 = vpop.permute.xlu0 %8456
    %8458 = vrot.lane.b32.xlu0 %v8421, 24
    %v8459 = vpop.permute.xlu0 %8458
    %8460 = vrot.lane.b32.xlu0 %v8422, 24
    %v8461 = vpop.permute.xlu0 %8460
    %8462 = vrot.lane.b32.xlu0 %v8423, 24
    %v8463 = vpop.permute.xlu0 %8462
    %8464 = vrot.lane.b32.xlu0 %v8424, 24
    %v8465 = vpop.permute.xlu0 %8464
    %8466 = vrot.lane.b32.xlu0 %v8425, 24
    %v8467 = vpop.permute.xlu0 %8466
    %8468 = vrot.lane.b32.xlu0 %v8426, 24
    %v8469 = vpop.permute.xlu0 %8468
    %8470 = vrot.lane.b32.xlu0 %v8427, 24
    %v8471 = vpop.permute.xlu0 %8470
    %8472 = vrot.lane.b32.xlu0 %v8428, 24
    %v8473 = vpop.permute.xlu0 %8472
    %8474 = vrot.lane.b32.xlu0 %v8429, 24
    %v8475 = vpop.permute.xlu0 %8474
    %8476 = vrot.lane.b32.xlu0 %v8430, 24
    %v8477 = vpop.permute.xlu0 %8476
    %8478 = vrot.lane.b32.xlu0 %v8431, 24
    %v8479 = vpop.permute.xlu0 %8478
    %8496 = vst.msk [vmem:[#allocation4] sm:$0xff] %vm5366, %v8449
    %8497 = vst.msk [vmem:[#allocation4 + $0x10] sm:$0xff] %vm5366, %v8451
    %8498 = vst.msk [vmem:[#allocation4 + $0x20] sm:$0xff] %vm5366, %v8453
    %8499 = vst.msk [vmem:[#allocation4 + $0x30] sm:$0xff] %vm5366, %v8455
    %8500 = vst.msk [vmem:[#allocation4 + $0x40] sm:$0xff] %vm5366, %v8457
    %8501 = vst.msk [vmem:[#allocation4 + $0x50] sm:$0xff] %vm5366, %v8459
    %8502 = vst.msk [vmem:[#allocation4 + $0x60] sm:$0xff] %vm5366, %v8461
    %8503 = vst.msk [vmem:[#allocation4 + $0x70] sm:$0xff] %vm5366, %v8463
    %8504 = vst.msk [vmem:[#allocation4 + $0x80] sm:$0xff] %vm5366, %v8465
    %8505 = vst.msk [vmem:[#allocation4 + $0x90] sm:$0xff] %vm5366, %v8467
    %8506 = vst.msk [vmem:[#allocation4 + $0xa0] sm:$0xff] %vm5366, %v8469
    %8507 = vst.msk [vmem:[#allocation4 + $0xb0] sm:$0xff] %vm5366, %v8471
    %8508 = vst.msk [vmem:[#allocation4 + $0xc0] sm:$0xff] %vm5366, %v8473
    %8509 = vst.msk [vmem:[#allocation4 + $0xd0] sm:$0xff] %vm5366, %v8475
    %8510 = vst.msk [vmem:[#allocation4 + $0xe0] sm:$0xff] %vm5366, %v8477
    %8511 = vst.msk [vmem:[#allocation4 + $0xf0] sm:$0xff] %vm5366, %v8479
    %v8512 = vld [vmem:[%s7995 + $0x1] sm:$0xff]
    %v8513 = vld [vmem:[%s7995 + $0x11] sm:$0xff]
    %v8514 = vld [vmem:[%s7995 + $0x21] sm:$0xff]
    %v8515 = vld [vmem:[%s7995 + $0x31] sm:$0xff]
    %v8516 = vld [vmem:[%s7995 + $0x41] sm:$0xff]
    %v8517 = vld [vmem:[%s7995 + $0x51] sm:$0xff]
    %v8518 = vld [vmem:[%s7995 + $0x61] sm:$0xff]
    %v8519 = vld [vmem:[%s7995 + $0x71] sm:$0xff]
    %v8520 = vld [vmem:[%s7995 + $0xa1] sm:$0xff]
    %v8521 = vld [vmem:[%s7995 + $0xb1] sm:$0xff]
    %v8522 = vld [vmem:[%s7995 + $0xc1] sm:$0xff]
    %v8523 = vld [vmem:[%s7995 + $0xd1] sm:$0xff]
    %v8524 = vld [vmem:[%s7995 + $0xe1] sm:$0xff]
    %v8525 = vld [vmem:[%s7995 + $0xf1] sm:$0xff]
    %v8526 = vld [vmem:[%s7995 + $0x101] sm:$0xff]
    %v8527 = vld [vmem:[%s7995 + $0x111] sm:$0xff]
    %8544 = vrot.lane.b32.xlu0 %v8512, 32
    %v8545 = vpop.permute.xlu0 %8544
    %8546 = vrot.lane.b32.xlu0 %v8513, 32
    %v8547 = vpop.permute.xlu0 %8546
    %8548 = vrot.lane.b32.xlu0 %v8514, 32
    %v8549 = vpop.permute.xlu0 %8548
    %8550 = vrot.lane.b32.xlu0 %v8515, 32
    %v8551 = vpop.permute.xlu0 %8550
    %8552 = vrot.lane.b32.xlu0 %v8516, 32
    %v8553 = vpop.permute.xlu0 %8552
    %8554 = vrot.lane.b32.xlu0 %v8517, 32
    %v8555 = vpop.permute.xlu0 %8554
    %8556 = vrot.lane.b32.xlu0 %v8518, 32
    %v8557 = vpop.permute.xlu0 %8556
    %8558 = vrot.lane.b32.xlu0 %v8519, 32
    %v8559 = vpop.permute.xlu0 %8558
    %8560 = vrot.lane.b32.xlu0 %v8520, 32
    %v8561 = vpop.permute.xlu0 %8560
    %8562 = vrot.lane.b32.xlu0 %v8521, 32
    %v8563 = vpop.permute.xlu0 %8562
    %8564 = vrot.lane.b32.xlu0 %v8522, 32
    %v8565 = vpop.permute.xlu0 %8564
    %8566 = vrot.lane.b32.xlu0 %v8523, 32
    %v8567 = vpop.permute.xlu0 %8566
    %8568 = vrot.lane.b32.xlu0 %v8524, 32
    %v8569 = vpop.permute.xlu0 %8568
    %8570 = vrot.lane.b32.xlu0 %v8525, 32
    %v8571 = vpop.permute.xlu0 %8570
    %8572 = vrot.lane.b32.xlu0 %v8526, 32
    %v8573 = vpop.permute.xlu0 %8572
    %8574 = vrot.lane.b32.xlu0 %v8527, 32
    %v8575 = vpop.permute.xlu0 %8574
    %8592 = vst.msk [vmem:[#allocation4] sm:$0xff] %vm5751, %v8545
    %8593 = vst.msk [vmem:[#allocation4 + $0x10] sm:$0xff] %vm5751, %v8547
    %8594 = vst.msk [vmem:[#allocation4 + $0x20] sm:$0xff] %vm5751, %v8549
    %8595 = vst.msk [vmem:[#allocation4 + $0x30] sm:$0xff] %vm5751, %v8551
    %8596 = vst.msk [vmem:[#allocation4 + $0x40] sm:$0xff] %vm5751, %v8553
    %8597 = vst.msk [vmem:[#allocation4 + $0x50] sm:$0xff] %vm5751, %v8555
    %8598 = vst.msk [vmem:[#allocation4 + $0x60] sm:$0xff] %vm5751, %v8557
    %8599 = vst.msk [vmem:[#allocation4 + $0x70] sm:$0xff] %vm5751, %v8559
    %8600 = vst.msk [vmem:[#allocation4 + $0x80] sm:$0xff] %vm5751, %v8561
    %8601 = vst.msk [vmem:[#allocation4 + $0x90] sm:$0xff] %vm5751, %v8563
    %8602 = vst.msk [vmem:[#allocation4 + $0xa0] sm:$0xff] %vm5751, %v8565
    %8603 = vst.msk [vmem:[#allocation4 + $0xb0] sm:$0xff] %vm5751, %v8567
    %8604 = vst.msk [vmem:[#allocation4 + $0xc0] sm:$0xff] %vm5751, %v8569
    %8605 = vst.msk [vmem:[#allocation4 + $0xd0] sm:$0xff] %vm5751, %v8571
    %8606 = vst.msk [vmem:[#allocation4 + $0xe0] sm:$0xff] %vm5751, %v8573
    %8607 = vst.msk [vmem:[#allocation4 + $0xf0] sm:$0xff] %vm5751, %v8575
    %v8608 = vld [vmem:[%s7995 + $0x2] sm:$0xff]
    %v8609 = vld [vmem:[%s7995 + $0x12] sm:$0xff]
    %v8610 = vld [vmem:[%s7995 + $0x22] sm:$0xff]
    %v8611 = vld [vmem:[%s7995 + $0x32] sm:$0xff]
    %v8612 = vld [vmem:[%s7995 + $0x42] sm:$0xff]
    %v8613 = vld [vmem:[%s7995 + $0x52] sm:$0xff]
    %v8614 = vld [vmem:[%s7995 + $0x62] sm:$0xff]
    %v8615 = vld [vmem:[%s7995 + $0x72] sm:$0xff]
    %v8616 = vld [vmem:[%s7995 + $0xa2] sm:$0xff]
    %v8617 = vld [vmem:[%s7995 + $0xb2] sm:$0xff]
    %v8618 = vld [vmem:[%s7995 + $0xc2] sm:$0xff]
    %v8619 = vld [vmem:[%s7995 + $0xd2] sm:$0xff]
    %v8620 = vld [vmem:[%s7995 + $0xe2] sm:$0xff]
    %v8621 = vld [vmem:[%s7995 + $0xf2] sm:$0xff]
    %v8622 = vld [vmem:[%s7995 + $0x102] sm:$0xff]
    %v8623 = vld [vmem:[%s7995 + $0x112] sm:$0xff]
    %8640 = vrot.lane.b32.xlu0 %v8608, 40
    %v8641 = vpop.permute.xlu0 %8640
    %8642 = vrot.lane.b32.xlu0 %v8609, 40
    %v8643 = vpop.permute.xlu0 %8642
    %8644 = vrot.lane.b32.xlu0 %v8610, 40
    %v8645 = vpop.permute.xlu0 %8644
    %8646 = vrot.lane.b32.xlu0 %v8611, 40
    %v8647 = vpop.permute.xlu0 %8646
    %8648 = vrot.lane.b32.xlu0 %v8612, 40
    %v8649 = vpop.permute.xlu0 %8648
    %8650 = vrot.lane.b32.xlu0 %v8613, 40
    %v8651 = vpop.permute.xlu0 %8650
    %8652 = vrot.lane.b32.xlu0 %v8614, 40
    %v8653 = vpop.permute.xlu0 %8652
    %8654 = vrot.lane.b32.xlu0 %v8615, 40
    %v8655 = vpop.permute.xlu0 %8654
    %8656 = vrot.lane.b32.xlu0 %v8616, 40
    %v8657 = vpop.permute.xlu0 %8656
    %8658 = vrot.lane.b32.xlu0 %v8617, 40
    %v8659 = vpop.permute.xlu0 %8658
    %8660 = vrot.lane.b32.xlu0 %v8618, 40
    %v8661 = vpop.permute.xlu0 %8660
    %8662 = vrot.lane.b32.xlu0 %v8619, 40
    %v8663 = vpop.permute.xlu0 %8662
    %8664 = vrot.lane.b32.xlu0 %v8620, 40
    %v8665 = vpop.permute.xlu0 %8664
    %8666 = vrot.lane.b32.xlu0 %v8621, 40
    %v8667 = vpop.permute.xlu0 %8666
    %8668 = vrot.lane.b32.xlu0 %v8622, 40
    %v8669 = vpop.permute.xlu0 %8668
    %8670 = vrot.lane.b32.xlu0 %v8623, 40
    %v8671 = vpop.permute.xlu0 %8670
    %8688 = vst.msk [vmem:[#allocation4] sm:$0xff] %vm6136, %v8641
    %8689 = vst.msk [vmem:[#allocation4 + $0x10] sm:$0xff] %vm6136, %v8643
    %8690 = vst.msk [vmem:[#allocation4 + $0x20] sm:$0xff] %vm6136, %v8645
    %8691 = vst.msk [vmem:[#allocation4 + $0x30] sm:$0xff] %vm6136, %v8647
    %8692 = vst.msk [vmem:[#allocation4 + $0x40] sm:$0xff] %vm6136, %v8649
    %8693 = vst.msk [vmem:[#allocation4 + $0x50] sm:$0xff] %vm6136, %v8651
    %8694 = vst.msk [vmem:[#allocation4 + $0x60] sm:$0xff] %vm6136, %v8653
    %8695 = vst.msk [vmem:[#allocation4 + $0x70] sm:$0xff] %vm6136, %v8655
    %8696 = vst.msk [vmem:[#allocation4 + $0x80] sm:$0xff] %vm6136, %v8657
    %8697 = vst.msk [vmem:[#allocation4 + $0x90] sm:$0xff] %vm6136, %v8659
    %8698 = vst.msk [vmem:[#allocation4 + $0xa0] sm:$0xff] %vm6136, %v8661
    %8699 = vst.msk [vmem:[#allocation4 + $0xb0] sm:$0xff] %vm6136, %v8663
    %8700 = vst.msk [vmem:[#allocation4 + $0xc0] sm:$0xff] %vm6136, %v8665
    %8701 = vst.msk [vmem:[#allocation4 + $0xd0] sm:$0xff] %vm6136, %v8667
    %8702 = vst.msk [vmem:[#allocation4 + $0xe0] sm:$0xff] %vm6136, %v8669
    %8703 = vst.msk [vmem:[#allocation4 + $0xf0] sm:$0xff] %vm6136, %v8671
    %s8704 = scalar_lea.vmem [#allocation3], 32
    %v8705 = vld [vmem:[%s8704] sm:$0xff]
    %v8706 = vld [vmem:[%s8704 + $0x10] sm:$0xff]
    %v8707 = vld [vmem:[%s8704 + $0x20] sm:$0xff]
    %v8708 = vld [vmem:[%s8704 + $0x30] sm:$0xff]
    %v8709 = vld [vmem:[%s8704 + $0x40] sm:$0xff]
    %v8710 = vld [vmem:[%s8704 + $0x50] sm:$0xff]
    %v8711 = vld [vmem:[%s8704 + $0x60] sm:$0xff]
    %v8712 = vld [vmem:[%s8704 + $0x70] sm:$0xff]
    %v8713 = vld [vmem:[%s8704 + $0xa0] sm:$0xff]
    %v8714 = vld [vmem:[%s8704 + $0xb0] sm:$0xff]
    %v8715 = vld [vmem:[%s8704 + $0xc0] sm:$0xff]
    %v8716 = vld [vmem:[%s8704 + $0xd0] sm:$0xff]
    %v8717 = vld [vmem:[%s8704 + $0xe0] sm:$0xff]
    %v8718 = vld [vmem:[%s8704 + $0xf0] sm:$0xff]
    %v8719 = vld [vmem:[%s8704 + $0x100] sm:$0xff]
    %v8720 = vld [vmem:[%s8704 + $0x110] sm:$0xff]
    %8737 = vrot.lane.b32.xlu0 %v8705, 48
    %v8738 = vpop.permute.xlu0 %8737
    %8739 = vrot.lane.b32.xlu0 %v8706, 48
    %v8740 = vpop.permute.xlu0 %8739
    %8741 = vrot.lane.b32.xlu0 %v8707, 48
    %v8742 = vpop.permute.xlu0 %8741
    %8743 = vrot.lane.b32.xlu0 %v8708, 48
    %v8744 = vpop.permute.xlu0 %8743
    %8745 = vrot.lane.b32.xlu0 %v8709, 48
    %v8746 = vpop.permute.xlu0 %8745
    %8747 = vrot.lane.b32.xlu0 %v8710, 48
    %v8748 = vpop.permute.xlu0 %8747
    %8749 = vrot.lane.b32.xlu0 %v8711, 48
    %v8750 = vpop.permute.xlu0 %8749
    %8751 = vrot.lane.b32.xlu0 %v8712, 48
    %v8752 = vpop.permute.xlu0 %8751
    %8753 = vrot.lane.b32.xlu0 %v8713, 48
    %v8754 = vpop.permute.xlu0 %8753
    %8755 = vrot.lane.b32.xlu0 %v8714, 48
    %v8756 = vpop.permute.xlu0 %8755
    %8757 = vrot.lane.b32.xlu0 %v8715, 48
    %v8758 = vpop.permute.xlu0 %8757
    %8759 = vrot.lane.b32.xlu0 %v8716, 48
    %v8760 = vpop.permute.xlu0 %8759
    %8761 = vrot.lane.b32.xlu0 %v8717, 48
    %v8762 = vpop.permute.xlu0 %8761
    %8763 = vrot.lane.b32.xlu0 %v8718, 48
    %v8764 = vpop.permute.xlu0 %8763
    %8765 = vrot.lane.b32.xlu0 %v8719, 48
    %v8766 = vpop.permute.xlu0 %8765
    %8767 = vrot.lane.b32.xlu0 %v8720, 48
    %v8768 = vpop.permute.xlu0 %8767
    %8785 = vst.msk [vmem:[#allocation4] sm:$0xff] %vm6521, %v8738
    %8786 = vst.msk [vmem:[#allocation4 + $0x10] sm:$0xff] %vm6521, %v8740
    %8787 = vst.msk [vmem:[#allocation4 + $0x20] sm:$0xff] %vm6521, %v8742
    %8788 = vst.msk [vmem:[#allocation4 + $0x30] sm:$0xff] %vm6521, %v8744
    %8789 = vst.msk [vmem:[#allocation4 + $0x40] sm:$0xff] %vm6521, %v8746
    %8790 = vst.msk [vmem:[#allocation4 + $0x50] sm:$0xff] %vm6521, %v8748
    %8791 = vst.msk [vmem:[#allocation4 + $0x60] sm:$0xff] %vm6521, %v8750
    %8792 = vst.msk [vmem:[#allocation4 + $0x70] sm:$0xff] %vm6521, %v8752
    %8793 = vst.msk [vmem:[#allocation4 + $0x80] sm:$0xff] %vm6521, %v8754
    %8794 = vst.msk [vmem:[#allocation4 + $0x90] sm:$0xff] %vm6521, %v8756
    %8795 = vst.msk [vmem:[#allocation4 + $0xa0] sm:$0xff] %vm6521, %v8758
    %8796 = vst.msk [vmem:[#allocation4 + $0xb0] sm:$0xff] %vm6521, %v8760
    %8797 = vst.msk [vmem:[#allocation4 + $0xc0] sm:$0xff] %vm6521, %v8762
    %8798 = vst.msk [vmem:[#allocation4 + $0xd0] sm:$0xff] %vm6521, %v8764
    %8799 = vst.msk [vmem:[#allocation4 + $0xe0] sm:$0xff] %vm6521, %v8766
    %8800 = vst.msk [vmem:[#allocation4 + $0xf0] sm:$0xff] %vm6521, %v8768
    %v8801 = vld [vmem:[%s8704 + $0x1] sm:$0xff]
    %v8802 = vld [vmem:[%s8704 + $0x11] sm:$0xff]
    %v8803 = vld [vmem:[%s8704 + $0x21] sm:$0xff]
    %v8804 = vld [vmem:[%s8704 + $0x31] sm:$0xff]
    %v8805 = vld [vmem:[%s8704 + $0x41] sm:$0xff]
    %v8806 = vld [vmem:[%s8704 + $0x51] sm:$0xff]
    %v8807 = vld [vmem:[%s8704 + $0x61] sm:$0xff]
    %v8808 = vld [vmem:[%s8704 + $0x71] sm:$0xff]
    %v8809 = vld [vmem:[%s8704 + $0xa1] sm:$0xff]
    %v8810 = vld [vmem:[%s8704 + $0xb1] sm:$0xff]
    %v8811 = vld [vmem:[%s8704 + $0xc1] sm:$0xff]
    %v8812 = vld [vmem:[%s8704 + $0xd1] sm:$0xff]
    %v8813 = vld [vmem:[%s8704 + $0xe1] sm:$0xff]
    %v8814 = vld [vmem:[%s8704 + $0xf1] sm:$0xff]
    %v8815 = vld [vmem:[%s8704 + $0x101] sm:$0xff]
    %v8816 = vld [vmem:[%s8704 + $0x111] sm:$0xff]
    %8833 = vrot.lane.b32.xlu0 %v8801, 56
    %v8834 = vpop.permute.xlu0 %8833
    %8835 = vrot.lane.b32.xlu0 %v8802, 56
    %v8836 = vpop.permute.xlu0 %8835
    %8837 = vrot.lane.b32.xlu0 %v8803, 56
    %v8838 = vpop.permute.xlu0 %8837
    %8839 = vrot.lane.b32.xlu0 %v8804, 56
    %v8840 = vpop.permute.xlu0 %8839
    %8841 = vrot.lane.b32.xlu0 %v8805, 56
    %v8842 = vpop.permute.xlu0 %8841
    %8843 = vrot.lane.b32.xlu0 %v8806, 56
    %v8844 = vpop.permute.xlu0 %8843
    %8845 = vrot.lane.b32.xlu0 %v8807, 56
    %v8846 = vpop.permute.xlu0 %8845
    %8847 = vrot.lane.b32.xlu0 %v8808, 56
    %v8848 = vpop.permute.xlu0 %8847
    %8849 = vrot.lane.b32.xlu0 %v8809, 56
    %v8850 = vpop.permute.xlu0 %8849
    %8851 = vrot.lane.b32.xlu0 %v8810, 56
    %v8852 = vpop.permute.xlu0 %8851
    %8853 = vrot.lane.b32.xlu0 %v8811, 56
    %v8854 = vpop.permute.xlu0 %8853
    %8855 = vrot.lane.b32.xlu0 %v8812, 56
    %v8856 = vpop.permute.xlu0 %8855
    %8857 = vrot.lane.b32.xlu0 %v8813, 56
    %v8858 = vpop.permute.xlu0 %8857
    %8859 = vrot.lane.b32.xlu0 %v8814, 56
    %v8860 = vpop.permute.xlu0 %8859
    %8861 = vrot.lane.b32.xlu0 %v8815, 56
    %v8862 = vpop.permute.xlu0 %8861
    %8863 = vrot.lane.b32.xlu0 %v8816, 56
    %v8864 = vpop.permute.xlu0 %8863
    %8881 = vst.msk [vmem:[#allocation4] sm:$0xff] %vm6906, %v8834
    %8882 = vst.msk [vmem:[#allocation4 + $0x10] sm:$0xff] %vm6906, %v8836
    %8883 = vst.msk [vmem:[#allocation4 + $0x20] sm:$0xff] %vm6906, %v8838
    %8884 = vst.msk [vmem:[#allocation4 + $0x30] sm:$0xff] %vm6906, %v8840
    %8885 = vst.msk [vmem:[#allocation4 + $0x40] sm:$0xff] %vm6906, %v8842
    %8886 = vst.msk [vmem:[#allocation4 + $0x50] sm:$0xff] %vm6906, %v8844
    %8887 = vst.msk [vmem:[#allocation4 + $0x60] sm:$0xff] %vm6906, %v8846
    %8888 = vst.msk [vmem:[#allocation4 + $0x70] sm:$0xff] %vm6906, %v8848
    %8889 = vst.msk [vmem:[#allocation4 + $0x80] sm:$0xff] %vm6906, %v8850
    %8890 = vst.msk [vmem:[#allocation4 + $0x90] sm:$0xff] %vm6906, %v8852
    %8891 = vst.msk [vmem:[#allocation4 + $0xa0] sm:$0xff] %vm6906, %v8854
    %8892 = vst.msk [vmem:[#allocation4 + $0xb0] sm:$0xff] %vm6906, %v8856
    %8893 = vst.msk [vmem:[#allocation4 + $0xc0] sm:$0xff] %vm6906, %v8858
    %8894 = vst.msk [vmem:[#allocation4 + $0xd0] sm:$0xff] %vm6906, %v8860
    %8895 = vst.msk [vmem:[#allocation4 + $0xe0] sm:$0xff] %vm6906, %v8862
    %8896 = vst.msk [vmem:[#allocation4 + $0xf0] sm:$0xff] %vm6906, %v8864
    %v8897 = vld [vmem:[%s8704 + $0x2] sm:$0xff]
    %v8898 = vld [vmem:[%s8704 + $0x12] sm:$0xff]
    %v8899 = vld [vmem:[%s8704 + $0x22] sm:$0xff]
    %v8900 = vld [vmem:[%s8704 + $0x32] sm:$0xff]
    %v8901 = vld [vmem:[%s8704 + $0x42] sm:$0xff]
    %v8902 = vld [vmem:[%s8704 + $0x52] sm:$0xff]
    %v8903 = vld [vmem:[%s8704 + $0x62] sm:$0xff]
    %v8904 = vld [vmem:[%s8704 + $0x72] sm:$0xff]
    %v8905 = vld [vmem:[%s8704 + $0xa2] sm:$0xff]
    %v8906 = vld [vmem:[%s8704 + $0xb2] sm:$0xff]
    %v8907 = vld [vmem:[%s8704 + $0xc2] sm:$0xff]
    %v8908 = vld [vmem:[%s8704 + $0xd2] sm:$0xff]
    %v8909 = vld [vmem:[%s8704 + $0xe2] sm:$0xff]
    %v8910 = vld [vmem:[%s8704 + $0xf2] sm:$0xff]
    %v8911 = vld [vmem:[%s8704 + $0x102] sm:$0xff]
    %v8912 = vld [vmem:[%s8704 + $0x112] sm:$0xff]
    %8929 = vrot.lane.b32.xlu0 %v8897, 64
    %v8930 = vpop.permute.xlu0 %8929
    %8931 = vrot.lane.b32.xlu0 %v8898, 64
    %v8932 = vpop.permute.xlu0 %8931
    %8933 = vrot.lane.b32.xlu0 %v8899, 64
    %v8934 = vpop.permute.xlu0 %8933
    %8935 = vrot.lane.b32.xlu0 %v8900, 64
    %v8936 = vpop.permute.xlu0 %8935
    %8937 = vrot.lane.b32.xlu0 %v8901, 64
    %v8938 = vpop.permute.xlu0 %8937
    %8939 = vrot.lane.b32.xlu0 %v8902, 64
    %v8940 = vpop.permute.xlu0 %8939
    %8941 = vrot.lane.b32.xlu0 %v8903, 64
    %v8942 = vpop.permute.xlu0 %8941
    %8943 = vrot.lane.b32.xlu0 %v8904, 64
    %v8944 = vpop.permute.xlu0 %8943
    %8945 = vrot.lane.b32.xlu0 %v8905, 64
    %v8946 = vpop.permute.xlu0 %8945
    %8947 = vrot.lane.b32.xlu0 %v8906, 64
    %v8948 = vpop.permute.xlu0 %8947
    %8949 = vrot.lane.b32.xlu0 %v8907, 64
    %v8950 = vpop.permute.xlu0 %8949
    %8951 = vrot.lane.b32.xlu0 %v8908, 64
    %v8952 = vpop.permute.xlu0 %8951
    %8953 = vrot.lane.b32.xlu0 %v8909, 64
    %v8954 = vpop.permute.xlu0 %8953
    %8955 = vrot.lane.b32.xlu0 %v8910, 64
    %v8956 = vpop.permute.xlu0 %8955
    %8957 = vrot.lane.b32.xlu0 %v8911, 64
    %v8958 = vpop.permute.xlu0 %8957
    %8959 = vrot.lane.b32.xlu0 %v8912, 64
    %v8960 = vpop.permute.xlu0 %8959
    %8977 = vst.msk [vmem:[#allocation4] sm:$0xff] %vm7291, %v8930
    %8978 = vst.msk [vmem:[#allocation4 + $0x10] sm:$0xff] %vm7291, %v8932
    %8979 = vst.msk [vmem:[#allocation4 + $0x20] sm:$0xff] %vm7291, %v8934
    %8980 = vst.msk [vmem:[#allocation4 + $0x30] sm:$0xff] %vm7291, %v8936
    %8981 = vst.msk [vmem:[#allocation4 + $0x40] sm:$0xff] %vm7291, %v8938
    %8982 = vst.msk [vmem:[#allocation4 + $0x50] sm:$0xff] %vm7291, %v8940
    %8983 = vst.msk [vmem:[#allocation4 + $0x60] sm:$0xff] %vm7291, %v8942
    %8984 = vst.msk [vmem:[#allocation4 + $0x70] sm:$0xff] %vm7291, %v8944
    %8985 = vst.msk [vmem:[#allocation4 + $0x80] sm:$0xff] %vm7291, %v8946
    %8986 = vst.msk [vmem:[#allocation4 + $0x90] sm:$0xff] %vm7291, %v8948
    %8987 = vst.msk [vmem:[#allocation4 + $0xa0] sm:$0xff] %vm7291, %v8950
    %8988 = vst.msk [vmem:[#allocation4 + $0xb0] sm:$0xff] %vm7291, %v8952
    %8989 = vst.msk [vmem:[#allocation4 + $0xc0] sm:$0xff] %vm7291, %v8954
    %8990 = vst.msk [vmem:[#allocation4 + $0xd0] sm:$0xff] %vm7291, %v8956
    %8991 = vst.msk [vmem:[#allocation4 + $0xe0] sm:$0xff] %vm7291, %v8958
    %8992 = vst.msk [vmem:[#allocation4 + $0xf0] sm:$0xff] %vm7291, %v8960
    %v8993 = vld [vmem:[#allocation4] sm:$0xff]
    %v8994 = vld [vmem:[#allocation4 + $0x10] sm:$0xff]
    %v8995 = vld [vmem:[#allocation4 + $0x20] sm:$0xff]
    %v8996 = vld [vmem:[#allocation4 + $0x30] sm:$0xff]
    %v8997 = vld [vmem:[#allocation4 + $0x40] sm:$0xff]
    %v8998 = vld [vmem:[#allocation4 + $0x50] sm:$0xff]
    %v8999 = vld [vmem:[#allocation4 + $0x60] sm:$0xff]
    %v9000 = vld [vmem:[#allocation4 + $0x70] sm:$0xff]
    %v9001 = vld [vmem:[#allocation4 + $0x80] sm:$0xff]
    %v9002 = vld [vmem:[#allocation4 + $0x90] sm:$0xff]
    %v9003 = vld [vmem:[#allocation4 + $0xa0] sm:$0xff]
    %v9004 = vld [vmem:[#allocation4 + $0xb0] sm:$0xff]
    %v9005 = vld [vmem:[#allocation4 + $0xc0] sm:$0xff]
    %v9006 = vld [vmem:[#allocation4 + $0xd0] sm:$0xff]
    %v9007 = vld [vmem:[#allocation4 + $0xe0] sm:$0xff]
    %v9008 = vld [vmem:[#allocation4 + $0xf0] sm:$0xff]
    %v9009 = vld [vmem:[%s5] sm:$0xff]
    %v9010 = vld [vmem:[%s5 + $0x8] sm:$0xff]
    %v9011 = vld [vmem:[%s5 + $0x10] sm:$0xff]
    %v9012 = vld [vmem:[%s5 + $0x18] sm:$0xff]
    %v9013 = vld [vmem:[%s5 + $0x20] sm:$0xff]
    %v9014 = vld [vmem:[%s5 + $0x28] sm:$0xff]
    %v9015 = vld [vmem:[%s5 + $0x30] sm:$0xff]
    %v9016 = vld [vmem:[%s5 + $0x38] sm:$0xff]
    %v9017 = vld [vmem:[%s5 + $0x40] sm:$0xff]
    %v9018 = vld [vmem:[%s6] sm:$0x1]
    %v9020 = vperm.slane %v9018, 0
    %v9023 = vsel %vm7433, %v8993, 0
    %v9026 = vsel %vm7433, %v8994, 0
    %v9029 = vsel %vm7433, %v8995, 0
    %v9032 = vsel %vm7433, %v8996, 0
    %v9035 = vsel %vm7433, %v8997, 0
    %v9038 = vsel %vm7433, %v8998, 0
    %v9041 = vsel %vm7433, %v8999, 0
    %v9044 = vsel %vm7433, %v9000, 0
    %v9047 = vsel %vm7433, %v9001, 0
    %v9050 = vsel %vm7433, %v9002, 0
    %v9053 = vsel %vm7433, %v9003, 0
    %v9056 = vsel %vm7433, %v9004, 0
    %v9059 = vsel %vm7433, %v9005, 0
    %v9062 = vsel %vm7433, %v9006, 0
    %v9065 = vsel %vm7433, %v9007, 0
    %v9068 = vsel %vm7433, %v9008, 0
    %9070 = vmatpush.msra.mxu0 0.0
    %9071 = vmatpush.msra.mxu0 0.0
    %9072 = vmatpush.msra.mxu0 0.0
    %9073 = vmatpush.msra.mxu0 0.0
    %9074 = vmatpush.msra.mxu0 0.0
    %9075 = vmatpush.msra.mxu0 0.0
    %9076 = vmatpush.msra.mxu0 0.0
    %9077 = vmatpush.msra.mxu0 %v9017
    %9078 = vmatpush.msra.mxu0 %v9016
    %9079 = vmatpush.msra.mxu0 %v9015
    %9080 = vmatpush.msra.mxu0 %v9014
    %9081 = vmatpush.msra.mxu0 %v9013
    %9082 = vmatpush.msra.mxu0 %v9012
    %9083 = vmatpush.msra.mxu0 %v9011
    %9084 = vmatpush.msra.mxu0 %v9010
    %9085 = vmatpush.msra.mxu0 %v9009
    %9086 = vmatmul.f32.gmra.mxu0 %v9023
    %v9087 = vpop.f32.mrf.mxu0
    %v9088 = vadd.f32 %v9020, %v9087
    %9089 = vmatmul.f32.gmra.mxu0 %v9026
    %v9090 = vpop.f32.mrf.mxu0
    %v9091 = vadd.f32 %v9020, %v9090
    %9092 = vmatmul.f32.gmra.mxu0 %v9029
    %v9093 = vpop.f32.mrf.mxu0
    %v9094 = vadd.f32 %v9020, %v9093
    %9095 = vmatmul.f32.gmra.mxu0 %v9032
    %v9096 = vpop.f32.mrf.mxu0
    %v9097 = vadd.f32 %v9020, %v9096
    %9098 = vmatmul.f32.gmra.mxu0 %v9035
    %v9099 = vpop.f32.mrf.mxu0
    %v9100 = vadd.f32 %v9020, %v9099
    %9101 = vmatmul.f32.gmra.mxu0 %v9038
    %v9102 = vpop.f32.mrf.mxu0
    %v9103 = vadd.f32 %v9020, %v9102
    %9104 = vmatmul.f32.gmra.mxu0 %v9041
    %v9105 = vpop.f32.mrf.mxu0
    %v9106 = vadd.f32 %v9020, %v9105
    %9107 = vmatmul.f32.gmra.mxu0 %v9044
    %v9108 = vpop.f32.mrf.mxu0
    %v9109 = vadd.f32 %v9020, %v9108
    %9110 = vmatmul.f32.gmra.mxu0 %v9047
    %v9111 = vpop.f32.mrf.mxu0
    %v9112 = vadd.f32 %v9020, %v9111
    %9113 = vmatmul.f32.gmra.mxu0 %v9050
    %v9114 = vpop.f32.mrf.mxu0
    %v9115 = vadd.f32 %v9020, %v9114
    %9116 = vmatmul.f32.gmra.mxu0 %v9053
    %v9117 = vpop.f32.mrf.mxu0
    %v9118 = vadd.f32 %v9020, %v9117
    %9119 = vmatmul.f32.gmra.mxu0 %v9056
    %v9120 = vpop.f32.mrf.mxu0
    %v9121 = vadd.f32 %v9020, %v9120
    %9122 = vmatmul.f32.gmra.mxu0 %v9059
    %v9123 = vpop.f32.mrf.mxu0
    %v9124 = vadd.f32 %v9020, %v9123
    %9125 = vmatmul.f32.gmra.mxu0 %v9062
    %v9126 = vpop.f32.mrf.mxu0
    %v9127 = vadd.f32 %v9020, %v9126
    %9128 = vmatmul.f32.gmra.mxu0 %v9065
    %v9129 = vpop.f32.mrf.mxu0
    %v9130 = vadd.f32 %v9020, %v9129
    %9131 = vmatmul.f32.gmra.mxu0 %v9068
    %v9132 = vpop.f32.mrf.mxu0
    %v9133 = vadd.f32 %v9020, %v9132
    %9134 = vdwg.mxu0
    %v9135 = vmax.f32 %v9088, 0.0
    %v9136 = vmax.f32 %v9091, 0.0
    %v9137 = vmax.f32 %v9094, 0.0
    %v9138 = vmax.f32 %v9097, 0.0
    %v9139 = vmax.f32 %v9100, 0.0
    %v9140 = vmax.f32 %v9103, 0.0
    %v9141 = vmax.f32 %v9106, 0.0
    %v9142 = vmax.f32 %v9109, 0.0
    %v9143 = vmax.f32 %v9112, 0.0
    %v9144 = vmax.f32 %v9115, 0.0
    %v9145 = vmax.f32 %v9118, 0.0
    %v9146 = vmax.f32 %v9121, 0.0
    %v9147 = vmax.f32 %v9124, 0.0
    %v9148 = vmax.f32 %v9127, 0.0
    %v9149 = vmax.f32 %v9130, 0.0
    %v9150 = vmax.f32 %v9133, 0.0
    %9151 = vst.msk [vmem:[%s7995 + $0x1] sm:$0xff] %vm161, %v9135
    %9152 = vst.msk [vmem:[%s7995 + $0x11] sm:$0xff] %vm161, %v9136
    %9153 = vst.msk [vmem:[%s7995 + $0x21] sm:$0xff] %vm161, %v9137
    %9154 = vst.msk [vmem:[%s7995 + $0x31] sm:$0xff] %vm161, %v9138
    %9155 = vst.msk [vmem:[%s7995 + $0x41] sm:$0xff] %vm161, %v9139
    %9156 = vst.msk [vmem:[%s7995 + $0x51] sm:$0xff] %vm161, %v9140
    %9157 = vst.msk [vmem:[%s7995 + $0x61] sm:$0xff] %vm161, %v9141
    %9158 = vst.msk [vmem:[%s7995 + $0x71] sm:$0xff] %vm161, %v9142
    %9159 = vst.msk [vmem:[%s7995 + $0xa1] sm:$0xff] %vm161, %v9143
    %9160 = vst.msk [vmem:[%s7995 + $0xb1] sm:$0xff] %vm161, %v9144
    %9161 = vst.msk [vmem:[%s7995 + $0xc1] sm:$0xff] %vm161, %v9145
    %9162 = vst.msk [vmem:[%s7995 + $0xd1] sm:$0xff] %vm161, %v9146
    %9163 = vst.msk [vmem:[%s7995 + $0xe1] sm:$0xff] %vm161, %v9147
    %9164 = vst.msk [vmem:[%s7995 + $0xf1] sm:$0xff] %vm161, %v9148
    %9165 = vst.msk [vmem:[%s7995 + $0x101] sm:$0xff] %vm161, %v9149
    %9166 = vst.msk [vmem:[%s7995 + $0x111] sm:$0xff] %vm161, %v9150
    %v9167 = vld [vmem:[#allocation3] sm:$0xff]
    %v9168 = vld [vmem:[#allocation3 + $0x10] sm:$0xff]
    %v9169 = vld [vmem:[#allocation3 + $0x20] sm:$0xff]
    %v9170 = vld [vmem:[#allocation3 + $0x30] sm:$0xff]
    %v9171 = vld [vmem:[#allocation3 + $0x40] sm:$0xff]
    %v9172 = vld [vmem:[#allocation3 + $0x50] sm:$0xff]
    %v9173 = vld [vmem:[#allocation3 + $0x60] sm:$0xff]
    %v9174 = vld [vmem:[#allocation3 + $0x70] sm:$0xff]
    %v9175 = vld [vmem:[#allocation3 + $0xa0] sm:$0xff]
    %v9176 = vld [vmem:[#allocation3 + $0xb0] sm:$0xff]
    %v9177 = vld [vmem:[#allocation3 + $0xc0] sm:$0xff]
    %v9178 = vld [vmem:[#allocation3 + $0xd0] sm:$0xff]
    %v9179 = vld [vmem:[#allocation3 + $0xe0] sm:$0xff]
    %v9180 = vld [vmem:[#allocation3 + $0xf0] sm:$0xff]
    %v9181 = vld [vmem:[#allocation3 + $0x100] sm:$0xff]
    %v9182 = vld [vmem:[#allocation3 + $0x110] sm:$0xff]
    %9183 = vst.msk [vmem:[#allocation4] sm:$0xff] %vm161, %v9167
    %9184 = vst.msk [vmem:[#allocation4 + $0x10] sm:$0xff] %vm161, %v9168
    %9185 = vst.msk [vmem:[#allocation4 + $0x20] sm:$0xff] %vm161, %v9169
    %9186 = vst.msk [vmem:[#allocation4 + $0x30] sm:$0xff] %vm161, %v9170
    %9187 = vst.msk [vmem:[#allocation4 + $0x40] sm:$0xff] %vm161, %v9171
    %9188 = vst.msk [vmem:[#allocation4 + $0x50] sm:$0xff] %vm161, %v9172
    %9189 = vst.msk [vmem:[#allocation4 + $0x60] sm:$0xff] %vm161, %v9173
    %9190 = vst.msk [vmem:[#allocation4 + $0x70] sm:$0xff] %vm161, %v9174
    %9191 = vst.msk [vmem:[#allocation4 + $0x80] sm:$0xff] %vm161, %v9175
    %9192 = vst.msk [vmem:[#allocation4 + $0x90] sm:$0xff] %vm161, %v9176
    %9193 = vst.msk [vmem:[#allocation4 + $0xa0] sm:$0xff] %vm161, %v9177
    %9194 = vst.msk [vmem:[#allocation4 + $0xb0] sm:$0xff] %vm161, %v9178
    %9195 = vst.msk [vmem:[#allocation4 + $0xc0] sm:$0xff] %vm161, %v9179
    %9196 = vst.msk [vmem:[#allocation4 + $0xd0] sm:$0xff] %vm161, %v9180
    %9197 = vst.msk [vmem:[#allocation4 + $0xe0] sm:$0xff] %vm161, %v9181
    %9198 = vst.msk [vmem:[#allocation4 + $0xf0] sm:$0xff] %vm161, %v9182
    %v9199 = vld [vmem:[#allocation3 + $0x1] sm:$0xff]
    %v9200 = vld [vmem:[#allocation3 + $0x11] sm:$0xff]
    %v9201 = vld [vmem:[#allocation3 + $0x21] sm:$0xff]
    %v9202 = vld [vmem:[#allocation3 + $0x31] sm:$0xff]
    %v9203 = vld [vmem:[#allocation3 + $0x41] sm:$0xff]
    %v9204 = vld [vmem:[#allocation3 + $0x51] sm:$0xff]
    %v9205 = vld [vmem:[#allocation3 + $0x61] sm:$0xff]
    %v9206 = vld [vmem:[#allocation3 + $0x71] sm:$0xff]
    %v9207 = vld [vmem:[#allocation3 + $0xa1] sm:$0xff]
    %v9208 = vld [vmem:[#allocation3 + $0xb1] sm:$0xff]
    %v9209 = vld [vmem:[#allocation3 + $0xc1] sm:$0xff]
    %v9210 = vld [vmem:[#allocation3 + $0xd1] sm:$0xff]
    %v9211 = vld [vmem:[#allocation3 + $0xe1] sm:$0xff]
    %v9212 = vld [vmem:[#allocation3 + $0xf1] sm:$0xff]
    %v9213 = vld [vmem:[#allocation3 + $0x101] sm:$0xff]
    %v9214 = vld [vmem:[#allocation3 + $0x111] sm:$0xff]
    %9231 = vrot.lane.b32.xlu0 %v9199, 16
    %v9232 = vpop.permute.xlu0 %9231
    %9233 = vrot.lane.b32.xlu0 %v9200, 16
    %v9234 = vpop.permute.xlu0 %9233
    %9235 = vrot.lane.b32.xlu0 %v9201, 16
    %v9236 = vpop.permute.xlu0 %9235
    %9237 = vrot.lane.b32.xlu0 %v9202, 16
    %v9238 = vpop.permute.xlu0 %9237
    %9239 = vrot.lane.b32.xlu0 %v9203, 16
    %v9240 = vpop.permute.xlu0 %9239
    %9241 = vrot.lane.b32.xlu0 %v9204, 16
    %v9242 = vpop.permute.xlu0 %9241
    %9243 = vrot.lane.b32.xlu0 %v9205, 16
    %v9244 = vpop.permute.xlu0 %9243
    %9245 = vrot.lane.b32.xlu0 %v9206, 16
    %v9246 = vpop.permute.xlu0 %9245
    %9247 = vrot.lane.b32.xlu0 %v9207, 16
    %v9248 = vpop.permute.xlu0 %9247
    %9249 = vrot.lane.b32.xlu0 %v9208, 16
    %v9250 = vpop.permute.xlu0 %9249
    %9251 = vrot.lane.b32.xlu0 %v9209, 16
    %v9252 = vpop.permute.xlu0 %9251
    %9253 = vrot.lane.b32.xlu0 %v9210, 16
    %v9254 = vpop.permute.xlu0 %9253
    %9255 = vrot.lane.b32.xlu0 %v9211, 16
    %v9256 = vpop.permute.xlu0 %9255
    %9257 = vrot.lane.b32.xlu0 %v9212, 16
    %v9258 = vpop.permute.xlu0 %9257
    %9259 = vrot.lane.b32.xlu0 %v9213, 16
    %v9260 = vpop.permute.xlu0 %9259
    %9261 = vrot.lane.b32.xlu0 %v9214, 16
    %v9262 = vpop.permute.xlu0 %9261
    %vm9279 = vcmask 261248
    %9280 = vst.msk [vmem:[#allocation4] sm:$0xff] %vm9279, %v9232
    %9281 = vst.msk [vmem:[#allocation4 + $0x10] sm:$0xff] %vm9279, %v9234
    %9282 = vst.msk [vmem:[#allocation4 + $0x20] sm:$0xff] %vm9279, %v9236
    %9283 = vst.msk [vmem:[#allocation4 + $0x30] sm:$0xff] %vm9279, %v9238
    %9284 = vst.msk [vmem:[#allocation4 + $0x40] sm:$0xff] %vm9279, %v9240
    %9285 = vst.msk [vmem:[#allocation4 + $0x50] sm:$0xff] %vm9279, %v9242
    %9286 = vst.msk [vmem:[#allocation4 + $0x60] sm:$0xff] %vm9279, %v9244
    %9287 = vst.msk [vmem:[#allocation4 + $0x70] sm:$0xff] %vm9279, %v9246
    %9288 = vst.msk [vmem:[#allocation4 + $0x80] sm:$0xff] %vm9279, %v9248
    %9289 = vst.msk [vmem:[#allocation4 + $0x90] sm:$0xff] %vm9279, %v9250
    %9290 = vst.msk [vmem:[#allocation4 + $0xa0] sm:$0xff] %vm9279, %v9252
    %9291 = vst.msk [vmem:[#allocation4 + $0xb0] sm:$0xff] %vm9279, %v9254
    %9292 = vst.msk [vmem:[#allocation4 + $0xc0] sm:$0xff] %vm9279, %v9256
    %9293 = vst.msk [vmem:[#allocation4 + $0xd0] sm:$0xff] %vm9279, %v9258
    %9294 = vst.msk [vmem:[#allocation4 + $0xe0] sm:$0xff] %vm9279, %v9260
    %9295 = vst.msk [vmem:[#allocation4 + $0xf0] sm:$0xff] %vm9279, %v9262
    %v9296 = vld [vmem:[#allocation3 + $0x2] sm:$0xff]
    %v9297 = vld [vmem:[#allocation3 + $0x12] sm:$0xff]
    %v9298 = vld [vmem:[#allocation3 + $0x22] sm:$0xff]
    %v9299 = vld [vmem:[#allocation3 + $0x32] sm:$0xff]
    %v9300 = vld [vmem:[#allocation3 + $0x42] sm:$0xff]
    %v9301 = vld [vmem:[#allocation3 + $0x52] sm:$0xff]
    %v9302 = vld [vmem:[#allocation3 + $0x62] sm:$0xff]
    %v9303 = vld [vmem:[#allocation3 + $0x72] sm:$0xff]
    %v9304 = vld [vmem:[#allocation3 + $0xa2] sm:$0xff]
    %v9305 = vld [vmem:[#allocation3 + $0xb2] sm:$0xff]
    %v9306 = vld [vmem:[#allocation3 + $0xc2] sm:$0xff]
    %v9307 = vld [vmem:[#allocation3 + $0xd2] sm:$0xff]
    %v9308 = vld [vmem:[#allocation3 + $0xe2] sm:$0xff]
    %v9309 = vld [vmem:[#allocation3 + $0xf2] sm:$0xff]
    %v9310 = vld [vmem:[#allocation3 + $0x102] sm:$0xff]
    %v9311 = vld [vmem:[#allocation3 + $0x112] sm:$0xff]
    %9328 = vrot.lane.b32.xlu0 %v9296, 32
    %v9329 = vpop.permute.xlu0 %9328
    %9330 = vrot.lane.b32.xlu0 %v9297, 32
    %v9331 = vpop.permute.xlu0 %9330
    %9332 = vrot.lane.b32.xlu0 %v9298, 32
    %v9333 = vpop.permute.xlu0 %9332
    %9334 = vrot.lane.b32.xlu0 %v9299, 32
    %v9335 = vpop.permute.xlu0 %9334
    %9336 = vrot.lane.b32.xlu0 %v9300, 32
    %v9337 = vpop.permute.xlu0 %9336
    %9338 = vrot.lane.b32.xlu0 %v9301, 32
    %v9339 = vpop.permute.xlu0 %9338
    %9340 = vrot.lane.b32.xlu0 %v9302, 32
    %v9341 = vpop.permute.xlu0 %9340
    %9342 = vrot.lane.b32.xlu0 %v9303, 32
    %v9343 = vpop.permute.xlu0 %9342
    %9344 = vrot.lane.b32.xlu0 %v9304, 32
    %v9345 = vpop.permute.xlu0 %9344
    %9346 = vrot.lane.b32.xlu0 %v9305, 32
    %v9347 = vpop.permute.xlu0 %9346
    %9348 = vrot.lane.b32.xlu0 %v9306, 32
    %v9349 = vpop.permute.xlu0 %9348
    %9350 = vrot.lane.b32.xlu0 %v9307, 32
    %v9351 = vpop.permute.xlu0 %9350
    %9352 = vrot.lane.b32.xlu0 %v9308, 32
    %v9353 = vpop.permute.xlu0 %9352
    %9354 = vrot.lane.b32.xlu0 %v9309, 32
    %v9355 = vpop.permute.xlu0 %9354
    %9356 = vrot.lane.b32.xlu0 %v9310, 32
    %v9357 = vpop.permute.xlu0 %9356
    %9358 = vrot.lane.b32.xlu0 %v9311, 32
    %v9359 = vpop.permute.xlu0 %9358
    %vm9376 = vcmask 392448
    %9377 = vst.msk [vmem:[#allocation4] sm:$0xff] %vm9376, %v9329
    %9378 = vst.msk [vmem:[#allocation4 + $0x10] sm:$0xff] %vm9376, %v9331
    %9379 = vst.msk [vmem:[#allocation4 + $0x20] sm:$0xff] %vm9376, %v9333
    %9380 = vst.msk [vmem:[#allocation4 + $0x30] sm:$0xff] %vm9376, %v9335
    %9381 = vst.msk [vmem:[#allocation4 + $0x40] sm:$0xff] %vm9376, %v9337
    %9382 = vst.msk [vmem:[#allocation4 + $0x50] sm:$0xff] %vm9376, %v9339
    %9383 = vst.msk [vmem:[#allocation4 + $0x60] sm:$0xff] %vm9376, %v9341
    %9384 = vst.msk [vmem:[#allocation4 + $0x70] sm:$0xff] %vm9376, %v9343
    %9385 = vst.msk [vmem:[#allocation4 + $0x80] sm:$0xff] %vm9376, %v9345
    %9386 = vst.msk [vmem:[#allocation4 + $0x90] sm:$0xff] %vm9376, %v9347
    %9387 = vst.msk [vmem:[#allocation4 + $0xa0] sm:$0xff] %vm9376, %v9349
    %9388 = vst.msk [vmem:[#allocation4 + $0xb0] sm:$0xff] %vm9376, %v9351
    %9389 = vst.msk [vmem:[#allocation4 + $0xc0] sm:$0xff] %vm9376, %v9353
    %9390 = vst.msk [vmem:[#allocation4 + $0xd0] sm:$0xff] %vm9376, %v9355
    %9391 = vst.msk [vmem:[#allocation4 + $0xe0] sm:$0xff] %vm9376, %v9357
    %9392 = vst.msk [vmem:[#allocation4 + $0xf0] sm:$0xff] %vm9376, %v9359
    %v9393 = vld [vmem:[%s7995] sm:$0xff]
    %v9394 = vld [vmem:[%s7995 + $0x10] sm:$0xff]
    %v9395 = vld [vmem:[%s7995 + $0x20] sm:$0xff]
    %v9396 = vld [vmem:[%s7995 + $0x30] sm:$0xff]
    %v9397 = vld [vmem:[%s7995 + $0x40] sm:$0xff]
    %v9398 = vld [vmem:[%s7995 + $0x50] sm:$0xff]
    %v9399 = vld [vmem:[%s7995 + $0x60] sm:$0xff]
    %v9400 = vld [vmem:[%s7995 + $0x70] sm:$0xff]
    %v9401 = vld [vmem:[%s7995 + $0xa0] sm:$0xff]
    %v9402 = vld [vmem:[%s7995 + $0xb0] sm:$0xff]
    %v9403 = vld [vmem:[%s7995 + $0xc0] sm:$0xff]
    %v9404 = vld [vmem:[%s7995 + $0xd0] sm:$0xff]
    %v9405 = vld [vmem:[%s7995 + $0xe0] sm:$0xff]
    %v9406 = vld [vmem:[%s7995 + $0xf0] sm:$0xff]
    %v9407 = vld [vmem:[%s7995 + $0x100] sm:$0xff]
    %v9408 = vld [vmem:[%s7995 + $0x110] sm:$0xff]
    %9425 = vrot.lane.b32.xlu0 %v9393, 48
    %v9426 = vpop.permute.xlu0 %9425
    %9427 = vrot.lane.b32.xlu0 %v9394, 48
    %v9428 = vpop.permute.xlu0 %9427
    %9429 = vrot.lane.b32.xlu0 %v9395, 48
    %v9430 = vpop.permute.xlu0 %9429
    %9431 = vrot.lane.b32.xlu0 %v9396, 48
    %v9432 = vpop.permute.xlu0 %9431
    %9433 = vrot.lane.b32.xlu0 %v9397, 48
    %v9434 = vpop.permute.xlu0 %9433
    %9435 = vrot.lane.b32.xlu0 %v9398, 48
    %v9436 = vpop.permute.xlu0 %9435
    %9437 = vrot.lane.b32.xlu0 %v9399, 48
    %v9438 = vpop.permute.xlu0 %9437
    %9439 = vrot.lane.b32.xlu0 %v9400, 48
    %v9440 = vpop.permute.xlu0 %9439
    %9441 = vrot.lane.b32.xlu0 %v9401, 48
    %v9442 = vpop.permute.xlu0 %9441
    %9443 = vrot.lane.b32.xlu0 %v9402, 48
    %v9444 = vpop.permute.xlu0 %9443
    %9445 = vrot.lane.b32.xlu0 %v9403, 48
    %v9446 = vpop.permute.xlu0 %9445
    %9447 = vrot.lane.b32.xlu0 %v9404, 48
    %v9448 = vpop.permute.xlu0 %9447
    %9449 = vrot.lane.b32.xlu0 %v9405, 48
    %v9450 = vpop.permute.xlu0 %9449
    %9451 = vrot.lane.b32.xlu0 %v9406, 48
    %v9452 = vpop.permute.xlu0 %9451
    %9453 = vrot.lane.b32.xlu0 %v9407, 48
    %v9454 = vpop.permute.xlu0 %9453
    %9455 = vrot.lane.b32.xlu0 %v9408, 48
    %v9456 = vpop.permute.xlu0 %9455
    %vm9473 = vcmask 523648
    %9474 = vst.msk [vmem:[#allocation4] sm:$0xff] %vm9473, %v9426
    %9475 = vst.msk [vmem:[#allocation4 + $0x10] sm:$0xff] %vm9473, %v9428
    %9476 = vst.msk [vmem:[#allocation4 + $0x20] sm:$0xff] %vm9473, %v9430
    %9477 = vst.msk [vmem:[#allocation4 + $0x30] sm:$0xff] %vm9473, %v9432
    %9478 = vst.msk [vmem:[#allocation4 + $0x40] sm:$0xff] %vm9473, %v9434
    %9479 = vst.msk [vmem:[#allocation4 + $0x50] sm:$0xff] %vm9473, %v9436
    %9480 = vst.msk [vmem:[#allocation4 + $0x60] sm:$0xff] %vm9473, %v9438
    %9481 = vst.msk [vmem:[#allocation4 + $0x70] sm:$0xff] %vm9473, %v9440
    %9482 = vst.msk [vmem:[#allocation4 + $0x80] sm:$0xff] %vm9473, %v9442
    %9483 = vst.msk [vmem:[#allocation4 + $0x90] sm:$0xff] %vm9473, %v9444
    %9484 = vst.msk [vmem:[#allocation4 + $0xa0] sm:$0xff] %vm9473, %v9446
    %9485 = vst.msk [vmem:[#allocation4 + $0xb0] sm:$0xff] %vm9473, %v9448
    %9486 = vst.msk [vmem:[#allocation4 + $0xc0] sm:$0xff] %vm9473, %v9450
    %9487 = vst.msk [vmem:[#allocation4 + $0xd0] sm:$0xff] %vm9473, %v9452
    %9488 = vst.msk [vmem:[#allocation4 + $0xe0] sm:$0xff] %vm9473, %v9454
    %9489 = vst.msk [vmem:[#allocation4 + $0xf0] sm:$0xff] %vm9473, %v9456
    %v9490 = vld [vmem:[%s7995 + $0x1] sm:$0xff]
    %v9491 = vld [vmem:[%s7995 + $0x11] sm:$0xff]
    %v9492 = vld [vmem:[%s7995 + $0x21] sm:$0xff]
    %v9493 = vld [vmem:[%s7995 + $0x31] sm:$0xff]
    %v9494 = vld [vmem:[%s7995 + $0x41] sm:$0xff]
    %v9495 = vld [vmem:[%s7995 + $0x51] sm:$0xff]
    %v9496 = vld [vmem:[%s7995 + $0x61] sm:$0xff]
    %v9497 = vld [vmem:[%s7995 + $0x71] sm:$0xff]
    %v9498 = vld [vmem:[%s7995 + $0xa1] sm:$0xff]
    %v9499 = vld [vmem:[%s7995 + $0xb1] sm:$0xff]
    %v9500 = vld [vmem:[%s7995 + $0xc1] sm:$0xff]
    %v9501 = vld [vmem:[%s7995 + $0xd1] sm:$0xff]
    %v9502 = vld [vmem:[%s7995 + $0xe1] sm:$0xff]
    %v9503 = vld [vmem:[%s7995 + $0xf1] sm:$0xff]
    %v9504 = vld [vmem:[%s7995 + $0x101] sm:$0xff]
    %v9505 = vld [vmem:[%s7995 + $0x111] sm:$0xff]
    %9522 = vrot.lane.b32.xlu0 %v9490, 64
    %v9523 = vpop.permute.xlu0 %9522
    %9524 = vrot.lane.b32.xlu0 %v9491, 64
    %v9525 = vpop.permute.xlu0 %9524
    %9526 = vrot.lane.b32.xlu0 %v9492, 64
    %v9527 = vpop.permute.xlu0 %9526
    %9528 = vrot.lane.b32.xlu0 %v9493, 64
    %v9529 = vpop.permute.xlu0 %9528
    %9530 = vrot.lane.b32.xlu0 %v9494, 64
    %v9531 = vpop.permute.xlu0 %9530
    %9532 = vrot.lane.b32.xlu0 %v9495, 64
    %v9533 = vpop.permute.xlu0 %9532
    %9534 = vrot.lane.b32.xlu0 %v9496, 64
    %v9535 = vpop.permute.xlu0 %9534
    %9536 = vrot.lane.b32.xlu0 %v9497, 64
    %v9537 = vpop.permute.xlu0 %9536
    %9538 = vrot.lane.b32.xlu0 %v9498, 64
    %v9539 = vpop.permute.xlu0 %9538
    %9540 = vrot.lane.b32.xlu0 %v9499, 64
    %v9541 = vpop.permute.xlu0 %9540
    %9542 = vrot.lane.b32.xlu0 %v9500, 64
    %v9543 = vpop.permute.xlu0 %9542
    %9544 = vrot.lane.b32.xlu0 %v9501, 64
    %v9545 = vpop.permute.xlu0 %9544
    %9546 = vrot.lane.b32.xlu0 %v9502, 64
    %v9547 = vpop.permute.xlu0 %9546
    %9548 = vrot.lane.b32.xlu0 %v9503, 64
    %v9549 = vpop.permute.xlu0 %9548
    %9550 = vrot.lane.b32.xlu0 %v9504, 64
    %v9551 = vpop.permute.xlu0 %9550
    %9552 = vrot.lane.b32.xlu0 %v9505, 64
    %v9553 = vpop.permute.xlu0 %9552
    %vm9570 = vcmask 654848
    %9571 = vst.msk [vmem:[#allocation4] sm:$0xff] %vm9570, %v9523
    %9572 = vst.msk [vmem:[#allocation4 + $0x10] sm:$0xff] %vm9570, %v9525
    %9573 = vst.msk [vmem:[#allocation4 + $0x20] sm:$0xff] %vm9570, %v9527
    %9574 = vst.msk [vmem:[#allocation4 + $0x30] sm:$0xff] %vm9570, %v9529
    %9575 = vst.msk [vmem:[#allocation4 + $0x40] sm:$0xff] %vm9570, %v9531
    %9576 = vst.msk [vmem:[#allocation4 + $0x50] sm:$0xff] %vm9570, %v9533
    %9577 = vst.msk [vmem:[#allocation4 + $0x60] sm:$0xff] %vm9570, %v9535
    %9578 = vst.msk [vmem:[#allocation4 + $0x70] sm:$0xff] %vm9570, %v9537
    %9579 = vst.msk [vmem:[#allocation4 + $0x80] sm:$0xff] %vm9570, %v9539
    %9580 = vst.msk [vmem:[#allocation4 + $0x90] sm:$0xff] %vm9570, %v9541
    %9581 = vst.msk [vmem:[#allocation4 + $0xa0] sm:$0xff] %vm9570, %v9543
    %9582 = vst.msk [vmem:[#allocation4 + $0xb0] sm:$0xff] %vm9570, %v9545
    %9583 = vst.msk [vmem:[#allocation4 + $0xc0] sm:$0xff] %vm9570, %v9547
    %9584 = vst.msk [vmem:[#allocation4 + $0xd0] sm:$0xff] %vm9570, %v9549
    %9585 = vst.msk [vmem:[#allocation4 + $0xe0] sm:$0xff] %vm9570, %v9551
    %9586 = vst.msk [vmem:[#allocation4 + $0xf0] sm:$0xff] %vm9570, %v9553
    %v9587 = vld [vmem:[%s7995 + $0x2] sm:$0xff]
    %v9588 = vld [vmem:[%s7995 + $0x12] sm:$0xff]
    %v9589 = vld [vmem:[%s7995 + $0x22] sm:$0xff]
    %v9590 = vld [vmem:[%s7995 + $0x32] sm:$0xff]
    %v9591 = vld [vmem:[%s7995 + $0x42] sm:$0xff]
    %v9592 = vld [vmem:[%s7995 + $0x52] sm:$0xff]
    %v9593 = vld [vmem:[%s7995 + $0x62] sm:$0xff]
    %v9594 = vld [vmem:[%s7995 + $0x72] sm:$0xff]
    %v9595 = vld [vmem:[%s7995 + $0xa2] sm:$0xff]
    %v9596 = vld [vmem:[%s7995 + $0xb2] sm:$0xff]
    %v9597 = vld [vmem:[%s7995 + $0xc2] sm:$0xff]
    %v9598 = vld [vmem:[%s7995 + $0xd2] sm:$0xff]
    %v9599 = vld [vmem:[%s7995 + $0xe2] sm:$0xff]
    %v9600 = vld [vmem:[%s7995 + $0xf2] sm:$0xff]
    %v9601 = vld [vmem:[%s7995 + $0x102] sm:$0xff]
    %v9602 = vld [vmem:[%s7995 + $0x112] sm:$0xff]
    %9619 = vrot.lane.b32.xlu0 %v9587, 80
    %v9620 = vpop.permute.xlu0 %9619
    %9621 = vrot.lane.b32.xlu0 %v9588, 80
    %v9622 = vpop.permute.xlu0 %9621
    %9623 = vrot.lane.b32.xlu0 %v9589, 80
    %v9624 = vpop.permute.xlu0 %9623
    %9625 = vrot.lane.b32.xlu0 %v9590, 80
    %v9626 = vpop.permute.xlu0 %9625
    %9627 = vrot.lane.b32.xlu0 %v9591, 80
    %v9628 = vpop.permute.xlu0 %9627
    %9629 = vrot.lane.b32.xlu0 %v9592, 80
    %v9630 = vpop.permute.xlu0 %9629
    %9631 = vrot.lane.b32.xlu0 %v9593, 80
    %v9632 = vpop.permute.xlu0 %9631
    %9633 = vrot.lane.b32.xlu0 %v9594, 80
    %v9634 = vpop.permute.xlu0 %9633
    %9635 = vrot.lane.b32.xlu0 %v9595, 80
    %v9636 = vpop.permute.xlu0 %9635
    %9637 = vrot.lane.b32.xlu0 %v9596, 80
    %v9638 = vpop.permute.xlu0 %9637
    %9639 = vrot.lane.b32.xlu0 %v9597, 80
    %v9640 = vpop.permute.xlu0 %9639
    %9641 = vrot.lane.b32.xlu0 %v9598, 80
    %v9642 = vpop.permute.xlu0 %9641
    %9643 = vrot.lane.b32.xlu0 %v9599, 80
    %v9644 = vpop.permute.xlu0 %9643
    %9645 = vrot.lane.b32.xlu0 %v9600, 80
    %v9646 = vpop.permute.xlu0 %9645
    %9647 = vrot.lane.b32.xlu0 %v9601, 80
    %v9648 = vpop.permute.xlu0 %9647
    %9649 = vrot.lane.b32.xlu0 %v9602, 80
    %v9650 = vpop.permute.xlu0 %9649
    %vm9667 = vcmask 786048
    %9668 = vst.msk [vmem:[#allocation4] sm:$0xff] %vm9667, %v9620
    %9669 = vst.msk [vmem:[#allocation4 + $0x10] sm:$0xff] %vm9667, %v9622
    %9670 = vst.msk [vmem:[#allocation4 + $0x20] sm:$0xff] %vm9667, %v9624
    %9671 = vst.msk [vmem:[#allocation4 + $0x30] sm:$0xff] %vm9667, %v9626
    %9672 = vst.msk [vmem:[#allocation4 + $0x40] sm:$0xff] %vm9667, %v9628
    %9673 = vst.msk [vmem:[#allocation4 + $0x50] sm:$0xff] %vm9667, %v9630
    %9674 = vst.msk [vmem:[#allocation4 + $0x60] sm:$0xff] %vm9667, %v9632
    %9675 = vst.msk [vmem:[#allocation4 + $0x70] sm:$0xff] %vm9667, %v9634
    %9676 = vst.msk [vmem:[#allocation4 + $0x80] sm:$0xff] %vm9667, %v9636
    %9677 = vst.msk [vmem:[#allocation4 + $0x90] sm:$0xff] %vm9667, %v9638
    %9678 = vst.msk [vmem:[#allocation4 + $0xa0] sm:$0xff] %vm9667, %v9640
    %9679 = vst.msk [vmem:[#allocation4 + $0xb0] sm:$0xff] %vm9667, %v9642
    %9680 = vst.msk [vmem:[#allocation4 + $0xc0] sm:$0xff] %vm9667, %v9644
    %9681 = vst.msk [vmem:[#allocation4 + $0xd0] sm:$0xff] %vm9667, %v9646
    %9682 = vst.msk [vmem:[#allocation4 + $0xe0] sm:$0xff] %vm9667, %v9648
    %9683 = vst.msk [vmem:[#allocation4 + $0xf0] sm:$0xff] %vm9667, %v9650
    %v9684 = vld [vmem:[%s8704] sm:$0xff]
    %v9685 = vld [vmem:[%s8704 + $0x10] sm:$0xff]
    %v9686 = vld [vmem:[%s8704 + $0x20] sm:$0xff]
    %v9687 = vld [vmem:[%s8704 + $0x30] sm:$0xff]
    %v9688 = vld [vmem:[%s8704 + $0x40] sm:$0xff]
    %v9689 = vld [vmem:[%s8704 + $0x50] sm:$0xff]
    %v9690 = vld [vmem:[%s8704 + $0x60] sm:$0xff]
    %v9691 = vld [vmem:[%s8704 + $0x70] sm:$0xff]
    %v9692 = vld [vmem:[%s8704 + $0xa0] sm:$0xff]
    %v9693 = vld [vmem:[%s8704 + $0xb0] sm:$0xff]
    %v9694 = vld [vmem:[%s8704 + $0xc0] sm:$0xff]
    %v9695 = vld [vmem:[%s8704 + $0xd0] sm:$0xff]
    %v9696 = vld [vmem:[%s8704 + $0xe0] sm:$0xff]
    %v9697 = vld [vmem:[%s8704 + $0xf0] sm:$0xff]
    %v9698 = vld [vmem:[%s8704 + $0x100] sm:$0xff]
    %v9699 = vld [vmem:[%s8704 + $0x110] sm:$0xff]
    %9716 = vrot.lane.b32.xlu0 %v9684, 96
    %v9717 = vpop.permute.xlu0 %9716
    %9718 = vrot.lane.b32.xlu0 %v9685, 96
    %v9719 = vpop.permute.xlu0 %9718
    %9720 = vrot.lane.b32.xlu0 %v9686, 96
    %v9721 = vpop.permute.xlu0 %9720
    %9722 = vrot.lane.b32.xlu0 %v9687, 96
    %v9723 = vpop.permute.xlu0 %9722
    %9724 = vrot.lane.b32.xlu0 %v9688, 96
    %v9725 = vpop.permute.xlu0 %9724
    %9726 = vrot.lane.b32.xlu0 %v9689, 96
    %v9727 = vpop.permute.xlu0 %9726
    %9728 = vrot.lane.b32.xlu0 %v9690, 96
    %v9729 = vpop.permute.xlu0 %9728
    %9730 = vrot.lane.b32.xlu0 %v9691, 96
    %v9731 = vpop.permute.xlu0 %9730
    %9732 = vrot.lane.b32.xlu0 %v9692, 96
    %v9733 = vpop.permute.xlu0 %9732
    %9734 = vrot.lane.b32.xlu0 %v9693, 96
    %v9735 = vpop.permute.xlu0 %9734
    %9736 = vrot.lane.b32.xlu0 %v9694, 96
    %v9737 = vpop.permute.xlu0 %9736
    %9738 = vrot.lane.b32.xlu0 %v9695, 96
    %v9739 = vpop.permute.xlu0 %9738
    %9740 = vrot.lane.b32.xlu0 %v9696, 96
    %v9741 = vpop.permute.xlu0 %9740
    %9742 = vrot.lane.b32.xlu0 %v9697, 96
    %v9743 = vpop.permute.xlu0 %9742
    %9744 = vrot.lane.b32.xlu0 %v9698, 96
    %v9745 = vpop.permute.xlu0 %9744
    %9746 = vrot.lane.b32.xlu0 %v9699, 96
    %v9747 = vpop.permute.xlu0 %9746
    %vm9764 = vcmask 917248
    %9765 = vst.msk [vmem:[#allocation4] sm:$0xff] %vm9764, %v9717
    %9766 = vst.msk [vmem:[#allocation4 + $0x10] sm:$0xff] %vm9764, %v9719
    %9767 = vst.msk [vmem:[#allocation4 + $0x20] sm:$0xff] %vm9764, %v9721
    %9768 = vst.msk [vmem:[#allocation4 + $0x30] sm:$0xff] %vm9764, %v9723
    %9769 = vst.msk [vmem:[#allocation4 + $0x40] sm:$0xff] %vm9764, %v9725
    %9770 = vst.msk [vmem:[#allocation4 + $0x50] sm:$0xff] %vm9764, %v9727
    %9771 = vst.msk [vmem:[#allocation4 + $0x60] sm:$0xff] %vm9764, %v9729
    %9772 = vst.msk [vmem:[#allocation4 + $0x70] sm:$0xff] %vm9764, %v9731
    %9773 = vst.msk [vmem:[#allocation4 + $0x80] sm:$0xff] %vm9764, %v9733
    %9774 = vst.msk [vmem:[#allocation4 + $0x90] sm:$0xff] %vm9764, %v9735
    %9775 = vst.msk [vmem:[#allocation4 + $0xa0] sm:$0xff] %vm9764, %v9737
    %9776 = vst.msk [vmem:[#allocation4 + $0xb0] sm:$0xff] %vm9764, %v9739
    %9777 = vst.msk [vmem:[#allocation4 + $0xc0] sm:$0xff] %vm9764, %v9741
    %9778 = vst.msk [vmem:[#allocation4 + $0xd0] sm:$0xff] %vm9764, %v9743
    %9779 = vst.msk [vmem:[#allocation4 + $0xe0] sm:$0xff] %vm9764, %v9745
    %9780 = vst.msk [vmem:[#allocation4 + $0xf0] sm:$0xff] %vm9764, %v9747
    %v9781 = vld [vmem:[%s8704 + $0x1] sm:$0xff]
    %v9782 = vld [vmem:[%s8704 + $0x11] sm:$0xff]
    %v9783 = vld [vmem:[%s8704 + $0x21] sm:$0xff]
    %v9784 = vld [vmem:[%s8704 + $0x31] sm:$0xff]
    %v9785 = vld [vmem:[%s8704 + $0x41] sm:$0xff]
    %v9786 = vld [vmem:[%s8704 + $0x51] sm:$0xff]
    %v9787 = vld [vmem:[%s8704 + $0x61] sm:$0xff]
    %v9788 = vld [vmem:[%s8704 + $0x71] sm:$0xff]
    %v9789 = vld [vmem:[%s8704 + $0xa1] sm:$0xff]
    %v9790 = vld [vmem:[%s8704 + $0xb1] sm:$0xff]
    %v9791 = vld [vmem:[%s8704 + $0xc1] sm:$0xff]
    %v9792 = vld [vmem:[%s8704 + $0xd1] sm:$0xff]
    %v9793 = vld [vmem:[%s8704 + $0xe1] sm:$0xff]
    %v9794 = vld [vmem:[%s8704 + $0xf1] sm:$0xff]
    %v9795 = vld [vmem:[%s8704 + $0x101] sm:$0xff]
    %v9796 = vld [vmem:[%s8704 + $0x111] sm:$0xff]
    %9813 = vrot.lane.b32.xlu0 %v9781, 112
    %v9814 = vpop.permute.xlu0 %9813
    %9815 = vrot.lane.b32.xlu0 %v9782, 112
    %v9816 = vpop.permute.xlu0 %9815
    %9817 = vrot.lane.b32.xlu0 %v9783, 112
    %v9818 = vpop.permute.xlu0 %9817
    %9819 = vrot.lane.b32.xlu0 %v9784, 112
    %v9820 = vpop.permute.xlu0 %9819
    %9821 = vrot.lane.b32.xlu0 %v9785, 112
    %v9822 = vpop.permute.xlu0 %9821
    %9823 = vrot.lane.b32.xlu0 %v9786, 112
    %v9824 = vpop.permute.xlu0 %9823
    %9825 = vrot.lane.b32.xlu0 %v9787, 112
    %v9826 = vpop.permute.xlu0 %9825
    %9827 = vrot.lane.b32.xlu0 %v9788, 112
    %v9828 = vpop.permute.xlu0 %9827
    %9829 = vrot.lane.b32.xlu0 %v9789, 112
    %v9830 = vpop.permute.xlu0 %9829
    %9831 = vrot.lane.b32.xlu0 %v9790, 112
    %v9832 = vpop.permute.xlu0 %9831
    %9833 = vrot.lane.b32.xlu0 %v9791, 112
    %v9834 = vpop.permute.xlu0 %9833
    %9835 = vrot.lane.b32.xlu0 %v9792, 112
    %v9836 = vpop.permute.xlu0 %9835
    %9837 = vrot.lane.b32.xlu0 %v9793, 112
    %v9838 = vpop.permute.xlu0 %9837
    %9839 = vrot.lane.b32.xlu0 %v9794, 112
    %v9840 = vpop.permute.xlu0 %9839
    %9841 = vrot.lane.b32.xlu0 %v9795, 112
    %v9842 = vpop.permute.xlu0 %9841
    %9843 = vrot.lane.b32.xlu0 %v9796, 112
    %v9844 = vpop.permute.xlu0 %9843
    %vm9861 = vcmask 1048448
    %9862 = vst.msk [vmem:[#allocation4] sm:$0xff] %vm9861, %v9814
    %9863 = vst.msk [vmem:[#allocation4 + $0x10] sm:$0xff] %vm9861, %v9816
    %9864 = vst.msk [vmem:[#allocation4 + $0x20] sm:$0xff] %vm9861, %v9818
    %9865 = vst.msk [vmem:[#allocation4 + $0x30] sm:$0xff] %vm9861, %v9820
    %9866 = vst.msk [vmem:[#allocation4 + $0x40] sm:$0xff] %vm9861, %v9822
    %9867 = vst.msk [vmem:[#allocation4 + $0x50] sm:$0xff] %vm9861, %v9824
    %9868 = vst.msk [vmem:[#allocation4 + $0x60] sm:$0xff] %vm9861, %v9826
    %9869 = vst.msk [vmem:[#allocation4 + $0x70] sm:$0xff] %vm9861, %v9828
    %9870 = vst.msk [vmem:[#allocation4 + $0x80] sm:$0xff] %vm9861, %v9830
    %9871 = vst.msk [vmem:[#allocation4 + $0x90] sm:$0xff] %vm9861, %v9832
    %9872 = vst.msk [vmem:[#allocation4 + $0xa0] sm:$0xff] %vm9861, %v9834
    %9873 = vst.msk [vmem:[#allocation4 + $0xb0] sm:$0xff] %vm9861, %v9836
    %9874 = vst.msk [vmem:[#allocation4 + $0xc0] sm:$0xff] %vm9861, %v9838
    %9875 = vst.msk [vmem:[#allocation4 + $0xd0] sm:$0xff] %vm9861, %v9840
    %9876 = vst.msk [vmem:[#allocation4 + $0xe0] sm:$0xff] %vm9861, %v9842
    %9877 = vst.msk [vmem:[#allocation4 + $0xf0] sm:$0xff] %vm9861, %v9844
    %v9878 = vld [vmem:[%s8704 + $0x2] sm:$0xff]
    %v9879 = vld [vmem:[%s8704 + $0x12] sm:$0xff]
    %v9880 = vld [vmem:[%s8704 + $0x22] sm:$0xff]
    %v9881 = vld [vmem:[%s8704 + $0x32] sm:$0xff]
    %v9882 = vld [vmem:[%s8704 + $0x42] sm:$0xff]
    %v9883 = vld [vmem:[%s8704 + $0x52] sm:$0xff]
    %v9884 = vld [vmem:[%s8704 + $0x62] sm:$0xff]
    %v9885 = vld [vmem:[%s8704 + $0x72] sm:$0xff]
    %v9886 = vld [vmem:[%s8704 + $0xa2] sm:$0xff]
    %v9887 = vld [vmem:[%s8704 + $0xb2] sm:$0xff]
    %v9888 = vld [vmem:[%s8704 + $0xc2] sm:$0xff]
    %v9889 = vld [vmem:[%s8704 + $0xd2] sm:$0xff]
    %v9890 = vld [vmem:[%s8704 + $0xe2] sm:$0xff]
    %v9891 = vld [vmem:[%s8704 + $0xf2] sm:$0xff]
    %v9892 = vld [vmem:[%s8704 + $0x102] sm:$0xff]
    %v9893 = vld [vmem:[%s8704 + $0x112] sm:$0xff]
    %9894 = vst.msk [vmem:[#allocation4 + $0x8] sm:$0xff] %vm161, %v9878
    %9895 = vst.msk [vmem:[#allocation4 + $0x18] sm:$0xff] %vm161, %v9879
    %9896 = vst.msk [vmem:[#allocation4 + $0x28] sm:$0xff] %vm161, %v9880
    %9897 = vst.msk [vmem:[#allocation4 + $0x38] sm:$0xff] %vm161, %v9881
    %9898 = vst.msk [vmem:[#allocation4 + $0x48] sm:$0xff] %vm161, %v9882
    %9899 = vst.msk [vmem:[#allocation4 + $0x58] sm:$0xff] %vm161, %v9883
    %9900 = vst.msk [vmem:[#allocation4 + $0x68] sm:$0xff] %vm161, %v9884
    %9901 = vst.msk [vmem:[#allocation4 + $0x78] sm:$0xff] %vm161, %v9885
    %9902 = vst.msk [vmem:[#allocation4 + $0x88] sm:$0xff] %vm161, %v9886
    %9903 = vst.msk [vmem:[#allocation4 + $0x98] sm:$0xff] %vm161, %v9887
    %9904 = vst.msk [vmem:[#allocation4 + $0xa8] sm:$0xff] %vm161, %v9888
    %9905 = vst.msk [vmem:[#allocation4 + $0xb8] sm:$0xff] %vm161, %v9889
    %9906 = vst.msk [vmem:[#allocation4 + $0xc8] sm:$0xff] %vm161, %v9890
    %9907 = vst.msk [vmem:[#allocation4 + $0xd8] sm:$0xff] %vm161, %v9891
    %9908 = vst.msk [vmem:[#allocation4 + $0xe8] sm:$0xff] %vm161, %v9892
    %9909 = vst.msk [vmem:[#allocation4 + $0xf8] sm:$0xff] %vm161, %v9893
    %v9910 = vld [vmem:[#allocation4] sm:$0xff]
    %v9911 = vld [vmem:[#allocation4 + $0x8] sm:$0xff]
    %v9912 = vld [vmem:[#allocation4 + $0x10] sm:$0xff]
    %v9913 = vld [vmem:[#allocation4 + $0x18] sm:$0xff]
    %v9914 = vld [vmem:[#allocation4 + $0x20] sm:$0xff]
    %v9915 = vld [vmem:[#allocation4 + $0x28] sm:$0xff]
    %v9916 = vld [vmem:[#allocation4 + $0x30] sm:$0xff]
    %v9917 = vld [vmem:[#allocation4 + $0x38] sm:$0xff]
    %v9918 = vld [vmem:[#allocation4 + $0x40] sm:$0xff]
    %v9919 = vld [vmem:[#allocation4 + $0x48] sm:$0xff]
    %v9920 = vld [vmem:[#allocation4 + $0x50] sm:$0xff]
    %v9921 = vld [vmem:[#allocation4 + $0x58] sm:$0xff]
    %v9922 = vld [vmem:[#allocation4 + $0x60] sm:$0xff]
    %v9923 = vld [vmem:[#allocation4 + $0x68] sm:$0xff]
    %v9924 = vld [vmem:[#allocation4 + $0x70] sm:$0xff]
    %v9925 = vld [vmem:[#allocation4 + $0x78] sm:$0xff]
    %v9926 = vld [vmem:[#allocation4 + $0x80] sm:$0xff]
    %v9927 = vld [vmem:[#allocation4 + $0x88] sm:$0xff]
    %v9928 = vld [vmem:[#allocation4 + $0x90] sm:$0xff]
    %v9929 = vld [vmem:[#allocation4 + $0x98] sm:$0xff]
    %v9930 = vld [vmem:[#allocation4 + $0xa0] sm:$0xff]
    %v9931 = vld [vmem:[#allocation4 + $0xa8] sm:$0xff]
    %v9932 = vld [vmem:[#allocation4 + $0xb0] sm:$0xff]
    %v9933 = vld [vmem:[#allocation4 + $0xb8] sm:$0xff]
    %v9934 = vld [vmem:[#allocation4 + $0xc0] sm:$0xff]
    %v9935 = vld [vmem:[#allocation4 + $0xc8] sm:$0xff]
    %v9936 = vld [vmem:[#allocation4 + $0xd0] sm:$0xff]
    %v9937 = vld [vmem:[#allocation4 + $0xd8] sm:$0xff]
    %v9938 = vld [vmem:[#allocation4 + $0xe0] sm:$0xff]
    %v9939 = vld [vmem:[#allocation4 + $0xe8] sm:$0xff]
    %v9940 = vld [vmem:[#allocation4 + $0xf0] sm:$0xff]
    %v9941 = vld [vmem:[#allocation4 + $0xf8] sm:$0xff]
    %v9942 = vld [vmem:[%s7] sm:$0xff]
    %v9943 = vld [vmem:[%s7 + $0x8] sm:$0xff]
    %v9944 = vld [vmem:[%s7 + $0x10] sm:$0xff]
    %v9945 = vld [vmem:[%s7 + $0x18] sm:$0xff]
    %v9946 = vld [vmem:[%s7 + $0x20] sm:$0xff]
    %v9947 = vld [vmem:[%s7 + $0x28] sm:$0xff]
    %v9948 = vld [vmem:[%s7 + $0x30] sm:$0xff]
    %v9949 = vld [vmem:[%s7 + $0x38] sm:$0xff]
    %v9950 = vld [vmem:[%s7 + $0x40] sm:$0xff]
    %v9951 = vld [vmem:[%s7 + $0x48] sm:$0xff]
    %v9952 = vld [vmem:[%s7 + $0x50] sm:$0xff]
    %v9953 = vld [vmem:[%s7 + $0x58] sm:$0xff]
    %v9954 = vld [vmem:[%s7 + $0x60] sm:$0xff]
    %v9955 = vld [vmem:[%s7 + $0x68] sm:$0xff]
    %v9956 = vld [vmem:[%s7 + $0x70] sm:$0xff]
    %v9957 = vld [vmem:[%s7 + $0x78] sm:$0xff]
    %v9958 = vld [vmem:[%s7 + $0x80] sm:$0xff]
    %v9959 = vld [vmem:[%s7 + $0x88] sm:$0xff]
    %v9960 = vld [vmem:[%s8] sm:$0x1]
    %v9962 = vperm.slane %v9960, 0
    %v9965 = vsel %vm161, %v9911, 0
    %v9968 = vsel %vm161, %v9913, 0
    %v9971 = vsel %vm161, %v9915, 0
    %v9974 = vsel %vm161, %v9917, 0
    %v9977 = vsel %vm161, %v9919, 0
    %v9980 = vsel %vm161, %v9921, 0
    %v9983 = vsel %vm161, %v9923, 0
    %v9986 = vsel %vm161, %v9925, 0
    %v9989 = vsel %vm161, %v9927, 0
    %v9992 = vsel %vm161, %v9929, 0
    %v9995 = vsel %vm161, %v9931, 0
    %v9998 = vsel %vm161, %v9933, 0
    %v10001 = vsel %vm161, %v9935, 0
    %v10004 = vsel %vm161, %v9937, 0
    %v10007 = vsel %vm161, %v9939, 0
    %v10010 = vsel %vm161, %v9941, 0
    %10012 = vmatpush.msra.mxu0 %v9957
    %10013 = vmatpush.msra.mxu0 %v9956
    %10014 = vmatpush.msra.mxu0 %v9955
    %10015 = vmatpush.msra.mxu0 %v9954
    %10016 = vmatpush.msra.mxu0 %v9953
    %10017 = vmatpush.msra.mxu0 %v9952
    %10018 = vmatpush.msra.mxu0 %v9951
    %10019 = vmatpush.msra.mxu0 %v9950
    %10020 = vmatpush.msra.mxu0 %v9949
    %10021 = vmatpush.msra.mxu0 %v9948
    %10022 = vmatpush.msra.mxu0 %v9947
    %10023 = vmatpush.msra.mxu0 %v9946
    %10024 = vmatpush.msra.mxu0 %v9945
    %10025 = vmatpush.msra.mxu0 %v9944
    %10026 = vmatpush.msra.mxu0 %v9943
    %10027 = vmatpush.msra.mxu0 %v9942
    %10028 = vmatmul.f32.gmra.mxu0 %v9910
    %v10029 = vpop.f32.mrf.mxu0
    %v10030 = vadd.f32 %v9962, %v10029
    %10031 = vmatmul.f32.gmra.mxu0 %v9912
    %v10032 = vpop.f32.mrf.mxu0
    %v10033 = vadd.f32 %v9962, %v10032
    %10034 = vmatmul.f32.gmra.mxu0 %v9914
    %v10035 = vpop.f32.mrf.mxu0
    %v10036 = vadd.f32 %v9962, %v10035
    %10037 = vmatmul.f32.gmra.mxu0 %v9916
    %v10038 = vpop.f32.mrf.mxu0
    %v10039 = vadd.f32 %v9962, %v10038
    %10040 = vmatmul.f32.gmra.mxu0 %v9918
    %v10041 = vpop.f32.mrf.mxu0
    %v10042 = vadd.f32 %v9962, %v10041
    %10043 = vmatmul.f32.gmra.mxu0 %v9920
    %v10044 = vpop.f32.mrf.mxu0
    %v10045 = vadd.f32 %v9962, %v10044
    %10046 = vmatmul.f32.gmra.mxu0 %v9922
    %v10047 = vpop.f32.mrf.mxu0
    %v10048 = vadd.f32 %v9962, %v10047
    %10049 = vmatmul.f32.gmra.mxu0 %v9924
    %v10050 = vpop.f32.mrf.mxu0
    %v10051 = vadd.f32 %v9962, %v10050
    %10052 = vmatmul.f32.gmra.mxu0 %v9926
    %v10053 = vpop.f32.mrf.mxu0
    %v10054 = vadd.f32 %v9962, %v10053
    %10055 = vmatmul.f32.gmra.mxu0 %v9928
    %v10056 = vpop.f32.mrf.mxu0
    %v10057 = vadd.f32 %v9962, %v10056
    %10058 = vmatmul.f32.gmra.mxu0 %v9930
    %v10059 = vpop.f32.mrf.mxu0
    %v10060 = vadd.f32 %v9962, %v10059
    %10061 = vmatmul.f32.gmra.mxu0 %v9932
    %v10062 = vpop.f32.mrf.mxu0
    %v10063 = vadd.f32 %v9962, %v10062
    %10064 = vmatmul.f32.gmra.mxu0 %v9934
    %v10065 = vpop.f32.mrf.mxu0
    %v10066 = vadd.f32 %v9962, %v10065
    %10067 = vmatmul.f32.gmra.mxu0 %v9936
    %v10068 = vpop.f32.mrf.mxu0
    %v10069 = vadd.f32 %v9962, %v10068
    %10070 = vmatmul.f32.gmra.mxu0 %v9938
    %v10071 = vpop.f32.mrf.mxu0
    %v10072 = vadd.f32 %v9962, %v10071
    %10073 = vmatmul.f32.gmra.mxu0 %v9940
    %v10074 = vpop.f32.mrf.mxu0
    %v10075 = vadd.f32 %v9962, %v10074
    %10076 = vdwg.mxu0
    %10077 = vmatpush.msra.mxu0 0.0
    %10078 = vmatpush.msra.mxu0 0.0
    %10079 = vmatpush.msra.mxu0 0.0
    %10080 = vmatpush.msra.mxu0 0.0
    %10081 = vmatpush.msra.mxu0 0.0
    %10082 = vmatpush.msra.mxu0 0.0
    %10083 = vmatpush.msra.mxu0 0.0
    %10084 = vmatpush.msra.mxu0 0.0
    %10085 = vmatpush.msra.mxu0 0.0
    %10086 = vmatpush.msra.mxu0 0.0
    %10087 = vmatpush.msra.mxu0 0.0
    %10088 = vmatpush.msra.mxu0 0.0
    %10089 = vmatpush.msra.mxu0 0.0
    %10090 = vmatpush.msra.mxu0 0.0
    %10091 = vmatpush.msra.mxu0 %v9959
    %10092 = vmatpush.msra.mxu0 %v9958
    %10093 = vmatmul.f32.gmra.mxu0 %v9965
    %v10094 = vpop.f32.mrf.mxu0
    %v10095 = vadd.f32 %v10030, %v10094
    %10096 = vmatmul.f32.gmra.mxu0 %v9968
    %v10097 = vpop.f32.mrf.mxu0
    %v10098 = vadd.f32 %v10033, %v10097
    %10099 = vmatmul.f32.gmra.mxu0 %v9971
    %v10100 = vpop.f32.mrf.mxu0
    %v10101 = vadd.f32 %v10036, %v10100
    %10102 = vmatmul.f32.gmra.mxu0 %v9974
    %v10103 = vpop.f32.mrf.mxu0
    %v10104 = vadd.f32 %v10039, %v10103
    %10105 = vmatmul.f32.gmra.mxu0 %v9977
    %v10106 = vpop.f32.mrf.mxu0
    %v10107 = vadd.f32 %v10042, %v10106
    %10108 = vmatmul.f32.gmra.mxu0 %v9980
    %v10109 = vpop.f32.mrf.mxu0
    %v10110 = vadd.f32 %v10045, %v10109
    %10111 = vmatmul.f32.gmra.mxu0 %v9983
    %v10112 = vpop.f32.mrf.mxu0
    %v10113 = vadd.f32 %v10048, %v10112
    %10114 = vmatmul.f32.gmra.mxu0 %v9986
    %v10115 = vpop.f32.mrf.mxu0
    %v10116 = vadd.f32 %v10051, %v10115
    %10117 = vmatmul.f32.gmra.mxu0 %v9989
    %v10118 = vpop.f32.mrf.mxu0
    %v10119 = vadd.f32 %v10054, %v10118
    %10120 = vmatmul.f32.gmra.mxu0 %v9992
    %v10121 = vpop.f32.mrf.mxu0
    %v10122 = vadd.f32 %v10057, %v10121
    %10123 = vmatmul.f32.gmra.mxu0 %v9995
    %v10124 = vpop.f32.mrf.mxu0
    %v10125 = vadd.f32 %v10060, %v10124
    %10126 = vmatmul.f32.gmra.mxu0 %v9998
    %v10127 = vpop.f32.mrf.mxu0
    %v10128 = vadd.f32 %v10063, %v10127
    %10129 = vmatmul.f32.gmra.mxu0 %v10001
    %v10130 = vpop.f32.mrf.mxu0
    %v10131 = vadd.f32 %v10066, %v10130
    %10132 = vmatmul.f32.gmra.mxu0 %v10004
    %v10133 = vpop.f32.mrf.mxu0
    %v10134 = vadd.f32 %v10069, %v10133
    %10135 = vmatmul.f32.gmra.mxu0 %v10007
    %v10136 = vpop.f32.mrf.mxu0
    %v10137 = vadd.f32 %v10072, %v10136
    %10138 = vmatmul.f32.gmra.mxu0 %v10010
    %v10139 = vpop.f32.mrf.mxu0
    %v10140 = vadd.f32 %v10075, %v10139
    %10141 = vdwg.mxu0
    %v10142 = vmax.f32 %v10095, 0.0
    %v10143 = vmax.f32 %v10098, 0.0
    %v10144 = vmax.f32 %v10101, 0.0
    %v10145 = vmax.f32 %v10104, 0.0
    %v10146 = vmax.f32 %v10107, 0.0
    %v10147 = vmax.f32 %v10110, 0.0
    %v10148 = vmax.f32 %v10113, 0.0
    %v10149 = vmax.f32 %v10116, 0.0
    %v10150 = vmax.f32 %v10119, 0.0
    %v10151 = vmax.f32 %v10122, 0.0
    %v10152 = vmax.f32 %v10125, 0.0
    %v10153 = vmax.f32 %v10128, 0.0
    %v10154 = vmax.f32 %v10131, 0.0
    %v10155 = vmax.f32 %v10134, 0.0
    %v10156 = vmax.f32 %v10137, 0.0
    %v10157 = vmax.f32 %v10140, 0.0
    %v10158 = vmax.f32 %v10142, %v10143
    %v10159 = vmax.f32 %v10144, %v10145
    %v10160 = vmax.f32 %v10146, %v10147
    %v10161 = vmax.f32 %v10148, %v10149
    %v10162 = vmax.f32 %v10150, %v10151
    %v10163 = vmax.f32 %v10152, %v10153
    %v10164 = vmax.f32 %v10154, %v10155
    %v10165 = vmax.f32 %v10156, %v10157
    %v10174 = vrot.slane %v10158, 1
    %v10175 = vrot.slane %v10159, 1
    %v10176 = vrot.slane %v10160, 1
    %v10177 = vrot.slane %v10161, 1
    %v10178 = vrot.slane %v10162, 1
    %v10179 = vrot.slane %v10163, 1
    %v10180 = vrot.slane %v10164, 1
    %v10181 = vrot.slane %v10165, 1
    %v10190 = vmax.f32 %v10158, %v10174
    %v10191 = vmax.f32 %v10159, %v10175
    %v10192 = vmax.f32 %v10160, %v10176
    %v10193 = vmax.f32 %v10161, %v10177
    %v10194 = vmax.f32 %v10162, %v10178
    %v10195 = vmax.f32 %v10163, %v10179
    %v10196 = vmax.f32 %v10164, %v10180
    %v10197 = vmax.f32 %v10165, %v10181
    %vm10198 = vcmask 122880
    %10199 = vst.msk [vmem:[#allocation5] sm:$0x1] %vm10198, %v10190
    %10200 = vst.msk [vmem:[#allocation5 + $0x4] sm:$0x1] %vm10198, %v10191
    %10201 = vst.msk [vmem:[#allocation5 + $0x8] sm:$0x1] %vm10198, %v10192
    %10202 = vst.msk [vmem:[#allocation5 + $0xc] sm:$0x1] %vm10198, %v10193
    %10203 = vst.msk [vmem:[#allocation5 + $0x10] sm:$0x1] %vm10198, %v10194
    %10204 = vst.msk [vmem:[#allocation5 + $0x14] sm:$0x1] %vm10198, %v10195
    %10205 = vst.msk [vmem:[#allocation5 + $0x18] sm:$0x1] %vm10198, %v10196
    %10206 = vst.msk [vmem:[#allocation5 + $0x1c] sm:$0x1] %vm10198, %v10197
    %vm10207 = vcmask 124930
    %10208 = vst.msk [vmem:[#allocation5 - $0x1] sm:$0x4] %vm10207, %v10190
    %10209 = vst.msk [vmem:[#allocation5 + $0x3] sm:$0x4] %vm10207, %v10191
    %10210 = vst.msk [vmem:[#allocation5 + $0x7] sm:$0x4] %vm10207, %v10192
    %10211 = vst.msk [vmem:[#allocation5 + $0xb] sm:$0x4] %vm10207, %v10193
    %10212 = vst.msk [vmem:[#allocation5 + $0xf] sm:$0x4] %vm10207, %v10194
    %10213 = vst.msk [vmem:[#allocation5 + $0x13] sm:$0x4] %vm10207, %v10195
    %10214 = vst.msk [vmem:[#allocation5 + $0x17] sm:$0x4] %vm10207, %v10196
    %10215 = vst.msk [vmem:[#allocation5 + $0x1b] sm:$0x4] %vm10207, %v10197
    %vm10216 = vcmask 126980
    %10217 = vst.msk [vmem:[#allocation5 - $0x2] sm:$0x10] %vm10216, %v10190
    %10218 = vst.msk [vmem:[#allocation5 + $0x2] sm:$0x10] %vm10216, %v10191
    %10219 = vst.msk [vmem:[#allocation5 + $0x6] sm:$0x10] %vm10216, %v10192
    %10220 = vst.msk [vmem:[#allocation5 + $0xa] sm:$0x10] %vm10216, %v10193
    %10221 = vst.msk [vmem:[#allocation5 + $0xe] sm:$0x10] %vm10216, %v10194
    %10222 = vst.msk [vmem:[#allocation5 + $0x12] sm:$0x10] %vm10216, %v10195
    %10223 = vst.msk [vmem:[#allocation5 + $0x16] sm:$0x10] %vm10216, %v10196
    %10224 = vst.msk [vmem:[#allocation5 + $0x1a] sm:$0x10] %vm10216, %v10197
    %vm10225 = vcmask 129030
    %10226 = vst.msk [vmem:[#allocation5 - $0x3] sm:$0x40] %vm10225, %v10190
    %10227 = vst.msk [vmem:[#allocation5 + $0x1] sm:$0x40] %vm10225, %v10191
    %10228 = vst.msk [vmem:[#allocation5 + $0x5] sm:$0x40] %vm10225, %v10192
    %10229 = vst.msk [vmem:[#allocation5 + $0x9] sm:$0x40] %vm10225, %v10193
    %10230 = vst.msk [vmem:[#allocation5 + $0xd] sm:$0x40] %vm10225, %v10194
    %10231 = vst.msk [vmem:[#allocation5 + $0x11] sm:$0x40] %vm10225, %v10195
    %10232 = vst.msk [vmem:[#allocation5 + $0x15] sm:$0x40] %vm10225, %v10196
    %10233 = vst.msk [vmem:[#allocation5 + $0x19] sm:$0x40] %vm10225, %v10197
    %v10234 = vld [vmem:[#allocation5] sm:$0x1]
    %v10235 = vld [vmem:[#allocation5 + $0x10] sm:$0x1]
    %vm10238 = vcmask 1044484
    %v10239 = vsel %vm10238, %v10234, %v10234
    %vm10240 = vcmask 1046534
    %v10241 = vsel %vm10240, %v10234, %v10239
    %v10242 = vrot.slane %v10235, 7
    %vm10243 = vcmask 1041409
    %v10244 = vsel %vm10243, %v10242, %v10241
    %vm10245 = vcmask 1043459
    %v10246 = vsel %vm10245, %v10242, %v10244
    %vm10247 = vcmask 1045509
    %v10248 = vsel %vm10247, %v10242, %v10246
    %vm10249 = vcmask 1047559
    %v10250 = vsel %vm10249, %v10242, %v10248
    %10252 = vst.msk [vmem:[#allocation6] sm:$0x3] %vm163, %v10250
    %v10253 = vld [vmem:[#allocation5 + $0x1] sm:$0x1]
    %v10254 = vld [vmem:[#allocation5 + $0x11] sm:$0x1]
    %v10257 = vsel %vm10238, %v10253, %v10253
    %v10258 = vsel %vm10240, %v10253, %v10257
    %v10259 = vrot.slane %v10254, 7
    %v10260 = vsel %vm10243, %v10259, %v10258
    %v10261 = vsel %vm10245, %v10259, %v10260
    %v10262 = vsel %vm10247, %v10259, %v10261
    %v10263 = vsel %vm10249, %v10259, %v10262
    %10264 = vrot.lane.b32.xlu0 %v10263, 16
    %v10265 = vpop.permute.xlu0 %10264
    %vm10267 = vcmask 255104
    %10268 = vst.msk [vmem:[#allocation6] sm:$0x3] %vm10267, %v10265
    %v10269 = vld [vmem:[#allocation5 + $0x2] sm:$0x1]
    %v10270 = vld [vmem:[#allocation5 + $0x12] sm:$0x1]
    %v10273 = vsel %vm10238, %v10269, %v10269
    %v10274 = vsel %vm10240, %v10269, %v10273
    %v10275 = vrot.slane %v10270, 7
    %v10276 = vsel %vm10243, %v10275, %v10274
    %v10277 = vsel %vm10245, %v10275, %v10276
    %v10278 = vsel %vm10247, %v10275, %v10277
    %v10279 = vsel %vm10249, %v10275, %v10278
    %10280 = vrot.lane.b32.xlu0 %v10279, 32
    %v10281 = vpop.permute.xlu0 %10280
    %vm10283 = vcmask 386304
    %10284 = vst.msk [vmem:[#allocation6] sm:$0x3] %vm10283, %v10281
    %v10285 = vld [vmem:[#allocation5 + $0x3] sm:$0x1]
    %v10286 = vld [vmem:[#allocation5 + $0x13] sm:$0x1]
    %v10289 = vsel %vm10238, %v10285, %v10285
    %v10290 = vsel %vm10240, %v10285, %v10289
    %v10291 = vrot.slane %v10286, 7
    %v10292 = vsel %vm10243, %v10291, %v10290
    %v10293 = vsel %vm10245, %v10291, %v10292
    %v10294 = vsel %vm10247, %v10291, %v10293
    %v10295 = vsel %vm10249, %v10291, %v10294
    %10296 = vrot.lane.b32.xlu0 %v10295, 48
    %v10297 = vpop.permute.xlu0 %10296
    %vm10299 = vcmask 517504
    %10300 = vst.msk [vmem:[#allocation6] sm:$0x3] %vm10299, %v10297
    %s10301 = scalar_lea.vmem [#allocation5], 4
    %v10302 = vld [vmem:[%s10301] sm:$0x1]
    %v10303 = vld [vmem:[%s10301 + $0x10] sm:$0x1]
    %v10306 = vsel %vm10238, %v10302, %v10302
    %v10307 = vsel %vm10240, %v10302, %v10306
    %v10308 = vrot.slane %v10303, 7
    %v10309 = vsel %vm10243, %v10308, %v10307
    %v10310 = vsel %vm10245, %v10308, %v10309
    %v10311 = vsel %vm10247, %v10308, %v10310
    %v10312 = vsel %vm10249, %v10308, %v10311
    %10313 = vrot.lane.b32.xlu0 %v10312, 64
    %v10314 = vpop.permute.xlu0 %10313
    %vm10316 = vcmask 648704
    %10317 = vst.msk [vmem:[#allocation6] sm:$0x3] %vm10316, %v10314
    %v10318 = vld [vmem:[%s10301 + $0x1] sm:$0x1]
    %v10319 = vld [vmem:[%s10301 + $0x11] sm:$0x1]
    %v10322 = vsel %vm10238, %v10318, %v10318
    %v10323 = vsel %vm10240, %v10318, %v10322
    %v10324 = vrot.slane %v10319, 7
    %v10325 = vsel %vm10243, %v10324, %v10323
    %v10326 = vsel %vm10245, %v10324, %v10325
    %v10327 = vsel %vm10247, %v10324, %v10326
    %v10328 = vsel %vm10249, %v10324, %v10327
    %10329 = vrot.lane.b32.xlu0 %v10328, 80
    %v10330 = vpop.permute.xlu0 %10329
    %vm10332 = vcmask 779904
    %10333 = vst.msk [vmem:[#allocation6] sm:$0x3] %vm10332, %v10330
    %v10334 = vld [vmem:[%s10301 + $0x2] sm:$0x1]
    %v10335 = vld [vmem:[%s10301 + $0x12] sm:$0x1]
    %v10338 = vsel %vm10238, %v10334, %v10334
    %v10339 = vsel %vm10240, %v10334, %v10338
    %v10340 = vrot.slane %v10335, 7
    %v10341 = vsel %vm10243, %v10340, %v10339
    %v10342 = vsel %vm10245, %v10340, %v10341
    %v10343 = vsel %vm10247, %v10340, %v10342
    %v10344 = vsel %vm10249, %v10340, %v10343
    %10345 = vrot.lane.b32.xlu0 %v10344, 96
    %v10346 = vpop.permute.xlu0 %10345
    %vm10348 = vcmask 911104
    %10349 = vst.msk [vmem:[#allocation6] sm:$0x3] %vm10348, %v10346
    %v10350 = vld [vmem:[%s10301 + $0x3] sm:$0x1]
    %v10351 = vld [vmem:[%s10301 + $0x13] sm:$0x1]
    %v10354 = vsel %vm10238, %v10350, %v10350
    %v10355 = vsel %vm10240, %v10350, %v10354
    %v10356 = vrot.slane %v10351, 7
    %v10357 = vsel %vm10243, %v10356, %v10355
    %v10358 = vsel %vm10245, %v10356, %v10357
    %v10359 = vsel %vm10247, %v10356, %v10358
    %v10360 = vsel %vm10249, %v10356, %v10359
    %10361 = vrot.lane.b32.xlu0 %v10360, 112
    %v10362 = vpop.permute.xlu0 %10361
    %vm10364 = vcmask 1042304
    %10365 = vst.msk [vmem:[#allocation6] sm:$0x3] %vm10364, %v10362
    %s10366 = scalar_lea.vmem [#allocation5], 8
    %v10367 = vld [vmem:[%s10366] sm:$0x1]
    %v10368 = vld [vmem:[%s10366 + $0x10] sm:$0x1]
    %v10371 = vsel %vm10238, %v10367, %v10367
    %v10372 = vsel %vm10240, %v10367, %v10371
    %v10373 = vrot.slane %v10368, 7
    %v10374 = vsel %vm10243, %v10373, %v10372
    %v10375 = vsel %vm10245, %v10373, %v10374
    %v10376 = vsel %vm10247, %v10373, %v10375
    %v10377 = vsel %vm10249, %v10373, %v10376
    %10379 = vst.msk [vmem:[#allocation6 + $0x2] sm:$0x3] %vm163, %v10377
    %v10380 = vld [vmem:[%s10366 + $0x1] sm:$0x1]
    %v10381 = vld [vmem:[%s10366 + $0x11] sm:$0x1]
    %v10384 = vsel %vm10238, %v10380, %v10380
    %v10385 = vsel %vm10240, %v10380, %v10384
    %v10386 = vrot.slane %v10381, 7
    %v10387 = vsel %vm10243, %v10386, %v10385
    %v10388 = vsel %vm10245, %v10386, %v10387
    %v10389 = vsel %vm10247, %v10386, %v10388
    %v10390 = vsel %vm10249, %v10386, %v10389
    %10391 = vrot.lane.b32.xlu0 %v10390, 16
    %v10392 = vpop.permute.xlu0 %10391
    %10394 = vst.msk [vmem:[#allocation6 + $0x2] sm:$0x3] %vm10267, %v10392
    %v10395 = vld [vmem:[%s10366 + $0x2] sm:$0x1]
    %v10396 = vld [vmem:[%s10366 + $0x12] sm:$0x1]
    %v10399 = vsel %vm10238, %v10395, %v10395
    %v10400 = vsel %vm10240, %v10395, %v10399
    %v10401 = vrot.slane %v10396, 7
    %v10402 = vsel %vm10243, %v10401, %v10400
    %v10403 = vsel %vm10245, %v10401, %v10402
    %v10404 = vsel %vm10247, %v10401, %v10403
    %v10405 = vsel %vm10249, %v10401, %v10404
    %10406 = vrot.lane.b32.xlu0 %v10405, 32
    %v10407 = vpop.permute.xlu0 %10406
    %10409 = vst.msk [vmem:[#allocation6 + $0x2] sm:$0x3] %vm10283, %v10407
    %v10410 = vld [vmem:[%s10366 + $0x3] sm:$0x1]
    %v10411 = vld [vmem:[%s10366 + $0x13] sm:$0x1]
    %v10414 = vsel %vm10238, %v10410, %v10410
    %v10415 = vsel %vm10240, %v10410, %v10414
    %v10416 = vrot.slane %v10411, 7
    %v10417 = vsel %vm10243, %v10416, %v10415
    %v10418 = vsel %vm10245, %v10416, %v10417
    %v10419 = vsel %vm10247, %v10416, %v10418
    %v10420 = vsel %vm10249, %v10416, %v10419
    %10421 = vrot.lane.b32.xlu0 %v10420, 48
    %v10422 = vpop.permute.xlu0 %10421
    %10424 = vst.msk [vmem:[#allocation6 + $0x2] sm:$0x3] %vm10299, %v10422
    %s10425 = scalar_lea.vmem [#allocation5], 12
    %v10426 = vld [vmem:[%s10425] sm:$0x1]
    %v10427 = vld [vmem:[%s10425 + $0x10] sm:$0x1]
    %v10430 = vsel %vm10238, %v10426, %v10426
    %v10431 = vsel %vm10240, %v10426, %v10430
    %v10432 = vrot.slane %v10427, 7
    %v10433 = vsel %vm10243, %v10432, %v10431
    %v10434 = vsel %vm10245, %v10432, %v10433
    %v10435 = vsel %vm10247, %v10432, %v10434
    %v10436 = vsel %vm10249, %v10432, %v10435
    %10437 = vrot.lane.b32.xlu0 %v10436, 64
    %v10438 = vpop.permute.xlu0 %10437
    %10440 = vst.msk [vmem:[#allocation6 + $0x2] sm:$0x3] %vm10316, %v10438
    %v10441 = vld [vmem:[%s10425 + $0x1] sm:$0x1]
    %v10442 = vld [vmem:[%s10425 + $0x11] sm:$0x1]
    %v10445 = vsel %vm10238, %v10441, %v10441
    %v10446 = vsel %vm10240, %v10441, %v10445
    %v10447 = vrot.slane %v10442, 7
    %v10448 = vsel %vm10243, %v10447, %v10446
    %v10449 = vsel %vm10245, %v10447, %v10448
    %v10450 = vsel %vm10247, %v10447, %v10449
    %v10451 = vsel %vm10249, %v10447, %v10450
    %10452 = vrot.lane.b32.xlu0 %v10451, 80
    %v10453 = vpop.permute.xlu0 %10452
    %10455 = vst.msk [vmem:[#allocation6 + $0x2] sm:$0x3] %vm10332, %v10453
    %v10456 = vld [vmem:[%s10425 + $0x2] sm:$0x1]
    %v10457 = vld [vmem:[%s10425 + $0x12] sm:$0x1]
    %v10460 = vsel %vm10238, %v10456, %v10456
    %v10461 = vsel %vm10240, %v10456, %v10460
    %v10462 = vrot.slane %v10457, 7
    %v10463 = vsel %vm10243, %v10462, %v10461
    %v10464 = vsel %vm10245, %v10462, %v10463
    %v10465 = vsel %vm10247, %v10462, %v10464
    %v10466 = vsel %vm10249, %v10462, %v10465
    %10467 = vrot.lane.b32.xlu0 %v10466, 96
    %v10468 = vpop.permute.xlu0 %10467
    %10470 = vst.msk [vmem:[#allocation6 + $0x2] sm:$0x3] %vm10348, %v10468
    %v10471 = vld [vmem:[%s10425 + $0x3] sm:$0x1]
    %v10472 = vld [vmem:[%s10425 + $0x13] sm:$0x1]
    %v10475 = vsel %vm10238, %v10471, %v10471
    %v10476 = vsel %vm10240, %v10471, %v10475
    %v10477 = vrot.slane %v10472, 7
    %v10478 = vsel %vm10243, %v10477, %v10476
    %v10479 = vsel %vm10245, %v10477, %v10478
    %v10480 = vsel %vm10247, %v10477, %v10479
    %v10481 = vsel %vm10249, %v10477, %v10480
    %10482 = vrot.lane.b32.xlu0 %v10481, 112
    %v10483 = vpop.permute.xlu0 %10482
    %10485 = vst.msk [vmem:[#allocation6 + $0x2] sm:$0x3] %vm10364, %v10483
    %v10486 = vld [vmem:[#allocation6] sm:$0xf]
    %v10487 = vld [vmem:[%s9] sm:$0xff]
    %v10488 = vld [vmem:[%s9 + $0x8] sm:$0xff]
    %v10489 = vld [vmem:[%s9 + $0x10] sm:$0xff]
    %v10490 = vld [vmem:[%s9 + $0x18] sm:$0xff]
    %v10491 = vld [vmem:[%s9 + $0x20] sm:$0xff]
    %v10492 = vld [vmem:[%s9 + $0x28] sm:$0xff]
    %v10493 = vld [vmem:[%s9 + $0x30] sm:$0xff]
    %v10494 = vld [vmem:[%s9 + $0x38] sm:$0xff]
    %v10495 = vld [vmem:[%s9 + $0x40] sm:$0xff]
    %v10496 = vld [vmem:[%s9 + $0x48] sm:$0xff]
    %v10497 = vld [vmem:[%s9 + $0x50] sm:$0xff]
    %v10498 = vld [vmem:[%s9 + $0x58] sm:$0xff]
    %v10499 = vld [vmem:[%s9 + $0x60] sm:$0xff]
    %v10500 = vld [vmem:[%s9 + $0x68] sm:$0xff]
    %v10501 = vld [vmem:[%s9 + $0x70] sm:$0xff]
    %v10502 = vld [vmem:[%s9 + $0x78] sm:$0xff]
    %v10503 = vld [vmem:[%s9 + $0x80] sm:$0xff]
    %v10504 = vld [vmem:[%s9 + $0x88] sm:$0xff]
    %v10505 = vld [vmem:[%s9 + $0x90] sm:$0xff]
    %v10506 = vld [vmem:[%s9 + $0x98] sm:$0xff]
    %v10507 = vld [vmem:[%s9 + $0xa0] sm:$0xff]
    %v10508 = vld [vmem:[%s9 + $0xa8] sm:$0xff]
    %v10509 = vld [vmem:[%s9 + $0xb0] sm:$0xff]
    %v10510 = vld [vmem:[%s9 + $0xb8] sm:$0xff]
    %v10511 = vld [vmem:[%s9 + $0xc0] sm:$0xff]
    %v10512 = vld [vmem:[%s9 + $0xc8] sm:$0xff]
    %v10513 = vld [vmem:[%s9 + $0xd0] sm:$0xff]
    %v10514 = vld [vmem:[%s9 + $0xd8] sm:$0xff]
    %v10515 = vld [vmem:[%s9 + $0xe0] sm:$0xff]
    %v10516 = vld [vmem:[%s9 + $0xe8] sm:$0xff]
    %v10517 = vld [vmem:[%s9 + $0xf0] sm:$0xff]
    %v10518 = vld [vmem:[%s9 + $0xf8] sm:$0xff]
    %v10519 = vld [vmem:[%s10] sm:$0x1]
    %v10521 = vperm.slane %v10519, 0
    %10524 = vst [vmem:[#allocation1] ss:$4 sm:$0xff] %v10486
    %v10525 = vld.sshfl [vmem:[#allocation1] sm:$0xff pattern:$0x73625140]
    %v10526 = vld.sshfl [vmem:[#allocation1 + $0x8] sm:$0xff pattern:$0x73625140]
    %10529 = vmatpush.msra.mxu0 %v10502
    %10530 = vmatpush.msra.mxu0 %v10501
    %10531 = vmatpush.msra.mxu0 %v10500
    %10532 = vmatpush.msra.mxu0 %v10499
    %10533 = vmatpush.msra.mxu0 %v10498
    %10534 = vmatpush.msra.mxu0 %v10497
    %10535 = vmatpush.msra.mxu0 %v10496
    %10536 = vmatpush.msra.mxu0 %v10495
    %10537 = vmatpush.msra.mxu0 %v10494
    %10538 = vmatpush.msra.mxu0 %v10493
    %10539 = vmatpush.msra.mxu0 %v10492
    %10540 = vmatpush.msra.mxu0 %v10491
    %10541 = vmatpush.msra.mxu0 %v10490
    %10542 = vmatpush.msra.mxu0 %v10489
    %10543 = vmatpush.msra.mxu0 %v10488
    %10544 = vmatpush.msra.mxu0 %v10487
    %10545 = vmatmul.f32.gmra.mxu0 %v10525
    %v10546 = vpop.f32.mrf.mxu0
    %v10547 = vadd.f32 %v10521, %v10546
    %10548 = vdwg.mxu0
    %10549 = vmatpush.msra.mxu0 %v10518
    %10550 = vmatpush.msra.mxu0 %v10517
    %10551 = vmatpush.msra.mxu0 %v10516
    %10552 = vmatpush.msra.mxu0 %v10515
    %10553 = vmatpush.msra.mxu0 %v10514
    %10554 = vmatpush.msra.mxu0 %v10513
    %10555 = vmatpush.msra.mxu0 %v10512
    %10556 = vmatpush.msra.mxu0 %v10511
    %10557 = vmatpush.msra.mxu0 %v10510
    %10558 = vmatpush.msra.mxu0 %v10509
    %10559 = vmatpush.msra.mxu0 %v10508
    %10560 = vmatpush.msra.mxu0 %v10507
    %10561 = vmatpush.msra.mxu0 %v10506
    %10562 = vmatpush.msra.mxu0 %v10505
    %10563 = vmatpush.msra.mxu0 %v10504
    %10564 = vmatpush.msra.mxu0 %v10503
    %10565 = vmatmul.f32.gmra.mxu0 %v10526
    %v10566 = vpop.f32.mrf.mxu0
    %v10567 = vadd.f32 %v10547, %v10566
    %10568 = vdwg.mxu0
    %v10569 = vmax.f32 %v10567, 0.0
    %v10570 = vld [vmem:[%s11] sm:$0xff]
    %v10571 = vld [vmem:[%s11 + $0x8] sm:$0xff]
    %v10572 = vld [vmem:[%s11 + $0x10] sm:$0xff]
    %v10573 = vld [vmem:[%s11 + $0x18] sm:$0xff]
    %v10574 = vld [vmem:[%s12] sm:$0x1]
    %v10576 = vperm.slane %v10574, 0
    %vm10578 = vcmask 261120
    %v10580 = vsel %vm10578, %v10569, 0
    %10582 = vmatpush.msra.mxu0 0.0
    %10583 = vmatpush.msra.mxu0 0.0
    %10584 = vmatpush.msra.mxu0 0.0
    %10585 = vmatpush.msra.mxu0 0.0
    %10586 = vmatpush.msra.mxu0 0.0
    %10587 = vmatpush.msra.mxu0 0.0
    %10588 = vmatpush.msra.mxu0 0.0
    %10589 = vmatpush.msra.mxu0 0.0
    %10590 = vmatpush.msra.mxu0 0.0
    %10591 = vmatpush.msra.mxu0 0.0
    %10592 = vmatpush.msra.mxu0 0.0
    %10593 = vmatpush.msra.mxu0 0.0
    %10594 = vmatpush.msra.mxu0 %v10573
    %10595 = vmatpush.msra.mxu0 %v10572
    %10596 = vmatpush.msra.mxu0 %v10571
    %10597 = vmatpush.msra.mxu0 %v10570
    %10598 = vmatmul.f32.gmra.mxu0 %v10580
    %v10599 = vpop.f32.mrf.mxu0
    %v10600 = vadd.f32 %v10576, %v10599
    %10601 = vdwg.mxu0
    %v10602 = vmax.f32 %v10600, 0.0
    %v10603 = vmul.f32 %v10602, %v10602
    %vm10604 = vcmask 254976
    %v10605 = vsel %vm10604, %v10603, 0.0
    %10606 = vadd.xlane.f32.xlu0 %v10605
    %v10607 = vpop.xlane.xlu0 %10606
    %v10608 = vrsqrt.pop %v10607
    %v10609 = vmul.f32 %v10608, %v10607
    %v10610 = vmul.f32 %v10609, %v10608
    %v10611 = vmul.f32 0.5, %v10610
    %v10612 = vsub.f32 1.5, %v10611
    %v10613 = vmul.f32 %v10608, %v10612
    %v10614 = vmul.f32 %v10607, %v10613
    %vm10615 = vcmp.eq.f32.partialorder %v10607, inf
    %v10616 = vsel %vm10615, %v10607, %v10614
    %vm10617 = vcmp.eq.f32.partialorder %v10607, 0.0
    %v10618 = vand.u32 %v10607, 2147483648
    %v10619 = vsel %vm10617, %v10618, %v10616
    %v10620 = vadd.f32 %v10619, 1e-12
    %v10621 = vrcp.pop %v10620
    %v10622 = vmul.f32 %v10620, %v10621
    %v10623 = vsub.f32 1.0, %v10622
    %v10624 = vmul.f32 %v10621, %v10623
    %v10625 = vadd.f32 %v10621, %v10624
    %vm10626 = vweird.f32 %v10620
    %vm10627 = vweird.f32 %v10621
    %vm10628 = vmor %vm10626, %vm10627
    %v10629 = vsel %vm10628, %v10621, %v10625
    %v10630 = vand.u32 2147483647, %v10620
    %vm10631 = vcmp.eq.f32.partialorder %v10630, 8.507059e+37
    %v10632 = vand.u32 %v10620, 2147483648
    %v10633 = vor.u32 1.1754944e-38, %v10632
    %v10634 = vsel %vm10631, %v10633, %v10629
    %v10635 = vmul.f32 %v10602, %v10634
    %v10636 = vld [vmem:[%s13] sm:$0xff]
    %v10637 = vld [vmem:[%s13 + $0x8] sm:$0xff]
    %v10638 = vld [vmem:[%s13 + $0x10] sm:$0xff]
    %v10639 = vld [vmem:[%s13 + $0x18] sm:$0xff]
    %v10640 = vld [vmem:[%s14] sm:$0x1]
    %v10642 = vperm.slane %v10640, 0
    %v10645 = vsel %vm10578, %v10635, 0
    %10647 = vmatpush.msra.mxu0 0.0
    %10648 = vmatpush.msra.mxu0 0.0
    %10649 = vmatpush.msra.mxu0 0.0
    %10650 = vmatpush.msra.mxu0 0.0
    %10651 = vmatpush.msra.mxu0 0.0
    %10652 = vmatpush.msra.mxu0 0.0
    %10653 = vmatpush.msra.mxu0 0.0
    %10654 = vmatpush.msra.mxu0 0.0
    %10655 = vmatpush.msra.mxu0 0.0
    %10656 = vmatpush.msra.mxu0 0.0
    %10657 = vmatpush.msra.mxu0 0.0
    %10658 = vmatpush.msra.mxu0 0.0
    %10659 = vmatpush.msra.mxu0 %v10639
    %10660 = vmatpush.msra.mxu0 %v10638
    %10661 = vmatpush.msra.mxu0 %v10637
    %10662 = vmatpush.msra.mxu0 %v10636
    %10663 = vmatmul.f32.gmra.mxu0 %v10645
    %v10664 = vpop.f32.mrf.mxu0
    %v10665 = vadd.f32 %v10642, %v10664
    %10666 = vdwg.mxu0
    %v10667 = vmul.f32 %v10665, %v10665
    %v10668 = vsel %vm10604, %v10667, 0.0
    %10669 = vadd.xlane.f32.xlu0 %v10668
    %v10670 = vpop.xlane.xlu0 %10669
    %v10671 = vrsqrt.pop %v10670
    %v10672 = vmul.f32 %v10671, %v10670
    %v10673 = vmul.f32 %v10672, %v10671
    %v10674 = vmul.f32 0.5, %v10673
    %v10675 = vsub.f32 1.5, %v10674
    %v10676 = vmul.f32 %v10671, %v10675
    %v10677 = vmul.f32 %v10670, %v10676
    %vm10678 = vcmp.eq.f32.partialorder %v10670, inf
    %v10679 = vsel %vm10678, %v10670, %v10677
    %vm10680 = vcmp.eq.f32.partialorder %v10670, 0.0
    %v10681 = vand.u32 %v10670, 2147483648
    %v10682 = vsel %vm10680, %v10681, %v10679
    %v10683 = vadd.f32 %v10682, 1e-12
    %v10684 = vrcp.pop %v10683
    %v10685 = vmul.f32 %v10683, %v10684
    %v10686 = vsub.f32 1.0, %v10685
    %v10687 = vmul.f32 %v10684, %v10686
    %v10688 = vadd.f32 %v10684, %v10687
    %vm10689 = vweird.f32 %v10683
    %vm10690 = vweird.f32 %v10684
    %vm10691 = vmor %vm10689, %vm10690
    %v10692 = vsel %vm10691, %v10684, %v10688
    %v10693 = vand.u32 2147483647, %v10683
    %vm10694 = vcmp.eq.f32.partialorder %v10693, 8.507059e+37
    %v10695 = vand.u32 %v10683, 2147483648
    %v10696 = vor.u32 1.1754944e-38, %v10695
    %v10697 = vsel %vm10694, %v10696, %v10692
    %v10698 = vmul.f32 %v10665, %v10697
    %10699 = vst.msk [vmem:[#allocation7] sm:$0x3] %vm10604, %v10698
    // Predicated region
    $region62: #{encoder_image_full_forward.1} parent=1 // pred_check
      _
    $region63: #{encoder_image_full_forward.1} parent=1 // pred_check_branch
      %10701 = sbr.rel (0) target = $region65
    $region64: #{encoder_image_full_forward.1} parent=1 // pred_region
      %10703 = vsyncadd [#allocation8], 0
      %s10705 = sshll.u32 [#allocation7], 4
      %s10706 = int_to_ptr.vmem [resolvable:$true] %s10705
      %s10707 = sshll.u32 %s15, 4
      %s10708 = int_to_ptr.hbm [resolvable:$true] %s10707
      %10710 = dma.vmem_to_hbm [thread:$0]  %s10706, 32, %s10708, [#allocation8]
    $region65: #{encoder_image_full_forward.1} parent=1 // pred_fallthru
      _
    // Predicated region
    $region66: #{encoder_image_full_forward.1} parent=1 // pred_check
      _
    $region67: #{encoder_image_full_forward.1} parent=1 // pred_check_branch
      %10712 = sbr.rel (0) target = $region69
    $region68: #{encoder_image_full_forward.1} parent=1 // pred_region
      %10714 = dma.done [#allocation8], 32
    $region69: #{encoder_image_full_forward.1} parent=1 // pred_fallthru
      _
    %10715 = vsyncpa [#allocation8], 1

</llo_original>
